<compile_context>
chip_gen: v6e
topology: v6e:2x2x1
jax: 0.10.0
libtpu: 0.0.40
codegen_flags: <defaults>
</compile_context>

<pallas_src>
import functools

import numpy as np

import jax
import jax.numpy as jnp
from jax.experimental import pallas as pl
from jax.experimental.pallas import tpu as pltpu


def _upconv_kernel(x_ref, w_ref, b_ref, o_ref, lhs_ref, *,
                   n_block, inner, Wp, Cin):
    """One grid step: n_block samples -> im2col slab -> one MXU matmul."""
    # im2col: 9 shifted contiguous copies of each sample's flat padded slab.
    # Tap (a, b) of the 3x3 window is simply the flat row-major padded buffer
    # shifted by a*Wp + b rows ("shift trick").  Rows whose shifted read wraps
    # into the next padded row correspond to the 2 pad columns per output row,
    # which the wrapper discards -- the reads stay in bounds by construction
    # (the host pads each sample's slab with slack rows).
    for t in range(9):
        a, b = divmod(t, 3)
        off = a * Wp + b
        for nb in range(n_block):
            lhs_ref[nb * inner:(nb + 1) * inner, t * Cin:(t + 1) * Cin] = \
                x_ref[nb, off:off + inner, :]

    # Single matmul: (n_block*inner, 9*Cin) @ (9*Cin, s*s*Cout), bf16 in,
    # f32 accumulation inside the MXU.  Structural zeros in the folded weights
    # are kept (cheaper than extra passes at this K/N).
    y = jnp.dot(lhs_ref[...], w_ref[...], preferred_element_type=jnp.float32)
    y = y + b_ref[...]                              # bias (loaded once)
    o_ref[...] = jnp.where(y >= 0, y, 0.1 * y)      # LeakyReLU(0.1), lane-dense store


def _pick_n_block(N, inner, n_max=8):
    """Largest divisor of N (<= n_max) whose block keeps (8,*) divisibility."""
    for nb in range(min(N, n_max), 0, -1):
        if N % nb == 0 and (nb == N or (nb * inner) % 8 == 0):
            return nb
    return N


def upconv_forward(x_nchw, w_hwio, bias, scale, n_block_max=8):
    """upconv.forward: nearest-upsample(scale) -> Conv2d(3x3, pad=1) -> LeakyReLU(0.1).

    x_nchw: (N, Cin, Hin, Win) f32, w_hwio: (3, 3, Cin, Cout), bias: (Cout,).
    Returns (N, Cout, Hin*scale, Win*scale) f32 (NCHW, like the PyTorch module).
    """
    s = int(scale)
    assert s == scale and s >= 1, "integer nearest-neighbour scale only"
    N, Cin, Hin, Win = x_nchw.shape
    kh, kw, wcin, Cout = w_hwio.shape
    assert (kh, kw) == (3, 3) and wcin == Cin
    # TODO(synk): generalize the sub-pixel weight folding to kernel_size != 3.

    Wp = Win + 2                       # padded row width of the low-res input
    inner = Hin * Wp                   # matmul M rows per sample (2 pad cols/row kept)
    slab = (Hin + 2) * Wp              # rows of one fully padded flat sample
    off_max = (kh - 1) * Wp + (kw - 1)
    slab_pad = max(slab, off_max + inner)        # slack so every tap slice is in bounds
    slab_pad = (slab_pad + 7) // 8 * 8           # round to sublane multiple

    n_block = _pick_n_block(N, inner, n_block_max)
    grid = N // n_block
    M = n_block * inner
    ncols = s * s * Cout

    # ---- host: fold the 3x3 weights into (9*Cin, s*s*Cout) sub-pixel weights.
    # For output phase (qh, qw):
    #   Wfold[qh,qw,a,b] = sum_{i: (qh+i-1)//s + 1 == a, j: (qw+j-1)//s + 1 == b} W[i,j]
    amap = np.array([[(q + i - 1) // s + 1 for i in range(3)] for q in range(s)])
    sel = (amap[:, :, None] == np.arange(3)[None, None, :]).astype(np.float32)
    w_big = jnp.einsum("qia,pjb,ijcd->abcqpd",
                       jnp.asarray(sel), jnp.asarray(sel),
                       w_hwio.astype(jnp.float32))        # fold in f32
    w_big = w_big.reshape(9 * Cin, ncols).astype(jnp.bfloat16)
    bias_big = jnp.tile(bias.astype(jnp.float32), (s * s,)).reshape(1, ncols)

    # ---- host: flat zero-padded low-res input (a few KB; the upsampled
    # activation is never materialised anywhere).
    x_nhwc = jnp.transpose(x_nchw, (0, 2, 3, 1))
    x_pad = jnp.pad(x_nhwc, ((0, 0), (1, 1), (1, 1), (0, 0)))
    x_flat = x_pad.reshape(N, slab, Cin)
    x_flat = jnp.pad(x_flat, ((0, 0), (0, slab_pad - slab), (0, 0)))
    x_flat = x_flat.astype(jnp.bfloat16)

    kernel = functools.partial(_upconv_kernel, n_block=n_block, inner=inner,
                               Wp=Wp, Cin=Cin)

    cost = pl.CostEstimate(
        flops=2 * N * inner * (9 * Cin) * ncols,
        transcendentals=0,
        bytes_accessed=(x_flat.size * 2 + w_big.size * 2 + bias_big.size * 4
                        + N * inner * ncols * 4),
    )

    out = pl.pallas_call(
        kernel,
        out_shape=jax.ShapeDtypeStruct((N * inner, ncols), jnp.float32),
        grid=(grid,),
        in_specs=[
            pl.BlockSpec((n_block, slab_pad, Cin), lambda n: (n, 0, 0)),
            pl.BlockSpec((9 * Cin, ncols), lambda n: (0, 0)),
            pl.BlockSpec((1, ncols), lambda n: (0, 0)),
        ],
        out_specs=pl.BlockSpec((M, ncols), lambda n: (n, 0)),
        scratch_shapes=[pltpu.VMEM((M, 9 * Cin), jnp.bfloat16)],   # im2col slab
        compiler_params=pltpu.CompilerParams(
            dimension_semantics=("parallel",)),
        cost_estimate=cost,
    )(x_flat, w_big, bias_big)

    # (N*inner, s*s*Cout) -> (N, Cout, Hin*s, Win*s):
    # drop the 2 pad columns per row and interleave the s*s phases (layout only).
    out = out.reshape(N, Hin, Wp, s, s, Cout)[:, :, :Win]
    out = jnp.transpose(out, (0, 5, 1, 3, 2, 4))      # (N, Cout, Hin, qh, Win, qw)
    return out.reshape(N, Cout, Hin * s, Win * s)


# ---------------------------------------------------------------------------
# Pure-JAX reference (nearest upsample + conv), for the correctness check.
# ---------------------------------------------------------------------------
def _ref_forward(x_nchw, w_hwio, bias, scale):
    s = int(scale)
    x = jnp.repeat(jnp.repeat(x_nchw, s, axis=2), s, axis=3)   # nearest upsample
    x = jnp.transpose(x, (0, 2, 3, 1))
    y = jax.lax.conv_general_dilated(
        x, w_hwio, window_strides=(1, 1), padding=[(1, 1), (1, 1)],
        dimension_numbers=("NHWC", "HWIO", "NHWC")) + bias
    y = jnp.where(y >= 0, y, 0.1 * y)                           # LeakyReLU(0.1)
    return jnp.transpose(y, (0, 3, 1, 2))


if __name__ == "__main__":
    key = jax.random.PRNGKey(0)
    kx, kw_, kb = jax.random.split(key, 3)

    # upconv(num_in_layers=32, num_out_layers=32, kernel_size=3, scale=2)
    N, Cin, Hin, Win = 2, 32, 16, 16
    Cout, scale = 32, 2

    x = jax.random.normal(kx, (N, Cin, Hin, Win), jnp.float32)
    w = jax.random.normal(kw_, (3, 3, Cin, Cout), jnp.float32) / jnp.sqrt(9.0 * Cin)
    b = jax.random.normal(kb, (Cout,), jnp.float32) * 0.01

    out = jax.block_until_ready(upconv_forward(x, w, b, scale))
    assert out.shape == (N, Cout, Hin * scale, Win * scale)

    ref = _ref_forward(x, w, b, scale)
    max_err = float(jnp.max(jnp.abs(out - ref)))
    assert jnp.allclose(out, ref, atol=5e-2, rtol=5e-2), f"max abs err {max_err}"

    print("KERNEL_OK")
</pallas_src>

<mosaic_0001>
module attributes {stable_mosaic.version = 11 : i64} {
  func.func @_upconv_kernel(%arg0: i32, %arg1: memref<2x328x32xbf16, #tpu.memory_space<vmem>>, %arg2: memref<288x128xbf16, #tpu.memory_space<vmem>>, %arg3: memref<1x128xf32, #tpu.memory_space<vmem>>, %arg4: memref<576x128xf32, #tpu.memory_space<vmem>>, %arg5: memref<576x288xbf16, #tpu.memory_space<vmem>>) attributes {dimension_semantics = [#tpu.dimension_semantics<parallel>], iteration_bounds = array<i64: 1>, scalar_prefetch = 0 : i64, scratch_operands = 1 : i64, tpu.core_type = #tpu.core_type<tc>, window_params = [{transform_indices = @transform_0, window_bounds = array<i64: 2, 328, 32>}, {pipeline_mode = #tpu.pipeline_mode<synchronous>, transform_indices = @transform_1, window_bounds = array<i64: 288, 128>}, {pipeline_mode = #tpu.pipeline_mode<synchronous>, transform_indices = @transform_2, window_bounds = array<i64: 1, 128>}, {transform_indices = @transform_3, window_bounds = array<i64: 576, 128>}]} {
    %c0 = arith.constant 0 : index
    %c0_0 = arith.constant 0 : index
    %c0_1 = arith.constant 0 : index
    %0 = vector.load %arg1[%c0, %c0_0, %c0_1] : memref<2x328x32xbf16, #tpu.memory_space<vmem>>, vector<1x288x32xbf16>
    %1 = vector.shape_cast %0 : vector<1x288x32xbf16> to vector<288x32xbf16>
    %c0_2 = arith.constant 0 : index
    %c0_3 = arith.constant 0 : index
    %2 = vector.load %arg5[%c0_2, %c0_3] : memref<576x288xbf16, #tpu.memory_space<vmem>>, vector<288x32xbf16>
    tpu.vector_store %arg5[%c0_2, %c0_3], %1 {strides = array<i32>} : memref<576x288xbf16, #tpu.memory_space<vmem>>, vector<288x32xbf16>,
    %c1 = arith.constant 1 : index
    %c0_4 = arith.constant 0 : index
    %c0_5 = arith.constant 0 : index
    %3 = vector.load %arg1[%c1, %c0_4, %c0_5] : memref<2x328x32xbf16, #tpu.memory_space<vmem>>, vector<1x288x32xbf16>
    %4 = vector.shape_cast %3 : vector<1x288x32xbf16> to vector<288x32xbf16>
    %c288 = arith.constant 288 : index
    %c0_6 = arith.constant 0 : index
    %5 = vector.load %arg5[%c288, %c0_6] : memref<576x288xbf16, #tpu.memory_space<vmem>>, vector<288x32xbf16>
    tpu.vector_store %arg5[%c288, %c0_6], %4 {strides = array<i32>} : memref<576x288xbf16, #tpu.memory_space<vmem>>, vector<288x32xbf16>,
    %c0_7 = arith.constant 0 : index
    %c1_8 = arith.constant 1 : index
    %c0_9 = arith.constant 0 : index
    %6 = vector.load %arg1[%c0_7, %c1_8, %c0_9] : memref<2x328x32xbf16, #tpu.memory_space<vmem>>, vector<1x288x32xbf16>
    %7 = vector.shape_cast %6 : vector<1x288x32xbf16> to vector<288x32xbf16>
    %c0_10 = arith.constant 0 : index
    %c32 = arith.constant 32 : index
    %8 = vector.load %arg5[%c0_10, %c32] : memref<576x288xbf16, #tpu.memory_space<vmem>>, vector<288x32xbf16>
    tpu.vector_store %arg5[%c0_10, %c32], %7 {strides = array<i32>} : memref<576x288xbf16, #tpu.memory_space<vmem>>, vector<288x32xbf16>,
    %c1_11 = arith.constant 1 : index
    %c1_12 = arith.constant 1 : index
    %c0_13 = arith.constant 0 : index
    %9 = vector.load %arg1[%c1_11, %c1_12, %c0_13] : memref<2x328x32xbf16, #tpu.memory_space<vmem>>, vector<1x288x32xbf16>
    %10 = vector.shape_cast %9 : vector<1x288x32xbf16> to vector<288x32xbf16>
    %c288_14 = arith.constant 288 : index
    %c32_15 = arith.constant 32 : index
    %11 = vector.load %arg5[%c288_14, %c32_15] : memref<576x288xbf16, #tpu.memory_space<vmem>>, vector<288x32xbf16>
    tpu.vector_store %arg5[%c288_14, %c32_15], %10 {strides = array<i32>} : memref<576x288xbf16, #tpu.memory_space<vmem>>, vector<288x32xbf16>,
    %c0_16 = arith.constant 0 : index
    %c2 = arith.constant 2 : index
    %c0_17 = arith.constant 0 : index
    %12 = vector.load %arg1[%c0_16, %c2, %c0_17] : memref<2x328x32xbf16, #tpu.memory_space<vmem>>, vector<1x288x32xbf16>
    %13 = vector.shape_cast %12 : vector<1x288x32xbf16> to vector<288x32xbf16>
    %c0_18 = arith.constant 0 : index
    %c64 = arith.constant 64 : index
    %14 = vector.load %arg5[%c0_18, %c64] : memref<576x288xbf16, #tpu.memory_space<vmem>>, vector<288x32xbf16>
    tpu.vector_store %arg5[%c0_18, %c64], %13 {strides = array<i32>} : memref<576x288xbf16, #tpu.memory_space<vmem>>, vector<288x32xbf16>,
    %c1_19 = arith.constant 1 : index
    %c2_20 = arith.constant 2 : index
    %c0_21 = arith.constant 0 : index
    %15 = vector.load %arg1[%c1_19, %c2_20, %c0_21] : memref<2x328x32xbf16, #tpu.memory_space<vmem>>, vector<1x288x32xbf16>
    %16 = vector.shape_cast %15 : vector<1x288x32xbf16> to vector<288x32xbf16>
    %c288_22 = arith.constant 288 : index
    %c64_23 = arith.constant 64 : index
    %17 = vector.load %arg5[%c288_22, %c64_23] : memref<576x288xbf16, #tpu.memory_space<vmem>>, vector<288x32xbf16>
    tpu.vector_store %arg5[%c288_22, %c64_23], %16 {strides = array<i32>} : memref<576x288xbf16, #tpu.memory_space<vmem>>, vector<288x32xbf16>,
    %c0_24 = arith.constant 0 : index
    %c18 = arith.constant 18 : index
    %c0_25 = arith.constant 0 : index
    %18 = vector.load %arg1[%c0_24, %c18, %c0_25] : memref<2x328x32xbf16, #tpu.memory_space<vmem>>, vector<1x288x32xbf16>
    %19 = vector.shape_cast %18 : vector<1x288x32xbf16> to vector<288x32xbf16>
    %c0_26 = arith.constant 0 : index
    %c96 = arith.constant 96 : index
    %20 = vector.load %arg5[%c0_26, %c96] : memref<576x288xbf16, #tpu.memory_space<vmem>>, vector<288x32xbf16>
    tpu.vector_store %arg5[%c0_26, %c96], %19 {strides = array<i32>} : memref<576x288xbf16, #tpu.memory_space<vmem>>, vector<288x32xbf16>,
    %c1_27 = arith.constant 1 : index
    %c18_28 = arith.constant 18 : index
    %c0_29 = arith.constant 0 : index
    %21 = vector.load %arg1[%c1_27, %c18_28, %c0_29] : memref<2x328x32xbf16, #tpu.memory_space<vmem>>, vector<1x288x32xbf16>
    %22 = vector.shape_cast %21 : vector<1x288x32xbf16> to vector<288x32xbf16>
    %c288_30 = arith.constant 288 : index
    %c96_31 = arith.constant 96 : index
    %23 = vector.load %arg5[%c288_30, %c96_31] : memref<576x288xbf16, #tpu.memory_space<vmem>>, vector<288x32xbf16>
    tpu.vector_store %arg5[%c288_30, %c96_31], %22 {strides = array<i32>} : memref<576x288xbf16, #tpu.memory_space<vmem>>, vector<288x32xbf16>,
    %c0_32 = arith.constant 0 : index
    %c19 = arith.constant 19 : index
    %c0_33 = arith.constant 0 : index
    %24 = vector.load %arg1[%c0_32, %c19, %c0_33] : memref<2x328x32xbf16, #tpu.memory_space<vmem>>, vector<1x288x32xbf16>
    %25 = vector.shape_cast %24 : vector<1x288x32xbf16> to vector<288x32xbf16>
    %c0_34 = arith.constant 0 : index
    %c128 = arith.constant 128 : index
    %26 = vector.load %arg5[%c0_34, %c128] : memref<576x288xbf16, #tpu.memory_space<vmem>>, vector<288x32xbf16>
    tpu.vector_store %arg5[%c0_34, %c128], %25 {strides = array<i32>} : memref<576x288xbf16, #tpu.memory_space<vmem>>, vector<288x32xbf16>,
    %c1_35 = arith.constant 1 : index
    %c19_36 = arith.constant 19 : index
    %c0_37 = arith.constant 0 : index
    %27 = vector.load %arg1[%c1_35, %c19_36, %c0_37] : memref<2x328x32xbf16, #tpu.memory_space<vmem>>, vector<1x288x32xbf16>
    %28 = vector.shape_cast %27 : vector<1x288x32xbf16> to vector<288x32xbf16>
    %c288_38 = arith.constant 288 : index
    %c128_39 = arith.constant 128 : index
    %29 = vector.load %arg5[%c288_38, %c128_39] : memref<576x288xbf16, #tpu.memory_space<vmem>>, vector<288x32xbf16>
    tpu.vector_store %arg5[%c288_38, %c128_39], %28 {strides = array<i32>} : memref<576x288xbf16, #tpu.memory_space<vmem>>, vector<288x32xbf16>,
    %c0_40 = arith.constant 0 : index
    %c20 = arith.constant 20 : index
    %c0_41 = arith.constant 0 : index
    %30 = vector.load %arg1[%c0_40, %c20, %c0_41] : memref<2x328x32xbf16, #tpu.memory_space<vmem>>, vector<1x288x32xbf16>
    %31 = vector.shape_cast %30 : vector<1x288x32xbf16> to vector<288x32xbf16>
    %c0_42 = arith.constant 0 : index
    %c160 = arith.constant 160 : index
    %32 = vector.load %arg5[%c0_42, %c160] : memref<576x288xbf16, #tpu.memory_space<vmem>>, vector<288x32xbf16>
    tpu.vector_store %arg5[%c0_42, %c160], %31 {strides = array<i32>} : memref<576x288xbf16, #tpu.memory_space<vmem>>, vector<288x32xbf16>,
    %c1_43 = arith.constant 1 : index
    %c20_44 = arith.constant 20 : index
    %c0_45 = arith.constant 0 : index
    %33 = vector.load %arg1[%c1_43, %c20_44, %c0_45] : memref<2x328x32xbf16, #tpu.memory_space<vmem>>, vector<1x288x32xbf16>
    %34 = vector.shape_cast %33 : vector<1x288x32xbf16> to vector<288x32xbf16>
    %c288_46 = arith.constant 288 : index
    %c160_47 = arith.constant 160 : index
    %35 = vector.load %arg5[%c288_46, %c160_47] : memref<576x288xbf16, #tpu.memory_space<vmem>>, vector<288x32xbf16>
    tpu.vector_store %arg5[%c288_46, %c160_47], %34 {strides = array<i32>} : memref<576x288xbf16, #tpu.memory_space<vmem>>, vector<288x32xbf16>,
    %c0_48 = arith.constant 0 : index
    %c36 = arith.constant 36 : index
    %c0_49 = arith.constant 0 : index
    %36 = vector.load %arg1[%c0_48, %c36, %c0_49] : memref<2x328x32xbf16, #tpu.memory_space<vmem>>, vector<1x288x32xbf16>
    %37 = vector.shape_cast %36 : vector<1x288x32xbf16> to vector<288x32xbf16>
    %c0_50 = arith.constant 0 : index
    %c192 = arith.constant 192 : index
    %38 = vector.load %arg5[%c0_50, %c192] : memref<576x288xbf16, #tpu.memory_space<vmem>>, vector<288x32xbf16>
    tpu.vector_store %arg5[%c0_50, %c192], %37 {strides = array<i32>} : memref<576x288xbf16, #tpu.memory_space<vmem>>, vector<288x32xbf16>,
    %c1_51 = arith.constant 1 : index
    %c36_52 = arith.constant 36 : index
    %c0_53 = arith.constant 0 : index
    %39 = vector.load %arg1[%c1_51, %c36_52, %c0_53] : memref<2x328x32xbf16, #tpu.memory_space<vmem>>, vector<1x288x32xbf16>
    %40 = vector.shape_cast %39 : vector<1x288x32xbf16> to vector<288x32xbf16>
    %c288_54 = arith.constant 288 : index
    %c192_55 = arith.constant 192 : index
    %41 = vector.load %arg5[%c288_54, %c192_55] : memref<576x288xbf16, #tpu.memory_space<vmem>>, vector<288x32xbf16>
    tpu.vector_store %arg5[%c288_54, %c192_55], %40 {strides = array<i32>} : memref<576x288xbf16, #tpu.memory_space<vmem>>, vector<288x32xbf16>,
    %c0_56 = arith.constant 0 : index
    %c37 = arith.constant 37 : index
    %c0_57 = arith.constant 0 : index
    %42 = vector.load %arg1[%c0_56, %c37, %c0_57] : memref<2x328x32xbf16, #tpu.memory_space<vmem>>, vector<1x288x32xbf16>
    %43 = vector.shape_cast %42 : vector<1x288x32xbf16> to vector<288x32xbf16>
    %c0_58 = arith.constant 0 : index
    %c224 = arith.constant 224 : index
    %44 = vector.load %arg5[%c0_58, %c224] : memref<576x288xbf16, #tpu.memory_space<vmem>>, vector<288x32xbf16>
    tpu.vector_store %arg5[%c0_58, %c224], %43 {strides = array<i32>} : memref<576x288xbf16, #tpu.memory_space<vmem>>, vector<288x32xbf16>,
    %c1_59 = arith.constant 1 : index
    %c37_60 = arith.constant 37 : index
    %c0_61 = arith.constant 0 : index
    %45 = vector.load %arg1[%c1_59, %c37_60, %c0_61] : memref<2x328x32xbf16, #tpu.memory_space<vmem>>, vector<1x288x32xbf16>
    %46 = vector.shape_cast %45 : vector<1x288x32xbf16> to vector<288x32xbf16>
    %c288_62 = arith.constant 288 : index
    %c224_63 = arith.constant 224 : index
    %47 = vector.load %arg5[%c288_62, %c224_63] : memref<576x288xbf16, #tpu.memory_space<vmem>>, vector<288x32xbf16>
    tpu.vector_store %arg5[%c288_62, %c224_63], %46 {strides = array<i32>} : memref<576x288xbf16, #tpu.memory_space<vmem>>, vector<288x32xbf16>,
    %c0_64 = arith.constant 0 : index
    %c38 = arith.constant 38 : index
    %c0_65 = arith.constant 0 : index
    %48 = vector.load %arg1[%c0_64, %c38, %c0_65] : memref<2x328x32xbf16, #tpu.memory_space<vmem>>, vector<1x288x32xbf16>
    %49 = vector.shape_cast %48 : vector<1x288x32xbf16> to vector<288x32xbf16>
    %c0_66 = arith.constant 0 : index
    %c256 = arith.constant 256 : index
    %50 = vector.load %arg5[%c0_66, %c256] : memref<576x288xbf16, #tpu.memory_space<vmem>>, vector<288x32xbf16>
    tpu.vector_store %arg5[%c0_66, %c256], %49 {strides = array<i32>} : memref<576x288xbf16, #tpu.memory_space<vmem>>, vector<288x32xbf16>,
    %c1_67 = arith.constant 1 : index
    %c38_68 = arith.constant 38 : index
    %c0_69 = arith.constant 0 : index
    %51 = vector.load %arg1[%c1_67, %c38_68, %c0_69] : memref<2x328x32xbf16, #tpu.memory_space<vmem>>, vector<1x288x32xbf16>
    %52 = vector.shape_cast %51 : vector<1x288x32xbf16> to vector<288x32xbf16>
    %c288_70 = arith.constant 288 : index
    %c256_71 = arith.constant 256 : index
    %53 = vector.load %arg5[%c288_70, %c256_71] : memref<576x288xbf16, #tpu.memory_space<vmem>>, vector<288x32xbf16>
    tpu.vector_store %arg5[%c288_70, %c256_71], %52 {strides = array<i32>} : memref<576x288xbf16, #tpu.memory_space<vmem>>, vector<288x32xbf16>,
    %c0_72 = arith.constant 0 : index
    %c0_73 = arith.constant 0 : index
    %54 = vector.load %arg5[%c0_72, %c0_73] : memref<576x288xbf16, #tpu.memory_space<vmem>>, vector<576x288xbf16>
    %c0_74 = arith.constant 0 : index
    %c0_75 = arith.constant 0 : index
    %55 = vector.load %arg2[%c0_74, %c0_75] : memref<288x128xbf16, #tpu.memory_space<vmem>>, vector<288x128xbf16>
    %cst = arith.constant dense<0.000000e+00> : vector<576x128xf32>
    %56 = tpu.matmul %54, %55, %cst {dimension_numbers = #tpu.dot_dimension_numbers<[1], [0], [0], [1], [0, 0, 1, 1], [], []>} : vector<576x288xbf16>, vector<288x128xbf16>, vector<576x128xf32> -> vector<576x128xf32>
    %c0_76 = arith.constant 0 : index
    %c0_77 = arith.constant 0 : index
    %57 = vector.load %arg3[%c0_76, %c0_77] : memref<1x128xf32, #tpu.memory_space<vmem>>, vector<1x128xf32>
    %58 = vector.broadcast %57 : vector<1x128xf32> to vector<576x128xf32>
    %59 = arith.addf %56, %58 : vector<576x128xf32>
    %cst_78 = arith.constant 0.000000e+00 : f32
    %60 = vector.broadcast %cst_78 : f32 to vector<576x128xf32>
    %61 = arith.cmpf oge, %59, %60 : vector<576x128xf32>
    %cst_79 = arith.constant 1.000000e-01 : f32
    %62 = vector.broadcast %cst_79 : f32 to vector<576x128xf32>
    %63 = arith.mulf %62, %59 : vector<576x128xf32>
    %64 = arith.select %61, %59, %63 : vector<576x128xi1>, vector<576x128xf32>
    %c0_80 = arith.constant 0 : index
    %c0_81 = arith.constant 0 : index
    %65 = vector.load %arg4[%c0_80, %c0_81] : memref<576x128xf32, #tpu.memory_space<vmem>>, vector<576x128xf32>
    tpu.vector_store %arg4[%c0_80, %c0_81], %64 {strides = array<i32>} : memref<576x128xf32, #tpu.memory_space<vmem>>, vector<576x128xf32>,
    return
  }
  func.func @transform_0(%arg0: i32) -> (i32, i32, i32) {
    %c0_i32 = arith.constant 0 : i32
    %c0_i32_0 = arith.constant 0 : i32
    %c0_i32_1 = arith.constant 0 : i32
    return %arg0, %c0_i32, %c0_i32_0 : i32, i32, i32
  }
  func.func @transform_1(%arg0: i32) -> (i32, i32) {
    %c0_i32 = arith.constant 0 : i32
    %c0_i32_0 = arith.constant 0 : i32
    %c0_i32_1 = arith.constant 0 : i32
    return %c0_i32, %c0_i32_0 : i32, i32
  }
  func.func @transform_2(%arg0: i32) -> (i32, i32) {
    %c0_i32 = arith.constant 0 : i32
    %c0_i32_0 = arith.constant 0 : i32
    %c0_i32_1 = arith.constant 0 : i32
    return %c0_i32, %c0_i32_0 : i32, i32
  }
  func.func @transform_3(%arg0: i32) -> (i32, i32) {
    %c0_i32 = arith.constant 0 : i32
    %c0_i32_0 = arith.constant 0 : i32
    return %arg0, %c0_i32 : i32, i32
  }
}

</mosaic_0001>

<llo_original>
// kernel: tpu_custom_call.1
$region0: #{tpu_custom_call.1}
  #allocation0 [shape = 'u32[]', space=smem, size = 0x4, offset = 0x4, fixed_abs, tag = 'smem constant byte address 0x4 - core index']
  #allocation1 [shape = 'u32[144,128]{1,0:T(1,128)}', space=vmem, size = 0x12000, scoped, tag = 'internal scratch']
  #allocation2 [shape = 'bf16[576,288]{1,0:T(8,128)(2,1)}', space=vmem, size = 0x6c000, scoped, tag = 'scratch operand']
  %s0 = inlined_call_operand.vmem [shape: bf16[2,328,32], index: 0, kind: input, shape index: {}]
  %s1 = inlined_call_operand.vmem [shape: bf16[288,128], index: 1, kind: input, shape index: {}]
  %s2 = inlined_call_operand.vmem [shape: f32[1,128], index: 2, kind: input, shape index: {}]
  %s3 = inlined_call_operand.hbm [shape: f32[576,128], index: 3, kind: output, shape index: {}]
  %s4 = sld [smem:[#allocation0]]
  $region22: #{tpu_custom_call.1} parent=0
    _
  %s6 = ssub.s32 1, %s4
  %s7 = scalar_select 0, %s6, %s4
  $region1: #{tpu_custom_call.1} parent=0
    #allocation3 [shape = 'u8[294912]{0}', space=vmem, size = 0x48000, scoped, tag = 'output window, operand 0, single buffered']
    #allocation4 [shape = 's32[1]{0}', space=sflag, size = 0x4, scoped, tag = 'scoped memory for tpu_custom_call.1']
    %8 = vsyncpa [#allocation4], 0
    // Predicated region
    $region2: #{tpu_custom_call.1} parent=1 // pred_check
      _
    $region3: #{tpu_custom_call.1} parent=1 // pred_check_branch
      %10 = sbr.rel (0) target = $region5
    $region4: #{tpu_custom_call.1} parent=1 // pred_region
      _
    $region5: #{tpu_custom_call.1} parent=1 // pred_fallthru
      _
    // Predicated region
    $region6: #{tpu_custom_call.1} parent=1 // pred_check
      _
    $region7: #{tpu_custom_call.1} parent=1 // pred_check_branch
      %12 = sbr.rel (0) target = $region9
    $region8: #{tpu_custom_call.1} parent=1 // pred_region
      _
    $region9: #{tpu_custom_call.1} parent=1 // pred_fallthru
      _
    // Predicated region
    $region10: #{tpu_custom_call.1} parent=1 // pred_check
      _
    $region11: #{tpu_custom_call.1} parent=1 // pred_check_branch
      %14 = sbr.rel (0) target = $region13
    $region12: #{tpu_custom_call.1} parent=1 // pred_region
      _
    $region13: #{tpu_custom_call.1} parent=1 // pred_fallthru
      _
    %v16 = vld [vmem:[%s0] sm:$0xf]
    %v17 = vld [vmem:[%s0 + $0x4] sm:$0xf]
    %v18 = vld [vmem:[%s0 + $0x8] sm:$0xf]
    %v19 = vld [vmem:[%s0 + $0xc] sm:$0xf]
    %v20 = vld [vmem:[%s0 + $0x10] sm:$0xf]
    %v21 = vld [vmem:[%s0 + $0x14] sm:$0xf]
    %v22 = vld [vmem:[%s0 + $0x18] sm:$0xf]
    %v23 = vld [vmem:[%s0 + $0x1c] sm:$0xf]
    %v24 = vld [vmem:[%s0 + $0x20] sm:$0xf]
    %v25 = vld [vmem:[%s0 + $0x24] sm:$0xf]
    %v26 = vld [vmem:[%s0 + $0x28] sm:$0xf]
    %v27 = vld [vmem:[%s0 + $0x2c] sm:$0xf]
    %v28 = vld [vmem:[%s0 + $0x30] sm:$0xf]
    %v29 = vld [vmem:[%s0 + $0x34] sm:$0xf]
    %v30 = vld [vmem:[%s0 + $0x38] sm:$0xf]
    %v31 = vld [vmem:[%s0 + $0x3c] sm:$0xf]
    %v32 = vld [vmem:[%s0 + $0x40] sm:$0xf]
    %v33 = vld [vmem:[%s0 + $0x44] sm:$0xf]
    %v34 = vld [vmem:[%s0 + $0x48] sm:$0xf]
    %v35 = vld [vmem:[%s0 + $0x4c] sm:$0xf]
    %v36 = vld [vmem:[%s0 + $0x50] sm:$0xf]
    %v37 = vld [vmem:[%s0 + $0x54] sm:$0xf]
    %v38 = vld [vmem:[%s0 + $0x58] sm:$0xf]
    %v39 = vld [vmem:[%s0 + $0x5c] sm:$0xf]
    %v40 = vld [vmem:[%s0 + $0x60] sm:$0xf]
    %v41 = vld [vmem:[%s0 + $0x64] sm:$0xf]
    %v42 = vld [vmem:[%s0 + $0x68] sm:$0xf]
    %v43 = vld [vmem:[%s0 + $0x6c] sm:$0xf]
    %v44 = vld [vmem:[%s0 + $0x70] sm:$0xf]
    %v45 = vld [vmem:[%s0 + $0x74] sm:$0xf]
    %v46 = vld [vmem:[%s0 + $0x78] sm:$0xf]
    %v47 = vld [vmem:[%s0 + $0x7c] sm:$0xf]
    %v48 = vld [vmem:[%s0 + $0x80] sm:$0xf]
    %v49 = vld [vmem:[%s0 + $0x84] sm:$0xf]
    %v50 = vld [vmem:[%s0 + $0x88] sm:$0xf]
    %v51 = vld [vmem:[%s0 + $0x8c] sm:$0xf]
    %vm52 = vcmask 257024
    %53 = vst.msk [vmem:[#allocation2] sm:$0xf] %vm52, %v16
    %54 = vst.msk [vmem:[#allocation2 + $0xc] sm:$0xf] %vm52, %v17
    %55 = vst.msk [vmem:[#allocation2 + $0x18] sm:$0xf] %vm52, %v18
    %56 = vst.msk [vmem:[#allocation2 + $0x24] sm:$0xf] %vm52, %v19
    %57 = vst.msk [vmem:[#allocation2 + $0x30] sm:$0xf] %vm52, %v20
    %58 = vst.msk [vmem:[#allocation2 + $0x3c] sm:$0xf] %vm52, %v21
    %59 = vst.msk [vmem:[#allocation2 + $0x48] sm:$0xf] %vm52, %v22
    %60 = vst.msk [vmem:[#allocation2 + $0x54] sm:$0xf] %vm52, %v23
    %61 = vst.msk [vmem:[#allocation2 + $0x60] sm:$0xf] %vm52, %v24
    %62 = vst.msk [vmem:[#allocation2 + $0x6c] sm:$0xf] %vm52, %v25
    %63 = vst.msk [vmem:[#allocation2 + $0x78] sm:$0xf] %vm52, %v26
    %64 = vst.msk [vmem:[#allocation2 + $0x84] sm:$0xf] %vm52, %v27
    %65 = vst.msk [vmem:[#allocation2 + $0x90] sm:$0xf] %vm52, %v28
    %66 = vst.msk [vmem:[#allocation2 + $0x9c] sm:$0xf] %vm52, %v29
    %67 = vst.msk [vmem:[#allocation2 + $0xa8] sm:$0xf] %vm52, %v30
    %68 = vst.msk [vmem:[#allocation2 + $0xb4] sm:$0xf] %vm52, %v31
    %69 = vst.msk [vmem:[#allocation2 + $0xc0] sm:$0xf] %vm52, %v32
    %70 = vst.msk [vmem:[#allocation2 + $0xcc] sm:$0xf] %vm52, %v33
    %71 = vst.msk [vmem:[#allocation2 + $0xd8] sm:$0xf] %vm52, %v34
    %72 = vst.msk [vmem:[#allocation2 + $0xe4] sm:$0xf] %vm52, %v35
    %73 = vst.msk [vmem:[#allocation2 + $0xf0] sm:$0xf] %vm52, %v36
    %74 = vst.msk [vmem:[#allocation2 + $0xfc] sm:$0xf] %vm52, %v37
    %75 = vst.msk [vmem:[#allocation2 + $0x108] sm:$0xf] %vm52, %v38
    %76 = vst.msk [vmem:[#allocation2 + $0x114] sm:$0xf] %vm52, %v39
    %77 = vst.msk [vmem:[#allocation2 + $0x120] sm:$0xf] %vm52, %v40
    %78 = vst.msk [vmem:[#allocation2 + $0x12c] sm:$0xf] %vm52, %v41
    %79 = vst.msk [vmem:[#allocation2 + $0x138] sm:$0xf] %vm52, %v42
    %80 = vst.msk [vmem:[#allocation2 + $0x144] sm:$0xf] %vm52, %v43
    %81 = vst.msk [vmem:[#allocation2 + $0x150] sm:$0xf] %vm52, %v44
    %82 = vst.msk [vmem:[#allocation2 + $0x15c] sm:$0xf] %vm52, %v45
    %83 = vst.msk [vmem:[#allocation2 + $0x168] sm:$0xf] %vm52, %v46
    %84 = vst.msk [vmem:[#allocation2 + $0x174] sm:$0xf] %vm52, %v47
    %85 = vst.msk [vmem:[#allocation2 + $0x180] sm:$0xf] %vm52, %v48
    %86 = vst.msk [vmem:[#allocation2 + $0x18c] sm:$0xf] %vm52, %v49
    %87 = vst.msk [vmem:[#allocation2 + $0x198] sm:$0xf] %vm52, %v50
    %88 = vst.msk [vmem:[#allocation2 + $0x1a4] sm:$0xf] %vm52, %v51
    %s89 = scalar_lea.vmem %s0, 164
    %v90 = vld [vmem:[%s89] sm:$0xf]
    %v91 = vld [vmem:[%s89 + $0x4] sm:$0xf]
    %v92 = vld [vmem:[%s89 + $0x8] sm:$0xf]
    %v93 = vld [vmem:[%s89 + $0xc] sm:$0xf]
    %v94 = vld [vmem:[%s89 + $0x10] sm:$0xf]
    %v95 = vld [vmem:[%s89 + $0x14] sm:$0xf]
    %v96 = vld [vmem:[%s89 + $0x18] sm:$0xf]
    %v97 = vld [vmem:[%s89 + $0x1c] sm:$0xf]
    %v98 = vld [vmem:[%s89 + $0x20] sm:$0xf]
    %v99 = vld [vmem:[%s89 + $0x24] sm:$0xf]
    %v100 = vld [vmem:[%s89 + $0x28] sm:$0xf]
    %v101 = vld [vmem:[%s89 + $0x2c] sm:$0xf]
    %v102 = vld [vmem:[%s89 + $0x30] sm:$0xf]
    %v103 = vld [vmem:[%s89 + $0x34] sm:$0xf]
    %v104 = vld [vmem:[%s89 + $0x38] sm:$0xf]
    %v105 = vld [vmem:[%s89 + $0x3c] sm:$0xf]
    %v106 = vld [vmem:[%s89 + $0x40] sm:$0xf]
    %v107 = vld [vmem:[%s89 + $0x44] sm:$0xf]
    %v108 = vld [vmem:[%s89 + $0x48] sm:$0xf]
    %v109 = vld [vmem:[%s89 + $0x4c] sm:$0xf]
    %v110 = vld [vmem:[%s89 + $0x50] sm:$0xf]
    %v111 = vld [vmem:[%s89 + $0x54] sm:$0xf]
    %v112 = vld [vmem:[%s89 + $0x58] sm:$0xf]
    %v113 = vld [vmem:[%s89 + $0x5c] sm:$0xf]
    %v114 = vld [vmem:[%s89 + $0x60] sm:$0xf]
    %v115 = vld [vmem:[%s89 + $0x64] sm:$0xf]
    %v116 = vld [vmem:[%s89 + $0x68] sm:$0xf]
    %v117 = vld [vmem:[%s89 + $0x6c] sm:$0xf]
    %v118 = vld [vmem:[%s89 + $0x70] sm:$0xf]
    %v119 = vld [vmem:[%s89 + $0x74] sm:$0xf]
    %v120 = vld [vmem:[%s89 + $0x78] sm:$0xf]
    %v121 = vld [vmem:[%s89 + $0x7c] sm:$0xf]
    %v122 = vld [vmem:[%s89 + $0x80] sm:$0xf]
    %v123 = vld [vmem:[%s89 + $0x84] sm:$0xf]
    %v124 = vld [vmem:[%s89 + $0x88] sm:$0xf]
    %v125 = vld [vmem:[%s89 + $0x8c] sm:$0xf]
    %126 = vst.msk [vmem:[#allocation2 + $0x1b0] sm:$0xf] %vm52, %v90
    %127 = vst.msk [vmem:[#allocation2 + $0x1bc] sm:$0xf] %vm52, %v91
    %128 = vst.msk [vmem:[#allocation2 + $0x1c8] sm:$0xf] %vm52, %v92
    %129 = vst.msk [vmem:[#allocation2 + $0x1d4] sm:$0xf] %vm52, %v93
    %130 = vst.msk [vmem:[#allocation2 + $0x1e0] sm:$0xf] %vm52, %v94
    %131 = vst.msk [vmem:[#allocation2 + $0x1ec] sm:$0xf] %vm52, %v95
    %132 = vst.msk [vmem:[#allocation2 + $0x1f8] sm:$0xf] %vm52, %v96
    %133 = vst.msk [vmem:[#allocation2 + $0x204] sm:$0xf] %vm52, %v97
    %134 = vst.msk [vmem:[#allocation2 + $0x210] sm:$0xf] %vm52, %v98
    %135 = vst.msk [vmem:[#allocation2 + $0x21c] sm:$0xf] %vm52, %v99
    %136 = vst.msk [vmem:[#allocation2 + $0x228] sm:$0xf] %vm52, %v100
    %137 = vst.msk [vmem:[#allocation2 + $0x234] sm:$0xf] %vm52, %v101
    %138 = vst.msk [vmem:[#allocation2 + $0x240] sm:$0xf] %vm52, %v102
    %139 = vst.msk [vmem:[#allocation2 + $0x24c] sm:$0xf] %vm52, %v103
    %140 = vst.msk [vmem:[#allocation2 + $0x258] sm:$0xf] %vm52, %v104
    %141 = vst.msk [vmem:[#allocation2 + $0x264] sm:$0xf] %vm52, %v105
    %142 = vst.msk [vmem:[#allocation2 + $0x270] sm:$0xf] %vm52, %v106
    %143 = vst.msk [vmem:[#allocation2 + $0x27c] sm:$0xf] %vm52, %v107
    %144 = vst.msk [vmem:[#allocation2 + $0x288] sm:$0xf] %vm52, %v108
    %145 = vst.msk [vmem:[#allocation2 + $0x294] sm:$0xf] %vm52, %v109
    %146 = vst.msk [vmem:[#allocation2 + $0x2a0] sm:$0xf] %vm52, %v110
    %147 = vst.msk [vmem:[#allocation2 + $0x2ac] sm:$0xf] %vm52, %v111
    %148 = vst.msk [vmem:[#allocation2 + $0x2b8] sm:$0xf] %vm52, %v112
    %149 = vst.msk [vmem:[#allocation2 + $0x2c4] sm:$0xf] %vm52, %v113
    %150 = vst.msk [vmem:[#allocation2 + $0x2d0] sm:$0xf] %vm52, %v114
    %151 = vst.msk [vmem:[#allocation2 + $0x2dc] sm:$0xf] %vm52, %v115
    %152 = vst.msk [vmem:[#allocation2 + $0x2e8] sm:$0xf] %vm52, %v116
    %153 = vst.msk [vmem:[#allocation2 + $0x2f4] sm:$0xf] %vm52, %v117
    %154 = vst.msk [vmem:[#allocation2 + $0x300] sm:$0xf] %vm52, %v118
    %155 = vst.msk [vmem:[#allocation2 + $0x30c] sm:$0xf] %vm52, %v119
    %156 = vst.msk [vmem:[#allocation2 + $0x318] sm:$0xf] %vm52, %v120
    %157 = vst.msk [vmem:[#allocation2 + $0x324] sm:$0xf] %vm52, %v121
    %158 = vst.msk [vmem:[#allocation2 + $0x330] sm:$0xf] %vm52, %v122
    %159 = vst.msk [vmem:[#allocation2 + $0x33c] sm:$0xf] %vm52, %v123
    %160 = vst.msk [vmem:[#allocation2 + $0x348] sm:$0xf] %vm52, %v124
    %161 = vst.msk [vmem:[#allocation2 + $0x354] sm:$0xf] %vm52, %v125
    %v162 = vld [vmem:[%s0] sm:$0xf]
    %v163 = vld [vmem:[%s0 + $0x4] sm:$0xf]
    %v164 = vld [vmem:[%s0 + $0x8] sm:$0xf]
    %v165 = vld [vmem:[%s0 + $0xc] sm:$0xf]
    %v166 = vld [vmem:[%s0 + $0x10] sm:$0xf]
    %v167 = vld [vmem:[%s0 + $0x14] sm:$0xf]
    %v168 = vld [vmem:[%s0 + $0x18] sm:$0xf]
    %v169 = vld [vmem:[%s0 + $0x1c] sm:$0xf]
    %v170 = vld [vmem:[%s0 + $0x20] sm:$0xf]
    %v171 = vld [vmem:[%s0 + $0x24] sm:$0xf]
    %v172 = vld [vmem:[%s0 + $0x28] sm:$0xf]
    %v173 = vld [vmem:[%s0 + $0x2c] sm:$0xf]
    %v174 = vld [vmem:[%s0 + $0x30] sm:$0xf]
    %v175 = vld [vmem:[%s0 + $0x34] sm:$0xf]
    %v176 = vld [vmem:[%s0 + $0x38] sm:$0xf]
    %v177 = vld [vmem:[%s0 + $0x3c] sm:$0xf]
    %v178 = vld [vmem:[%s0 + $0x40] sm:$0xf]
    %v179 = vld [vmem:[%s0 + $0x44] sm:$0xf]
    %v180 = vld [vmem:[%s0 + $0x48] sm:$0xf]
    %v181 = vld [vmem:[%s0 + $0x4c] sm:$0xf]
    %v182 = vld [vmem:[%s0 + $0x50] sm:$0xf]
    %v183 = vld [vmem:[%s0 + $0x54] sm:$0xf]
    %v184 = vld [vmem:[%s0 + $0x58] sm:$0xf]
    %v185 = vld [vmem:[%s0 + $0x5c] sm:$0xf]
    %v186 = vld [vmem:[%s0 + $0x60] sm:$0xf]
    %v187 = vld [vmem:[%s0 + $0x64] sm:$0xf]
    %v188 = vld [vmem:[%s0 + $0x68] sm:$0xf]
    %v189 = vld [vmem:[%s0 + $0x6c] sm:$0xf]
    %v190 = vld [vmem:[%s0 + $0x70] sm:$0xf]
    %v191 = vld [vmem:[%s0 + $0x74] sm:$0xf]
    %v192 = vld [vmem:[%s0 + $0x78] sm:$0xf]
    %v193 = vld [vmem:[%s0 + $0x7c] sm:$0xf]
    %v194 = vld [vmem:[%s0 + $0x80] sm:$0xf]
    %v195 = vld [vmem:[%s0 + $0x84] sm:$0xf]
    %v196 = vld [vmem:[%s0 + $0x88] sm:$0xf]
    %v197 = vld [vmem:[%s0 + $0x8c] sm:$0xf]
    %v198 = vld [vmem:[%s0 + $0x90] sm:$0x1]
    %vm199 = vsmask.f32 3328
    %vm200 = vsmask.f32 7440
    %vm201 = vmor %vm199, %vm200
    %v203 = vshrl.u32 %v162, 16
    %v205 = vrot.slane %v203, 4
    %v206 = vshll.u32 %v162, 16
    %v208 = vrot.slane %v206, 5
    %v209 = vor.u32 %v205, %v208
    %v210 = vrot.slane %v209, 4
    %v212 = vshll.u32 %v163, 16
    %v214 = vrot.slane %v212, 5
    %v215 = vsel %vm201, %v210, %v214
    %v216 = vshrl.u32 %v163, 16
    %v218 = vrot.slane %v216, 4
    %v219 = vor.u32 %v218, %v214
    %v220 = vrot.slane %v219, 4
    %v222 = vshll.u32 %v164, 16
    %v224 = vrot.slane %v222, 5
    %v225 = vsel %vm201, %v220, %v224
    %v226 = vshrl.u32 %v164, 16
    %v228 = vrot.slane %v226, 4
    %v229 = vor.u32 %v228, %v224
    %v230 = vrot.slane %v229, 4
    %v232 = vshll.u32 %v165, 16
    %v234 = vrot.slane %v232, 5
    %v235 = vsel %vm201, %v230, %v234
    %v236 = vshrl.u32 %v165, 16
    %v238 = vrot.slane %v236, 4
    %v239 = vor.u32 %v238, %v234
    %v240 = vrot.slane %v239, 4
    %v242 = vshll.u32 %v166, 16
    %v244 = vrot.slane %v242, 5
    %v245 = vsel %vm201, %v240, %v244
    %v246 = vshrl.u32 %v166, 16
    %v248 = vrot.slane %v246, 4
    %v249 = vor.u32 %v248, %v244
    %v250 = vrot.slane %v249, 4
    %v252 = vshll.u32 %v167, 16
    %v254 = vrot.slane %v252, 5
    %v255 = vsel %vm201, %v250, %v254
    %v256 = vshrl.u32 %v167, 16
    %v258 = vrot.slane %v256, 4
    %v259 = vor.u32 %v258, %v254
    %v260 = vrot.slane %v259, 4
    %v262 = vshll.u32 %v168, 16
    %v264 = vrot.slane %v262, 5
    %v265 = vsel %vm201, %v260, %v264
    %v266 = vshrl.u32 %v168, 16
    %v268 = vrot.slane %v266, 4
    %v269 = vor.u32 %v268, %v264
    %v270 = vrot.slane %v269, 4
    %v272 = vshll.u32 %v169, 16
    %v274 = vrot.slane %v272, 5
    %v275 = vsel %vm201, %v270, %v274
    %v276 = vshrl.u32 %v169, 16
    %v278 = vrot.slane %v276, 4
    %v279 = vor.u32 %v278, %v274
    %v280 = vrot.slane %v279, 4
    %v282 = vshll.u32 %v170, 16
    %v284 = vrot.slane %v282, 5
    %v285 = vsel %vm201, %v280, %v284
    %v286 = vshrl.u32 %v170, 16
    %v288 = vrot.slane %v286, 4
    %v289 = vor.u32 %v288, %v284
    %v290 = vrot.slane %v289, 4
    %v292 = vshll.u32 %v171, 16
    %v294 = vrot.slane %v292, 5
    %v295 = vsel %vm201, %v290, %v294
    %v296 = vshrl.u32 %v171, 16
    %v298 = vrot.slane %v296, 4
    %v299 = vor.u32 %v298, %v294
    %v300 = vrot.slane %v299, 4
    %v302 = vshll.u32 %v172, 16
    %v304 = vrot.slane %v302, 5
    %v305 = vsel %vm201, %v300, %v304
    %v306 = vshrl.u32 %v172, 16
    %v308 = vrot.slane %v306, 4
    %v309 = vor.u32 %v308, %v304
    %v310 = vrot.slane %v309, 4
    %v312 = vshll.u32 %v173, 16
    %v314 = vrot.slane %v312, 5
    %v315 = vsel %vm201, %v310, %v314
    %v316 = vshrl.u32 %v173, 16
    %v318 = vrot.slane %v316, 4
    %v319 = vor.u32 %v318, %v314
    %v320 = vrot.slane %v319, 4
    %v322 = vshll.u32 %v174, 16
    %v324 = vrot.slane %v322, 5
    %v325 = vsel %vm201, %v320, %v324
    %v326 = vshrl.u32 %v174, 16
    %v328 = vrot.slane %v326, 4
    %v329 = vor.u32 %v328, %v324
    %v330 = vrot.slane %v329, 4
    %v332 = vshll.u32 %v175, 16
    %v334 = vrot.slane %v332, 5
    %v335 = vsel %vm201, %v330, %v334
    %v336 = vshrl.u32 %v175, 16
    %v338 = vrot.slane %v336, 4
    %v339 = vor.u32 %v338, %v334
    %v340 = vrot.slane %v339, 4
    %v342 = vshll.u32 %v176, 16
    %v344 = vrot.slane %v342, 5
    %v345 = vsel %vm201, %v340, %v344
    %v346 = vshrl.u32 %v176, 16
    %v348 = vrot.slane %v346, 4
    %v349 = vor.u32 %v348, %v344
    %v350 = vrot.slane %v349, 4
    %v352 = vshll.u32 %v177, 16
    %v354 = vrot.slane %v352, 5
    %v355 = vsel %vm201, %v350, %v354
    %v356 = vshrl.u32 %v177, 16
    %v358 = vrot.slane %v356, 4
    %v359 = vor.u32 %v358, %v354
    %v360 = vrot.slane %v359, 4
    %v362 = vshll.u32 %v178, 16
    %v364 = vrot.slane %v362, 5
    %v365 = vsel %vm201, %v360, %v364
    %v366 = vshrl.u32 %v178, 16
    %v368 = vrot.slane %v366, 4
    %v369 = vor.u32 %v368, %v364
    %v370 = vrot.slane %v369, 4
    %v372 = vshll.u32 %v179, 16
    %v374 = vrot.slane %v372, 5
    %v375 = vsel %vm201, %v370, %v374
    %v376 = vshrl.u32 %v179, 16
    %v378 = vrot.slane %v376, 4
    %v379 = vor.u32 %v378, %v374
    %v380 = vrot.slane %v379, 4
    %v382 = vshll.u32 %v180, 16
    %v384 = vrot.slane %v382, 5
    %v385 = vsel %vm201, %v380, %v384
    %v386 = vshrl.u32 %v180, 16
    %v388 = vrot.slane %v386, 4
    %v389 = vor.u32 %v388, %v384
    %v390 = vrot.slane %v389, 4
    %v392 = vshll.u32 %v181, 16
    %v394 = vrot.slane %v392, 5
    %v395 = vsel %vm201, %v390, %v394
    %v396 = vshrl.u32 %v181, 16
    %v398 = vrot.slane %v396, 4
    %v399 = vor.u32 %v398, %v394
    %v400 = vrot.slane %v399, 4
    %v402 = vshll.u32 %v182, 16
    %v404 = vrot.slane %v402, 5
    %v405 = vsel %vm201, %v400, %v404
    %v406 = vshrl.u32 %v182, 16
    %v408 = vrot.slane %v406, 4
    %v409 = vor.u32 %v408, %v404
    %v410 = vrot.slane %v409, 4
    %v412 = vshll.u32 %v183, 16
    %v414 = vrot.slane %v412, 5
    %v415 = vsel %vm201, %v410, %v414
    %v416 = vshrl.u32 %v183, 16
    %v418 = vrot.slane %v416, 4
    %v419 = vor.u32 %v418, %v414
    %v420 = vrot.slane %v419, 4
    %v422 = vshll.u32 %v184, 16
    %v424 = vrot.slane %v422, 5
    %v425 = vsel %vm201, %v420, %v424
    %v426 = vshrl.u32 %v184, 16
    %v428 = vrot.slane %v426, 4
    %v429 = vor.u32 %v428, %v424
    %v430 = vrot.slane %v429, 4
    %v432 = vshll.u32 %v185, 16
    %v434 = vrot.slane %v432, 5
    %v435 = vsel %vm201, %v430, %v434
    %v436 = vshrl.u32 %v185, 16
    %v438 = vrot.slane %v436, 4
    %v439 = vor.u32 %v438, %v434
    %v440 = vrot.slane %v439, 4
    %v442 = vshll.u32 %v186, 16
    %v444 = vrot.slane %v442, 5
    %v445 = vsel %vm201, %v440, %v444
    %v446 = vshrl.u32 %v186, 16
    %v448 = vrot.slane %v446, 4
    %v449 = vor.u32 %v448, %v444
    %v450 = vrot.slane %v449, 4
    %v452 = vshll.u32 %v187, 16
    %v454 = vrot.slane %v452, 5
    %v455 = vsel %vm201, %v450, %v454
    %v456 = vshrl.u32 %v187, 16
    %v458 = vrot.slane %v456, 4
    %v459 = vor.u32 %v458, %v454
    %v460 = vrot.slane %v459, 4
    %v462 = vshll.u32 %v188, 16
    %v464 = vrot.slane %v462, 5
    %v465 = vsel %vm201, %v460, %v464
    %v466 = vshrl.u32 %v188, 16
    %v468 = vrot.slane %v466, 4
    %v469 = vor.u32 %v468, %v464
    %v470 = vrot.slane %v469, 4
    %v472 = vshll.u32 %v189, 16
    %v474 = vrot.slane %v472, 5
    %v475 = vsel %vm201, %v470, %v474
    %v476 = vshrl.u32 %v189, 16
    %v478 = vrot.slane %v476, 4
    %v479 = vor.u32 %v478, %v474
    %v480 = vrot.slane %v479, 4
    %v482 = vshll.u32 %v190, 16
    %v484 = vrot.slane %v482, 5
    %v485 = vsel %vm201, %v480, %v484
    %v486 = vshrl.u32 %v190, 16
    %v488 = vrot.slane %v486, 4
    %v489 = vor.u32 %v488, %v484
    %v490 = vrot.slane %v489, 4
    %v492 = vshll.u32 %v191, 16
    %v494 = vrot.slane %v492, 5
    %v495 = vsel %vm201, %v490, %v494
    %v496 = vshrl.u32 %v191, 16
    %v498 = vrot.slane %v496, 4
    %v499 = vor.u32 %v498, %v494
    %v500 = vrot.slane %v499, 4
    %v502 = vshll.u32 %v192, 16
    %v504 = vrot.slane %v502, 5
    %v505 = vsel %vm201, %v500, %v504
    %v506 = vshrl.u32 %v192, 16
    %v508 = vrot.slane %v506, 4
    %v509 = vor.u32 %v508, %v504
    %v510 = vrot.slane %v509, 4
    %v512 = vshll.u32 %v193, 16
    %v514 = vrot.slane %v512, 5
    %v515 = vsel %vm201, %v510, %v514
    %v516 = vshrl.u32 %v193, 16
    %v518 = vrot.slane %v516, 4
    %v519 = vor.u32 %v518, %v514
    %v520 = vrot.slane %v519, 4
    %v522 = vshll.u32 %v194, 16
    %v524 = vrot.slane %v522, 5
    %v525 = vsel %vm201, %v520, %v524
    %v526 = vshrl.u32 %v194, 16
    %v528 = vrot.slane %v526, 4
    %v529 = vor.u32 %v528, %v524
    %v530 = vrot.slane %v529, 4
    %v532 = vshll.u32 %v195, 16
    %v534 = vrot.slane %v532, 5
    %v535 = vsel %vm201, %v530, %v534
    %v536 = vshrl.u32 %v195, 16
    %v538 = vrot.slane %v536, 4
    %v539 = vor.u32 %v538, %v534
    %v540 = vrot.slane %v539, 4
    %v542 = vshll.u32 %v196, 16
    %v544 = vrot.slane %v542, 5
    %v545 = vsel %vm201, %v540, %v544
    %v546 = vshrl.u32 %v196, 16
    %v548 = vrot.slane %v546, 4
    %v549 = vor.u32 %v548, %v544
    %v550 = vrot.slane %v549, 4
    %v552 = vshll.u32 %v197, 16
    %v554 = vrot.slane %v552, 5
    %v555 = vsel %vm201, %v550, %v554
    %v556 = vshrl.u32 %v197, 16
    %v558 = vrot.slane %v556, 4
    %v559 = vor.u32 %v558, %v554
    %v560 = vrot.slane %v559, 4
    %v562 = vshll.u32 %v198, 16
    %v564 = vrot.slane %v562, 5
    %v565 = vsel %vm201, %v560, %v564
    %566 = vrot.lane.b32.xlu0 %v215, 32
    %v567 = vpop.permute.xlu0 %566
    %568 = vrot.lane.b32.xlu0 %v225, 32
    %v569 = vpop.permute.xlu0 %568
    %570 = vrot.lane.b32.xlu0 %v235, 32
    %v571 = vpop.permute.xlu0 %570
    %572 = vrot.lane.b32.xlu0 %v245, 32
    %v573 = vpop.permute.xlu0 %572
    %574 = vrot.lane.b32.xlu0 %v255, 32
    %v575 = vpop.permute.xlu0 %574
    %576 = vrot.lane.b32.xlu0 %v265, 32
    %v577 = vpop.permute.xlu0 %576
    %578 = vrot.lane.b32.xlu0 %v275, 32
    %v579 = vpop.permute.xlu0 %578
    %580 = vrot.lane.b32.xlu0 %v285, 32
    %v581 = vpop.permute.xlu0 %580
    %582 = vrot.lane.b32.xlu0 %v295, 32
    %v583 = vpop.permute.xlu0 %582
    %584 = vrot.lane.b32.xlu0 %v305, 32
    %v585 = vpop.permute.xlu0 %584
    %586 = vrot.lane.b32.xlu0 %v315, 32
    %v587 = vpop.permute.xlu0 %586
    %588 = vrot.lane.b32.xlu0 %v325, 32
    %v589 = vpop.permute.xlu0 %588
    %590 = vrot.lane.b32.xlu0 %v335, 32
    %v591 = vpop.permute.xlu0 %590
    %592 = vrot.lane.b32.xlu0 %v345, 32
    %v593 = vpop.permute.xlu0 %592
    %594 = vrot.lane.b32.xlu0 %v355, 32
    %v595 = vpop.permute.xlu0 %594
    %596 = vrot.lane.b32.xlu0 %v365, 32
    %v597 = vpop.permute.xlu0 %596
    %598 = vrot.lane.b32.xlu0 %v375, 32
    %v599 = vpop.permute.xlu0 %598
    %600 = vrot.lane.b32.xlu0 %v385, 32
    %v601 = vpop.permute.xlu0 %600
    %602 = vrot.lane.b32.xlu0 %v395, 32
    %v603 = vpop.permute.xlu0 %602
    %604 = vrot.lane.b32.xlu0 %v405, 32
    %v605 = vpop.permute.xlu0 %604
    %606 = vrot.lane.b32.xlu0 %v415, 32
    %v607 = vpop.permute.xlu0 %606
    %608 = vrot.lane.b32.xlu0 %v425, 32
    %v609 = vpop.permute.xlu0 %608
    %610 = vrot.lane.b32.xlu0 %v435, 32
    %v611 = vpop.permute.xlu0 %610
    %612 = vrot.lane.b32.xlu0 %v445, 32
    %v613 = vpop.permute.xlu0 %612
    %614 = vrot.lane.b32.xlu0 %v455, 32
    %v615 = vpop.permute.xlu0 %614
    %616 = vrot.lane.b32.xlu0 %v465, 32
    %v617 = vpop.permute.xlu0 %616
    %618 = vrot.lane.b32.xlu0 %v475, 32
    %v619 = vpop.permute.xlu0 %618
    %620 = vrot.lane.b32.xlu0 %v485, 32
    %v621 = vpop.permute.xlu0 %620
    %622 = vrot.lane.b32.xlu0 %v495, 32
    %v623 = vpop.permute.xlu0 %622
    %624 = vrot.lane.b32.xlu0 %v505, 32
    %v625 = vpop.permute.xlu0 %624
    %626 = vrot.lane.b32.xlu0 %v515, 32
    %v627 = vpop.permute.xlu0 %626
    %628 = vrot.lane.b32.xlu0 %v525, 32
    %v629 = vpop.permute.xlu0 %628
    %630 = vrot.lane.b32.xlu0 %v535, 32
    %v631 = vpop.permute.xlu0 %630
    %632 = vrot.lane.b32.xlu0 %v545, 32
    %v633 = vpop.permute.xlu0 %632
    %634 = vrot.lane.b32.xlu0 %v555, 32
    %v635 = vpop.permute.xlu0 %634
    %636 = vrot.lane.b32.xlu0 %v565, 32
    %v637 = vpop.permute.xlu0 %636
    %vm674 = vcmask 519424
    %675 = vst.msk [vmem:[#allocation2] sm:$0xf] %vm674, %v567
    %676 = vst.msk [vmem:[#allocation2 + $0xc] sm:$0xf] %vm674, %v569
    %677 = vst.msk [vmem:[#allocation2 + $0x18] sm:$0xf] %vm674, %v571
    %678 = vst.msk [vmem:[#allocation2 + $0x24] sm:$0xf] %vm674, %v573
    %679 = vst.msk [vmem:[#allocation2 + $0x30] sm:$0xf] %vm674, %v575
    %680 = vst.msk [vmem:[#allocation2 + $0x3c] sm:$0xf] %vm674, %v577
    %681 = vst.msk [vmem:[#allocation2 + $0x48] sm:$0xf] %vm674, %v579
    %682 = vst.msk [vmem:[#allocation2 + $0x54] sm:$0xf] %vm674, %v581
    %683 = vst.msk [vmem:[#allocation2 + $0x60] sm:$0xf] %vm674, %v583
    %684 = vst.msk [vmem:[#allocation2 + $0x6c] sm:$0xf] %vm674, %v585
    %685 = vst.msk [vmem:[#allocation2 + $0x78] sm:$0xf] %vm674, %v587
    %686 = vst.msk [vmem:[#allocation2 + $0x84] sm:$0xf] %vm674, %v589
    %687 = vst.msk [vmem:[#allocation2 + $0x90] sm:$0xf] %vm674, %v591
    %688 = vst.msk [vmem:[#allocation2 + $0x9c] sm:$0xf] %vm674, %v593
    %689 = vst.msk [vmem:[#allocation2 + $0xa8] sm:$0xf] %vm674, %v595
    %690 = vst.msk [vmem:[#allocation2 + $0xb4] sm:$0xf] %vm674, %v597
    %691 = vst.msk [vmem:[#allocation2 + $0xc0] sm:$0xf] %vm674, %v599
    %692 = vst.msk [vmem:[#allocation2 + $0xcc] sm:$0xf] %vm674, %v601
    %693 = vst.msk [vmem:[#allocation2 + $0xd8] sm:$0xf] %vm674, %v603
    %694 = vst.msk [vmem:[#allocation2 + $0xe4] sm:$0xf] %vm674, %v605
    %695 = vst.msk [vmem:[#allocation2 + $0xf0] sm:$0xf] %vm674, %v607
    %696 = vst.msk [vmem:[#allocation2 + $0xfc] sm:$0xf] %vm674, %v609
    %697 = vst.msk [vmem:[#allocation2 + $0x108] sm:$0xf] %vm674, %v611
    %698 = vst.msk [vmem:[#allocation2 + $0x114] sm:$0xf] %vm674, %v613
    %699 = vst.msk [vmem:[#allocation2 + $0x120] sm:$0xf] %vm674, %v615
    %700 = vst.msk [vmem:[#allocation2 + $0x12c] sm:$0xf] %vm674, %v617
    %701 = vst.msk [vmem:[#allocation2 + $0x138] sm:$0xf] %vm674, %v619
    %702 = vst.msk [vmem:[#allocation2 + $0x144] sm:$0xf] %vm674, %v621
    %703 = vst.msk [vmem:[#allocation2 + $0x150] sm:$0xf] %vm674, %v623
    %704 = vst.msk [vmem:[#allocation2 + $0x15c] sm:$0xf] %vm674, %v625
    %705 = vst.msk [vmem:[#allocation2 + $0x168] sm:$0xf] %vm674, %v627
    %706 = vst.msk [vmem:[#allocation2 + $0x174] sm:$0xf] %vm674, %v629
    %707 = vst.msk [vmem:[#allocation2 + $0x180] sm:$0xf] %vm674, %v631
    %708 = vst.msk [vmem:[#allocation2 + $0x18c] sm:$0xf] %vm674, %v633
    %709 = vst.msk [vmem:[#allocation2 + $0x198] sm:$0xf] %vm674, %v635
    %710 = vst.msk [vmem:[#allocation2 + $0x1a4] sm:$0xf] %vm674, %v637
    %v711 = vld [vmem:[%s89] sm:$0xf]
    %v712 = vld [vmem:[%s89 + $0x4] sm:$0xf]
    %v713 = vld [vmem:[%s89 + $0x8] sm:$0xf]
    %v714 = vld [vmem:[%s89 + $0xc] sm:$0xf]
    %v715 = vld [vmem:[%s89 + $0x10] sm:$0xf]
    %v716 = vld [vmem:[%s89 + $0x14] sm:$0xf]
    %v717 = vld [vmem:[%s89 + $0x18] sm:$0xf]
    %v718 = vld [vmem:[%s89 + $0x1c] sm:$0xf]
    %v719 = vld [vmem:[%s89 + $0x20] sm:$0xf]
    %v720 = vld [vmem:[%s89 + $0x24] sm:$0xf]
    %v721 = vld [vmem:[%s89 + $0x28] sm:$0xf]
    %v722 = vld [vmem:[%s89 + $0x2c] sm:$0xf]
    %v723 = vld [vmem:[%s89 + $0x30] sm:$0xf]
    %v724 = vld [vmem:[%s89 + $0x34] sm:$0xf]
    %v725 = vld [vmem:[%s89 + $0x38] sm:$0xf]
    %v726 = vld [vmem:[%s89 + $0x3c] sm:$0xf]
    %v727 = vld [vmem:[%s89 + $0x40] sm:$0xf]
    %v728 = vld [vmem:[%s89 + $0x44] sm:$0xf]
    %v729 = vld [vmem:[%s89 + $0x48] sm:$0xf]
    %v730 = vld [vmem:[%s89 + $0x4c] sm:$0xf]
    %v731 = vld [vmem:[%s89 + $0x50] sm:$0xf]
    %v732 = vld [vmem:[%s89 + $0x54] sm:$0xf]
    %v733 = vld [vmem:[%s89 + $0x58] sm:$0xf]
    %v734 = vld [vmem:[%s89 + $0x5c] sm:$0xf]
    %v735 = vld [vmem:[%s89 + $0x60] sm:$0xf]
    %v736 = vld [vmem:[%s89 + $0x64] sm:$0xf]
    %v737 = vld [vmem:[%s89 + $0x68] sm:$0xf]
    %v738 = vld [vmem:[%s89 + $0x6c] sm:$0xf]
    %v739 = vld [vmem:[%s89 + $0x70] sm:$0xf]
    %v740 = vld [vmem:[%s89 + $0x74] sm:$0xf]
    %v741 = vld [vmem:[%s89 + $0x78] sm:$0xf]
    %v742 = vld [vmem:[%s89 + $0x7c] sm:$0xf]
    %v743 = vld [vmem:[%s89 + $0x80] sm:$0xf]
    %v744 = vld [vmem:[%s89 + $0x84] sm:$0xf]
    %v745 = vld [vmem:[%s89 + $0x88] sm:$0xf]
    %v746 = vld [vmem:[%s89 + $0x8c] sm:$0xf]
    %v747 = vld [vmem:[%s89 + $0x90] sm:$0x1]
    %v749 = vshrl.u32 %v711, 16
    %v751 = vrot.slane %v749, 4
    %v752 = vshll.u32 %v711, 16
    %v754 = vrot.slane %v752, 5
    %v755 = vor.u32 %v751, %v754
    %v756 = vrot.slane %v755, 4
    %v758 = vshll.u32 %v712, 16
    %v760 = vrot.slane %v758, 5
    %v761 = vsel %vm201, %v756, %v760
    %v762 = vshrl.u32 %v712, 16
    %v764 = vrot.slane %v762, 4
    %v765 = vor.u32 %v764, %v760
    %v766 = vrot.slane %v765, 4
    %v768 = vshll.u32 %v713, 16
    %v770 = vrot.slane %v768, 5
    %v771 = vsel %vm201, %v766, %v770
    %v772 = vshrl.u32 %v713, 16
    %v774 = vrot.slane %v772, 4
    %v775 = vor.u32 %v774, %v770
    %v776 = vrot.slane %v775, 4
    %v778 = vshll.u32 %v714, 16
    %v780 = vrot.slane %v778, 5
    %v781 = vsel %vm201, %v776, %v780
    %v782 = vshrl.u32 %v714, 16
    %v784 = vrot.slane %v782, 4
    %v785 = vor.u32 %v784, %v780
    %v786 = vrot.slane %v785, 4
    %v788 = vshll.u32 %v715, 16
    %v790 = vrot.slane %v788, 5
    %v791 = vsel %vm201, %v786, %v790
    %v792 = vshrl.u32 %v715, 16
    %v794 = vrot.slane %v792, 4
    %v795 = vor.u32 %v794, %v790
    %v796 = vrot.slane %v795, 4
    %v798 = vshll.u32 %v716, 16
    %v800 = vrot.slane %v798, 5
    %v801 = vsel %vm201, %v796, %v800
    %v802 = vshrl.u32 %v716, 16
    %v804 = vrot.slane %v802, 4
    %v805 = vor.u32 %v804, %v800
    %v806 = vrot.slane %v805, 4
    %v808 = vshll.u32 %v717, 16
    %v810 = vrot.slane %v808, 5
    %v811 = vsel %vm201, %v806, %v810
    %v812 = vshrl.u32 %v717, 16
    %v814 = vrot.slane %v812, 4
    %v815 = vor.u32 %v814, %v810
    %v816 = vrot.slane %v815, 4
    %v818 = vshll.u32 %v718, 16
    %v820 = vrot.slane %v818, 5
    %v821 = vsel %vm201, %v816, %v820
    %v822 = vshrl.u32 %v718, 16
    %v824 = vrot.slane %v822, 4
    %v825 = vor.u32 %v824, %v820
    %v826 = vrot.slane %v825, 4
    %v828 = vshll.u32 %v719, 16
    %v830 = vrot.slane %v828, 5
    %v831 = vsel %vm201, %v826, %v830
    %v832 = vshrl.u32 %v719, 16
    %v834 = vrot.slane %v832, 4
    %v835 = vor.u32 %v834, %v830
    %v836 = vrot.slane %v835, 4
    %v838 = vshll.u32 %v720, 16
    %v840 = vrot.slane %v838, 5
    %v841 = vsel %vm201, %v836, %v840
    %v842 = vshrl.u32 %v720, 16
    %v844 = vrot.slane %v842, 4
    %v845 = vor.u32 %v844, %v840
    %v846 = vrot.slane %v845, 4
    %v848 = vshll.u32 %v721, 16
    %v850 = vrot.slane %v848, 5
    %v851 = vsel %vm201, %v846, %v850
    %v852 = vshrl.u32 %v721, 16
    %v854 = vrot.slane %v852, 4
    %v855 = vor.u32 %v854, %v850
    %v856 = vrot.slane %v855, 4
    %v858 = vshll.u32 %v722, 16
    %v860 = vrot.slane %v858, 5
    %v861 = vsel %vm201, %v856, %v860
    %v862 = vshrl.u32 %v722, 16
    %v864 = vrot.slane %v862, 4
    %v865 = vor.u32 %v864, %v860
    %v866 = vrot.slane %v865, 4
    %v868 = vshll.u32 %v723, 16
    %v870 = vrot.slane %v868, 5
    %v871 = vsel %vm201, %v866, %v870
    %v872 = vshrl.u32 %v723, 16
    %v874 = vrot.slane %v872, 4
    %v875 = vor.u32 %v874, %v870
    %v876 = vrot.slane %v875, 4
    %v878 = vshll.u32 %v724, 16
    %v880 = vrot.slane %v878, 5
    %v881 = vsel %vm201, %v876, %v880
    %v882 = vshrl.u32 %v724, 16
    %v884 = vrot.slane %v882, 4
    %v885 = vor.u32 %v884, %v880
    %v886 = vrot.slane %v885, 4
    %v888 = vshll.u32 %v725, 16
    %v890 = vrot.slane %v888, 5
    %v891 = vsel %vm201, %v886, %v890
    %v892 = vshrl.u32 %v725, 16
    %v894 = vrot.slane %v892, 4
    %v895 = vor.u32 %v894, %v890
    %v896 = vrot.slane %v895, 4
    %v898 = vshll.u32 %v726, 16
    %v900 = vrot.slane %v898, 5
    %v901 = vsel %vm201, %v896, %v900
    %v902 = vshrl.u32 %v726, 16
    %v904 = vrot.slane %v902, 4
    %v905 = vor.u32 %v904, %v900
    %v906 = vrot.slane %v905, 4
    %v908 = vshll.u32 %v727, 16
    %v910 = vrot.slane %v908, 5
    %v911 = vsel %vm201, %v906, %v910
    %v912 = vshrl.u32 %v727, 16
    %v914 = vrot.slane %v912, 4
    %v915 = vor.u32 %v914, %v910
    %v916 = vrot.slane %v915, 4
    %v918 = vshll.u32 %v728, 16
    %v920 = vrot.slane %v918, 5
    %v921 = vsel %vm201, %v916, %v920
    %v922 = vshrl.u32 %v728, 16
    %v924 = vrot.slane %v922, 4
    %v925 = vor.u32 %v924, %v920
    %v926 = vrot.slane %v925, 4
    %v928 = vshll.u32 %v729, 16
    %v930 = vrot.slane %v928, 5
    %v931 = vsel %vm201, %v926, %v930
    %v932 = vshrl.u32 %v729, 16
    %v934 = vrot.slane %v932, 4
    %v935 = vor.u32 %v934, %v930
    %v936 = vrot.slane %v935, 4
    %v938 = vshll.u32 %v730, 16
    %v940 = vrot.slane %v938, 5
    %v941 = vsel %vm201, %v936, %v940
    %v942 = vshrl.u32 %v730, 16
    %v944 = vrot.slane %v942, 4
    %v945 = vor.u32 %v944, %v940
    %v946 = vrot.slane %v945, 4
    %v948 = vshll.u32 %v731, 16
    %v950 = vrot.slane %v948, 5
    %v951 = vsel %vm201, %v946, %v950
    %v952 = vshrl.u32 %v731, 16
    %v954 = vrot.slane %v952, 4
    %v955 = vor.u32 %v954, %v950
    %v956 = vrot.slane %v955, 4
    %v958 = vshll.u32 %v732, 16
    %v960 = vrot.slane %v958, 5
    %v961 = vsel %vm201, %v956, %v960
    %v962 = vshrl.u32 %v732, 16
    %v964 = vrot.slane %v962, 4
    %v965 = vor.u32 %v964, %v960
    %v966 = vrot.slane %v965, 4
    %v968 = vshll.u32 %v733, 16
    %v970 = vrot.slane %v968, 5
    %v971 = vsel %vm201, %v966, %v970
    %v972 = vshrl.u32 %v733, 16
    %v974 = vrot.slane %v972, 4
    %v975 = vor.u32 %v974, %v970
    %v976 = vrot.slane %v975, 4
    %v978 = vshll.u32 %v734, 16
    %v980 = vrot.slane %v978, 5
    %v981 = vsel %vm201, %v976, %v980
    %v982 = vshrl.u32 %v734, 16
    %v984 = vrot.slane %v982, 4
    %v985 = vor.u32 %v984, %v980
    %v986 = vrot.slane %v985, 4
    %v988 = vshll.u32 %v735, 16
    %v990 = vrot.slane %v988, 5
    %v991 = vsel %vm201, %v986, %v990
    %v992 = vshrl.u32 %v735, 16
    %v994 = vrot.slane %v992, 4
    %v995 = vor.u32 %v994, %v990
    %v996 = vrot.slane %v995, 4
    %v998 = vshll.u32 %v736, 16
    %v1000 = vrot.slane %v998, 5
    %v1001 = vsel %vm201, %v996, %v1000
    %v1002 = vshrl.u32 %v736, 16
    %v1004 = vrot.slane %v1002, 4
    %v1005 = vor.u32 %v1004, %v1000
    %v1006 = vrot.slane %v1005, 4
    %v1008 = vshll.u32 %v737, 16
    %v1010 = vrot.slane %v1008, 5
    %v1011 = vsel %vm201, %v1006, %v1010
    %v1012 = vshrl.u32 %v737, 16
    %v1014 = vrot.slane %v1012, 4
    %v1015 = vor.u32 %v1014, %v1010
    %v1016 = vrot.slane %v1015, 4
    %v1018 = vshll.u32 %v738, 16
    %v1020 = vrot.slane %v1018, 5
    %v1021 = vsel %vm201, %v1016, %v1020
    %v1022 = vshrl.u32 %v738, 16
    %v1024 = vrot.slane %v1022, 4
    %v1025 = vor.u32 %v1024, %v1020
    %v1026 = vrot.slane %v1025, 4
    %v1028 = vshll.u32 %v739, 16
    %v1030 = vrot.slane %v1028, 5
    %v1031 = vsel %vm201, %v1026, %v1030
    %v1032 = vshrl.u32 %v739, 16
    %v1034 = vrot.slane %v1032, 4
    %v1035 = vor.u32 %v1034, %v1030
    %v1036 = vrot.slane %v1035, 4
    %v1038 = vshll.u32 %v740, 16
    %v1040 = vrot.slane %v1038, 5
    %v1041 = vsel %vm201, %v1036, %v1040
    %v1042 = vshrl.u32 %v740, 16
    %v1044 = vrot.slane %v1042, 4
    %v1045 = vor.u32 %v1044, %v1040
    %v1046 = vrot.slane %v1045, 4
    %v1048 = vshll.u32 %v741, 16
    %v1050 = vrot.slane %v1048, 5
    %v1051 = vsel %vm201, %v1046, %v1050
    %v1052 = vshrl.u32 %v741, 16
    %v1054 = vrot.slane %v1052, 4
    %v1055 = vor.u32 %v1054, %v1050
    %v1056 = vrot.slane %v1055, 4
    %v1058 = vshll.u32 %v742, 16
    %v1060 = vrot.slane %v1058, 5
    %v1061 = vsel %vm201, %v1056, %v1060
    %v1062 = vshrl.u32 %v742, 16
    %v1064 = vrot.slane %v1062, 4
    %v1065 = vor.u32 %v1064, %v1060
    %v1066 = vrot.slane %v1065, 4
    %v1068 = vshll.u32 %v743, 16
    %v1070 = vrot.slane %v1068, 5
    %v1071 = vsel %vm201, %v1066, %v1070
    %v1072 = vshrl.u32 %v743, 16
    %v1074 = vrot.slane %v1072, 4
    %v1075 = vor.u32 %v1074, %v1070
    %v1076 = vrot.slane %v1075, 4
    %v1078 = vshll.u32 %v744, 16
    %v1080 = vrot.slane %v1078, 5
    %v1081 = vsel %vm201, %v1076, %v1080
    %v1082 = vshrl.u32 %v744, 16
    %v1084 = vrot.slane %v1082, 4
    %v1085 = vor.u32 %v1084, %v1080
    %v1086 = vrot.slane %v1085, 4
    %v1088 = vshll.u32 %v745, 16
    %v1090 = vrot.slane %v1088, 5
    %v1091 = vsel %vm201, %v1086, %v1090
    %v1092 = vshrl.u32 %v745, 16
    %v1094 = vrot.slane %v1092, 4
    %v1095 = vor.u32 %v1094, %v1090
    %v1096 = vrot.slane %v1095, 4
    %v1098 = vshll.u32 %v746, 16
    %v1100 = vrot.slane %v1098, 5
    %v1101 = vsel %vm201, %v1096, %v1100
    %v1102 = vshrl.u32 %v746, 16
    %v1104 = vrot.slane %v1102, 4
    %v1105 = vor.u32 %v1104, %v1100
    %v1106 = vrot.slane %v1105, 4
    %v1108 = vshll.u32 %v747, 16
    %v1110 = vrot.slane %v1108, 5
    %v1111 = vsel %vm201, %v1106, %v1110
    %1112 = vrot.lane.b32.xlu0 %v761, 32
    %v1113 = vpop.permute.xlu0 %1112
    %1114 = vrot.lane.b32.xlu0 %v771, 32
    %v1115 = vpop.permute.xlu0 %1114
    %1116 = vrot.lane.b32.xlu0 %v781, 32
    %v1117 = vpop.permute.xlu0 %1116
    %1118 = vrot.lane.b32.xlu0 %v791, 32
    %v1119 = vpop.permute.xlu0 %1118
    %1120 = vrot.lane.b32.xlu0 %v801, 32
    %v1121 = vpop.permute.xlu0 %1120
    %1122 = vrot.lane.b32.xlu0 %v811, 32
    %v1123 = vpop.permute.xlu0 %1122
    %1124 = vrot.lane.b32.xlu0 %v821, 32
    %v1125 = vpop.permute.xlu0 %1124
    %1126 = vrot.lane.b32.xlu0 %v831, 32
    %v1127 = vpop.permute.xlu0 %1126
    %1128 = vrot.lane.b32.xlu0 %v841, 32
    %v1129 = vpop.permute.xlu0 %1128
    %1130 = vrot.lane.b32.xlu0 %v851, 32
    %v1131 = vpop.permute.xlu0 %1130
    %1132 = vrot.lane.b32.xlu0 %v861, 32
    %v1133 = vpop.permute.xlu0 %1132
    %1134 = vrot.lane.b32.xlu0 %v871, 32
    %v1135 = vpop.permute.xlu0 %1134
    %1136 = vrot.lane.b32.xlu0 %v881, 32
    %v1137 = vpop.permute.xlu0 %1136
    %1138 = vrot.lane.b32.xlu0 %v891, 32
    %v1139 = vpop.permute.xlu0 %1138
    %1140 = vrot.lane.b32.xlu0 %v901, 32
    %v1141 = vpop.permute.xlu0 %1140
    %1142 = vrot.lane.b32.xlu0 %v911, 32
    %v1143 = vpop.permute.xlu0 %1142
    %1144 = vrot.lane.b32.xlu0 %v921, 32
    %v1145 = vpop.permute.xlu0 %1144
    %1146 = vrot.lane.b32.xlu0 %v931, 32
    %v1147 = vpop.permute.xlu0 %1146
    %1148 = vrot.lane.b32.xlu0 %v941, 32
    %v1149 = vpop.permute.xlu0 %1148
    %1150 = vrot.lane.b32.xlu0 %v951, 32
    %v1151 = vpop.permute.xlu0 %1150
    %1152 = vrot.lane.b32.xlu0 %v961, 32
    %v1153 = vpop.permute.xlu0 %1152
    %1154 = vrot.lane.b32.xlu0 %v971, 32
    %v1155 = vpop.permute.xlu0 %1154
    %1156 = vrot.lane.b32.xlu0 %v981, 32
    %v1157 = vpop.permute.xlu0 %1156
    %1158 = vrot.lane.b32.xlu0 %v991, 32
    %v1159 = vpop.permute.xlu0 %1158
    %1160 = vrot.lane.b32.xlu0 %v1001, 32
    %v1161 = vpop.permute.xlu0 %1160
    %1162 = vrot.lane.b32.xlu0 %v1011, 32
    %v1163 = vpop.permute.xlu0 %1162
    %1164 = vrot.lane.b32.xlu0 %v1021, 32
    %v1165 = vpop.permute.xlu0 %1164
    %1166 = vrot.lane.b32.xlu0 %v1031, 32
    %v1167 = vpop.permute.xlu0 %1166
    %1168 = vrot.lane.b32.xlu0 %v1041, 32
    %v1169 = vpop.permute.xlu0 %1168
    %1170 = vrot.lane.b32.xlu0 %v1051, 32
    %v1171 = vpop.permute.xlu0 %1170
    %1172 = vrot.lane.b32.xlu0 %v1061, 32
    %v1173 = vpop.permute.xlu0 %1172
    %1174 = vrot.lane.b32.xlu0 %v1071, 32
    %v1175 = vpop.permute.xlu0 %1174
    %1176 = vrot.lane.b32.xlu0 %v1081, 32
    %v1177 = vpop.permute.xlu0 %1176
    %1178 = vrot.lane.b32.xlu0 %v1091, 32
    %v1179 = vpop.permute.xlu0 %1178
    %1180 = vrot.lane.b32.xlu0 %v1101, 32
    %v1181 = vpop.permute.xlu0 %1180
    %1182 = vrot.lane.b32.xlu0 %v1111, 32
    %v1183 = vpop.permute.xlu0 %1182
    %1220 = vst.msk [vmem:[#allocation2 + $0x1b0] sm:$0xf] %vm674, %v1113
    %1221 = vst.msk [vmem:[#allocation2 + $0x1bc] sm:$0xf] %vm674, %v1115
    %1222 = vst.msk [vmem:[#allocation2 + $0x1c8] sm:$0xf] %vm674, %v1117
    %1223 = vst.msk [vmem:[#allocation2 + $0x1d4] sm:$0xf] %vm674, %v1119
    %1224 = vst.msk [vmem:[#allocation2 + $0x1e0] sm:$0xf] %vm674, %v1121
    %1225 = vst.msk [vmem:[#allocation2 + $0x1ec] sm:$0xf] %vm674, %v1123
    %1226 = vst.msk [vmem:[#allocation2 + $0x1f8] sm:$0xf] %vm674, %v1125
    %1227 = vst.msk [vmem:[#allocation2 + $0x204] sm:$0xf] %vm674, %v1127
    %1228 = vst.msk [vmem:[#allocation2 + $0x210] sm:$0xf] %vm674, %v1129
    %1229 = vst.msk [vmem:[#allocation2 + $0x21c] sm:$0xf] %vm674, %v1131
    %1230 = vst.msk [vmem:[#allocation2 + $0x228] sm:$0xf] %vm674, %v1133
    %1231 = vst.msk [vmem:[#allocation2 + $0x234] sm:$0xf] %vm674, %v1135
    %1232 = vst.msk [vmem:[#allocation2 + $0x240] sm:$0xf] %vm674, %v1137
    %1233 = vst.msk [vmem:[#allocation2 + $0x24c] sm:$0xf] %vm674, %v1139
    %1234 = vst.msk [vmem:[#allocation2 + $0x258] sm:$0xf] %vm674, %v1141
    %1235 = vst.msk [vmem:[#allocation2 + $0x264] sm:$0xf] %vm674, %v1143
    %1236 = vst.msk [vmem:[#allocation2 + $0x270] sm:$0xf] %vm674, %v1145
    %1237 = vst.msk [vmem:[#allocation2 + $0x27c] sm:$0xf] %vm674, %v1147
    %1238 = vst.msk [vmem:[#allocation2 + $0x288] sm:$0xf] %vm674, %v1149
    %1239 = vst.msk [vmem:[#allocation2 + $0x294] sm:$0xf] %vm674, %v1151
    %1240 = vst.msk [vmem:[#allocation2 + $0x2a0] sm:$0xf] %vm674, %v1153
    %1241 = vst.msk [vmem:[#allocation2 + $0x2ac] sm:$0xf] %vm674, %v1155
    %1242 = vst.msk [vmem:[#allocation2 + $0x2b8] sm:$0xf] %vm674, %v1157
    %1243 = vst.msk [vmem:[#allocation2 + $0x2c4] sm:$0xf] %vm674, %v1159
    %1244 = vst.msk [vmem:[#allocation2 + $0x2d0] sm:$0xf] %vm674, %v1161
    %1245 = vst.msk [vmem:[#allocation2 + $0x2dc] sm:$0xf] %vm674, %v1163
    %1246 = vst.msk [vmem:[#allocation2 + $0x2e8] sm:$0xf] %vm674, %v1165
    %1247 = vst.msk [vmem:[#allocation2 + $0x2f4] sm:$0xf] %vm674, %v1167
    %1248 = vst.msk [vmem:[#allocation2 + $0x300] sm:$0xf] %vm674, %v1169
    %1249 = vst.msk [vmem:[#allocation2 + $0x30c] sm:$0xf] %vm674, %v1171
    %1250 = vst.msk [vmem:[#allocation2 + $0x318] sm:$0xf] %vm674, %v1173
    %1251 = vst.msk [vmem:[#allocation2 + $0x324] sm:$0xf] %vm674, %v1175
    %1252 = vst.msk [vmem:[#allocation2 + $0x330] sm:$0xf] %vm674, %v1177
    %1253 = vst.msk [vmem:[#allocation2 + $0x33c] sm:$0xf] %vm674, %v1179
    %1254 = vst.msk [vmem:[#allocation2 + $0x348] sm:$0xf] %vm674, %v1181
    %1255 = vst.msk [vmem:[#allocation2 + $0x354] sm:$0xf] %vm674, %v1183
    %v1256 = vld [vmem:[%s0] sm:$0xe]
    %v1257 = vld [vmem:[%s0 + $0x4] sm:$0xf]
    %v1258 = vld [vmem:[%s0 + $0x8] sm:$0xf]
    %v1259 = vld [vmem:[%s0 + $0xc] sm:$0xf]
    %v1260 = vld [vmem:[%s0 + $0x10] sm:$0xf]
    %v1261 = vld [vmem:[%s0 + $0x14] sm:$0xf]
    %v1262 = vld [vmem:[%s0 + $0x18] sm:$0xf]
    %v1263 = vld [vmem:[%s0 + $0x1c] sm:$0xf]
    %v1264 = vld [vmem:[%s0 + $0x20] sm:$0xf]
    %v1265 = vld [vmem:[%s0 + $0x24] sm:$0xf]
    %v1266 = vld [vmem:[%s0 + $0x28] sm:$0xf]
    %v1267 = vld [vmem:[%s0 + $0x2c] sm:$0xf]
    %v1268 = vld [vmem:[%s0 + $0x30] sm:$0xf]
    %v1269 = vld [vmem:[%s0 + $0x34] sm:$0xf]
    %v1270 = vld [vmem:[%s0 + $0x38] sm:$0xf]
    %v1271 = vld [vmem:[%s0 + $0x3c] sm:$0xf]
    %v1272 = vld [vmem:[%s0 + $0x40] sm:$0xf]
    %v1273 = vld [vmem:[%s0 + $0x44] sm:$0xf]
    %v1274 = vld [vmem:[%s0 + $0x48] sm:$0xf]
    %v1275 = vld [vmem:[%s0 + $0x4c] sm:$0xf]
    %v1276 = vld [vmem:[%s0 + $0x50] sm:$0xf]
    %v1277 = vld [vmem:[%s0 + $0x54] sm:$0xf]
    %v1278 = vld [vmem:[%s0 + $0x58] sm:$0xf]
    %v1279 = vld [vmem:[%s0 + $0x5c] sm:$0xf]
    %v1280 = vld [vmem:[%s0 + $0x60] sm:$0xf]
    %v1281 = vld [vmem:[%s0 + $0x64] sm:$0xf]
    %v1282 = vld [vmem:[%s0 + $0x68] sm:$0xf]
    %v1283 = vld [vmem:[%s0 + $0x6c] sm:$0xf]
    %v1284 = vld [vmem:[%s0 + $0x70] sm:$0xf]
    %v1285 = vld [vmem:[%s0 + $0x74] sm:$0xf]
    %v1286 = vld [vmem:[%s0 + $0x78] sm:$0xf]
    %v1287 = vld [vmem:[%s0 + $0x7c] sm:$0xf]
    %v1288 = vld [vmem:[%s0 + $0x80] sm:$0xf]
    %v1289 = vld [vmem:[%s0 + $0x84] sm:$0xf]
    %v1290 = vld [vmem:[%s0 + $0x88] sm:$0xf]
    %v1291 = vld [vmem:[%s0 + $0x8c] sm:$0xf]
    %v1292 = vld [vmem:[%s0 + $0x90] sm:$0x1]
    %vm1330 = vcmask 1042432
    %vm1331 = vcmask 1046532
    %vm1332 = vmor %vm1330, %vm1331
    %v1333 = vrot.slane %v1256, 5
    %v1334 = vrot.slane %v1333, 4
    %v1335 = vrot.slane %v1257, 5
    %v1336 = vsel %vm1332, %v1334, %v1335
    %v1337 = vrot.slane %v1335, 4
    %v1338 = vrot.slane %v1258, 5
    %v1339 = vsel %vm1332, %v1337, %v1338
    %v1340 = vrot.slane %v1338, 4
    %v1341 = vrot.slane %v1259, 5
    %v1342 = vsel %vm1332, %v1340, %v1341
    %v1343 = vrot.slane %v1341, 4
    %v1344 = vrot.slane %v1260, 5
    %v1345 = vsel %vm1332, %v1343, %v1344
    %v1346 = vrot.slane %v1344, 4
    %v1347 = vrot.slane %v1261, 5
    %v1348 = vsel %vm1332, %v1346, %v1347
    %v1349 = vrot.slane %v1347, 4
    %v1350 = vrot.slane %v1262, 5
    %v1351 = vsel %vm1332, %v1349, %v1350
    %v1352 = vrot.slane %v1350, 4
    %v1353 = vrot.slane %v1263, 5
    %v1354 = vsel %vm1332, %v1352, %v1353
    %v1355 = vrot.slane %v1353, 4
    %v1356 = vrot.slane %v1264, 5
    %v1357 = vsel %vm1332, %v1355, %v1356
    %v1358 = vrot.slane %v1356, 4
    %v1359 = vrot.slane %v1265, 5
    %v1360 = vsel %vm1332, %v1358, %v1359
    %v1361 = vrot.slane %v1359, 4
    %v1362 = vrot.slane %v1266, 5
    %v1363 = vsel %vm1332, %v1361, %v1362
    %v1364 = vrot.slane %v1362, 4
    %v1365 = vrot.slane %v1267, 5
    %v1366 = vsel %vm1332, %v1364, %v1365
    %v1367 = vrot.slane %v1365, 4
    %v1368 = vrot.slane %v1268, 5
    %v1369 = vsel %vm1332, %v1367, %v1368
    %v1370 = vrot.slane %v1368, 4
    %v1371 = vrot.slane %v1269, 5
    %v1372 = vsel %vm1332, %v1370, %v1371
    %v1373 = vrot.slane %v1371, 4
    %v1374 = vrot.slane %v1270, 5
    %v1375 = vsel %vm1332, %v1373, %v1374
    %v1376 = vrot.slane %v1374, 4
    %v1377 = vrot.slane %v1271, 5
    %v1378 = vsel %vm1332, %v1376, %v1377
    %v1379 = vrot.slane %v1377, 4
    %v1380 = vrot.slane %v1272, 5
    %v1381 = vsel %vm1332, %v1379, %v1380
    %v1382 = vrot.slane %v1380, 4
    %v1383 = vrot.slane %v1273, 5
    %v1384 = vsel %vm1332, %v1382, %v1383
    %v1385 = vrot.slane %v1383, 4
    %v1386 = vrot.slane %v1274, 5
    %v1387 = vsel %vm1332, %v1385, %v1386
    %v1388 = vrot.slane %v1386, 4
    %v1389 = vrot.slane %v1275, 5
    %v1390 = vsel %vm1332, %v1388, %v1389
    %v1391 = vrot.slane %v1389, 4
    %v1392 = vrot.slane %v1276, 5
    %v1393 = vsel %vm1332, %v1391, %v1392
    %v1394 = vrot.slane %v1392, 4
    %v1395 = vrot.slane %v1277, 5
    %v1396 = vsel %vm1332, %v1394, %v1395
    %v1397 = vrot.slane %v1395, 4
    %v1398 = vrot.slane %v1278, 5
    %v1399 = vsel %vm1332, %v1397, %v1398
    %v1400 = vrot.slane %v1398, 4
    %v1401 = vrot.slane %v1279, 5
    %v1402 = vsel %vm1332, %v1400, %v1401
    %v1403 = vrot.slane %v1401, 4
    %v1404 = vrot.slane %v1280, 5
    %v1405 = vsel %vm1332, %v1403, %v1404
    %v1406 = vrot.slane %v1404, 4
    %v1407 = vrot.slane %v1281, 5
    %v1408 = vsel %vm1332, %v1406, %v1407
    %v1409 = vrot.slane %v1407, 4
    %v1410 = vrot.slane %v1282, 5
    %v1411 = vsel %vm1332, %v1409, %v1410
    %v1412 = vrot.slane %v1410, 4
    %v1413 = vrot.slane %v1283, 5
    %v1414 = vsel %vm1332, %v1412, %v1413
    %v1415 = vrot.slane %v1413, 4
    %v1416 = vrot.slane %v1284, 5
    %v1417 = vsel %vm1332, %v1415, %v1416
    %v1418 = vrot.slane %v1416, 4
    %v1419 = vrot.slane %v1285, 5
    %v1420 = vsel %vm1332, %v1418, %v1419
    %v1421 = vrot.slane %v1419, 4
    %v1422 = vrot.slane %v1286, 5
    %v1423 = vsel %vm1332, %v1421, %v1422
    %v1424 = vrot.slane %v1422, 4
    %v1425 = vrot.slane %v1287, 5
    %v1426 = vsel %vm1332, %v1424, %v1425
    %v1427 = vrot.slane %v1425, 4
    %v1428 = vrot.slane %v1288, 5
    %v1429 = vsel %vm1332, %v1427, %v1428
    %v1430 = vrot.slane %v1428, 4
    %v1431 = vrot.slane %v1289, 5
    %v1432 = vsel %vm1332, %v1430, %v1431
    %v1433 = vrot.slane %v1431, 4
    %v1434 = vrot.slane %v1290, 5
    %v1435 = vsel %vm1332, %v1433, %v1434
    %v1436 = vrot.slane %v1434, 4
    %v1437 = vrot.slane %v1291, 5
    %v1438 = vsel %vm1332, %v1436, %v1437
    %v1439 = vrot.slane %v1437, 4
    %v1440 = vrot.slane %v1292, 5
    %v1441 = vsel %vm1332, %v1439, %v1440
    %1442 = vrot.lane.b32.xlu0 %v1336, 64
    %v1443 = vpop.permute.xlu0 %1442
    %1444 = vrot.lane.b32.xlu0 %v1339, 64
    %v1445 = vpop.permute.xlu0 %1444
    %1446 = vrot.lane.b32.xlu0 %v1342, 64
    %v1447 = vpop.permute.xlu0 %1446
    %1448 = vrot.lane.b32.xlu0 %v1345, 64
    %v1449 = vpop.permute.xlu0 %1448
    %1450 = vrot.lane.b32.xlu0 %v1348, 64
    %v1451 = vpop.permute.xlu0 %1450
    %1452 = vrot.lane.b32.xlu0 %v1351, 64
    %v1453 = vpop.permute.xlu0 %1452
    %1454 = vrot.lane.b32.xlu0 %v1354, 64
    %v1455 = vpop.permute.xlu0 %1454
    %1456 = vrot.lane.b32.xlu0 %v1357, 64
    %v1457 = vpop.permute.xlu0 %1456
    %1458 = vrot.lane.b32.xlu0 %v1360, 64
    %v1459 = vpop.permute.xlu0 %1458
    %1460 = vrot.lane.b32.xlu0 %v1363, 64
    %v1461 = vpop.permute.xlu0 %1460
    %1462 = vrot.lane.b32.xlu0 %v1366, 64
    %v1463 = vpop.permute.xlu0 %1462
    %1464 = vrot.lane.b32.xlu0 %v1369, 64
    %v1465 = vpop.permute.xlu0 %1464
    %1466 = vrot.lane.b32.xlu0 %v1372, 64
    %v1467 = vpop.permute.xlu0 %1466
    %1468 = vrot.lane.b32.xlu0 %v1375, 64
    %v1469 = vpop.permute.xlu0 %1468
    %1470 = vrot.lane.b32.xlu0 %v1378, 64
    %v1471 = vpop.permute.xlu0 %1470
    %1472 = vrot.lane.b32.xlu0 %v1381, 64
    %v1473 = vpop.permute.xlu0 %1472
    %1474 = vrot.lane.b32.xlu0 %v1384, 64
    %v1475 = vpop.permute.xlu0 %1474
    %1476 = vrot.lane.b32.xlu0 %v1387, 64
    %v1477 = vpop.permute.xlu0 %1476
    %1478 = vrot.lane.b32.xlu0 %v1390, 64
    %v1479 = vpop.permute.xlu0 %1478
    %1480 = vrot.lane.b32.xlu0 %v1393, 64
    %v1481 = vpop.permute.xlu0 %1480
    %1482 = vrot.lane.b32.xlu0 %v1396, 64
    %v1483 = vpop.permute.xlu0 %1482
    %1484 = vrot.lane.b32.xlu0 %v1399, 64
    %v1485 = vpop.permute.xlu0 %1484
    %1486 = vrot.lane.b32.xlu0 %v1402, 64
    %v1487 = vpop.permute.xlu0 %1486
    %1488 = vrot.lane.b32.xlu0 %v1405, 64
    %v1489 = vpop.permute.xlu0 %1488
    %1490 = vrot.lane.b32.xlu0 %v1408, 64
    %v1491 = vpop.permute.xlu0 %1490
    %1492 = vrot.lane.b32.xlu0 %v1411, 64
    %v1493 = vpop.permute.xlu0 %1492
    %1494 = vrot.lane.b32.xlu0 %v1414, 64
    %v1495 = vpop.permute.xlu0 %1494
    %1496 = vrot.lane.b32.xlu0 %v1417, 64
    %v1497 = vpop.permute.xlu0 %1496
    %1498 = vrot.lane.b32.xlu0 %v1420, 64
    %v1499 = vpop.permute.xlu0 %1498
    %1500 = vrot.lane.b32.xlu0 %v1423, 64
    %v1501 = vpop.permute.xlu0 %1500
    %1502 = vrot.lane.b32.xlu0 %v1426, 64
    %v1503 = vpop.permute.xlu0 %1502
    %1504 = vrot.lane.b32.xlu0 %v1429, 64
    %v1505 = vpop.permute.xlu0 %1504
    %1506 = vrot.lane.b32.xlu0 %v1432, 64
    %v1507 = vpop.permute.xlu0 %1506
    %1508 = vrot.lane.b32.xlu0 %v1435, 64
    %v1509 = vpop.permute.xlu0 %1508
    %1510 = vrot.lane.b32.xlu0 %v1438, 64
    %v1511 = vpop.permute.xlu0 %1510
    %1512 = vrot.lane.b32.xlu0 %v1441, 64
    %v1513 = vpop.permute.xlu0 %1512
    %vm1550 = vcmask 781824
    %1551 = vst.msk [vmem:[#allocation2] sm:$0xf] %vm1550, %v1443
    %1552 = vst.msk [vmem:[#allocation2 + $0xc] sm:$0xf] %vm1550, %v1445
    %1553 = vst.msk [vmem:[#allocation2 + $0x18] sm:$0xf] %vm1550, %v1447
    %1554 = vst.msk [vmem:[#allocation2 + $0x24] sm:$0xf] %vm1550, %v1449
    %1555 = vst.msk [vmem:[#allocation2 + $0x30] sm:$0xf] %vm1550, %v1451
    %1556 = vst.msk [vmem:[#allocation2 + $0x3c] sm:$0xf] %vm1550, %v1453
    %1557 = vst.msk [vmem:[#allocation2 + $0x48] sm:$0xf] %vm1550, %v1455
    %1558 = vst.msk [vmem:[#allocation2 + $0x54] sm:$0xf] %vm1550, %v1457
    %1559 = vst.msk [vmem:[#allocation2 + $0x60] sm:$0xf] %vm1550, %v1459
    %1560 = vst.msk [vmem:[#allocation2 + $0x6c] sm:$0xf] %vm1550, %v1461
    %1561 = vst.msk [vmem:[#allocation2 + $0x78] sm:$0xf] %vm1550, %v1463
    %1562 = vst.msk [vmem:[#allocation2 + $0x84] sm:$0xf] %vm1550, %v1465
    %1563 = vst.msk [vmem:[#allocation2 + $0x90] sm:$0xf] %vm1550, %v1467
    %1564 = vst.msk [vmem:[#allocation2 + $0x9c] sm:$0xf] %vm1550, %v1469
    %1565 = vst.msk [vmem:[#allocation2 + $0xa8] sm:$0xf] %vm1550, %v1471
    %1566 = vst.msk [vmem:[#allocation2 + $0xb4] sm:$0xf] %vm1550, %v1473
    %1567 = vst.msk [vmem:[#allocation2 + $0xc0] sm:$0xf] %vm1550, %v1475
    %1568 = vst.msk [vmem:[#allocation2 + $0xcc] sm:$0xf] %vm1550, %v1477
    %1569 = vst.msk [vmem:[#allocation2 + $0xd8] sm:$0xf] %vm1550, %v1479
    %1570 = vst.msk [vmem:[#allocation2 + $0xe4] sm:$0xf] %vm1550, %v1481
    %1571 = vst.msk [vmem:[#allocation2 + $0xf0] sm:$0xf] %vm1550, %v1483
    %1572 = vst.msk [vmem:[#allocation2 + $0xfc] sm:$0xf] %vm1550, %v1485
    %1573 = vst.msk [vmem:[#allocation2 + $0x108] sm:$0xf] %vm1550, %v1487
    %1574 = vst.msk [vmem:[#allocation2 + $0x114] sm:$0xf] %vm1550, %v1489
    %1575 = vst.msk [vmem:[#allocation2 + $0x120] sm:$0xf] %vm1550, %v1491
    %1576 = vst.msk [vmem:[#allocation2 + $0x12c] sm:$0xf] %vm1550, %v1493
    %1577 = vst.msk [vmem:[#allocation2 + $0x138] sm:$0xf] %vm1550, %v1495
    %1578 = vst.msk [vmem:[#allocation2 + $0x144] sm:$0xf] %vm1550, %v1497
    %1579 = vst.msk [vmem:[#allocation2 + $0x150] sm:$0xf] %vm1550, %v1499
    %1580 = vst.msk [vmem:[#allocation2 + $0x15c] sm:$0xf] %vm1550, %v1501
    %1581 = vst.msk [vmem:[#allocation2 + $0x168] sm:$0xf] %vm1550, %v1503
    %1582 = vst.msk [vmem:[#allocation2 + $0x174] sm:$0xf] %vm1550, %v1505
    %1583 = vst.msk [vmem:[#allocation2 + $0x180] sm:$0xf] %vm1550, %v1507
    %1584 = vst.msk [vmem:[#allocation2 + $0x18c] sm:$0xf] %vm1550, %v1509
    %1585 = vst.msk [vmem:[#allocation2 + $0x198] sm:$0xf] %vm1550, %v1511
    %1586 = vst.msk [vmem:[#allocation2 + $0x1a4] sm:$0xf] %vm1550, %v1513
    %v1587 = vld [vmem:[%s89] sm:$0xe]
    %v1588 = vld [vmem:[%s89 + $0x4] sm:$0xf]
    %v1589 = vld [vmem:[%s89 + $0x8] sm:$0xf]
    %v1590 = vld [vmem:[%s89 + $0xc] sm:$0xf]
    %v1591 = vld [vmem:[%s89 + $0x10] sm:$0xf]
    %v1592 = vld [vmem:[%s89 + $0x14] sm:$0xf]
    %v1593 = vld [vmem:[%s89 + $0x18] sm:$0xf]
    %v1594 = vld [vmem:[%s89 + $0x1c] sm:$0xf]
    %v1595 = vld [vmem:[%s89 + $0x20] sm:$0xf]
    %v1596 = vld [vmem:[%s89 + $0x24] sm:$0xf]
    %v1597 = vld [vmem:[%s89 + $0x28] sm:$0xf]
    %v1598 = vld [vmem:[%s89 + $0x2c] sm:$0xf]
    %v1599 = vld [vmem:[%s89 + $0x30] sm:$0xf]
    %v1600 = vld [vmem:[%s89 + $0x34] sm:$0xf]
    %v1601 = vld [vmem:[%s89 + $0x38] sm:$0xf]
    %v1602 = vld [vmem:[%s89 + $0x3c] sm:$0xf]
    %v1603 = vld [vmem:[%s89 + $0x40] sm:$0xf]
    %v1604 = vld [vmem:[%s89 + $0x44] sm:$0xf]
    %v1605 = vld [vmem:[%s89 + $0x48] sm:$0xf]
    %v1606 = vld [vmem:[%s89 + $0x4c] sm:$0xf]
    %v1607 = vld [vmem:[%s89 + $0x50] sm:$0xf]
    %v1608 = vld [vmem:[%s89 + $0x54] sm:$0xf]
    %v1609 = vld [vmem:[%s89 + $0x58] sm:$0xf]
    %v1610 = vld [vmem:[%s89 + $0x5c] sm:$0xf]
    %v1611 = vld [vmem:[%s89 + $0x60] sm:$0xf]
    %v1612 = vld [vmem:[%s89 + $0x64] sm:$0xf]
    %v1613 = vld [vmem:[%s89 + $0x68] sm:$0xf]
    %v1614 = vld [vmem:[%s89 + $0x6c] sm:$0xf]
    %v1615 = vld [vmem:[%s89 + $0x70] sm:$0xf]
    %v1616 = vld [vmem:[%s89 + $0x74] sm:$0xf]
    %v1617 = vld [vmem:[%s89 + $0x78] sm:$0xf]
    %v1618 = vld [vmem:[%s89 + $0x7c] sm:$0xf]
    %v1619 = vld [vmem:[%s89 + $0x80] sm:$0xf]
    %v1620 = vld [vmem:[%s89 + $0x84] sm:$0xf]
    %v1621 = vld [vmem:[%s89 + $0x88] sm:$0xf]
    %v1622 = vld [vmem:[%s89 + $0x8c] sm:$0xf]
    %v1623 = vld [vmem:[%s89 + $0x90] sm:$0x1]
    %v1661 = vrot.slane %v1587, 5
    %v1662 = vrot.slane %v1661, 4
    %v1663 = vrot.slane %v1588, 5
    %v1664 = vsel %vm1332, %v1662, %v1663
    %v1665 = vrot.slane %v1663, 4
    %v1666 = vrot.slane %v1589, 5
    %v1667 = vsel %vm1332, %v1665, %v1666
    %v1668 = vrot.slane %v1666, 4
    %v1669 = vrot.slane %v1590, 5
    %v1670 = vsel %vm1332, %v1668, %v1669
    %v1671 = vrot.slane %v1669, 4
    %v1672 = vrot.slane %v1591, 5
    %v1673 = vsel %vm1332, %v1671, %v1672
    %v1674 = vrot.slane %v1672, 4
    %v1675 = vrot.slane %v1592, 5
    %v1676 = vsel %vm1332, %v1674, %v1675
    %v1677 = vrot.slane %v1675, 4
    %v1678 = vrot.slane %v1593, 5
    %v1679 = vsel %vm1332, %v1677, %v1678
    %v1680 = vrot.slane %v1678, 4
    %v1681 = vrot.slane %v1594, 5
    %v1682 = vsel %vm1332, %v1680, %v1681
    %v1683 = vrot.slane %v1681, 4
    %v1684 = vrot.slane %v1595, 5
    %v1685 = vsel %vm1332, %v1683, %v1684
    %v1686 = vrot.slane %v1684, 4
    %v1687 = vrot.slane %v1596, 5
    %v1688 = vsel %vm1332, %v1686, %v1687
    %v1689 = vrot.slane %v1687, 4
    %v1690 = vrot.slane %v1597, 5
    %v1691 = vsel %vm1332, %v1689, %v1690
    %v1692 = vrot.slane %v1690, 4
    %v1693 = vrot.slane %v1598, 5
    %v1694 = vsel %vm1332, %v1692, %v1693
    %v1695 = vrot.slane %v1693, 4
    %v1696 = vrot.slane %v1599, 5
    %v1697 = vsel %vm1332, %v1695, %v1696
    %v1698 = vrot.slane %v1696, 4
    %v1699 = vrot.slane %v1600, 5
    %v1700 = vsel %vm1332, %v1698, %v1699
    %v1701 = vrot.slane %v1699, 4
    %v1702 = vrot.slane %v1601, 5
    %v1703 = vsel %vm1332, %v1701, %v1702
    %v1704 = vrot.slane %v1702, 4
    %v1705 = vrot.slane %v1602, 5
    %v1706 = vsel %vm1332, %v1704, %v1705
    %v1707 = vrot.slane %v1705, 4
    %v1708 = vrot.slane %v1603, 5
    %v1709 = vsel %vm1332, %v1707, %v1708
    %v1710 = vrot.slane %v1708, 4
    %v1711 = vrot.slane %v1604, 5
    %v1712 = vsel %vm1332, %v1710, %v1711
    %v1713 = vrot.slane %v1711, 4
    %v1714 = vrot.slane %v1605, 5
    %v1715 = vsel %vm1332, %v1713, %v1714
    %v1716 = vrot.slane %v1714, 4
    %v1717 = vrot.slane %v1606, 5
    %v1718 = vsel %vm1332, %v1716, %v1717
    %v1719 = vrot.slane %v1717, 4
    %v1720 = vrot.slane %v1607, 5
    %v1721 = vsel %vm1332, %v1719, %v1720
    %v1722 = vrot.slane %v1720, 4
    %v1723 = vrot.slane %v1608, 5
    %v1724 = vsel %vm1332, %v1722, %v1723
    %v1725 = vrot.slane %v1723, 4
    %v1726 = vrot.slane %v1609, 5
    %v1727 = vsel %vm1332, %v1725, %v1726
    %v1728 = vrot.slane %v1726, 4
    %v1729 = vrot.slane %v1610, 5
    %v1730 = vsel %vm1332, %v1728, %v1729
    %v1731 = vrot.slane %v1729, 4
    %v1732 = vrot.slane %v1611, 5
    %v1733 = vsel %vm1332, %v1731, %v1732
    %v1734 = vrot.slane %v1732, 4
    %v1735 = vrot.slane %v1612, 5
    %v1736 = vsel %vm1332, %v1734, %v1735
    %v1737 = vrot.slane %v1735, 4
    %v1738 = vrot.slane %v1613, 5
    %v1739 = vsel %vm1332, %v1737, %v1738
    %v1740 = vrot.slane %v1738, 4
    %v1741 = vrot.slane %v1614, 5
    %v1742 = vsel %vm1332, %v1740, %v1741
    %v1743 = vrot.slane %v1741, 4
    %v1744 = vrot.slane %v1615, 5
    %v1745 = vsel %vm1332, %v1743, %v1744
    %v1746 = vrot.slane %v1744, 4
    %v1747 = vrot.slane %v1616, 5
    %v1748 = vsel %vm1332, %v1746, %v1747
    %v1749 = vrot.slane %v1747, 4
    %v1750 = vrot.slane %v1617, 5
    %v1751 = vsel %vm1332, %v1749, %v1750
    %v1752 = vrot.slane %v1750, 4
    %v1753 = vrot.slane %v1618, 5
    %v1754 = vsel %vm1332, %v1752, %v1753
    %v1755 = vrot.slane %v1753, 4
    %v1756 = vrot.slane %v1619, 5
    %v1757 = vsel %vm1332, %v1755, %v1756
    %v1758 = vrot.slane %v1756, 4
    %v1759 = vrot.slane %v1620, 5
    %v1760 = vsel %vm1332, %v1758, %v1759
    %v1761 = vrot.slane %v1759, 4
    %v1762 = vrot.slane %v1621, 5
    %v1763 = vsel %vm1332, %v1761, %v1762
    %v1764 = vrot.slane %v1762, 4
    %v1765 = vrot.slane %v1622, 5
    %v1766 = vsel %vm1332, %v1764, %v1765
    %v1767 = vrot.slane %v1765, 4
    %v1768 = vrot.slane %v1623, 5
    %v1769 = vsel %vm1332, %v1767, %v1768
    %1770 = vrot.lane.b32.xlu0 %v1664, 64
    %v1771 = vpop.permute.xlu0 %1770
    %1772 = vrot.lane.b32.xlu0 %v1667, 64
    %v1773 = vpop.permute.xlu0 %1772
    %1774 = vrot.lane.b32.xlu0 %v1670, 64
    %v1775 = vpop.permute.xlu0 %1774
    %1776 = vrot.lane.b32.xlu0 %v1673, 64
    %v1777 = vpop.permute.xlu0 %1776
    %1778 = vrot.lane.b32.xlu0 %v1676, 64
    %v1779 = vpop.permute.xlu0 %1778
    %1780 = vrot.lane.b32.xlu0 %v1679, 64
    %v1781 = vpop.permute.xlu0 %1780
    %1782 = vrot.lane.b32.xlu0 %v1682, 64
    %v1783 = vpop.permute.xlu0 %1782
    %1784 = vrot.lane.b32.xlu0 %v1685, 64
    %v1785 = vpop.permute.xlu0 %1784
    %1786 = vrot.lane.b32.xlu0 %v1688, 64
    %v1787 = vpop.permute.xlu0 %1786
    %1788 = vrot.lane.b32.xlu0 %v1691, 64
    %v1789 = vpop.permute.xlu0 %1788
    %1790 = vrot.lane.b32.xlu0 %v1694, 64
    %v1791 = vpop.permute.xlu0 %1790
    %1792 = vrot.lane.b32.xlu0 %v1697, 64
    %v1793 = vpop.permute.xlu0 %1792
    %1794 = vrot.lane.b32.xlu0 %v1700, 64
    %v1795 = vpop.permute.xlu0 %1794
    %1796 = vrot.lane.b32.xlu0 %v1703, 64
    %v1797 = vpop.permute.xlu0 %1796
    %1798 = vrot.lane.b32.xlu0 %v1706, 64
    %v1799 = vpop.permute.xlu0 %1798
    %1800 = vrot.lane.b32.xlu0 %v1709, 64
    %v1801 = vpop.permute.xlu0 %1800
    %1802 = vrot.lane.b32.xlu0 %v1712, 64
    %v1803 = vpop.permute.xlu0 %1802
    %1804 = vrot.lane.b32.xlu0 %v1715, 64
    %v1805 = vpop.permute.xlu0 %1804
    %1806 = vrot.lane.b32.xlu0 %v1718, 64
    %v1807 = vpop.permute.xlu0 %1806
    %1808 = vrot.lane.b32.xlu0 %v1721, 64
    %v1809 = vpop.permute.xlu0 %1808
    %1810 = vrot.lane.b32.xlu0 %v1724, 64
    %v1811 = vpop.permute.xlu0 %1810
    %1812 = vrot.lane.b32.xlu0 %v1727, 64
    %v1813 = vpop.permute.xlu0 %1812
    %1814 = vrot.lane.b32.xlu0 %v1730, 64
    %v1815 = vpop.permute.xlu0 %1814
    %1816 = vrot.lane.b32.xlu0 %v1733, 64
    %v1817 = vpop.permute.xlu0 %1816
    %1818 = vrot.lane.b32.xlu0 %v1736, 64
    %v1819 = vpop.permute.xlu0 %1818
    %1820 = vrot.lane.b32.xlu0 %v1739, 64
    %v1821 = vpop.permute.xlu0 %1820
    %1822 = vrot.lane.b32.xlu0 %v1742, 64
    %v1823 = vpop.permute.xlu0 %1822
    %1824 = vrot.lane.b32.xlu0 %v1745, 64
    %v1825 = vpop.permute.xlu0 %1824
    %1826 = vrot.lane.b32.xlu0 %v1748, 64
    %v1827 = vpop.permute.xlu0 %1826
    %1828 = vrot.lane.b32.xlu0 %v1751, 64
    %v1829 = vpop.permute.xlu0 %1828
    %1830 = vrot.lane.b32.xlu0 %v1754, 64
    %v1831 = vpop.permute.xlu0 %1830
    %1832 = vrot.lane.b32.xlu0 %v1757, 64
    %v1833 = vpop.permute.xlu0 %1832
    %1834 = vrot.lane.b32.xlu0 %v1760, 64
    %v1835 = vpop.permute.xlu0 %1834
    %1836 = vrot.lane.b32.xlu0 %v1763, 64
    %v1837 = vpop.permute.xlu0 %1836
    %1838 = vrot.lane.b32.xlu0 %v1766, 64
    %v1839 = vpop.permute.xlu0 %1838
    %1840 = vrot.lane.b32.xlu0 %v1769, 64
    %v1841 = vpop.permute.xlu0 %1840
    %1878 = vst.msk [vmem:[#allocation2 + $0x1b0] sm:$0xf] %vm1550, %v1771
    %1879 = vst.msk [vmem:[#allocation2 + $0x1bc] sm:$0xf] %vm1550, %v1773
    %1880 = vst.msk [vmem:[#allocation2 + $0x1c8] sm:$0xf] %vm1550, %v1775
    %1881 = vst.msk [vmem:[#allocation2 + $0x1d4] sm:$0xf] %vm1550, %v1777
    %1882 = vst.msk [vmem:[#allocation2 + $0x1e0] sm:$0xf] %vm1550, %v1779
    %1883 = vst.msk [vmem:[#allocation2 + $0x1ec] sm:$0xf] %vm1550, %v1781
    %1884 = vst.msk [vmem:[#allocation2 + $0x1f8] sm:$0xf] %vm1550, %v1783
    %1885 = vst.msk [vmem:[#allocation2 + $0x204] sm:$0xf] %vm1550, %v1785
    %1886 = vst.msk [vmem:[#allocation2 + $0x210] sm:$0xf] %vm1550, %v1787
    %1887 = vst.msk [vmem:[#allocation2 + $0x21c] sm:$0xf] %vm1550, %v1789
    %1888 = vst.msk [vmem:[#allocation2 + $0x228] sm:$0xf] %vm1550, %v1791
    %1889 = vst.msk [vmem:[#allocation2 + $0x234] sm:$0xf] %vm1550, %v1793
    %1890 = vst.msk [vmem:[#allocation2 + $0x240] sm:$0xf] %vm1550, %v1795
    %1891 = vst.msk [vmem:[#allocation2 + $0x24c] sm:$0xf] %vm1550, %v1797
    %1892 = vst.msk [vmem:[#allocation2 + $0x258] sm:$0xf] %vm1550, %v1799
    %1893 = vst.msk [vmem:[#allocation2 + $0x264] sm:$0xf] %vm1550, %v1801
    %1894 = vst.msk [vmem:[#allocation2 + $0x270] sm:$0xf] %vm1550, %v1803
    %1895 = vst.msk [vmem:[#allocation2 + $0x27c] sm:$0xf] %vm1550, %v1805
    %1896 = vst.msk [vmem:[#allocation2 + $0x288] sm:$0xf] %vm1550, %v1807
    %1897 = vst.msk [vmem:[#allocation2 + $0x294] sm:$0xf] %vm1550, %v1809
    %1898 = vst.msk [vmem:[#allocation2 + $0x2a0] sm:$0xf] %vm1550, %v1811
    %1899 = vst.msk [vmem:[#allocation2 + $0x2ac] sm:$0xf] %vm1550, %v1813
    %1900 = vst.msk [vmem:[#allocation2 + $0x2b8] sm:$0xf] %vm1550, %v1815
    %1901 = vst.msk [vmem:[#allocation2 + $0x2c4] sm:$0xf] %vm1550, %v1817
    %1902 = vst.msk [vmem:[#allocation2 + $0x2d0] sm:$0xf] %vm1550, %v1819
    %1903 = vst.msk [vmem:[#allocation2 + $0x2dc] sm:$0xf] %vm1550, %v1821
    %1904 = vst.msk [vmem:[#allocation2 + $0x2e8] sm:$0xf] %vm1550, %v1823
    %1905 = vst.msk [vmem:[#allocation2 + $0x2f4] sm:$0xf] %vm1550, %v1825
    %1906 = vst.msk [vmem:[#allocation2 + $0x300] sm:$0xf] %vm1550, %v1827
    %1907 = vst.msk [vmem:[#allocation2 + $0x30c] sm:$0xf] %vm1550, %v1829
    %1908 = vst.msk [vmem:[#allocation2 + $0x318] sm:$0xf] %vm1550, %v1831
    %1909 = vst.msk [vmem:[#allocation2 + $0x324] sm:$0xf] %vm1550, %v1833
    %1910 = vst.msk [vmem:[#allocation2 + $0x330] sm:$0xf] %vm1550, %v1835
    %1911 = vst.msk [vmem:[#allocation2 + $0x33c] sm:$0xf] %vm1550, %v1837
    %1912 = vst.msk [vmem:[#allocation2 + $0x348] sm:$0xf] %vm1550, %v1839
    %1913 = vst.msk [vmem:[#allocation2 + $0x354] sm:$0xf] %vm1550, %v1841
    %v1914 = vld [vmem:[%s0 + $0x8] sm:$0xe]
    %v1915 = vld [vmem:[%s0 + $0xc] sm:$0xf]
    %v1916 = vld [vmem:[%s0 + $0x10] sm:$0xf]
    %v1917 = vld [vmem:[%s0 + $0x14] sm:$0xf]
    %v1918 = vld [vmem:[%s0 + $0x18] sm:$0xf]
    %v1919 = vld [vmem:[%s0 + $0x1c] sm:$0xf]
    %v1920 = vld [vmem:[%s0 + $0x20] sm:$0xf]
    %v1921 = vld [vmem:[%s0 + $0x24] sm:$0xf]
    %v1922 = vld [vmem:[%s0 + $0x28] sm:$0xf]
    %v1923 = vld [vmem:[%s0 + $0x2c] sm:$0xf]
    %v1924 = vld [vmem:[%s0 + $0x30] sm:$0xf]
    %v1925 = vld [vmem:[%s0 + $0x34] sm:$0xf]
    %v1926 = vld [vmem:[%s0 + $0x38] sm:$0xf]
    %v1927 = vld [vmem:[%s0 + $0x3c] sm:$0xf]
    %v1928 = vld [vmem:[%s0 + $0x40] sm:$0xf]
    %v1929 = vld [vmem:[%s0 + $0x44] sm:$0xf]
    %v1930 = vld [vmem:[%s0 + $0x48] sm:$0xf]
    %v1931 = vld [vmem:[%s0 + $0x4c] sm:$0xf]
    %v1932 = vld [vmem:[%s0 + $0x50] sm:$0xf]
    %v1933 = vld [vmem:[%s0 + $0x54] sm:$0xf]
    %v1934 = vld [vmem:[%s0 + $0x58] sm:$0xf]
    %v1935 = vld [vmem:[%s0 + $0x5c] sm:$0xf]
    %v1936 = vld [vmem:[%s0 + $0x60] sm:$0xf]
    %v1937 = vld [vmem:[%s0 + $0x64] sm:$0xf]
    %v1938 = vld [vmem:[%s0 + $0x68] sm:$0xf]
    %v1939 = vld [vmem:[%s0 + $0x6c] sm:$0xf]
    %v1940 = vld [vmem:[%s0 + $0x70] sm:$0xf]
    %v1941 = vld [vmem:[%s0 + $0x74] sm:$0xf]
    %v1942 = vld [vmem:[%s0 + $0x78] sm:$0xf]
    %v1943 = vld [vmem:[%s0 + $0x7c] sm:$0xf]
    %v1944 = vld [vmem:[%s0 + $0x80] sm:$0xf]
    %v1945 = vld [vmem:[%s0 + $0x84] sm:$0xf]
    %v1946 = vld [vmem:[%s0 + $0x88] sm:$0xf]
    %v1947 = vld [vmem:[%s0 + $0x8c] sm:$0xf]
    %v1948 = vld [vmem:[%s0 + $0x90] sm:$0xf]
    %v1949 = vld [vmem:[%s0 + $0x94] sm:$0xf]
    %v1950 = vld [vmem:[%s0 + $0x98] sm:$0x1]
    %v1988 = vrot.slane %v1914, 5
    %v1989 = vrot.slane %v1988, 4
    %v1990 = vrot.slane %v1915, 5
    %v1991 = vsel %vm1332, %v1989, %v1990
    %v1992 = vrot.slane %v1990, 4
    %v1993 = vrot.slane %v1916, 5
    %v1994 = vsel %vm1332, %v1992, %v1993
    %v1995 = vrot.slane %v1993, 4
    %v1996 = vrot.slane %v1917, 5
    %v1997 = vsel %vm1332, %v1995, %v1996
    %v1998 = vrot.slane %v1996, 4
    %v1999 = vrot.slane %v1918, 5
    %v2000 = vsel %vm1332, %v1998, %v1999
    %v2001 = vrot.slane %v1999, 4
    %v2002 = vrot.slane %v1919, 5
    %v2003 = vsel %vm1332, %v2001, %v2002
    %v2004 = vrot.slane %v2002, 4
    %v2005 = vrot.slane %v1920, 5
    %v2006 = vsel %vm1332, %v2004, %v2005
    %v2007 = vrot.slane %v2005, 4
    %v2008 = vrot.slane %v1921, 5
    %v2009 = vsel %vm1332, %v2007, %v2008
    %v2010 = vrot.slane %v2008, 4
    %v2011 = vrot.slane %v1922, 5
    %v2012 = vsel %vm1332, %v2010, %v2011
    %v2013 = vrot.slane %v2011, 4
    %v2014 = vrot.slane %v1923, 5
    %v2015 = vsel %vm1332, %v2013, %v2014
    %v2016 = vrot.slane %v2014, 4
    %v2017 = vrot.slane %v1924, 5
    %v2018 = vsel %vm1332, %v2016, %v2017
    %v2019 = vrot.slane %v2017, 4
    %v2020 = vrot.slane %v1925, 5
    %v2021 = vsel %vm1332, %v2019, %v2020
    %v2022 = vrot.slane %v2020, 4
    %v2023 = vrot.slane %v1926, 5
    %v2024 = vsel %vm1332, %v2022, %v2023
    %v2025 = vrot.slane %v2023, 4
    %v2026 = vrot.slane %v1927, 5
    %v2027 = vsel %vm1332, %v2025, %v2026
    %v2028 = vrot.slane %v2026, 4
    %v2029 = vrot.slane %v1928, 5
    %v2030 = vsel %vm1332, %v2028, %v2029
    %v2031 = vrot.slane %v2029, 4
    %v2032 = vrot.slane %v1929, 5
    %v2033 = vsel %vm1332, %v2031, %v2032
    %v2034 = vrot.slane %v2032, 4
    %v2035 = vrot.slane %v1930, 5
    %v2036 = vsel %vm1332, %v2034, %v2035
    %v2037 = vrot.slane %v2035, 4
    %v2038 = vrot.slane %v1931, 5
    %v2039 = vsel %vm1332, %v2037, %v2038
    %v2040 = vrot.slane %v2038, 4
    %v2041 = vrot.slane %v1932, 5
    %v2042 = vsel %vm1332, %v2040, %v2041
    %v2043 = vrot.slane %v2041, 4
    %v2044 = vrot.slane %v1933, 5
    %v2045 = vsel %vm1332, %v2043, %v2044
    %v2046 = vrot.slane %v2044, 4
    %v2047 = vrot.slane %v1934, 5
    %v2048 = vsel %vm1332, %v2046, %v2047
    %v2049 = vrot.slane %v2047, 4
    %v2050 = vrot.slane %v1935, 5
    %v2051 = vsel %vm1332, %v2049, %v2050
    %v2052 = vrot.slane %v2050, 4
    %v2053 = vrot.slane %v1936, 5
    %v2054 = vsel %vm1332, %v2052, %v2053
    %v2055 = vrot.slane %v2053, 4
    %v2056 = vrot.slane %v1937, 5
    %v2057 = vsel %vm1332, %v2055, %v2056
    %v2058 = vrot.slane %v2056, 4
    %v2059 = vrot.slane %v1938, 5
    %v2060 = vsel %vm1332, %v2058, %v2059
    %v2061 = vrot.slane %v2059, 4
    %v2062 = vrot.slane %v1939, 5
    %v2063 = vsel %vm1332, %v2061, %v2062
    %v2064 = vrot.slane %v2062, 4
    %v2065 = vrot.slane %v1940, 5
    %v2066 = vsel %vm1332, %v2064, %v2065
    %v2067 = vrot.slane %v2065, 4
    %v2068 = vrot.slane %v1941, 5
    %v2069 = vsel %vm1332, %v2067, %v2068
    %v2070 = vrot.slane %v2068, 4
    %v2071 = vrot.slane %v1942, 5
    %v2072 = vsel %vm1332, %v2070, %v2071
    %v2073 = vrot.slane %v2071, 4
    %v2074 = vrot.slane %v1943, 5
    %v2075 = vsel %vm1332, %v2073, %v2074
    %v2076 = vrot.slane %v2074, 4
    %v2077 = vrot.slane %v1944, 5
    %v2078 = vsel %vm1332, %v2076, %v2077
    %v2079 = vrot.slane %v2077, 4
    %v2080 = vrot.slane %v1945, 5
    %v2081 = vsel %vm1332, %v2079, %v2080
    %v2082 = vrot.slane %v2080, 4
    %v2083 = vrot.slane %v1946, 5
    %v2084 = vsel %vm1332, %v2082, %v2083
    %v2085 = vrot.slane %v2083, 4
    %v2086 = vrot.slane %v1947, 5
    %v2087 = vsel %vm1332, %v2085, %v2086
    %v2088 = vrot.slane %v2086, 4
    %v2089 = vrot.slane %v1948, 5
    %v2090 = vsel %vm1332, %v2088, %v2089
    %v2091 = vrot.slane %v2089, 4
    %v2092 = vrot.slane %v1949, 5
    %v2093 = vsel %vm1332, %v2091, %v2092
    %v2094 = vrot.slane %v2092, 4
    %v2095 = vrot.slane %v1950, 5
    %v2096 = vsel %vm1332, %v2094, %v2095
    %2097 = vrot.lane.b32.xlu0 %v1991, 96
    %v2098 = vpop.permute.xlu0 %2097
    %2099 = vrot.lane.b32.xlu0 %v1994, 96
    %v2100 = vpop.permute.xlu0 %2099
    %2101 = vrot.lane.b32.xlu0 %v1997, 96
    %v2102 = vpop.permute.xlu0 %2101
    %2103 = vrot.lane.b32.xlu0 %v2000, 96
    %v2104 = vpop.permute.xlu0 %2103
    %2105 = vrot.lane.b32.xlu0 %v2003, 96
    %v2106 = vpop.permute.xlu0 %2105
    %2107 = vrot.lane.b32.xlu0 %v2006, 96
    %v2108 = vpop.permute.xlu0 %2107
    %2109 = vrot.lane.b32.xlu0 %v2009, 96
    %v2110 = vpop.permute.xlu0 %2109
    %2111 = vrot.lane.b32.xlu0 %v2012, 96
    %v2112 = vpop.permute.xlu0 %2111
    %2113 = vrot.lane.b32.xlu0 %v2015, 96
    %v2114 = vpop.permute.xlu0 %2113
    %2115 = vrot.lane.b32.xlu0 %v2018, 96
    %v2116 = vpop.permute.xlu0 %2115
    %2117 = vrot.lane.b32.xlu0 %v2021, 96
    %v2118 = vpop.permute.xlu0 %2117
    %2119 = vrot.lane.b32.xlu0 %v2024, 96
    %v2120 = vpop.permute.xlu0 %2119
    %2121 = vrot.lane.b32.xlu0 %v2027, 96
    %v2122 = vpop.permute.xlu0 %2121
    %2123 = vrot.lane.b32.xlu0 %v2030, 96
    %v2124 = vpop.permute.xlu0 %2123
    %2125 = vrot.lane.b32.xlu0 %v2033, 96
    %v2126 = vpop.permute.xlu0 %2125
    %2127 = vrot.lane.b32.xlu0 %v2036, 96
    %v2128 = vpop.permute.xlu0 %2127
    %2129 = vrot.lane.b32.xlu0 %v2039, 96
    %v2130 = vpop.permute.xlu0 %2129
    %2131 = vrot.lane.b32.xlu0 %v2042, 96
    %v2132 = vpop.permute.xlu0 %2131
    %2133 = vrot.lane.b32.xlu0 %v2045, 96
    %v2134 = vpop.permute.xlu0 %2133
    %2135 = vrot.lane.b32.xlu0 %v2048, 96
    %v2136 = vpop.permute.xlu0 %2135
    %2137 = vrot.lane.b32.xlu0 %v2051, 96
    %v2138 = vpop.permute.xlu0 %2137
    %2139 = vrot.lane.b32.xlu0 %v2054, 96
    %v2140 = vpop.permute.xlu0 %2139
    %2141 = vrot.lane.b32.xlu0 %v2057, 96
    %v2142 = vpop.permute.xlu0 %2141
    %2143 = vrot.lane.b32.xlu0 %v2060, 96
    %v2144 = vpop.permute.xlu0 %2143
    %2145 = vrot.lane.b32.xlu0 %v2063, 96
    %v2146 = vpop.permute.xlu0 %2145
    %2147 = vrot.lane.b32.xlu0 %v2066, 96
    %v2148 = vpop.permute.xlu0 %2147
    %2149 = vrot.lane.b32.xlu0 %v2069, 96
    %v2150 = vpop.permute.xlu0 %2149
    %2151 = vrot.lane.b32.xlu0 %v2072, 96
    %v2152 = vpop.permute.xlu0 %2151
    %2153 = vrot.lane.b32.xlu0 %v2075, 96
    %v2154 = vpop.permute.xlu0 %2153
    %2155 = vrot.lane.b32.xlu0 %v2078, 96
    %v2156 = vpop.permute.xlu0 %2155
    %2157 = vrot.lane.b32.xlu0 %v2081, 96
    %v2158 = vpop.permute.xlu0 %2157
    %2159 = vrot.lane.b32.xlu0 %v2084, 96
    %v2160 = vpop.permute.xlu0 %2159
    %2161 = vrot.lane.b32.xlu0 %v2087, 96
    %v2162 = vpop.permute.xlu0 %2161
    %2163 = vrot.lane.b32.xlu0 %v2090, 96
    %v2164 = vpop.permute.xlu0 %2163
    %2165 = vrot.lane.b32.xlu0 %v2093, 96
    %v2166 = vpop.permute.xlu0 %2165
    %2167 = vrot.lane.b32.xlu0 %v2096, 96
    %v2168 = vpop.permute.xlu0 %2167
    %vm2205 = vcmask 1044224
    %2206 = vst.msk [vmem:[#allocation2] sm:$0xf] %vm2205, %v2098
    %2207 = vst.msk [vmem:[#allocation2 + $0xc] sm:$0xf] %vm2205, %v2100
    %2208 = vst.msk [vmem:[#allocation2 + $0x18] sm:$0xf] %vm2205, %v2102
    %2209 = vst.msk [vmem:[#allocation2 + $0x24] sm:$0xf] %vm2205, %v2104
    %2210 = vst.msk [vmem:[#allocation2 + $0x30] sm:$0xf] %vm2205, %v2106
    %2211 = vst.msk [vmem:[#allocation2 + $0x3c] sm:$0xf] %vm2205, %v2108
    %2212 = vst.msk [vmem:[#allocation2 + $0x48] sm:$0xf] %vm2205, %v2110
    %2213 = vst.msk [vmem:[#allocation2 + $0x54] sm:$0xf] %vm2205, %v2112
    %2214 = vst.msk [vmem:[#allocation2 + $0x60] sm:$0xf] %vm2205, %v2114
    %2215 = vst.msk [vmem:[#allocation2 + $0x6c] sm:$0xf] %vm2205, %v2116
    %2216 = vst.msk [vmem:[#allocation2 + $0x78] sm:$0xf] %vm2205, %v2118
    %2217 = vst.msk [vmem:[#allocation2 + $0x84] sm:$0xf] %vm2205, %v2120
    %2218 = vst.msk [vmem:[#allocation2 + $0x90] sm:$0xf] %vm2205, %v2122
    %2219 = vst.msk [vmem:[#allocation2 + $0x9c] sm:$0xf] %vm2205, %v2124
    %2220 = vst.msk [vmem:[#allocation2 + $0xa8] sm:$0xf] %vm2205, %v2126
    %2221 = vst.msk [vmem:[#allocation2 + $0xb4] sm:$0xf] %vm2205, %v2128
    %2222 = vst.msk [vmem:[#allocation2 + $0xc0] sm:$0xf] %vm2205, %v2130
    %2223 = vst.msk [vmem:[#allocation2 + $0xcc] sm:$0xf] %vm2205, %v2132
    %2224 = vst.msk [vmem:[#allocation2 + $0xd8] sm:$0xf] %vm2205, %v2134
    %2225 = vst.msk [vmem:[#allocation2 + $0xe4] sm:$0xf] %vm2205, %v2136
    %2226 = vst.msk [vmem:[#allocation2 + $0xf0] sm:$0xf] %vm2205, %v2138
    %2227 = vst.msk [vmem:[#allocation2 + $0xfc] sm:$0xf] %vm2205, %v2140
    %2228 = vst.msk [vmem:[#allocation2 + $0x108] sm:$0xf] %vm2205, %v2142
    %2229 = vst.msk [vmem:[#allocation2 + $0x114] sm:$0xf] %vm2205, %v2144
    %2230 = vst.msk [vmem:[#allocation2 + $0x120] sm:$0xf] %vm2205, %v2146
    %2231 = vst.msk [vmem:[#allocation2 + $0x12c] sm:$0xf] %vm2205, %v2148
    %2232 = vst.msk [vmem:[#allocation2 + $0x138] sm:$0xf] %vm2205, %v2150
    %2233 = vst.msk [vmem:[#allocation2 + $0x144] sm:$0xf] %vm2205, %v2152
    %2234 = vst.msk [vmem:[#allocation2 + $0x150] sm:$0xf] %vm2205, %v2154
    %2235 = vst.msk [vmem:[#allocation2 + $0x15c] sm:$0xf] %vm2205, %v2156
    %2236 = vst.msk [vmem:[#allocation2 + $0x168] sm:$0xf] %vm2205, %v2158
    %2237 = vst.msk [vmem:[#allocation2 + $0x174] sm:$0xf] %vm2205, %v2160
    %2238 = vst.msk [vmem:[#allocation2 + $0x180] sm:$0xf] %vm2205, %v2162
    %2239 = vst.msk [vmem:[#allocation2 + $0x18c] sm:$0xf] %vm2205, %v2164
    %2240 = vst.msk [vmem:[#allocation2 + $0x198] sm:$0xf] %vm2205, %v2166
    %2241 = vst.msk [vmem:[#allocation2 + $0x1a4] sm:$0xf] %vm2205, %v2168
    %v2242 = vld [vmem:[%s89 + $0x8] sm:$0xe]
    %v2243 = vld [vmem:[%s89 + $0xc] sm:$0xf]
    %v2244 = vld [vmem:[%s89 + $0x10] sm:$0xf]
    %v2245 = vld [vmem:[%s89 + $0x14] sm:$0xf]
    %v2246 = vld [vmem:[%s89 + $0x18] sm:$0xf]
    %v2247 = vld [vmem:[%s89 + $0x1c] sm:$0xf]
    %v2248 = vld [vmem:[%s89 + $0x20] sm:$0xf]
    %v2249 = vld [vmem:[%s89 + $0x24] sm:$0xf]
    %v2250 = vld [vmem:[%s89 + $0x28] sm:$0xf]
    %v2251 = vld [vmem:[%s89 + $0x2c] sm:$0xf]
    %v2252 = vld [vmem:[%s89 + $0x30] sm:$0xf]
    %v2253 = vld [vmem:[%s89 + $0x34] sm:$0xf]
    %v2254 = vld [vmem:[%s89 + $0x38] sm:$0xf]
    %v2255 = vld [vmem:[%s89 + $0x3c] sm:$0xf]
    %v2256 = vld [vmem:[%s89 + $0x40] sm:$0xf]
    %v2257 = vld [vmem:[%s89 + $0x44] sm:$0xf]
    %v2258 = vld [vmem:[%s89 + $0x48] sm:$0xf]
    %v2259 = vld [vmem:[%s89 + $0x4c] sm:$0xf]
    %v2260 = vld [vmem:[%s89 + $0x50] sm:$0xf]
    %v2261 = vld [vmem:[%s89 + $0x54] sm:$0xf]
    %v2262 = vld [vmem:[%s89 + $0x58] sm:$0xf]
    %v2263 = vld [vmem:[%s89 + $0x5c] sm:$0xf]
    %v2264 = vld [vmem:[%s89 + $0x60] sm:$0xf]
    %v2265 = vld [vmem:[%s89 + $0x64] sm:$0xf]
    %v2266 = vld [vmem:[%s89 + $0x68] sm:$0xf]
    %v2267 = vld [vmem:[%s89 + $0x6c] sm:$0xf]
    %v2268 = vld [vmem:[%s89 + $0x70] sm:$0xf]
    %v2269 = vld [vmem:[%s89 + $0x74] sm:$0xf]
    %v2270 = vld [vmem:[%s89 + $0x78] sm:$0xf]
    %v2271 = vld [vmem:[%s89 + $0x7c] sm:$0xf]
    %v2272 = vld [vmem:[%s89 + $0x80] sm:$0xf]
    %v2273 = vld [vmem:[%s89 + $0x84] sm:$0xf]
    %v2274 = vld [vmem:[%s89 + $0x88] sm:$0xf]
    %v2275 = vld [vmem:[%s89 + $0x8c] sm:$0xf]
    %v2276 = vld [vmem:[%s89 + $0x90] sm:$0xf]
    %v2277 = vld [vmem:[%s89 + $0x94] sm:$0xf]
    %v2278 = vld [vmem:[%s89 + $0x98] sm:$0x1]
    %v2316 = vrot.slane %v2242, 5
    %v2317 = vrot.slane %v2316, 4
    %v2318 = vrot.slane %v2243, 5
    %v2319 = vsel %vm1332, %v2317, %v2318
    %v2320 = vrot.slane %v2318, 4
    %v2321 = vrot.slane %v2244, 5
    %v2322 = vsel %vm1332, %v2320, %v2321
    %v2323 = vrot.slane %v2321, 4
    %v2324 = vrot.slane %v2245, 5
    %v2325 = vsel %vm1332, %v2323, %v2324
    %v2326 = vrot.slane %v2324, 4
    %v2327 = vrot.slane %v2246, 5
    %v2328 = vsel %vm1332, %v2326, %v2327
    %v2329 = vrot.slane %v2327, 4
    %v2330 = vrot.slane %v2247, 5
    %v2331 = vsel %vm1332, %v2329, %v2330
    %v2332 = vrot.slane %v2330, 4
    %v2333 = vrot.slane %v2248, 5
    %v2334 = vsel %vm1332, %v2332, %v2333
    %v2335 = vrot.slane %v2333, 4
    %v2336 = vrot.slane %v2249, 5
    %v2337 = vsel %vm1332, %v2335, %v2336
    %v2338 = vrot.slane %v2336, 4
    %v2339 = vrot.slane %v2250, 5
    %v2340 = vsel %vm1332, %v2338, %v2339
    %v2341 = vrot.slane %v2339, 4
    %v2342 = vrot.slane %v2251, 5
    %v2343 = vsel %vm1332, %v2341, %v2342
    %v2344 = vrot.slane %v2342, 4
    %v2345 = vrot.slane %v2252, 5
    %v2346 = vsel %vm1332, %v2344, %v2345
    %v2347 = vrot.slane %v2345, 4
    %v2348 = vrot.slane %v2253, 5
    %v2349 = vsel %vm1332, %v2347, %v2348
    %v2350 = vrot.slane %v2348, 4
    %v2351 = vrot.slane %v2254, 5
    %v2352 = vsel %vm1332, %v2350, %v2351
    %v2353 = vrot.slane %v2351, 4
    %v2354 = vrot.slane %v2255, 5
    %v2355 = vsel %vm1332, %v2353, %v2354
    %v2356 = vrot.slane %v2354, 4
    %v2357 = vrot.slane %v2256, 5
    %v2358 = vsel %vm1332, %v2356, %v2357
    %v2359 = vrot.slane %v2357, 4
    %v2360 = vrot.slane %v2257, 5
    %v2361 = vsel %vm1332, %v2359, %v2360
    %v2362 = vrot.slane %v2360, 4
    %v2363 = vrot.slane %v2258, 5
    %v2364 = vsel %vm1332, %v2362, %v2363
    %v2365 = vrot.slane %v2363, 4
    %v2366 = vrot.slane %v2259, 5
    %v2367 = vsel %vm1332, %v2365, %v2366
    %v2368 = vrot.slane %v2366, 4
    %v2369 = vrot.slane %v2260, 5
    %v2370 = vsel %vm1332, %v2368, %v2369
    %v2371 = vrot.slane %v2369, 4
    %v2372 = vrot.slane %v2261, 5
    %v2373 = vsel %vm1332, %v2371, %v2372
    %v2374 = vrot.slane %v2372, 4
    %v2375 = vrot.slane %v2262, 5
    %v2376 = vsel %vm1332, %v2374, %v2375
    %v2377 = vrot.slane %v2375, 4
    %v2378 = vrot.slane %v2263, 5
    %v2379 = vsel %vm1332, %v2377, %v2378
    %v2380 = vrot.slane %v2378, 4
    %v2381 = vrot.slane %v2264, 5
    %v2382 = vsel %vm1332, %v2380, %v2381
    %v2383 = vrot.slane %v2381, 4
    %v2384 = vrot.slane %v2265, 5
    %v2385 = vsel %vm1332, %v2383, %v2384
    %v2386 = vrot.slane %v2384, 4
    %v2387 = vrot.slane %v2266, 5
    %v2388 = vsel %vm1332, %v2386, %v2387
    %v2389 = vrot.slane %v2387, 4
    %v2390 = vrot.slane %v2267, 5
    %v2391 = vsel %vm1332, %v2389, %v2390
    %v2392 = vrot.slane %v2390, 4
    %v2393 = vrot.slane %v2268, 5
    %v2394 = vsel %vm1332, %v2392, %v2393
    %v2395 = vrot.slane %v2393, 4
    %v2396 = vrot.slane %v2269, 5
    %v2397 = vsel %vm1332, %v2395, %v2396
    %v2398 = vrot.slane %v2396, 4
    %v2399 = vrot.slane %v2270, 5
    %v2400 = vsel %vm1332, %v2398, %v2399
    %v2401 = vrot.slane %v2399, 4
    %v2402 = vrot.slane %v2271, 5
    %v2403 = vsel %vm1332, %v2401, %v2402
    %v2404 = vrot.slane %v2402, 4
    %v2405 = vrot.slane %v2272, 5
    %v2406 = vsel %vm1332, %v2404, %v2405
    %v2407 = vrot.slane %v2405, 4
    %v2408 = vrot.slane %v2273, 5
    %v2409 = vsel %vm1332, %v2407, %v2408
    %v2410 = vrot.slane %v2408, 4
    %v2411 = vrot.slane %v2274, 5
    %v2412 = vsel %vm1332, %v2410, %v2411
    %v2413 = vrot.slane %v2411, 4
    %v2414 = vrot.slane %v2275, 5
    %v2415 = vsel %vm1332, %v2413, %v2414
    %v2416 = vrot.slane %v2414, 4
    %v2417 = vrot.slane %v2276, 5
    %v2418 = vsel %vm1332, %v2416, %v2417
    %v2419 = vrot.slane %v2417, 4
    %v2420 = vrot.slane %v2277, 5
    %v2421 = vsel %vm1332, %v2419, %v2420
    %v2422 = vrot.slane %v2420, 4
    %v2423 = vrot.slane %v2278, 5
    %v2424 = vsel %vm1332, %v2422, %v2423
    %2425 = vrot.lane.b32.xlu0 %v2319, 96
    %v2426 = vpop.permute.xlu0 %2425
    %2427 = vrot.lane.b32.xlu0 %v2322, 96
    %v2428 = vpop.permute.xlu0 %2427
    %2429 = vrot.lane.b32.xlu0 %v2325, 96
    %v2430 = vpop.permute.xlu0 %2429
    %2431 = vrot.lane.b32.xlu0 %v2328, 96
    %v2432 = vpop.permute.xlu0 %2431
    %2433 = vrot.lane.b32.xlu0 %v2331, 96
    %v2434 = vpop.permute.xlu0 %2433
    %2435 = vrot.lane.b32.xlu0 %v2334, 96
    %v2436 = vpop.permute.xlu0 %2435
    %2437 = vrot.lane.b32.xlu0 %v2337, 96
    %v2438 = vpop.permute.xlu0 %2437
    %2439 = vrot.lane.b32.xlu0 %v2340, 96
    %v2440 = vpop.permute.xlu0 %2439
    %2441 = vrot.lane.b32.xlu0 %v2343, 96
    %v2442 = vpop.permute.xlu0 %2441
    %2443 = vrot.lane.b32.xlu0 %v2346, 96
    %v2444 = vpop.permute.xlu0 %2443
    %2445 = vrot.lane.b32.xlu0 %v2349, 96
    %v2446 = vpop.permute.xlu0 %2445
    %2447 = vrot.lane.b32.xlu0 %v2352, 96
    %v2448 = vpop.permute.xlu0 %2447
    %2449 = vrot.lane.b32.xlu0 %v2355, 96
    %v2450 = vpop.permute.xlu0 %2449
    %2451 = vrot.lane.b32.xlu0 %v2358, 96
    %v2452 = vpop.permute.xlu0 %2451
    %2453 = vrot.lane.b32.xlu0 %v2361, 96
    %v2454 = vpop.permute.xlu0 %2453
    %2455 = vrot.lane.b32.xlu0 %v2364, 96
    %v2456 = vpop.permute.xlu0 %2455
    %2457 = vrot.lane.b32.xlu0 %v2367, 96
    %v2458 = vpop.permute.xlu0 %2457
    %2459 = vrot.lane.b32.xlu0 %v2370, 96
    %v2460 = vpop.permute.xlu0 %2459
    %2461 = vrot.lane.b32.xlu0 %v2373, 96
    %v2462 = vpop.permute.xlu0 %2461
    %2463 = vrot.lane.b32.xlu0 %v2376, 96
    %v2464 = vpop.permute.xlu0 %2463
    %2465 = vrot.lane.b32.xlu0 %v2379, 96
    %v2466 = vpop.permute.xlu0 %2465
    %2467 = vrot.lane.b32.xlu0 %v2382, 96
    %v2468 = vpop.permute.xlu0 %2467
    %2469 = vrot.lane.b32.xlu0 %v2385, 96
    %v2470 = vpop.permute.xlu0 %2469
    %2471 = vrot.lane.b32.xlu0 %v2388, 96
    %v2472 = vpop.permute.xlu0 %2471
    %2473 = vrot.lane.b32.xlu0 %v2391, 96
    %v2474 = vpop.permute.xlu0 %2473
    %2475 = vrot.lane.b32.xlu0 %v2394, 96
    %v2476 = vpop.permute.xlu0 %2475
    %2477 = vrot.lane.b32.xlu0 %v2397, 96
    %v2478 = vpop.permute.xlu0 %2477
    %2479 = vrot.lane.b32.xlu0 %v2400, 96
    %v2480 = vpop.permute.xlu0 %2479
    %2481 = vrot.lane.b32.xlu0 %v2403, 96
    %v2482 = vpop.permute.xlu0 %2481
    %2483 = vrot.lane.b32.xlu0 %v2406, 96
    %v2484 = vpop.permute.xlu0 %2483
    %2485 = vrot.lane.b32.xlu0 %v2409, 96
    %v2486 = vpop.permute.xlu0 %2485
    %2487 = vrot.lane.b32.xlu0 %v2412, 96
    %v2488 = vpop.permute.xlu0 %2487
    %2489 = vrot.lane.b32.xlu0 %v2415, 96
    %v2490 = vpop.permute.xlu0 %2489
    %2491 = vrot.lane.b32.xlu0 %v2418, 96
    %v2492 = vpop.permute.xlu0 %2491
    %2493 = vrot.lane.b32.xlu0 %v2421, 96
    %v2494 = vpop.permute.xlu0 %2493
    %2495 = vrot.lane.b32.xlu0 %v2424, 96
    %v2496 = vpop.permute.xlu0 %2495
    %2533 = vst.msk [vmem:[#allocation2 + $0x1b0] sm:$0xf] %vm2205, %v2426
    %2534 = vst.msk [vmem:[#allocation2 + $0x1bc] sm:$0xf] %vm2205, %v2428
    %2535 = vst.msk [vmem:[#allocation2 + $0x1c8] sm:$0xf] %vm2205, %v2430
    %2536 = vst.msk [vmem:[#allocation2 + $0x1d4] sm:$0xf] %vm2205, %v2432
    %2537 = vst.msk [vmem:[#allocation2 + $0x1e0] sm:$0xf] %vm2205, %v2434
    %2538 = vst.msk [vmem:[#allocation2 + $0x1ec] sm:$0xf] %vm2205, %v2436
    %2539 = vst.msk [vmem:[#allocation2 + $0x1f8] sm:$0xf] %vm2205, %v2438
    %2540 = vst.msk [vmem:[#allocation2 + $0x204] sm:$0xf] %vm2205, %v2440
    %2541 = vst.msk [vmem:[#allocation2 + $0x210] sm:$0xf] %vm2205, %v2442
    %2542 = vst.msk [vmem:[#allocation2 + $0x21c] sm:$0xf] %vm2205, %v2444
    %2543 = vst.msk [vmem:[#allocation2 + $0x228] sm:$0xf] %vm2205, %v2446
    %2544 = vst.msk [vmem:[#allocation2 + $0x234] sm:$0xf] %vm2205, %v2448
    %2545 = vst.msk [vmem:[#allocation2 + $0x240] sm:$0xf] %vm2205, %v2450
    %2546 = vst.msk [vmem:[#allocation2 + $0x24c] sm:$0xf] %vm2205, %v2452
    %2547 = vst.msk [vmem:[#allocation2 + $0x258] sm:$0xf] %vm2205, %v2454
    %2548 = vst.msk [vmem:[#allocation2 + $0x264] sm:$0xf] %vm2205, %v2456
    %2549 = vst.msk [vmem:[#allocation2 + $0x270] sm:$0xf] %vm2205, %v2458
    %2550 = vst.msk [vmem:[#allocation2 + $0x27c] sm:$0xf] %vm2205, %v2460
    %2551 = vst.msk [vmem:[#allocation2 + $0x288] sm:$0xf] %vm2205, %v2462
    %2552 = vst.msk [vmem:[#allocation2 + $0x294] sm:$0xf] %vm2205, %v2464
    %2553 = vst.msk [vmem:[#allocation2 + $0x2a0] sm:$0xf] %vm2205, %v2466
    %2554 = vst.msk [vmem:[#allocation2 + $0x2ac] sm:$0xf] %vm2205, %v2468
    %2555 = vst.msk [vmem:[#allocation2 + $0x2b8] sm:$0xf] %vm2205, %v2470
    %2556 = vst.msk [vmem:[#allocation2 + $0x2c4] sm:$0xf] %vm2205, %v2472
    %2557 = vst.msk [vmem:[#allocation2 + $0x2d0] sm:$0xf] %vm2205, %v2474
    %2558 = vst.msk [vmem:[#allocation2 + $0x2dc] sm:$0xf] %vm2205, %v2476
    %2559 = vst.msk [vmem:[#allocation2 + $0x2e8] sm:$0xf] %vm2205, %v2478
    %2560 = vst.msk [vmem:[#allocation2 + $0x2f4] sm:$0xf] %vm2205, %v2480
    %2561 = vst.msk [vmem:[#allocation2 + $0x300] sm:$0xf] %vm2205, %v2482
    %2562 = vst.msk [vmem:[#allocation2 + $0x30c] sm:$0xf] %vm2205, %v2484
    %2563 = vst.msk [vmem:[#allocation2 + $0x318] sm:$0xf] %vm2205, %v2486
    %2564 = vst.msk [vmem:[#allocation2 + $0x324] sm:$0xf] %vm2205, %v2488
    %2565 = vst.msk [vmem:[#allocation2 + $0x330] sm:$0xf] %vm2205, %v2490
    %2566 = vst.msk [vmem:[#allocation2 + $0x33c] sm:$0xf] %vm2205, %v2492
    %2567 = vst.msk [vmem:[#allocation2 + $0x348] sm:$0xf] %vm2205, %v2494
    %2568 = vst.msk [vmem:[#allocation2 + $0x354] sm:$0xf] %vm2205, %v2496
    %v2569 = vld [vmem:[%s0 + $0x8] sm:$0xe]
    %v2570 = vld [vmem:[%s0 + $0xc] sm:$0xf]
    %v2571 = vld [vmem:[%s0 + $0x10] sm:$0xf]
    %v2572 = vld [vmem:[%s0 + $0x14] sm:$0xf]
    %v2573 = vld [vmem:[%s0 + $0x18] sm:$0xf]
    %v2574 = vld [vmem:[%s0 + $0x1c] sm:$0xf]
    %v2575 = vld [vmem:[%s0 + $0x20] sm:$0xf]
    %v2576 = vld [vmem:[%s0 + $0x24] sm:$0xf]
    %v2577 = vld [vmem:[%s0 + $0x28] sm:$0xf]
    %v2578 = vld [vmem:[%s0 + $0x2c] sm:$0xf]
    %v2579 = vld [vmem:[%s0 + $0x30] sm:$0xf]
    %v2580 = vld [vmem:[%s0 + $0x34] sm:$0xf]
    %v2581 = vld [vmem:[%s0 + $0x38] sm:$0xf]
    %v2582 = vld [vmem:[%s0 + $0x3c] sm:$0xf]
    %v2583 = vld [vmem:[%s0 + $0x40] sm:$0xf]
    %v2584 = vld [vmem:[%s0 + $0x44] sm:$0xf]
    %v2585 = vld [vmem:[%s0 + $0x48] sm:$0xf]
    %v2586 = vld [vmem:[%s0 + $0x4c] sm:$0xf]
    %v2587 = vld [vmem:[%s0 + $0x50] sm:$0xf]
    %v2588 = vld [vmem:[%s0 + $0x54] sm:$0xf]
    %v2589 = vld [vmem:[%s0 + $0x58] sm:$0xf]
    %v2590 = vld [vmem:[%s0 + $0x5c] sm:$0xf]
    %v2591 = vld [vmem:[%s0 + $0x60] sm:$0xf]
    %v2592 = vld [vmem:[%s0 + $0x64] sm:$0xf]
    %v2593 = vld [vmem:[%s0 + $0x68] sm:$0xf]
    %v2594 = vld [vmem:[%s0 + $0x6c] sm:$0xf]
    %v2595 = vld [vmem:[%s0 + $0x70] sm:$0xf]
    %v2596 = vld [vmem:[%s0 + $0x74] sm:$0xf]
    %v2597 = vld [vmem:[%s0 + $0x78] sm:$0xf]
    %v2598 = vld [vmem:[%s0 + $0x7c] sm:$0xf]
    %v2599 = vld [vmem:[%s0 + $0x80] sm:$0xf]
    %v2600 = vld [vmem:[%s0 + $0x84] sm:$0xf]
    %v2601 = vld [vmem:[%s0 + $0x88] sm:$0xf]
    %v2602 = vld [vmem:[%s0 + $0x8c] sm:$0xf]
    %v2603 = vld [vmem:[%s0 + $0x90] sm:$0xf]
    %v2604 = vld [vmem:[%s0 + $0x94] sm:$0xf]
    %v2605 = vld [vmem:[%s0 + $0x98] sm:$0x3]
    %vm2606 = vsmask.f32 2304
    %vm2607 = vsmask.f32 6416
    %vm2608 = vmor %vm2606, %vm2607
    %v2610 = vshrl.u32 %v2569, 16
    %v2612 = vrot.slane %v2610, 5
    %v2613 = vshll.u32 %v2569, 16
    %v2615 = vrot.slane %v2613, 6
    %v2616 = vor.u32 %v2612, %v2615
    %v2617 = vrot.slane %v2616, 4
    %v2619 = vshrl.u32 %v2570, 16
    %v2621 = vrot.slane %v2619, 5
    %v2622 = vshll.u32 %v2570, 16
    %v2624 = vrot.slane %v2622, 6
    %v2625 = vor.u32 %v2621, %v2624
    %v2626 = vsel %vm2608, %v2617, %v2625
    %v2627 = vrot.slane %v2625, 4
    %v2629 = vshrl.u32 %v2571, 16
    %v2631 = vrot.slane %v2629, 5
    %v2632 = vshll.u32 %v2571, 16
    %v2634 = vrot.slane %v2632, 6
    %v2635 = vor.u32 %v2631, %v2634
    %v2636 = vsel %vm2608, %v2627, %v2635
    %v2637 = vrot.slane %v2635, 4
    %v2639 = vshrl.u32 %v2572, 16
    %v2641 = vrot.slane %v2639, 5
    %v2642 = vshll.u32 %v2572, 16
    %v2644 = vrot.slane %v2642, 6
    %v2645 = vor.u32 %v2641, %v2644
    %v2646 = vsel %vm2608, %v2637, %v2645
    %v2647 = vrot.slane %v2645, 4
    %v2649 = vshrl.u32 %v2573, 16
    %v2651 = vrot.slane %v2649, 5
    %v2652 = vshll.u32 %v2573, 16
    %v2654 = vrot.slane %v2652, 6
    %v2655 = vor.u32 %v2651, %v2654
    %v2656 = vsel %vm2608, %v2647, %v2655
    %v2657 = vrot.slane %v2655, 4
    %v2659 = vshrl.u32 %v2574, 16
    %v2661 = vrot.slane %v2659, 5
    %v2662 = vshll.u32 %v2574, 16
    %v2664 = vrot.slane %v2662, 6
    %v2665 = vor.u32 %v2661, %v2664
    %v2666 = vsel %vm2608, %v2657, %v2665
    %v2667 = vrot.slane %v2665, 4
    %v2669 = vshrl.u32 %v2575, 16
    %v2671 = vrot.slane %v2669, 5
    %v2672 = vshll.u32 %v2575, 16
    %v2674 = vrot.slane %v2672, 6
    %v2675 = vor.u32 %v2671, %v2674
    %v2676 = vsel %vm2608, %v2667, %v2675
    %v2677 = vrot.slane %v2675, 4
    %v2679 = vshrl.u32 %v2576, 16
    %v2681 = vrot.slane %v2679, 5
    %v2682 = vshll.u32 %v2576, 16
    %v2684 = vrot.slane %v2682, 6
    %v2685 = vor.u32 %v2681, %v2684
    %v2686 = vsel %vm2608, %v2677, %v2685
    %v2687 = vrot.slane %v2685, 4
    %v2689 = vshrl.u32 %v2577, 16
    %v2691 = vrot.slane %v2689, 5
    %v2692 = vshll.u32 %v2577, 16
    %v2694 = vrot.slane %v2692, 6
    %v2695 = vor.u32 %v2691, %v2694
    %v2696 = vsel %vm2608, %v2687, %v2695
    %v2697 = vrot.slane %v2695, 4
    %v2699 = vshrl.u32 %v2578, 16
    %v2701 = vrot.slane %v2699, 5
    %v2702 = vshll.u32 %v2578, 16
    %v2704 = vrot.slane %v2702, 6
    %v2705 = vor.u32 %v2701, %v2704
    %v2706 = vsel %vm2608, %v2697, %v2705
    %v2707 = vrot.slane %v2705, 4
    %v2709 = vshrl.u32 %v2579, 16
    %v2711 = vrot.slane %v2709, 5
    %v2712 = vshll.u32 %v2579, 16
    %v2714 = vrot.slane %v2712, 6
    %v2715 = vor.u32 %v2711, %v2714
    %v2716 = vsel %vm2608, %v2707, %v2715
    %v2717 = vrot.slane %v2715, 4
    %v2719 = vshrl.u32 %v2580, 16
    %v2721 = vrot.slane %v2719, 5
    %v2722 = vshll.u32 %v2580, 16
    %v2724 = vrot.slane %v2722, 6
    %v2725 = vor.u32 %v2721, %v2724
    %v2726 = vsel %vm2608, %v2717, %v2725
    %v2727 = vrot.slane %v2725, 4
    %v2729 = vshrl.u32 %v2581, 16
    %v2731 = vrot.slane %v2729, 5
    %v2732 = vshll.u32 %v2581, 16
    %v2734 = vrot.slane %v2732, 6
    %v2735 = vor.u32 %v2731, %v2734
    %v2736 = vsel %vm2608, %v2727, %v2735
    %v2737 = vrot.slane %v2735, 4
    %v2739 = vshrl.u32 %v2582, 16
    %v2741 = vrot.slane %v2739, 5
    %v2742 = vshll.u32 %v2582, 16
    %v2744 = vrot.slane %v2742, 6
    %v2745 = vor.u32 %v2741, %v2744
    %v2746 = vsel %vm2608, %v2737, %v2745
    %v2747 = vrot.slane %v2745, 4
    %v2749 = vshrl.u32 %v2583, 16
    %v2751 = vrot.slane %v2749, 5
    %v2752 = vshll.u32 %v2583, 16
    %v2754 = vrot.slane %v2752, 6
    %v2755 = vor.u32 %v2751, %v2754
    %v2756 = vsel %vm2608, %v2747, %v2755
    %v2757 = vrot.slane %v2755, 4
    %v2759 = vshrl.u32 %v2584, 16
    %v2761 = vrot.slane %v2759, 5
    %v2762 = vshll.u32 %v2584, 16
    %v2764 = vrot.slane %v2762, 6
    %v2765 = vor.u32 %v2761, %v2764
    %v2766 = vsel %vm2608, %v2757, %v2765
    %v2767 = vrot.slane %v2765, 4
    %v2769 = vshrl.u32 %v2585, 16
    %v2771 = vrot.slane %v2769, 5
    %v2772 = vshll.u32 %v2585, 16
    %v2774 = vrot.slane %v2772, 6
    %v2775 = vor.u32 %v2771, %v2774
    %v2776 = vsel %vm2608, %v2767, %v2775
    %v2777 = vrot.slane %v2775, 4
    %v2779 = vshrl.u32 %v2586, 16
    %v2781 = vrot.slane %v2779, 5
    %v2782 = vshll.u32 %v2586, 16
    %v2784 = vrot.slane %v2782, 6
    %v2785 = vor.u32 %v2781, %v2784
    %v2786 = vsel %vm2608, %v2777, %v2785
    %v2787 = vrot.slane %v2785, 4
    %v2789 = vshrl.u32 %v2587, 16
    %v2791 = vrot.slane %v2789, 5
    %v2792 = vshll.u32 %v2587, 16
    %v2794 = vrot.slane %v2792, 6
    %v2795 = vor.u32 %v2791, %v2794
    %v2796 = vsel %vm2608, %v2787, %v2795
    %v2797 = vrot.slane %v2795, 4
    %v2799 = vshrl.u32 %v2588, 16
    %v2801 = vrot.slane %v2799, 5
    %v2802 = vshll.u32 %v2588, 16
    %v2804 = vrot.slane %v2802, 6
    %v2805 = vor.u32 %v2801, %v2804
    %v2806 = vsel %vm2608, %v2797, %v2805
    %v2807 = vrot.slane %v2805, 4
    %v2809 = vshrl.u32 %v2589, 16
    %v2811 = vrot.slane %v2809, 5
    %v2812 = vshll.u32 %v2589, 16
    %v2814 = vrot.slane %v2812, 6
    %v2815 = vor.u32 %v2811, %v2814
    %v2816 = vsel %vm2608, %v2807, %v2815
    %v2817 = vrot.slane %v2815, 4
    %v2819 = vshrl.u32 %v2590, 16
    %v2821 = vrot.slane %v2819, 5
    %v2822 = vshll.u32 %v2590, 16
    %v2824 = vrot.slane %v2822, 6
    %v2825 = vor.u32 %v2821, %v2824
    %v2826 = vsel %vm2608, %v2817, %v2825
    %v2827 = vrot.slane %v2825, 4
    %v2829 = vshrl.u32 %v2591, 16
    %v2831 = vrot.slane %v2829, 5
    %v2832 = vshll.u32 %v2591, 16
    %v2834 = vrot.slane %v2832, 6
    %v2835 = vor.u32 %v2831, %v2834
    %v2836 = vsel %vm2608, %v2827, %v2835
    %v2837 = vrot.slane %v2835, 4
    %v2839 = vshrl.u32 %v2592, 16
    %v2841 = vrot.slane %v2839, 5
    %v2842 = vshll.u32 %v2592, 16
    %v2844 = vrot.slane %v2842, 6
    %v2845 = vor.u32 %v2841, %v2844
    %v2846 = vsel %vm2608, %v2837, %v2845
    %v2847 = vrot.slane %v2845, 4
    %v2849 = vshrl.u32 %v2593, 16
    %v2851 = vrot.slane %v2849, 5
    %v2852 = vshll.u32 %v2593, 16
    %v2854 = vrot.slane %v2852, 6
    %v2855 = vor.u32 %v2851, %v2854
    %v2856 = vsel %vm2608, %v2847, %v2855
    %v2857 = vrot.slane %v2855, 4
    %v2859 = vshrl.u32 %v2594, 16
    %v2861 = vrot.slane %v2859, 5
    %v2862 = vshll.u32 %v2594, 16
    %v2864 = vrot.slane %v2862, 6
    %v2865 = vor.u32 %v2861, %v2864
    %v2866 = vsel %vm2608, %v2857, %v2865
    %v2867 = vrot.slane %v2865, 4
    %v2869 = vshrl.u32 %v2595, 16
    %v2871 = vrot.slane %v2869, 5
    %v2872 = vshll.u32 %v2595, 16
    %v2874 = vrot.slane %v2872, 6
    %v2875 = vor.u32 %v2871, %v2874
    %v2876 = vsel %vm2608, %v2867, %v2875
    %v2877 = vrot.slane %v2875, 4
    %v2879 = vshrl.u32 %v2596, 16
    %v2881 = vrot.slane %v2879, 5
    %v2882 = vshll.u32 %v2596, 16
    %v2884 = vrot.slane %v2882, 6
    %v2885 = vor.u32 %v2881, %v2884
    %v2886 = vsel %vm2608, %v2877, %v2885
    %v2887 = vrot.slane %v2885, 4
    %v2889 = vshrl.u32 %v2597, 16
    %v2891 = vrot.slane %v2889, 5
    %v2892 = vshll.u32 %v2597, 16
    %v2894 = vrot.slane %v2892, 6
    %v2895 = vor.u32 %v2891, %v2894
    %v2896 = vsel %vm2608, %v2887, %v2895
    %v2897 = vrot.slane %v2895, 4
    %v2899 = vshrl.u32 %v2598, 16
    %v2901 = vrot.slane %v2899, 5
    %v2902 = vshll.u32 %v2598, 16
    %v2904 = vrot.slane %v2902, 6
    %v2905 = vor.u32 %v2901, %v2904
    %v2906 = vsel %vm2608, %v2897, %v2905
    %v2907 = vrot.slane %v2905, 4
    %v2909 = vshrl.u32 %v2599, 16
    %v2911 = vrot.slane %v2909, 5
    %v2912 = vshll.u32 %v2599, 16
    %v2914 = vrot.slane %v2912, 6
    %v2915 = vor.u32 %v2911, %v2914
    %v2916 = vsel %vm2608, %v2907, %v2915
    %v2917 = vrot.slane %v2915, 4
    %v2919 = vshrl.u32 %v2600, 16
    %v2921 = vrot.slane %v2919, 5
    %v2922 = vshll.u32 %v2600, 16
    %v2924 = vrot.slane %v2922, 6
    %v2925 = vor.u32 %v2921, %v2924
    %v2926 = vsel %vm2608, %v2917, %v2925
    %v2927 = vrot.slane %v2925, 4
    %v2929 = vshrl.u32 %v2601, 16
    %v2931 = vrot.slane %v2929, 5
    %v2932 = vshll.u32 %v2601, 16
    %v2934 = vrot.slane %v2932, 6
    %v2935 = vor.u32 %v2931, %v2934
    %v2936 = vsel %vm2608, %v2927, %v2935
    %v2937 = vrot.slane %v2935, 4
    %v2939 = vshrl.u32 %v2602, 16
    %v2941 = vrot.slane %v2939, 5
    %v2942 = vshll.u32 %v2602, 16
    %v2944 = vrot.slane %v2942, 6
    %v2945 = vor.u32 %v2941, %v2944
    %v2946 = vsel %vm2608, %v2937, %v2945
    %v2947 = vrot.slane %v2945, 4
    %v2949 = vshrl.u32 %v2603, 16
    %v2951 = vrot.slane %v2949, 5
    %v2952 = vshll.u32 %v2603, 16
    %v2954 = vrot.slane %v2952, 6
    %v2955 = vor.u32 %v2951, %v2954
    %v2956 = vsel %vm2608, %v2947, %v2955
    %v2957 = vrot.slane %v2955, 4
    %v2959 = vshrl.u32 %v2604, 16
    %v2961 = vrot.slane %v2959, 5
    %v2962 = vshll.u32 %v2604, 16
    %v2964 = vrot.slane %v2962, 6
    %v2965 = vor.u32 %v2961, %v2964
    %v2966 = vsel %vm2608, %v2957, %v2965
    %v2967 = vrot.slane %v2965, 4
    %v2969 = vshrl.u32 %v2605, 16
    %v2971 = vrot.slane %v2969, 5
    %v2972 = vshll.u32 %v2605, 16
    %v2974 = vrot.slane %v2972, 6
    %v2975 = vor.u32 %v2971, %v2974
    %v2976 = vsel %vm2608, %v2967, %v2975
    %3013 = vst.msk [vmem:[#allocation2 + $0x4] sm:$0xf] %vm52, %v2626
    %3014 = vst.msk [vmem:[#allocation2 + $0x10] sm:$0xf] %vm52, %v2636
    %3015 = vst.msk [vmem:[#allocation2 + $0x1c] sm:$0xf] %vm52, %v2646
    %3016 = vst.msk [vmem:[#allocation2 + $0x28] sm:$0xf] %vm52, %v2656
    %3017 = vst.msk [vmem:[#allocation2 + $0x34] sm:$0xf] %vm52, %v2666
    %3018 = vst.msk [vmem:[#allocation2 + $0x40] sm:$0xf] %vm52, %v2676
    %3019 = vst.msk [vmem:[#allocation2 + $0x4c] sm:$0xf] %vm52, %v2686
    %3020 = vst.msk [vmem:[#allocation2 + $0x58] sm:$0xf] %vm52, %v2696
    %3021 = vst.msk [vmem:[#allocation2 + $0x64] sm:$0xf] %vm52, %v2706
    %3022 = vst.msk [vmem:[#allocation2 + $0x70] sm:$0xf] %vm52, %v2716
    %3023 = vst.msk [vmem:[#allocation2 + $0x7c] sm:$0xf] %vm52, %v2726
    %3024 = vst.msk [vmem:[#allocation2 + $0x88] sm:$0xf] %vm52, %v2736
    %3025 = vst.msk [vmem:[#allocation2 + $0x94] sm:$0xf] %vm52, %v2746
    %3026 = vst.msk [vmem:[#allocation2 + $0xa0] sm:$0xf] %vm52, %v2756
    %3027 = vst.msk [vmem:[#allocation2 + $0xac] sm:$0xf] %vm52, %v2766
    %3028 = vst.msk [vmem:[#allocation2 + $0xb8] sm:$0xf] %vm52, %v2776
    %3029 = vst.msk [vmem:[#allocation2 + $0xc4] sm:$0xf] %vm52, %v2786
    %3030 = vst.msk [vmem:[#allocation2 + $0xd0] sm:$0xf] %vm52, %v2796
    %3031 = vst.msk [vmem:[#allocation2 + $0xdc] sm:$0xf] %vm52, %v2806
    %3032 = vst.msk [vmem:[#allocation2 + $0xe8] sm:$0xf] %vm52, %v2816
    %3033 = vst.msk [vmem:[#allocation2 + $0xf4] sm:$0xf] %vm52, %v2826
    %3034 = vst.msk [vmem:[#allocation2 + $0x100] sm:$0xf] %vm52, %v2836
    %3035 = vst.msk [vmem:[#allocation2 + $0x10c] sm:$0xf] %vm52, %v2846
    %3036 = vst.msk [vmem:[#allocation2 + $0x118] sm:$0xf] %vm52, %v2856
    %3037 = vst.msk [vmem:[#allocation2 + $0x124] sm:$0xf] %vm52, %v2866
    %3038 = vst.msk [vmem:[#allocation2 + $0x130] sm:$0xf] %vm52, %v2876
    %3039 = vst.msk [vmem:[#allocation2 + $0x13c] sm:$0xf] %vm52, %v2886
    %3040 = vst.msk [vmem:[#allocation2 + $0x148] sm:$0xf] %vm52, %v2896
    %3041 = vst.msk [vmem:[#allocation2 + $0x154] sm:$0xf] %vm52, %v2906
    %3042 = vst.msk [vmem:[#allocation2 + $0x160] sm:$0xf] %vm52, %v2916
    %3043 = vst.msk [vmem:[#allocation2 + $0x16c] sm:$0xf] %vm52, %v2926
    %3044 = vst.msk [vmem:[#allocation2 + $0x178] sm:$0xf] %vm52, %v2936
    %3045 = vst.msk [vmem:[#allocation2 + $0x184] sm:$0xf] %vm52, %v2946
    %3046 = vst.msk [vmem:[#allocation2 + $0x190] sm:$0xf] %vm52, %v2956
    %3047 = vst.msk [vmem:[#allocation2 + $0x19c] sm:$0xf] %vm52, %v2966
    %3048 = vst.msk [vmem:[#allocation2 + $0x1a8] sm:$0xf] %vm52, %v2976
    %v3049 = vld [vmem:[%s89 + $0x8] sm:$0xe]
    %v3050 = vld [vmem:[%s89 + $0xc] sm:$0xf]
    %v3051 = vld [vmem:[%s89 + $0x10] sm:$0xf]
    %v3052 = vld [vmem:[%s89 + $0x14] sm:$0xf]
    %v3053 = vld [vmem:[%s89 + $0x18] sm:$0xf]
    %v3054 = vld [vmem:[%s89 + $0x1c] sm:$0xf]
    %v3055 = vld [vmem:[%s89 + $0x20] sm:$0xf]
    %v3056 = vld [vmem:[%s89 + $0x24] sm:$0xf]
    %v3057 = vld [vmem:[%s89 + $0x28] sm:$0xf]
    %v3058 = vld [vmem:[%s89 + $0x2c] sm:$0xf]
    %v3059 = vld [vmem:[%s89 + $0x30] sm:$0xf]
    %v3060 = vld [vmem:[%s89 + $0x34] sm:$0xf]
    %v3061 = vld [vmem:[%s89 + $0x38] sm:$0xf]
    %v3062 = vld [vmem:[%s89 + $0x3c] sm:$0xf]
    %v3063 = vld [vmem:[%s89 + $0x40] sm:$0xf]
    %v3064 = vld [vmem:[%s89 + $0x44] sm:$0xf]
    %v3065 = vld [vmem:[%s89 + $0x48] sm:$0xf]
    %v3066 = vld [vmem:[%s89 + $0x4c] sm:$0xf]
    %v3067 = vld [vmem:[%s89 + $0x50] sm:$0xf]
    %v3068 = vld [vmem:[%s89 + $0x54] sm:$0xf]
    %v3069 = vld [vmem:[%s89 + $0x58] sm:$0xf]
    %v3070 = vld [vmem:[%s89 + $0x5c] sm:$0xf]
    %v3071 = vld [vmem:[%s89 + $0x60] sm:$0xf]
    %v3072 = vld [vmem:[%s89 + $0x64] sm:$0xf]
    %v3073 = vld [vmem:[%s89 + $0x68] sm:$0xf]
    %v3074 = vld [vmem:[%s89 + $0x6c] sm:$0xf]
    %v3075 = vld [vmem:[%s89 + $0x70] sm:$0xf]
    %v3076 = vld [vmem:[%s89 + $0x74] sm:$0xf]
    %v3077 = vld [vmem:[%s89 + $0x78] sm:$0xf]
    %v3078 = vld [vmem:[%s89 + $0x7c] sm:$0xf]
    %v3079 = vld [vmem:[%s89 + $0x80] sm:$0xf]
    %v3080 = vld [vmem:[%s89 + $0x84] sm:$0xf]
    %v3081 = vld [vmem:[%s89 + $0x88] sm:$0xf]
    %v3082 = vld [vmem:[%s89 + $0x8c] sm:$0xf]
    %v3083 = vld [vmem:[%s89 + $0x90] sm:$0xf]
    %v3084 = vld [vmem:[%s89 + $0x94] sm:$0xf]
    %v3085 = vld [vmem:[%s89 + $0x98] sm:$0x3]
    %v3087 = vshrl.u32 %v3049, 16
    %v3089 = vrot.slane %v3087, 5
    %v3090 = vshll.u32 %v3049, 16
    %v3092 = vrot.slane %v3090, 6
    %v3093 = vor.u32 %v3089, %v3092
    %v3094 = vrot.slane %v3093, 4
    %v3096 = vshrl.u32 %v3050, 16
    %v3098 = vrot.slane %v3096, 5
    %v3099 = vshll.u32 %v3050, 16
    %v3101 = vrot.slane %v3099, 6
    %v3102 = vor.u32 %v3098, %v3101
    %v3103 = vsel %vm2608, %v3094, %v3102
    %v3104 = vrot.slane %v3102, 4
    %v3106 = vshrl.u32 %v3051, 16
    %v3108 = vrot.slane %v3106, 5
    %v3109 = vshll.u32 %v3051, 16
    %v3111 = vrot.slane %v3109, 6
    %v3112 = vor.u32 %v3108, %v3111
    %v3113 = vsel %vm2608, %v3104, %v3112
    %v3114 = vrot.slane %v3112, 4
    %v3116 = vshrl.u32 %v3052, 16
    %v3118 = vrot.slane %v3116, 5
    %v3119 = vshll.u32 %v3052, 16
    %v3121 = vrot.slane %v3119, 6
    %v3122 = vor.u32 %v3118, %v3121
    %v3123 = vsel %vm2608, %v3114, %v3122
    %v3124 = vrot.slane %v3122, 4
    %v3126 = vshrl.u32 %v3053, 16
    %v3128 = vrot.slane %v3126, 5
    %v3129 = vshll.u32 %v3053, 16
    %v3131 = vrot.slane %v3129, 6
    %v3132 = vor.u32 %v3128, %v3131
    %v3133 = vsel %vm2608, %v3124, %v3132
    %v3134 = vrot.slane %v3132, 4
    %v3136 = vshrl.u32 %v3054, 16
    %v3138 = vrot.slane %v3136, 5
    %v3139 = vshll.u32 %v3054, 16
    %v3141 = vrot.slane %v3139, 6
    %v3142 = vor.u32 %v3138, %v3141
    %v3143 = vsel %vm2608, %v3134, %v3142
    %v3144 = vrot.slane %v3142, 4
    %v3146 = vshrl.u32 %v3055, 16
    %v3148 = vrot.slane %v3146, 5
    %v3149 = vshll.u32 %v3055, 16
    %v3151 = vrot.slane %v3149, 6
    %v3152 = vor.u32 %v3148, %v3151
    %v3153 = vsel %vm2608, %v3144, %v3152
    %v3154 = vrot.slane %v3152, 4
    %v3156 = vshrl.u32 %v3056, 16
    %v3158 = vrot.slane %v3156, 5
    %v3159 = vshll.u32 %v3056, 16
    %v3161 = vrot.slane %v3159, 6
    %v3162 = vor.u32 %v3158, %v3161
    %v3163 = vsel %vm2608, %v3154, %v3162
    %v3164 = vrot.slane %v3162, 4
    %v3166 = vshrl.u32 %v3057, 16
    %v3168 = vrot.slane %v3166, 5
    %v3169 = vshll.u32 %v3057, 16
    %v3171 = vrot.slane %v3169, 6
    %v3172 = vor.u32 %v3168, %v3171
    %v3173 = vsel %vm2608, %v3164, %v3172
    %v3174 = vrot.slane %v3172, 4
    %v3176 = vshrl.u32 %v3058, 16
    %v3178 = vrot.slane %v3176, 5
    %v3179 = vshll.u32 %v3058, 16
    %v3181 = vrot.slane %v3179, 6
    %v3182 = vor.u32 %v3178, %v3181
    %v3183 = vsel %vm2608, %v3174, %v3182
    %v3184 = vrot.slane %v3182, 4
    %v3186 = vshrl.u32 %v3059, 16
    %v3188 = vrot.slane %v3186, 5
    %v3189 = vshll.u32 %v3059, 16
    %v3191 = vrot.slane %v3189, 6
    %v3192 = vor.u32 %v3188, %v3191
    %v3193 = vsel %vm2608, %v3184, %v3192
    %v3194 = vrot.slane %v3192, 4
    %v3196 = vshrl.u32 %v3060, 16
    %v3198 = vrot.slane %v3196, 5
    %v3199 = vshll.u32 %v3060, 16
    %v3201 = vrot.slane %v3199, 6
    %v3202 = vor.u32 %v3198, %v3201
    %v3203 = vsel %vm2608, %v3194, %v3202
    %v3204 = vrot.slane %v3202, 4
    %v3206 = vshrl.u32 %v3061, 16
    %v3208 = vrot.slane %v3206, 5
    %v3209 = vshll.u32 %v3061, 16
    %v3211 = vrot.slane %v3209, 6
    %v3212 = vor.u32 %v3208, %v3211
    %v3213 = vsel %vm2608, %v3204, %v3212
    %v3214 = vrot.slane %v3212, 4
    %v3216 = vshrl.u32 %v3062, 16
    %v3218 = vrot.slane %v3216, 5
    %v3219 = vshll.u32 %v3062, 16
    %v3221 = vrot.slane %v3219, 6
    %v3222 = vor.u32 %v3218, %v3221
    %v3223 = vsel %vm2608, %v3214, %v3222
    %v3224 = vrot.slane %v3222, 4
    %v3226 = vshrl.u32 %v3063, 16
    %v3228 = vrot.slane %v3226, 5
    %v3229 = vshll.u32 %v3063, 16
    %v3231 = vrot.slane %v3229, 6
    %v3232 = vor.u32 %v3228, %v3231
    %v3233 = vsel %vm2608, %v3224, %v3232
    %v3234 = vrot.slane %v3232, 4
    %v3236 = vshrl.u32 %v3064, 16
    %v3238 = vrot.slane %v3236, 5
    %v3239 = vshll.u32 %v3064, 16
    %v3241 = vrot.slane %v3239, 6
    %v3242 = vor.u32 %v3238, %v3241
    %v3243 = vsel %vm2608, %v3234, %v3242
    %v3244 = vrot.slane %v3242, 4
    %v3246 = vshrl.u32 %v3065, 16
    %v3248 = vrot.slane %v3246, 5
    %v3249 = vshll.u32 %v3065, 16
    %v3251 = vrot.slane %v3249, 6
    %v3252 = vor.u32 %v3248, %v3251
    %v3253 = vsel %vm2608, %v3244, %v3252
    %v3254 = vrot.slane %v3252, 4
    %v3256 = vshrl.u32 %v3066, 16
    %v3258 = vrot.slane %v3256, 5
    %v3259 = vshll.u32 %v3066, 16
    %v3261 = vrot.slane %v3259, 6
    %v3262 = vor.u32 %v3258, %v3261
    %v3263 = vsel %vm2608, %v3254, %v3262
    %v3264 = vrot.slane %v3262, 4
    %v3266 = vshrl.u32 %v3067, 16
    %v3268 = vrot.slane %v3266, 5
    %v3269 = vshll.u32 %v3067, 16
    %v3271 = vrot.slane %v3269, 6
    %v3272 = vor.u32 %v3268, %v3271
    %v3273 = vsel %vm2608, %v3264, %v3272
    %v3274 = vrot.slane %v3272, 4
    %v3276 = vshrl.u32 %v3068, 16
    %v3278 = vrot.slane %v3276, 5
    %v3279 = vshll.u32 %v3068, 16
    %v3281 = vrot.slane %v3279, 6
    %v3282 = vor.u32 %v3278, %v3281
    %v3283 = vsel %vm2608, %v3274, %v3282
    %v3284 = vrot.slane %v3282, 4
    %v3286 = vshrl.u32 %v3069, 16
    %v3288 = vrot.slane %v3286, 5
    %v3289 = vshll.u32 %v3069, 16
    %v3291 = vrot.slane %v3289, 6
    %v3292 = vor.u32 %v3288, %v3291
    %v3293 = vsel %vm2608, %v3284, %v3292
    %v3294 = vrot.slane %v3292, 4
    %v3296 = vshrl.u32 %v3070, 16
    %v3298 = vrot.slane %v3296, 5
    %v3299 = vshll.u32 %v3070, 16
    %v3301 = vrot.slane %v3299, 6
    %v3302 = vor.u32 %v3298, %v3301
    %v3303 = vsel %vm2608, %v3294, %v3302
    %v3304 = vrot.slane %v3302, 4
    %v3306 = vshrl.u32 %v3071, 16
    %v3308 = vrot.slane %v3306, 5
    %v3309 = vshll.u32 %v3071, 16
    %v3311 = vrot.slane %v3309, 6
    %v3312 = vor.u32 %v3308, %v3311
    %v3313 = vsel %vm2608, %v3304, %v3312
    %v3314 = vrot.slane %v3312, 4
    %v3316 = vshrl.u32 %v3072, 16
    %v3318 = vrot.slane %v3316, 5
    %v3319 = vshll.u32 %v3072, 16
    %v3321 = vrot.slane %v3319, 6
    %v3322 = vor.u32 %v3318, %v3321
    %v3323 = vsel %vm2608, %v3314, %v3322
    %v3324 = vrot.slane %v3322, 4
    %v3326 = vshrl.u32 %v3073, 16
    %v3328 = vrot.slane %v3326, 5
    %v3329 = vshll.u32 %v3073, 16
    %v3331 = vrot.slane %v3329, 6
    %v3332 = vor.u32 %v3328, %v3331
    %v3333 = vsel %vm2608, %v3324, %v3332
    %v3334 = vrot.slane %v3332, 4
    %v3336 = vshrl.u32 %v3074, 16
    %v3338 = vrot.slane %v3336, 5
    %v3339 = vshll.u32 %v3074, 16
    %v3341 = vrot.slane %v3339, 6
    %v3342 = vor.u32 %v3338, %v3341
    %v3343 = vsel %vm2608, %v3334, %v3342
    %v3344 = vrot.slane %v3342, 4
    %v3346 = vshrl.u32 %v3075, 16
    %v3348 = vrot.slane %v3346, 5
    %v3349 = vshll.u32 %v3075, 16
    %v3351 = vrot.slane %v3349, 6
    %v3352 = vor.u32 %v3348, %v3351
    %v3353 = vsel %vm2608, %v3344, %v3352
    %v3354 = vrot.slane %v3352, 4
    %v3356 = vshrl.u32 %v3076, 16
    %v3358 = vrot.slane %v3356, 5
    %v3359 = vshll.u32 %v3076, 16
    %v3361 = vrot.slane %v3359, 6
    %v3362 = vor.u32 %v3358, %v3361
    %v3363 = vsel %vm2608, %v3354, %v3362
    %v3364 = vrot.slane %v3362, 4
    %v3366 = vshrl.u32 %v3077, 16
    %v3368 = vrot.slane %v3366, 5
    %v3369 = vshll.u32 %v3077, 16
    %v3371 = vrot.slane %v3369, 6
    %v3372 = vor.u32 %v3368, %v3371
    %v3373 = vsel %vm2608, %v3364, %v3372
    %v3374 = vrot.slane %v3372, 4
    %v3376 = vshrl.u32 %v3078, 16
    %v3378 = vrot.slane %v3376, 5
    %v3379 = vshll.u32 %v3078, 16
    %v3381 = vrot.slane %v3379, 6
    %v3382 = vor.u32 %v3378, %v3381
    %v3383 = vsel %vm2608, %v3374, %v3382
    %v3384 = vrot.slane %v3382, 4
    %v3386 = vshrl.u32 %v3079, 16
    %v3388 = vrot.slane %v3386, 5
    %v3389 = vshll.u32 %v3079, 16
    %v3391 = vrot.slane %v3389, 6
    %v3392 = vor.u32 %v3388, %v3391
    %v3393 = vsel %vm2608, %v3384, %v3392
    %v3394 = vrot.slane %v3392, 4
    %v3396 = vshrl.u32 %v3080, 16
    %v3398 = vrot.slane %v3396, 5
    %v3399 = vshll.u32 %v3080, 16
    %v3401 = vrot.slane %v3399, 6
    %v3402 = vor.u32 %v3398, %v3401
    %v3403 = vsel %vm2608, %v3394, %v3402
    %v3404 = vrot.slane %v3402, 4
    %v3406 = vshrl.u32 %v3081, 16
    %v3408 = vrot.slane %v3406, 5
    %v3409 = vshll.u32 %v3081, 16
    %v3411 = vrot.slane %v3409, 6
    %v3412 = vor.u32 %v3408, %v3411
    %v3413 = vsel %vm2608, %v3404, %v3412
    %v3414 = vrot.slane %v3412, 4
    %v3416 = vshrl.u32 %v3082, 16
    %v3418 = vrot.slane %v3416, 5
    %v3419 = vshll.u32 %v3082, 16
    %v3421 = vrot.slane %v3419, 6
    %v3422 = vor.u32 %v3418, %v3421
    %v3423 = vsel %vm2608, %v3414, %v3422
    %v3424 = vrot.slane %v3422, 4
    %v3426 = vshrl.u32 %v3083, 16
    %v3428 = vrot.slane %v3426, 5
    %v3429 = vshll.u32 %v3083, 16
    %v3431 = vrot.slane %v3429, 6
    %v3432 = vor.u32 %v3428, %v3431
    %v3433 = vsel %vm2608, %v3424, %v3432
    %v3434 = vrot.slane %v3432, 4
    %v3436 = vshrl.u32 %v3084, 16
    %v3438 = vrot.slane %v3436, 5
    %v3439 = vshll.u32 %v3084, 16
    %v3441 = vrot.slane %v3439, 6
    %v3442 = vor.u32 %v3438, %v3441
    %v3443 = vsel %vm2608, %v3434, %v3442
    %v3444 = vrot.slane %v3442, 4
    %v3446 = vshrl.u32 %v3085, 16
    %v3448 = vrot.slane %v3446, 5
    %v3449 = vshll.u32 %v3085, 16
    %v3451 = vrot.slane %v3449, 6
    %v3452 = vor.u32 %v3448, %v3451
    %v3453 = vsel %vm2608, %v3444, %v3452
    %3490 = vst.msk [vmem:[#allocation2 + $0x1b4] sm:$0xf] %vm52, %v3103
    %3491 = vst.msk [vmem:[#allocation2 + $0x1c0] sm:$0xf] %vm52, %v3113
    %3492 = vst.msk [vmem:[#allocation2 + $0x1cc] sm:$0xf] %vm52, %v3123
    %3493 = vst.msk [vmem:[#allocation2 + $0x1d8] sm:$0xf] %vm52, %v3133
    %3494 = vst.msk [vmem:[#allocation2 + $0x1e4] sm:$0xf] %vm52, %v3143
    %3495 = vst.msk [vmem:[#allocation2 + $0x1f0] sm:$0xf] %vm52, %v3153
    %3496 = vst.msk [vmem:[#allocation2 + $0x1fc] sm:$0xf] %vm52, %v3163
    %3497 = vst.msk [vmem:[#allocation2 + $0x208] sm:$0xf] %vm52, %v3173
    %3498 = vst.msk [vmem:[#allocation2 + $0x214] sm:$0xf] %vm52, %v3183
    %3499 = vst.msk [vmem:[#allocation2 + $0x220] sm:$0xf] %vm52, %v3193
    %3500 = vst.msk [vmem:[#allocation2 + $0x22c] sm:$0xf] %vm52, %v3203
    %3501 = vst.msk [vmem:[#allocation2 + $0x238] sm:$0xf] %vm52, %v3213
    %3502 = vst.msk [vmem:[#allocation2 + $0x244] sm:$0xf] %vm52, %v3223
    %3503 = vst.msk [vmem:[#allocation2 + $0x250] sm:$0xf] %vm52, %v3233
    %3504 = vst.msk [vmem:[#allocation2 + $0x25c] sm:$0xf] %vm52, %v3243
    %3505 = vst.msk [vmem:[#allocation2 + $0x268] sm:$0xf] %vm52, %v3253
    %3506 = vst.msk [vmem:[#allocation2 + $0x274] sm:$0xf] %vm52, %v3263
    %3507 = vst.msk [vmem:[#allocation2 + $0x280] sm:$0xf] %vm52, %v3273
    %3508 = vst.msk [vmem:[#allocation2 + $0x28c] sm:$0xf] %vm52, %v3283
    %3509 = vst.msk [vmem:[#allocation2 + $0x298] sm:$0xf] %vm52, %v3293
    %3510 = vst.msk [vmem:[#allocation2 + $0x2a4] sm:$0xf] %vm52, %v3303
    %3511 = vst.msk [vmem:[#allocation2 + $0x2b0] sm:$0xf] %vm52, %v3313
    %3512 = vst.msk [vmem:[#allocation2 + $0x2bc] sm:$0xf] %vm52, %v3323
    %3513 = vst.msk [vmem:[#allocation2 + $0x2c8] sm:$0xf] %vm52, %v3333
    %3514 = vst.msk [vmem:[#allocation2 + $0x2d4] sm:$0xf] %vm52, %v3343
    %3515 = vst.msk [vmem:[#allocation2 + $0x2e0] sm:$0xf] %vm52, %v3353
    %3516 = vst.msk [vmem:[#allocation2 + $0x2ec] sm:$0xf] %vm52, %v3363
    %3517 = vst.msk [vmem:[#allocation2 + $0x2f8] sm:$0xf] %vm52, %v3373
    %3518 = vst.msk [vmem:[#allocation2 + $0x304] sm:$0xf] %vm52, %v3383
    %3519 = vst.msk [vmem:[#allocation2 + $0x310] sm:$0xf] %vm52, %v3393
    %3520 = vst.msk [vmem:[#allocation2 + $0x31c] sm:$0xf] %vm52, %v3403
    %3521 = vst.msk [vmem:[#allocation2 + $0x328] sm:$0xf] %vm52, %v3413
    %3522 = vst.msk [vmem:[#allocation2 + $0x334] sm:$0xf] %vm52, %v3423
    %3523 = vst.msk [vmem:[#allocation2 + $0x340] sm:$0xf] %vm52, %v3433
    %3524 = vst.msk [vmem:[#allocation2 + $0x34c] sm:$0xf] %vm52, %v3443
    %3525 = vst.msk [vmem:[#allocation2 + $0x358] sm:$0xf] %vm52, %v3453
    %v3526 = vld [vmem:[%s0 + $0x8] sm:$0xc]
    %v3527 = vld [vmem:[%s0 + $0xc] sm:$0xf]
    %v3528 = vld [vmem:[%s0 + $0x10] sm:$0xf]
    %v3529 = vld [vmem:[%s0 + $0x14] sm:$0xf]
    %v3530 = vld [vmem:[%s0 + $0x18] sm:$0xf]
    %v3531 = vld [vmem:[%s0 + $0x1c] sm:$0xf]
    %v3532 = vld [vmem:[%s0 + $0x20] sm:$0xf]
    %v3533 = vld [vmem:[%s0 + $0x24] sm:$0xf]
    %v3534 = vld [vmem:[%s0 + $0x28] sm:$0xf]
    %v3535 = vld [vmem:[%s0 + $0x2c] sm:$0xf]
    %v3536 = vld [vmem:[%s0 + $0x30] sm:$0xf]
    %v3537 = vld [vmem:[%s0 + $0x34] sm:$0xf]
    %v3538 = vld [vmem:[%s0 + $0x38] sm:$0xf]
    %v3539 = vld [vmem:[%s0 + $0x3c] sm:$0xf]
    %v3540 = vld [vmem:[%s0 + $0x40] sm:$0xf]
    %v3541 = vld [vmem:[%s0 + $0x44] sm:$0xf]
    %v3542 = vld [vmem:[%s0 + $0x48] sm:$0xf]
    %v3543 = vld [vmem:[%s0 + $0x4c] sm:$0xf]
    %v3544 = vld [vmem:[%s0 + $0x50] sm:$0xf]
    %v3545 = vld [vmem:[%s0 + $0x54] sm:$0xf]
    %v3546 = vld [vmem:[%s0 + $0x58] sm:$0xf]
    %v3547 = vld [vmem:[%s0 + $0x5c] sm:$0xf]
    %v3548 = vld [vmem:[%s0 + $0x60] sm:$0xf]
    %v3549 = vld [vmem:[%s0 + $0x64] sm:$0xf]
    %v3550 = vld [vmem:[%s0 + $0x68] sm:$0xf]
    %v3551 = vld [vmem:[%s0 + $0x6c] sm:$0xf]
    %v3552 = vld [vmem:[%s0 + $0x70] sm:$0xf]
    %v3553 = vld [vmem:[%s0 + $0x74] sm:$0xf]
    %v3554 = vld [vmem:[%s0 + $0x78] sm:$0xf]
    %v3555 = vld [vmem:[%s0 + $0x7c] sm:$0xf]
    %v3556 = vld [vmem:[%s0 + $0x80] sm:$0xf]
    %v3557 = vld [vmem:[%s0 + $0x84] sm:$0xf]
    %v3558 = vld [vmem:[%s0 + $0x88] sm:$0xf]
    %v3559 = vld [vmem:[%s0 + $0x8c] sm:$0xf]
    %v3560 = vld [vmem:[%s0 + $0x90] sm:$0xf]
    %v3561 = vld [vmem:[%s0 + $0x94] sm:$0xf]
    %v3562 = vld [vmem:[%s0 + $0x98] sm:$0x3]
    %vm3600 = vcmask 1041408
    %vm3601 = vcmask 1045508
    %vm3602 = vmor %vm3600, %vm3601
    %v3603 = vrot.slane %v3526, 6
    %v3604 = vrot.slane %v3603, 4
    %v3605 = vrot.slane %v3527, 6
    %v3606 = vsel %vm3602, %v3604, %v3605
    %v3607 = vrot.slane %v3605, 4
    %v3608 = vrot.slane %v3528, 6
    %v3609 = vsel %vm3602, %v3607, %v3608
    %v3610 = vrot.slane %v3608, 4
    %v3611 = vrot.slane %v3529, 6
    %v3612 = vsel %vm3602, %v3610, %v3611
    %v3613 = vrot.slane %v3611, 4
    %v3614 = vrot.slane %v3530, 6
    %v3615 = vsel %vm3602, %v3613, %v3614
    %v3616 = vrot.slane %v3614, 4
    %v3617 = vrot.slane %v3531, 6
    %v3618 = vsel %vm3602, %v3616, %v3617
    %v3619 = vrot.slane %v3617, 4
    %v3620 = vrot.slane %v3532, 6
    %v3621 = vsel %vm3602, %v3619, %v3620
    %v3622 = vrot.slane %v3620, 4
    %v3623 = vrot.slane %v3533, 6
    %v3624 = vsel %vm3602, %v3622, %v3623
    %v3625 = vrot.slane %v3623, 4
    %v3626 = vrot.slane %v3534, 6
    %v3627 = vsel %vm3602, %v3625, %v3626
    %v3628 = vrot.slane %v3626, 4
    %v3629 = vrot.slane %v3535, 6
    %v3630 = vsel %vm3602, %v3628, %v3629
    %v3631 = vrot.slane %v3629, 4
    %v3632 = vrot.slane %v3536, 6
    %v3633 = vsel %vm3602, %v3631, %v3632
    %v3634 = vrot.slane %v3632, 4
    %v3635 = vrot.slane %v3537, 6
    %v3636 = vsel %vm3602, %v3634, %v3635
    %v3637 = vrot.slane %v3635, 4
    %v3638 = vrot.slane %v3538, 6
    %v3639 = vsel %vm3602, %v3637, %v3638
    %v3640 = vrot.slane %v3638, 4
    %v3641 = vrot.slane %v3539, 6
    %v3642 = vsel %vm3602, %v3640, %v3641
    %v3643 = vrot.slane %v3641, 4
    %v3644 = vrot.slane %v3540, 6
    %v3645 = vsel %vm3602, %v3643, %v3644
    %v3646 = vrot.slane %v3644, 4
    %v3647 = vrot.slane %v3541, 6
    %v3648 = vsel %vm3602, %v3646, %v3647
    %v3649 = vrot.slane %v3647, 4
    %v3650 = vrot.slane %v3542, 6
    %v3651 = vsel %vm3602, %v3649, %v3650
    %v3652 = vrot.slane %v3650, 4
    %v3653 = vrot.slane %v3543, 6
    %v3654 = vsel %vm3602, %v3652, %v3653
    %v3655 = vrot.slane %v3653, 4
    %v3656 = vrot.slane %v3544, 6
    %v3657 = vsel %vm3602, %v3655, %v3656
    %v3658 = vrot.slane %v3656, 4
    %v3659 = vrot.slane %v3545, 6
    %v3660 = vsel %vm3602, %v3658, %v3659
    %v3661 = vrot.slane %v3659, 4
    %v3662 = vrot.slane %v3546, 6
    %v3663 = vsel %vm3602, %v3661, %v3662
    %v3664 = vrot.slane %v3662, 4
    %v3665 = vrot.slane %v3547, 6
    %v3666 = vsel %vm3602, %v3664, %v3665
    %v3667 = vrot.slane %v3665, 4
    %v3668 = vrot.slane %v3548, 6
    %v3669 = vsel %vm3602, %v3667, %v3668
    %v3670 = vrot.slane %v3668, 4
    %v3671 = vrot.slane %v3549, 6
    %v3672 = vsel %vm3602, %v3670, %v3671
    %v3673 = vrot.slane %v3671, 4
    %v3674 = vrot.slane %v3550, 6
    %v3675 = vsel %vm3602, %v3673, %v3674
    %v3676 = vrot.slane %v3674, 4
    %v3677 = vrot.slane %v3551, 6
    %v3678 = vsel %vm3602, %v3676, %v3677
    %v3679 = vrot.slane %v3677, 4
    %v3680 = vrot.slane %v3552, 6
    %v3681 = vsel %vm3602, %v3679, %v3680
    %v3682 = vrot.slane %v3680, 4
    %v3683 = vrot.slane %v3553, 6
    %v3684 = vsel %vm3602, %v3682, %v3683
    %v3685 = vrot.slane %v3683, 4
    %v3686 = vrot.slane %v3554, 6
    %v3687 = vsel %vm3602, %v3685, %v3686
    %v3688 = vrot.slane %v3686, 4
    %v3689 = vrot.slane %v3555, 6
    %v3690 = vsel %vm3602, %v3688, %v3689
    %v3691 = vrot.slane %v3689, 4
    %v3692 = vrot.slane %v3556, 6
    %v3693 = vsel %vm3602, %v3691, %v3692
    %v3694 = vrot.slane %v3692, 4
    %v3695 = vrot.slane %v3557, 6
    %v3696 = vsel %vm3602, %v3694, %v3695
    %v3697 = vrot.slane %v3695, 4
    %v3698 = vrot.slane %v3558, 6
    %v3699 = vsel %vm3602, %v3697, %v3698
    %v3700 = vrot.slane %v3698, 4
    %v3701 = vrot.slane %v3559, 6
    %v3702 = vsel %vm3602, %v3700, %v3701
    %v3703 = vrot.slane %v3701, 4
    %v3704 = vrot.slane %v3560, 6
    %v3705 = vsel %vm3602, %v3703, %v3704
    %v3706 = vrot.slane %v3704, 4
    %v3707 = vrot.slane %v3561, 6
    %v3708 = vsel %vm3602, %v3706, %v3707
    %v3709 = vrot.slane %v3707, 4
    %v3710 = vrot.slane %v3562, 6
    %v3711 = vsel %vm3602, %v3709, %v3710
    %3712 = vrot.lane.b32.xlu0 %v3606, 32
    %v3713 = vpop.permute.xlu0 %3712
    %3714 = vrot.lane.b32.xlu0 %v3609, 32
    %v3715 = vpop.permute.xlu0 %3714
    %3716 = vrot.lane.b32.xlu0 %v3612, 32
    %v3717 = vpop.permute.xlu0 %3716
    %3718 = vrot.lane.b32.xlu0 %v3615, 32
    %v3719 = vpop.permute.xlu0 %3718
    %3720 = vrot.lane.b32.xlu0 %v3618, 32
    %v3721 = vpop.permute.xlu0 %3720
    %3722 = vrot.lane.b32.xlu0 %v3621, 32
    %v3723 = vpop.permute.xlu0 %3722
    %3724 = vrot.lane.b32.xlu0 %v3624, 32
    %v3725 = vpop.permute.xlu0 %3724
    %3726 = vrot.lane.b32.xlu0 %v3627, 32
    %v3727 = vpop.permute.xlu0 %3726
    %3728 = vrot.lane.b32.xlu0 %v3630, 32
    %v3729 = vpop.permute.xlu0 %3728
    %3730 = vrot.lane.b32.xlu0 %v3633, 32
    %v3731 = vpop.permute.xlu0 %3730
    %3732 = vrot.lane.b32.xlu0 %v3636, 32
    %v3733 = vpop.permute.xlu0 %3732
    %3734 = vrot.lane.b32.xlu0 %v3639, 32
    %v3735 = vpop.permute.xlu0 %3734
    %3736 = vrot.lane.b32.xlu0 %v3642, 32
    %v3737 = vpop.permute.xlu0 %3736
    %3738 = vrot.lane.b32.xlu0 %v3645, 32
    %v3739 = vpop.permute.xlu0 %3738
    %3740 = vrot.lane.b32.xlu0 %v3648, 32
    %v3741 = vpop.permute.xlu0 %3740
    %3742 = vrot.lane.b32.xlu0 %v3651, 32
    %v3743 = vpop.permute.xlu0 %3742
    %3744 = vrot.lane.b32.xlu0 %v3654, 32
    %v3745 = vpop.permute.xlu0 %3744
    %3746 = vrot.lane.b32.xlu0 %v3657, 32
    %v3747 = vpop.permute.xlu0 %3746
    %3748 = vrot.lane.b32.xlu0 %v3660, 32
    %v3749 = vpop.permute.xlu0 %3748
    %3750 = vrot.lane.b32.xlu0 %v3663, 32
    %v3751 = vpop.permute.xlu0 %3750
    %3752 = vrot.lane.b32.xlu0 %v3666, 32
    %v3753 = vpop.permute.xlu0 %3752
    %3754 = vrot.lane.b32.xlu0 %v3669, 32
    %v3755 = vpop.permute.xlu0 %3754
    %3756 = vrot.lane.b32.xlu0 %v3672, 32
    %v3757 = vpop.permute.xlu0 %3756
    %3758 = vrot.lane.b32.xlu0 %v3675, 32
    %v3759 = vpop.permute.xlu0 %3758
    %3760 = vrot.lane.b32.xlu0 %v3678, 32
    %v3761 = vpop.permute.xlu0 %3760
    %3762 = vrot.lane.b32.xlu0 %v3681, 32
    %v3763 = vpop.permute.xlu0 %3762
    %3764 = vrot.lane.b32.xlu0 %v3684, 32
    %v3765 = vpop.permute.xlu0 %3764
    %3766 = vrot.lane.b32.xlu0 %v3687, 32
    %v3767 = vpop.permute.xlu0 %3766
    %3768 = vrot.lane.b32.xlu0 %v3690, 32
    %v3769 = vpop.permute.xlu0 %3768
    %3770 = vrot.lane.b32.xlu0 %v3693, 32
    %v3771 = vpop.permute.xlu0 %3770
    %3772 = vrot.lane.b32.xlu0 %v3696, 32
    %v3773 = vpop.permute.xlu0 %3772
    %3774 = vrot.lane.b32.xlu0 %v3699, 32
    %v3775 = vpop.permute.xlu0 %3774
    %3776 = vrot.lane.b32.xlu0 %v3702, 32
    %v3777 = vpop.permute.xlu0 %3776
    %3778 = vrot.lane.b32.xlu0 %v3705, 32
    %v3779 = vpop.permute.xlu0 %3778
    %3780 = vrot.lane.b32.xlu0 %v3708, 32
    %v3781 = vpop.permute.xlu0 %3780
    %3782 = vrot.lane.b32.xlu0 %v3711, 32
    %v3783 = vpop.permute.xlu0 %3782
    %3820 = vst.msk [vmem:[#allocation2 + $0x4] sm:$0xf] %vm674, %v3713
    %3821 = vst.msk [vmem:[#allocation2 + $0x10] sm:$0xf] %vm674, %v3715
    %3822 = vst.msk [vmem:[#allocation2 + $0x1c] sm:$0xf] %vm674, %v3717
    %3823 = vst.msk [vmem:[#allocation2 + $0x28] sm:$0xf] %vm674, %v3719
    %3824 = vst.msk [vmem:[#allocation2 + $0x34] sm:$0xf] %vm674, %v3721
    %3825 = vst.msk [vmem:[#allocation2 + $0x40] sm:$0xf] %vm674, %v3723
    %3826 = vst.msk [vmem:[#allocation2 + $0x4c] sm:$0xf] %vm674, %v3725
    %3827 = vst.msk [vmem:[#allocation2 + $0x58] sm:$0xf] %vm674, %v3727
    %3828 = vst.msk [vmem:[#allocation2 + $0x64] sm:$0xf] %vm674, %v3729
    %3829 = vst.msk [vmem:[#allocation2 + $0x70] sm:$0xf] %vm674, %v3731
    %3830 = vst.msk [vmem:[#allocation2 + $0x7c] sm:$0xf] %vm674, %v3733
    %3831 = vst.msk [vmem:[#allocation2 + $0x88] sm:$0xf] %vm674, %v3735
    %3832 = vst.msk [vmem:[#allocation2 + $0x94] sm:$0xf] %vm674, %v3737
    %3833 = vst.msk [vmem:[#allocation2 + $0xa0] sm:$0xf] %vm674, %v3739
    %3834 = vst.msk [vmem:[#allocation2 + $0xac] sm:$0xf] %vm674, %v3741
    %3835 = vst.msk [vmem:[#allocation2 + $0xb8] sm:$0xf] %vm674, %v3743
    %3836 = vst.msk [vmem:[#allocation2 + $0xc4] sm:$0xf] %vm674, %v3745
    %3837 = vst.msk [vmem:[#allocation2 + $0xd0] sm:$0xf] %vm674, %v3747
    %3838 = vst.msk [vmem:[#allocation2 + $0xdc] sm:$0xf] %vm674, %v3749
    %3839 = vst.msk [vmem:[#allocation2 + $0xe8] sm:$0xf] %vm674, %v3751
    %3840 = vst.msk [vmem:[#allocation2 + $0xf4] sm:$0xf] %vm674, %v3753
    %3841 = vst.msk [vmem:[#allocation2 + $0x100] sm:$0xf] %vm674, %v3755
    %3842 = vst.msk [vmem:[#allocation2 + $0x10c] sm:$0xf] %vm674, %v3757
    %3843 = vst.msk [vmem:[#allocation2 + $0x118] sm:$0xf] %vm674, %v3759
    %3844 = vst.msk [vmem:[#allocation2 + $0x124] sm:$0xf] %vm674, %v3761
    %3845 = vst.msk [vmem:[#allocation2 + $0x130] sm:$0xf] %vm674, %v3763
    %3846 = vst.msk [vmem:[#allocation2 + $0x13c] sm:$0xf] %vm674, %v3765
    %3847 = vst.msk [vmem:[#allocation2 + $0x148] sm:$0xf] %vm674, %v3767
    %3848 = vst.msk [vmem:[#allocation2 + $0x154] sm:$0xf] %vm674, %v3769
    %3849 = vst.msk [vmem:[#allocation2 + $0x160] sm:$0xf] %vm674, %v3771
    %3850 = vst.msk [vmem:[#allocation2 + $0x16c] sm:$0xf] %vm674, %v3773
    %3851 = vst.msk [vmem:[#allocation2 + $0x178] sm:$0xf] %vm674, %v3775
    %3852 = vst.msk [vmem:[#allocation2 + $0x184] sm:$0xf] %vm674, %v3777
    %3853 = vst.msk [vmem:[#allocation2 + $0x190] sm:$0xf] %vm674, %v3779
    %3854 = vst.msk [vmem:[#allocation2 + $0x19c] sm:$0xf] %vm674, %v3781
    %3855 = vst.msk [vmem:[#allocation2 + $0x1a8] sm:$0xf] %vm674, %v3783
    %v3856 = vld [vmem:[%s89 + $0x8] sm:$0xc]
    %v3857 = vld [vmem:[%s89 + $0xc] sm:$0xf]
    %v3858 = vld [vmem:[%s89 + $0x10] sm:$0xf]
    %v3859 = vld [vmem:[%s89 + $0x14] sm:$0xf]
    %v3860 = vld [vmem:[%s89 + $0x18] sm:$0xf]
    %v3861 = vld [vmem:[%s89 + $0x1c] sm:$0xf]
    %v3862 = vld [vmem:[%s89 + $0x20] sm:$0xf]
    %v3863 = vld [vmem:[%s89 + $0x24] sm:$0xf]
    %v3864 = vld [vmem:[%s89 + $0x28] sm:$0xf]
    %v3865 = vld [vmem:[%s89 + $0x2c] sm:$0xf]
    %v3866 = vld [vmem:[%s89 + $0x30] sm:$0xf]
    %v3867 = vld [vmem:[%s89 + $0x34] sm:$0xf]
    %v3868 = vld [vmem:[%s89 + $0x38] sm:$0xf]
    %v3869 = vld [vmem:[%s89 + $0x3c] sm:$0xf]
    %v3870 = vld [vmem:[%s89 + $0x40] sm:$0xf]
    %v3871 = vld [vmem:[%s89 + $0x44] sm:$0xf]
    %v3872 = vld [vmem:[%s89 + $0x48] sm:$0xf]
    %v3873 = vld [vmem:[%s89 + $0x4c] sm:$0xf]
    %v3874 = vld [vmem:[%s89 + $0x50] sm:$0xf]
    %v3875 = vld [vmem:[%s89 + $0x54] sm:$0xf]
    %v3876 = vld [vmem:[%s89 + $0x58] sm:$0xf]
    %v3877 = vld [vmem:[%s89 + $0x5c] sm:$0xf]
    %v3878 = vld [vmem:[%s89 + $0x60] sm:$0xf]
    %v3879 = vld [vmem:[%s89 + $0x64] sm:$0xf]
    %v3880 = vld [vmem:[%s89 + $0x68] sm:$0xf]
    %v3881 = vld [vmem:[%s89 + $0x6c] sm:$0xf]
    %v3882 = vld [vmem:[%s89 + $0x70] sm:$0xf]
    %v3883 = vld [vmem:[%s89 + $0x74] sm:$0xf]
    %v3884 = vld [vmem:[%s89 + $0x78] sm:$0xf]
    %v3885 = vld [vmem:[%s89 + $0x7c] sm:$0xf]
    %v3886 = vld [vmem:[%s89 + $0x80] sm:$0xf]
    %v3887 = vld [vmem:[%s89 + $0x84] sm:$0xf]
    %v3888 = vld [vmem:[%s89 + $0x88] sm:$0xf]
    %v3889 = vld [vmem:[%s89 + $0x8c] sm:$0xf]
    %v3890 = vld [vmem:[%s89 + $0x90] sm:$0xf]
    %v3891 = vld [vmem:[%s89 + $0x94] sm:$0xf]
    %v3892 = vld [vmem:[%s89 + $0x98] sm:$0x3]
    %v3930 = vrot.slane %v3856, 6
    %v3931 = vrot.slane %v3930, 4
    %v3932 = vrot.slane %v3857, 6
    %v3933 = vsel %vm3602, %v3931, %v3932
    %v3934 = vrot.slane %v3932, 4
    %v3935 = vrot.slane %v3858, 6
    %v3936 = vsel %vm3602, %v3934, %v3935
    %v3937 = vrot.slane %v3935, 4
    %v3938 = vrot.slane %v3859, 6
    %v3939 = vsel %vm3602, %v3937, %v3938
    %v3940 = vrot.slane %v3938, 4
    %v3941 = vrot.slane %v3860, 6
    %v3942 = vsel %vm3602, %v3940, %v3941
    %v3943 = vrot.slane %v3941, 4
    %v3944 = vrot.slane %v3861, 6
    %v3945 = vsel %vm3602, %v3943, %v3944
    %v3946 = vrot.slane %v3944, 4
    %v3947 = vrot.slane %v3862, 6
    %v3948 = vsel %vm3602, %v3946, %v3947
    %v3949 = vrot.slane %v3947, 4
    %v3950 = vrot.slane %v3863, 6
    %v3951 = vsel %vm3602, %v3949, %v3950
    %v3952 = vrot.slane %v3950, 4
    %v3953 = vrot.slane %v3864, 6
    %v3954 = vsel %vm3602, %v3952, %v3953
    %v3955 = vrot.slane %v3953, 4
    %v3956 = vrot.slane %v3865, 6
    %v3957 = vsel %vm3602, %v3955, %v3956
    %v3958 = vrot.slane %v3956, 4
    %v3959 = vrot.slane %v3866, 6
    %v3960 = vsel %vm3602, %v3958, %v3959
    %v3961 = vrot.slane %v3959, 4
    %v3962 = vrot.slane %v3867, 6
    %v3963 = vsel %vm3602, %v3961, %v3962
    %v3964 = vrot.slane %v3962, 4
    %v3965 = vrot.slane %v3868, 6
    %v3966 = vsel %vm3602, %v3964, %v3965
    %v3967 = vrot.slane %v3965, 4
    %v3968 = vrot.slane %v3869, 6
    %v3969 = vsel %vm3602, %v3967, %v3968
    %v3970 = vrot.slane %v3968, 4
    %v3971 = vrot.slane %v3870, 6
    %v3972 = vsel %vm3602, %v3970, %v3971
    %v3973 = vrot.slane %v3971, 4
    %v3974 = vrot.slane %v3871, 6
    %v3975 = vsel %vm3602, %v3973, %v3974
    %v3976 = vrot.slane %v3974, 4
    %v3977 = vrot.slane %v3872, 6
    %v3978 = vsel %vm3602, %v3976, %v3977
    %v3979 = vrot.slane %v3977, 4
    %v3980 = vrot.slane %v3873, 6
    %v3981 = vsel %vm3602, %v3979, %v3980
    %v3982 = vrot.slane %v3980, 4
    %v3983 = vrot.slane %v3874, 6
    %v3984 = vsel %vm3602, %v3982, %v3983
    %v3985 = vrot.slane %v3983, 4
    %v3986 = vrot.slane %v3875, 6
    %v3987 = vsel %vm3602, %v3985, %v3986
    %v3988 = vrot.slane %v3986, 4
    %v3989 = vrot.slane %v3876, 6
    %v3990 = vsel %vm3602, %v3988, %v3989
    %v3991 = vrot.slane %v3989, 4
    %v3992 = vrot.slane %v3877, 6
    %v3993 = vsel %vm3602, %v3991, %v3992
    %v3994 = vrot.slane %v3992, 4
    %v3995 = vrot.slane %v3878, 6
    %v3996 = vsel %vm3602, %v3994, %v3995
    %v3997 = vrot.slane %v3995, 4
    %v3998 = vrot.slane %v3879, 6
    %v3999 = vsel %vm3602, %v3997, %v3998
    %v4000 = vrot.slane %v3998, 4
    %v4001 = vrot.slane %v3880, 6
    %v4002 = vsel %vm3602, %v4000, %v4001
    %v4003 = vrot.slane %v4001, 4
    %v4004 = vrot.slane %v3881, 6
    %v4005 = vsel %vm3602, %v4003, %v4004
    %v4006 = vrot.slane %v4004, 4
    %v4007 = vrot.slane %v3882, 6
    %v4008 = vsel %vm3602, %v4006, %v4007
    %v4009 = vrot.slane %v4007, 4
    %v4010 = vrot.slane %v3883, 6
    %v4011 = vsel %vm3602, %v4009, %v4010
    %v4012 = vrot.slane %v4010, 4
    %v4013 = vrot.slane %v3884, 6
    %v4014 = vsel %vm3602, %v4012, %v4013
    %v4015 = vrot.slane %v4013, 4
    %v4016 = vrot.slane %v3885, 6
    %v4017 = vsel %vm3602, %v4015, %v4016
    %v4018 = vrot.slane %v4016, 4
    %v4019 = vrot.slane %v3886, 6
    %v4020 = vsel %vm3602, %v4018, %v4019
    %v4021 = vrot.slane %v4019, 4
    %v4022 = vrot.slane %v3887, 6
    %v4023 = vsel %vm3602, %v4021, %v4022
    %v4024 = vrot.slane %v4022, 4
    %v4025 = vrot.slane %v3888, 6
    %v4026 = vsel %vm3602, %v4024, %v4025
    %v4027 = vrot.slane %v4025, 4
    %v4028 = vrot.slane %v3889, 6
    %v4029 = vsel %vm3602, %v4027, %v4028
    %v4030 = vrot.slane %v4028, 4
    %v4031 = vrot.slane %v3890, 6
    %v4032 = vsel %vm3602, %v4030, %v4031
    %v4033 = vrot.slane %v4031, 4
    %v4034 = vrot.slane %v3891, 6
    %v4035 = vsel %vm3602, %v4033, %v4034
    %v4036 = vrot.slane %v4034, 4
    %v4037 = vrot.slane %v3892, 6
    %v4038 = vsel %vm3602, %v4036, %v4037
    %4039 = vrot.lane.b32.xlu0 %v3933, 32
    %v4040 = vpop.permute.xlu0 %4039
    %4041 = vrot.lane.b32.xlu0 %v3936, 32
    %v4042 = vpop.permute.xlu0 %4041
    %4043 = vrot.lane.b32.xlu0 %v3939, 32
    %v4044 = vpop.permute.xlu0 %4043
    %4045 = vrot.lane.b32.xlu0 %v3942, 32
    %v4046 = vpop.permute.xlu0 %4045
    %4047 = vrot.lane.b32.xlu0 %v3945, 32
    %v4048 = vpop.permute.xlu0 %4047
    %4049 = vrot.lane.b32.xlu0 %v3948, 32
    %v4050 = vpop.permute.xlu0 %4049
    %4051 = vrot.lane.b32.xlu0 %v3951, 32
    %v4052 = vpop.permute.xlu0 %4051
    %4053 = vrot.lane.b32.xlu0 %v3954, 32
    %v4054 = vpop.permute.xlu0 %4053
    %4055 = vrot.lane.b32.xlu0 %v3957, 32
    %v4056 = vpop.permute.xlu0 %4055
    %4057 = vrot.lane.b32.xlu0 %v3960, 32
    %v4058 = vpop.permute.xlu0 %4057
    %4059 = vrot.lane.b32.xlu0 %v3963, 32
    %v4060 = vpop.permute.xlu0 %4059
    %4061 = vrot.lane.b32.xlu0 %v3966, 32
    %v4062 = vpop.permute.xlu0 %4061
    %4063 = vrot.lane.b32.xlu0 %v3969, 32
    %v4064 = vpop.permute.xlu0 %4063
    %4065 = vrot.lane.b32.xlu0 %v3972, 32
    %v4066 = vpop.permute.xlu0 %4065
    %4067 = vrot.lane.b32.xlu0 %v3975, 32
    %v4068 = vpop.permute.xlu0 %4067
    %4069 = vrot.lane.b32.xlu0 %v3978, 32
    %v4070 = vpop.permute.xlu0 %4069
    %4071 = vrot.lane.b32.xlu0 %v3981, 32
    %v4072 = vpop.permute.xlu0 %4071
    %4073 = vrot.lane.b32.xlu0 %v3984, 32
    %v4074 = vpop.permute.xlu0 %4073
    %4075 = vrot.lane.b32.xlu0 %v3987, 32
    %v4076 = vpop.permute.xlu0 %4075
    %4077 = vrot.lane.b32.xlu0 %v3990, 32
    %v4078 = vpop.permute.xlu0 %4077
    %4079 = vrot.lane.b32.xlu0 %v3993, 32
    %v4080 = vpop.permute.xlu0 %4079
    %4081 = vrot.lane.b32.xlu0 %v3996, 32
    %v4082 = vpop.permute.xlu0 %4081
    %4083 = vrot.lane.b32.xlu0 %v3999, 32
    %v4084 = vpop.permute.xlu0 %4083
    %4085 = vrot.lane.b32.xlu0 %v4002, 32
    %v4086 = vpop.permute.xlu0 %4085
    %4087 = vrot.lane.b32.xlu0 %v4005, 32
    %v4088 = vpop.permute.xlu0 %4087
    %4089 = vrot.lane.b32.xlu0 %v4008, 32
    %v4090 = vpop.permute.xlu0 %4089
    %4091 = vrot.lane.b32.xlu0 %v4011, 32
    %v4092 = vpop.permute.xlu0 %4091
    %4093 = vrot.lane.b32.xlu0 %v4014, 32
    %v4094 = vpop.permute.xlu0 %4093
    %4095 = vrot.lane.b32.xlu0 %v4017, 32
    %v4096 = vpop.permute.xlu0 %4095
    %4097 = vrot.lane.b32.xlu0 %v4020, 32
    %v4098 = vpop.permute.xlu0 %4097
    %4099 = vrot.lane.b32.xlu0 %v4023, 32
    %v4100 = vpop.permute.xlu0 %4099
    %4101 = vrot.lane.b32.xlu0 %v4026, 32
    %v4102 = vpop.permute.xlu0 %4101
    %4103 = vrot.lane.b32.xlu0 %v4029, 32
    %v4104 = vpop.permute.xlu0 %4103
    %4105 = vrot.lane.b32.xlu0 %v4032, 32
    %v4106 = vpop.permute.xlu0 %4105
    %4107 = vrot.lane.b32.xlu0 %v4035, 32
    %v4108 = vpop.permute.xlu0 %4107
    %4109 = vrot.lane.b32.xlu0 %v4038, 32
    %v4110 = vpop.permute.xlu0 %4109
    %4147 = vst.msk [vmem:[#allocation2 + $0x1b4] sm:$0xf] %vm674, %v4040
    %4148 = vst.msk [vmem:[#allocation2 + $0x1c0] sm:$0xf] %vm674, %v4042
    %4149 = vst.msk [vmem:[#allocation2 + $0x1cc] sm:$0xf] %vm674, %v4044
    %4150 = vst.msk [vmem:[#allocation2 + $0x1d8] sm:$0xf] %vm674, %v4046
    %4151 = vst.msk [vmem:[#allocation2 + $0x1e4] sm:$0xf] %vm674, %v4048
    %4152 = vst.msk [vmem:[#allocation2 + $0x1f0] sm:$0xf] %vm674, %v4050
    %4153 = vst.msk [vmem:[#allocation2 + $0x1fc] sm:$0xf] %vm674, %v4052
    %4154 = vst.msk [vmem:[#allocation2 + $0x208] sm:$0xf] %vm674, %v4054
    %4155 = vst.msk [vmem:[#allocation2 + $0x214] sm:$0xf] %vm674, %v4056
    %4156 = vst.msk [vmem:[#allocation2 + $0x220] sm:$0xf] %vm674, %v4058
    %4157 = vst.msk [vmem:[#allocation2 + $0x22c] sm:$0xf] %vm674, %v4060
    %4158 = vst.msk [vmem:[#allocation2 + $0x238] sm:$0xf] %vm674, %v4062
    %4159 = vst.msk [vmem:[#allocation2 + $0x244] sm:$0xf] %vm674, %v4064
    %4160 = vst.msk [vmem:[#allocation2 + $0x250] sm:$0xf] %vm674, %v4066
    %4161 = vst.msk [vmem:[#allocation2 + $0x25c] sm:$0xf] %vm674, %v4068
    %4162 = vst.msk [vmem:[#allocation2 + $0x268] sm:$0xf] %vm674, %v4070
    %4163 = vst.msk [vmem:[#allocation2 + $0x274] sm:$0xf] %vm674, %v4072
    %4164 = vst.msk [vmem:[#allocation2 + $0x280] sm:$0xf] %vm674, %v4074
    %4165 = vst.msk [vmem:[#allocation2 + $0x28c] sm:$0xf] %vm674, %v4076
    %4166 = vst.msk [vmem:[#allocation2 + $0x298] sm:$0xf] %vm674, %v4078
    %4167 = vst.msk [vmem:[#allocation2 + $0x2a4] sm:$0xf] %vm674, %v4080
    %4168 = vst.msk [vmem:[#allocation2 + $0x2b0] sm:$0xf] %vm674, %v4082
    %4169 = vst.msk [vmem:[#allocation2 + $0x2bc] sm:$0xf] %vm674, %v4084
    %4170 = vst.msk [vmem:[#allocation2 + $0x2c8] sm:$0xf] %vm674, %v4086
    %4171 = vst.msk [vmem:[#allocation2 + $0x2d4] sm:$0xf] %vm674, %v4088
    %4172 = vst.msk [vmem:[#allocation2 + $0x2e0] sm:$0xf] %vm674, %v4090
    %4173 = vst.msk [vmem:[#allocation2 + $0x2ec] sm:$0xf] %vm674, %v4092
    %4174 = vst.msk [vmem:[#allocation2 + $0x2f8] sm:$0xf] %vm674, %v4094
    %4175 = vst.msk [vmem:[#allocation2 + $0x304] sm:$0xf] %vm674, %v4096
    %4176 = vst.msk [vmem:[#allocation2 + $0x310] sm:$0xf] %vm674, %v4098
    %4177 = vst.msk [vmem:[#allocation2 + $0x31c] sm:$0xf] %vm674, %v4100
    %4178 = vst.msk [vmem:[#allocation2 + $0x328] sm:$0xf] %vm674, %v4102
    %4179 = vst.msk [vmem:[#allocation2 + $0x334] sm:$0xf] %vm674, %v4104
    %4180 = vst.msk [vmem:[#allocation2 + $0x340] sm:$0xf] %vm674, %v4106
    %4181 = vst.msk [vmem:[#allocation2 + $0x34c] sm:$0xf] %vm674, %v4108
    %4182 = vst.msk [vmem:[#allocation2 + $0x358] sm:$0xf] %vm674, %v4110
    %v4183 = vld [vmem:[%s0 + $0x10] sm:$0xc]
    %v4184 = vld [vmem:[%s0 + $0x14] sm:$0xf]
    %v4185 = vld [vmem:[%s0 + $0x18] sm:$0xf]
    %v4186 = vld [vmem:[%s0 + $0x1c] sm:$0xf]
    %v4187 = vld [vmem:[%s0 + $0x20] sm:$0xf]
    %v4188 = vld [vmem:[%s0 + $0x24] sm:$0xf]
    %v4189 = vld [vmem:[%s0 + $0x28] sm:$0xf]
    %v4190 = vld [vmem:[%s0 + $0x2c] sm:$0xf]
    %v4191 = vld [vmem:[%s0 + $0x30] sm:$0xf]
    %v4192 = vld [vmem:[%s0 + $0x34] sm:$0xf]
    %v4193 = vld [vmem:[%s0 + $0x38] sm:$0xf]
    %v4194 = vld [vmem:[%s0 + $0x3c] sm:$0xf]
    %v4195 = vld [vmem:[%s0 + $0x40] sm:$0xf]
    %v4196 = vld [vmem:[%s0 + $0x44] sm:$0xf]
    %v4197 = vld [vmem:[%s0 + $0x48] sm:$0xf]
    %v4198 = vld [vmem:[%s0 + $0x4c] sm:$0xf]
    %v4199 = vld [vmem:[%s0 + $0x50] sm:$0xf]
    %v4200 = vld [vmem:[%s0 + $0x54] sm:$0xf]
    %v4201 = vld [vmem:[%s0 + $0x58] sm:$0xf]
    %v4202 = vld [vmem:[%s0 + $0x5c] sm:$0xf]
    %v4203 = vld [vmem:[%s0 + $0x60] sm:$0xf]
    %v4204 = vld [vmem:[%s0 + $0x64] sm:$0xf]
    %v4205 = vld [vmem:[%s0 + $0x68] sm:$0xf]
    %v4206 = vld [vmem:[%s0 + $0x6c] sm:$0xf]
    %v4207 = vld [vmem:[%s0 + $0x70] sm:$0xf]
    %v4208 = vld [vmem:[%s0 + $0x74] sm:$0xf]
    %v4209 = vld [vmem:[%s0 + $0x78] sm:$0xf]
    %v4210 = vld [vmem:[%s0 + $0x7c] sm:$0xf]
    %v4211 = vld [vmem:[%s0 + $0x80] sm:$0xf]
    %v4212 = vld [vmem:[%s0 + $0x84] sm:$0xf]
    %v4213 = vld [vmem:[%s0 + $0x88] sm:$0xf]
    %v4214 = vld [vmem:[%s0 + $0x8c] sm:$0xf]
    %v4215 = vld [vmem:[%s0 + $0x90] sm:$0xf]
    %v4216 = vld [vmem:[%s0 + $0x94] sm:$0xf]
    %v4217 = vld [vmem:[%s0 + $0x98] sm:$0xf]
    %v4218 = vld [vmem:[%s0 + $0x9c] sm:$0xf]
    %v4219 = vld [vmem:[%s0 + $0xa0] sm:$0x3]
    %v4257 = vrot.slane %v4183, 6
    %v4258 = vrot.slane %v4257, 4
    %v4259 = vrot.slane %v4184, 6
    %v4260 = vsel %vm3602, %v4258, %v4259
    %v4261 = vrot.slane %v4259, 4
    %v4262 = vrot.slane %v4185, 6
    %v4263 = vsel %vm3602, %v4261, %v4262
    %v4264 = vrot.slane %v4262, 4
    %v4265 = vrot.slane %v4186, 6
    %v4266 = vsel %vm3602, %v4264, %v4265
    %v4267 = vrot.slane %v4265, 4
    %v4268 = vrot.slane %v4187, 6
    %v4269 = vsel %vm3602, %v4267, %v4268
    %v4270 = vrot.slane %v4268, 4
    %v4271 = vrot.slane %v4188, 6
    %v4272 = vsel %vm3602, %v4270, %v4271
    %v4273 = vrot.slane %v4271, 4
    %v4274 = vrot.slane %v4189, 6
    %v4275 = vsel %vm3602, %v4273, %v4274
    %v4276 = vrot.slane %v4274, 4
    %v4277 = vrot.slane %v4190, 6
    %v4278 = vsel %vm3602, %v4276, %v4277
    %v4279 = vrot.slane %v4277, 4
    %v4280 = vrot.slane %v4191, 6
    %v4281 = vsel %vm3602, %v4279, %v4280
    %v4282 = vrot.slane %v4280, 4
    %v4283 = vrot.slane %v4192, 6
    %v4284 = vsel %vm3602, %v4282, %v4283
    %v4285 = vrot.slane %v4283, 4
    %v4286 = vrot.slane %v4193, 6
    %v4287 = vsel %vm3602, %v4285, %v4286
    %v4288 = vrot.slane %v4286, 4
    %v4289 = vrot.slane %v4194, 6
    %v4290 = vsel %vm3602, %v4288, %v4289
    %v4291 = vrot.slane %v4289, 4
    %v4292 = vrot.slane %v4195, 6
    %v4293 = vsel %vm3602, %v4291, %v4292
    %v4294 = vrot.slane %v4292, 4
    %v4295 = vrot.slane %v4196, 6
    %v4296 = vsel %vm3602, %v4294, %v4295
    %v4297 = vrot.slane %v4295, 4
    %v4298 = vrot.slane %v4197, 6
    %v4299 = vsel %vm3602, %v4297, %v4298
    %v4300 = vrot.slane %v4298, 4
    %v4301 = vrot.slane %v4198, 6
    %v4302 = vsel %vm3602, %v4300, %v4301
    %v4303 = vrot.slane %v4301, 4
    %v4304 = vrot.slane %v4199, 6
    %v4305 = vsel %vm3602, %v4303, %v4304
    %v4306 = vrot.slane %v4304, 4
    %v4307 = vrot.slane %v4200, 6
    %v4308 = vsel %vm3602, %v4306, %v4307
    %v4309 = vrot.slane %v4307, 4
    %v4310 = vrot.slane %v4201, 6
    %v4311 = vsel %vm3602, %v4309, %v4310
    %v4312 = vrot.slane %v4310, 4
    %v4313 = vrot.slane %v4202, 6
    %v4314 = vsel %vm3602, %v4312, %v4313
    %v4315 = vrot.slane %v4313, 4
    %v4316 = vrot.slane %v4203, 6
    %v4317 = vsel %vm3602, %v4315, %v4316
    %v4318 = vrot.slane %v4316, 4
    %v4319 = vrot.slane %v4204, 6
    %v4320 = vsel %vm3602, %v4318, %v4319
    %v4321 = vrot.slane %v4319, 4
    %v4322 = vrot.slane %v4205, 6
    %v4323 = vsel %vm3602, %v4321, %v4322
    %v4324 = vrot.slane %v4322, 4
    %v4325 = vrot.slane %v4206, 6
    %v4326 = vsel %vm3602, %v4324, %v4325
    %v4327 = vrot.slane %v4325, 4
    %v4328 = vrot.slane %v4207, 6
    %v4329 = vsel %vm3602, %v4327, %v4328
    %v4330 = vrot.slane %v4328, 4
    %v4331 = vrot.slane %v4208, 6
    %v4332 = vsel %vm3602, %v4330, %v4331
    %v4333 = vrot.slane %v4331, 4
    %v4334 = vrot.slane %v4209, 6
    %v4335 = vsel %vm3602, %v4333, %v4334
    %v4336 = vrot.slane %v4334, 4
    %v4337 = vrot.slane %v4210, 6
    %v4338 = vsel %vm3602, %v4336, %v4337
    %v4339 = vrot.slane %v4337, 4
    %v4340 = vrot.slane %v4211, 6
    %v4341 = vsel %vm3602, %v4339, %v4340
    %v4342 = vrot.slane %v4340, 4
    %v4343 = vrot.slane %v4212, 6
    %v4344 = vsel %vm3602, %v4342, %v4343
    %v4345 = vrot.slane %v4343, 4
    %v4346 = vrot.slane %v4213, 6
    %v4347 = vsel %vm3602, %v4345, %v4346
    %v4348 = vrot.slane %v4346, 4
    %v4349 = vrot.slane %v4214, 6
    %v4350 = vsel %vm3602, %v4348, %v4349
    %v4351 = vrot.slane %v4349, 4
    %v4352 = vrot.slane %v4215, 6
    %v4353 = vsel %vm3602, %v4351, %v4352
    %v4354 = vrot.slane %v4352, 4
    %v4355 = vrot.slane %v4216, 6
    %v4356 = vsel %vm3602, %v4354, %v4355
    %v4357 = vrot.slane %v4355, 4
    %v4358 = vrot.slane %v4217, 6
    %v4359 = vsel %vm3602, %v4357, %v4358
    %v4360 = vrot.slane %v4358, 4
    %v4361 = vrot.slane %v4218, 6
    %v4362 = vsel %vm3602, %v4360, %v4361
    %v4363 = vrot.slane %v4361, 4
    %v4364 = vrot.slane %v4219, 6
    %v4365 = vsel %vm3602, %v4363, %v4364
    %4366 = vrot.lane.b32.xlu0 %v4260, 64
    %v4367 = vpop.permute.xlu0 %4366
    %4368 = vrot.lane.b32.xlu0 %v4263, 64
    %v4369 = vpop.permute.xlu0 %4368
    %4370 = vrot.lane.b32.xlu0 %v4266, 64
    %v4371 = vpop.permute.xlu0 %4370
    %4372 = vrot.lane.b32.xlu0 %v4269, 64
    %v4373 = vpop.permute.xlu0 %4372
    %4374 = vrot.lane.b32.xlu0 %v4272, 64
    %v4375 = vpop.permute.xlu0 %4374
    %4376 = vrot.lane.b32.xlu0 %v4275, 64
    %v4377 = vpop.permute.xlu0 %4376
    %4378 = vrot.lane.b32.xlu0 %v4278, 64
    %v4379 = vpop.permute.xlu0 %4378
    %4380 = vrot.lane.b32.xlu0 %v4281, 64
    %v4381 = vpop.permute.xlu0 %4380
    %4382 = vrot.lane.b32.xlu0 %v4284, 64
    %v4383 = vpop.permute.xlu0 %4382
    %4384 = vrot.lane.b32.xlu0 %v4287, 64
    %v4385 = vpop.permute.xlu0 %4384
    %4386 = vrot.lane.b32.xlu0 %v4290, 64
    %v4387 = vpop.permute.xlu0 %4386
    %4388 = vrot.lane.b32.xlu0 %v4293, 64
    %v4389 = vpop.permute.xlu0 %4388
    %4390 = vrot.lane.b32.xlu0 %v4296, 64
    %v4391 = vpop.permute.xlu0 %4390
    %4392 = vrot.lane.b32.xlu0 %v4299, 64
    %v4393 = vpop.permute.xlu0 %4392
    %4394 = vrot.lane.b32.xlu0 %v4302, 64
    %v4395 = vpop.permute.xlu0 %4394
    %4396 = vrot.lane.b32.xlu0 %v4305, 64
    %v4397 = vpop.permute.xlu0 %4396
    %4398 = vrot.lane.b32.xlu0 %v4308, 64
    %v4399 = vpop.permute.xlu0 %4398
    %4400 = vrot.lane.b32.xlu0 %v4311, 64
    %v4401 = vpop.permute.xlu0 %4400
    %4402 = vrot.lane.b32.xlu0 %v4314, 64
    %v4403 = vpop.permute.xlu0 %4402
    %4404 = vrot.lane.b32.xlu0 %v4317, 64
    %v4405 = vpop.permute.xlu0 %4404
    %4406 = vrot.lane.b32.xlu0 %v4320, 64
    %v4407 = vpop.permute.xlu0 %4406
    %4408 = vrot.lane.b32.xlu0 %v4323, 64
    %v4409 = vpop.permute.xlu0 %4408
    %4410 = vrot.lane.b32.xlu0 %v4326, 64
    %v4411 = vpop.permute.xlu0 %4410
    %4412 = vrot.lane.b32.xlu0 %v4329, 64
    %v4413 = vpop.permute.xlu0 %4412
    %4414 = vrot.lane.b32.xlu0 %v4332, 64
    %v4415 = vpop.permute.xlu0 %4414
    %4416 = vrot.lane.b32.xlu0 %v4335, 64
    %v4417 = vpop.permute.xlu0 %4416
    %4418 = vrot.lane.b32.xlu0 %v4338, 64
    %v4419 = vpop.permute.xlu0 %4418
    %4420 = vrot.lane.b32.xlu0 %v4341, 64
    %v4421 = vpop.permute.xlu0 %4420
    %4422 = vrot.lane.b32.xlu0 %v4344, 64
    %v4423 = vpop.permute.xlu0 %4422
    %4424 = vrot.lane.b32.xlu0 %v4347, 64
    %v4425 = vpop.permute.xlu0 %4424
    %4426 = vrot.lane.b32.xlu0 %v4350, 64
    %v4427 = vpop.permute.xlu0 %4426
    %4428 = vrot.lane.b32.xlu0 %v4353, 64
    %v4429 = vpop.permute.xlu0 %4428
    %4430 = vrot.lane.b32.xlu0 %v4356, 64
    %v4431 = vpop.permute.xlu0 %4430
    %4432 = vrot.lane.b32.xlu0 %v4359, 64
    %v4433 = vpop.permute.xlu0 %4432
    %4434 = vrot.lane.b32.xlu0 %v4362, 64
    %v4435 = vpop.permute.xlu0 %4434
    %4436 = vrot.lane.b32.xlu0 %v4365, 64
    %v4437 = vpop.permute.xlu0 %4436
    %4474 = vst.msk [vmem:[#allocation2 + $0x4] sm:$0xf] %vm1550, %v4367
    %4475 = vst.msk [vmem:[#allocation2 + $0x10] sm:$0xf] %vm1550, %v4369
    %4476 = vst.msk [vmem:[#allocation2 + $0x1c] sm:$0xf] %vm1550, %v4371
    %4477 = vst.msk [vmem:[#allocation2 + $0x28] sm:$0xf] %vm1550, %v4373
    %4478 = vst.msk [vmem:[#allocation2 + $0x34] sm:$0xf] %vm1550, %v4375
    %4479 = vst.msk [vmem:[#allocation2 + $0x40] sm:$0xf] %vm1550, %v4377
    %4480 = vst.msk [vmem:[#allocation2 + $0x4c] sm:$0xf] %vm1550, %v4379
    %4481 = vst.msk [vmem:[#allocation2 + $0x58] sm:$0xf] %vm1550, %v4381
    %4482 = vst.msk [vmem:[#allocation2 + $0x64] sm:$0xf] %vm1550, %v4383
    %4483 = vst.msk [vmem:[#allocation2 + $0x70] sm:$0xf] %vm1550, %v4385
    %4484 = vst.msk [vmem:[#allocation2 + $0x7c] sm:$0xf] %vm1550, %v4387
    %4485 = vst.msk [vmem:[#allocation2 + $0x88] sm:$0xf] %vm1550, %v4389
    %4486 = vst.msk [vmem:[#allocation2 + $0x94] sm:$0xf] %vm1550, %v4391
    %4487 = vst.msk [vmem:[#allocation2 + $0xa0] sm:$0xf] %vm1550, %v4393
    %4488 = vst.msk [vmem:[#allocation2 + $0xac] sm:$0xf] %vm1550, %v4395
    %4489 = vst.msk [vmem:[#allocation2 + $0xb8] sm:$0xf] %vm1550, %v4397
    %4490 = vst.msk [vmem:[#allocation2 + $0xc4] sm:$0xf] %vm1550, %v4399
    %4491 = vst.msk [vmem:[#allocation2 + $0xd0] sm:$0xf] %vm1550, %v4401
    %4492 = vst.msk [vmem:[#allocation2 + $0xdc] sm:$0xf] %vm1550, %v4403
    %4493 = vst.msk [vmem:[#allocation2 + $0xe8] sm:$0xf] %vm1550, %v4405
    %4494 = vst.msk [vmem:[#allocation2 + $0xf4] sm:$0xf] %vm1550, %v4407
    %4495 = vst.msk [vmem:[#allocation2 + $0x100] sm:$0xf] %vm1550, %v4409
    %4496 = vst.msk [vmem:[#allocation2 + $0x10c] sm:$0xf] %vm1550, %v4411
    %4497 = vst.msk [vmem:[#allocation2 + $0x118] sm:$0xf] %vm1550, %v4413
    %4498 = vst.msk [vmem:[#allocation2 + $0x124] sm:$0xf] %vm1550, %v4415
    %4499 = vst.msk [vmem:[#allocation2 + $0x130] sm:$0xf] %vm1550, %v4417
    %4500 = vst.msk [vmem:[#allocation2 + $0x13c] sm:$0xf] %vm1550, %v4419
    %4501 = vst.msk [vmem:[#allocation2 + $0x148] sm:$0xf] %vm1550, %v4421
    %4502 = vst.msk [vmem:[#allocation2 + $0x154] sm:$0xf] %vm1550, %v4423
    %4503 = vst.msk [vmem:[#allocation2 + $0x160] sm:$0xf] %vm1550, %v4425
    %4504 = vst.msk [vmem:[#allocation2 + $0x16c] sm:$0xf] %vm1550, %v4427
    %4505 = vst.msk [vmem:[#allocation2 + $0x178] sm:$0xf] %vm1550, %v4429
    %4506 = vst.msk [vmem:[#allocation2 + $0x184] sm:$0xf] %vm1550, %v4431
    %4507 = vst.msk [vmem:[#allocation2 + $0x190] sm:$0xf] %vm1550, %v4433
    %4508 = vst.msk [vmem:[#allocation2 + $0x19c] sm:$0xf] %vm1550, %v4435
    %4509 = vst.msk [vmem:[#allocation2 + $0x1a8] sm:$0xf] %vm1550, %v4437
    %v4510 = vld [vmem:[%s89 + $0x10] sm:$0xc]
    %v4511 = vld [vmem:[%s89 + $0x14] sm:$0xf]
    %v4512 = vld [vmem:[%s89 + $0x18] sm:$0xf]
    %v4513 = vld [vmem:[%s89 + $0x1c] sm:$0xf]
    %v4514 = vld [vmem:[%s89 + $0x20] sm:$0xf]
    %v4515 = vld [vmem:[%s89 + $0x24] sm:$0xf]
    %v4516 = vld [vmem:[%s89 + $0x28] sm:$0xf]
    %v4517 = vld [vmem:[%s89 + $0x2c] sm:$0xf]
    %v4518 = vld [vmem:[%s89 + $0x30] sm:$0xf]
    %v4519 = vld [vmem:[%s89 + $0x34] sm:$0xf]
    %v4520 = vld [vmem:[%s89 + $0x38] sm:$0xf]
    %v4521 = vld [vmem:[%s89 + $0x3c] sm:$0xf]
    %v4522 = vld [vmem:[%s89 + $0x40] sm:$0xf]
    %v4523 = vld [vmem:[%s89 + $0x44] sm:$0xf]
    %v4524 = vld [vmem:[%s89 + $0x48] sm:$0xf]
    %v4525 = vld [vmem:[%s89 + $0x4c] sm:$0xf]
    %v4526 = vld [vmem:[%s89 + $0x50] sm:$0xf]
    %v4527 = vld [vmem:[%s89 + $0x54] sm:$0xf]
    %v4528 = vld [vmem:[%s89 + $0x58] sm:$0xf]
    %v4529 = vld [vmem:[%s89 + $0x5c] sm:$0xf]
    %v4530 = vld [vmem:[%s89 + $0x60] sm:$0xf]
    %v4531 = vld [vmem:[%s89 + $0x64] sm:$0xf]
    %v4532 = vld [vmem:[%s89 + $0x68] sm:$0xf]
    %v4533 = vld [vmem:[%s89 + $0x6c] sm:$0xf]
    %v4534 = vld [vmem:[%s89 + $0x70] sm:$0xf]
    %v4535 = vld [vmem:[%s89 + $0x74] sm:$0xf]
    %v4536 = vld [vmem:[%s89 + $0x78] sm:$0xf]
    %v4537 = vld [vmem:[%s89 + $0x7c] sm:$0xf]
    %v4538 = vld [vmem:[%s89 + $0x80] sm:$0xf]
    %v4539 = vld [vmem:[%s89 + $0x84] sm:$0xf]
    %v4540 = vld [vmem:[%s89 + $0x88] sm:$0xf]
    %v4541 = vld [vmem:[%s89 + $0x8c] sm:$0xf]
    %v4542 = vld [vmem:[%s89 + $0x90] sm:$0xf]
    %v4543 = vld [vmem:[%s89 + $0x94] sm:$0xf]
    %v4544 = vld [vmem:[%s89 + $0x98] sm:$0xf]
    %v4545 = vld [vmem:[%s89 + $0x9c] sm:$0xf]
    %v4546 = vld [vmem:[%s89 + $0xa0] sm:$0x3]
    %v4584 = vrot.slane %v4510, 6
    %v4585 = vrot.slane %v4584, 4
    %v4586 = vrot.slane %v4511, 6
    %v4587 = vsel %vm3602, %v4585, %v4586
    %v4588 = vrot.slane %v4586, 4
    %v4589 = vrot.slane %v4512, 6
    %v4590 = vsel %vm3602, %v4588, %v4589
    %v4591 = vrot.slane %v4589, 4
    %v4592 = vrot.slane %v4513, 6
    %v4593 = vsel %vm3602, %v4591, %v4592
    %v4594 = vrot.slane %v4592, 4
    %v4595 = vrot.slane %v4514, 6
    %v4596 = vsel %vm3602, %v4594, %v4595
    %v4597 = vrot.slane %v4595, 4
    %v4598 = vrot.slane %v4515, 6
    %v4599 = vsel %vm3602, %v4597, %v4598
    %v4600 = vrot.slane %v4598, 4
    %v4601 = vrot.slane %v4516, 6
    %v4602 = vsel %vm3602, %v4600, %v4601
    %v4603 = vrot.slane %v4601, 4
    %v4604 = vrot.slane %v4517, 6
    %v4605 = vsel %vm3602, %v4603, %v4604
    %v4606 = vrot.slane %v4604, 4
    %v4607 = vrot.slane %v4518, 6
    %v4608 = vsel %vm3602, %v4606, %v4607
    %v4609 = vrot.slane %v4607, 4
    %v4610 = vrot.slane %v4519, 6
    %v4611 = vsel %vm3602, %v4609, %v4610
    %v4612 = vrot.slane %v4610, 4
    %v4613 = vrot.slane %v4520, 6
    %v4614 = vsel %vm3602, %v4612, %v4613
    %v4615 = vrot.slane %v4613, 4
    %v4616 = vrot.slane %v4521, 6
    %v4617 = vsel %vm3602, %v4615, %v4616
    %v4618 = vrot.slane %v4616, 4
    %v4619 = vrot.slane %v4522, 6
    %v4620 = vsel %vm3602, %v4618, %v4619
    %v4621 = vrot.slane %v4619, 4
    %v4622 = vrot.slane %v4523, 6
    %v4623 = vsel %vm3602, %v4621, %v4622
    %v4624 = vrot.slane %v4622, 4
    %v4625 = vrot.slane %v4524, 6
    %v4626 = vsel %vm3602, %v4624, %v4625
    %v4627 = vrot.slane %v4625, 4
    %v4628 = vrot.slane %v4525, 6
    %v4629 = vsel %vm3602, %v4627, %v4628
    %v4630 = vrot.slane %v4628, 4
    %v4631 = vrot.slane %v4526, 6
    %v4632 = vsel %vm3602, %v4630, %v4631
    %v4633 = vrot.slane %v4631, 4
    %v4634 = vrot.slane %v4527, 6
    %v4635 = vsel %vm3602, %v4633, %v4634
    %v4636 = vrot.slane %v4634, 4
    %v4637 = vrot.slane %v4528, 6
    %v4638 = vsel %vm3602, %v4636, %v4637
    %v4639 = vrot.slane %v4637, 4
    %v4640 = vrot.slane %v4529, 6
    %v4641 = vsel %vm3602, %v4639, %v4640
    %v4642 = vrot.slane %v4640, 4
    %v4643 = vrot.slane %v4530, 6
    %v4644 = vsel %vm3602, %v4642, %v4643
    %v4645 = vrot.slane %v4643, 4
    %v4646 = vrot.slane %v4531, 6
    %v4647 = vsel %vm3602, %v4645, %v4646
    %v4648 = vrot.slane %v4646, 4
    %v4649 = vrot.slane %v4532, 6
    %v4650 = vsel %vm3602, %v4648, %v4649
    %v4651 = vrot.slane %v4649, 4
    %v4652 = vrot.slane %v4533, 6
    %v4653 = vsel %vm3602, %v4651, %v4652
    %v4654 = vrot.slane %v4652, 4
    %v4655 = vrot.slane %v4534, 6
    %v4656 = vsel %vm3602, %v4654, %v4655
    %v4657 = vrot.slane %v4655, 4
    %v4658 = vrot.slane %v4535, 6
    %v4659 = vsel %vm3602, %v4657, %v4658
    %v4660 = vrot.slane %v4658, 4
    %v4661 = vrot.slane %v4536, 6
    %v4662 = vsel %vm3602, %v4660, %v4661
    %v4663 = vrot.slane %v4661, 4
    %v4664 = vrot.slane %v4537, 6
    %v4665 = vsel %vm3602, %v4663, %v4664
    %v4666 = vrot.slane %v4664, 4
    %v4667 = vrot.slane %v4538, 6
    %v4668 = vsel %vm3602, %v4666, %v4667
    %v4669 = vrot.slane %v4667, 4
    %v4670 = vrot.slane %v4539, 6
    %v4671 = vsel %vm3602, %v4669, %v4670
    %v4672 = vrot.slane %v4670, 4
    %v4673 = vrot.slane %v4540, 6
    %v4674 = vsel %vm3602, %v4672, %v4673
    %v4675 = vrot.slane %v4673, 4
    %v4676 = vrot.slane %v4541, 6
    %v4677 = vsel %vm3602, %v4675, %v4676
    %v4678 = vrot.slane %v4676, 4
    %v4679 = vrot.slane %v4542, 6
    %v4680 = vsel %vm3602, %v4678, %v4679
    %v4681 = vrot.slane %v4679, 4
    %v4682 = vrot.slane %v4543, 6
    %v4683 = vsel %vm3602, %v4681, %v4682
    %v4684 = vrot.slane %v4682, 4
    %v4685 = vrot.slane %v4544, 6
    %v4686 = vsel %vm3602, %v4684, %v4685
    %v4687 = vrot.slane %v4685, 4
    %v4688 = vrot.slane %v4545, 6
    %v4689 = vsel %vm3602, %v4687, %v4688
    %v4690 = vrot.slane %v4688, 4
    %v4691 = vrot.slane %v4546, 6
    %v4692 = vsel %vm3602, %v4690, %v4691
    %4693 = vrot.lane.b32.xlu0 %v4587, 64
    %v4694 = vpop.permute.xlu0 %4693
    %4695 = vrot.lane.b32.xlu0 %v4590, 64
    %v4696 = vpop.permute.xlu0 %4695
    %4697 = vrot.lane.b32.xlu0 %v4593, 64
    %v4698 = vpop.permute.xlu0 %4697
    %4699 = vrot.lane.b32.xlu0 %v4596, 64
    %v4700 = vpop.permute.xlu0 %4699
    %4701 = vrot.lane.b32.xlu0 %v4599, 64
    %v4702 = vpop.permute.xlu0 %4701
    %4703 = vrot.lane.b32.xlu0 %v4602, 64
    %v4704 = vpop.permute.xlu0 %4703
    %4705 = vrot.lane.b32.xlu0 %v4605, 64
    %v4706 = vpop.permute.xlu0 %4705
    %4707 = vrot.lane.b32.xlu0 %v4608, 64
    %v4708 = vpop.permute.xlu0 %4707
    %4709 = vrot.lane.b32.xlu0 %v4611, 64
    %v4710 = vpop.permute.xlu0 %4709
    %4711 = vrot.lane.b32.xlu0 %v4614, 64
    %v4712 = vpop.permute.xlu0 %4711
    %4713 = vrot.lane.b32.xlu0 %v4617, 64
    %v4714 = vpop.permute.xlu0 %4713
    %4715 = vrot.lane.b32.xlu0 %v4620, 64
    %v4716 = vpop.permute.xlu0 %4715
    %4717 = vrot.lane.b32.xlu0 %v4623, 64
    %v4718 = vpop.permute.xlu0 %4717
    %4719 = vrot.lane.b32.xlu0 %v4626, 64
    %v4720 = vpop.permute.xlu0 %4719
    %4721 = vrot.lane.b32.xlu0 %v4629, 64
    %v4722 = vpop.permute.xlu0 %4721
    %4723 = vrot.lane.b32.xlu0 %v4632, 64
    %v4724 = vpop.permute.xlu0 %4723
    %4725 = vrot.lane.b32.xlu0 %v4635, 64
    %v4726 = vpop.permute.xlu0 %4725
    %4727 = vrot.lane.b32.xlu0 %v4638, 64
    %v4728 = vpop.permute.xlu0 %4727
    %4729 = vrot.lane.b32.xlu0 %v4641, 64
    %v4730 = vpop.permute.xlu0 %4729
    %4731 = vrot.lane.b32.xlu0 %v4644, 64
    %v4732 = vpop.permute.xlu0 %4731
    %4733 = vrot.lane.b32.xlu0 %v4647, 64
    %v4734 = vpop.permute.xlu0 %4733
    %4735 = vrot.lane.b32.xlu0 %v4650, 64
    %v4736 = vpop.permute.xlu0 %4735
    %4737 = vrot.lane.b32.xlu0 %v4653, 64
    %v4738 = vpop.permute.xlu0 %4737
    %4739 = vrot.lane.b32.xlu0 %v4656, 64
    %v4740 = vpop.permute.xlu0 %4739
    %4741 = vrot.lane.b32.xlu0 %v4659, 64
    %v4742 = vpop.permute.xlu0 %4741
    %4743 = vrot.lane.b32.xlu0 %v4662, 64
    %v4744 = vpop.permute.xlu0 %4743
    %4745 = vrot.lane.b32.xlu0 %v4665, 64
    %v4746 = vpop.permute.xlu0 %4745
    %4747 = vrot.lane.b32.xlu0 %v4668, 64
    %v4748 = vpop.permute.xlu0 %4747
    %4749 = vrot.lane.b32.xlu0 %v4671, 64
    %v4750 = vpop.permute.xlu0 %4749
    %4751 = vrot.lane.b32.xlu0 %v4674, 64
    %v4752 = vpop.permute.xlu0 %4751
    %4753 = vrot.lane.b32.xlu0 %v4677, 64
    %v4754 = vpop.permute.xlu0 %4753
    %4755 = vrot.lane.b32.xlu0 %v4680, 64
    %v4756 = vpop.permute.xlu0 %4755
    %4757 = vrot.lane.b32.xlu0 %v4683, 64
    %v4758 = vpop.permute.xlu0 %4757
    %4759 = vrot.lane.b32.xlu0 %v4686, 64
    %v4760 = vpop.permute.xlu0 %4759
    %4761 = vrot.lane.b32.xlu0 %v4689, 64
    %v4762 = vpop.permute.xlu0 %4761
    %4763 = vrot.lane.b32.xlu0 %v4692, 64
    %v4764 = vpop.permute.xlu0 %4763
    %4801 = vst.msk [vmem:[#allocation2 + $0x1b4] sm:$0xf] %vm1550, %v4694
    %4802 = vst.msk [vmem:[#allocation2 + $0x1c0] sm:$0xf] %vm1550, %v4696
    %4803 = vst.msk [vmem:[#allocation2 + $0x1cc] sm:$0xf] %vm1550, %v4698
    %4804 = vst.msk [vmem:[#allocation2 + $0x1d8] sm:$0xf] %vm1550, %v4700
    %4805 = vst.msk [vmem:[#allocation2 + $0x1e4] sm:$0xf] %vm1550, %v4702
    %4806 = vst.msk [vmem:[#allocation2 + $0x1f0] sm:$0xf] %vm1550, %v4704
    %4807 = vst.msk [vmem:[#allocation2 + $0x1fc] sm:$0xf] %vm1550, %v4706
    %4808 = vst.msk [vmem:[#allocation2 + $0x208] sm:$0xf] %vm1550, %v4708
    %4809 = vst.msk [vmem:[#allocation2 + $0x214] sm:$0xf] %vm1550, %v4710
    %4810 = vst.msk [vmem:[#allocation2 + $0x220] sm:$0xf] %vm1550, %v4712
    %4811 = vst.msk [vmem:[#allocation2 + $0x22c] sm:$0xf] %vm1550, %v4714
    %4812 = vst.msk [vmem:[#allocation2 + $0x238] sm:$0xf] %vm1550, %v4716
    %4813 = vst.msk [vmem:[#allocation2 + $0x244] sm:$0xf] %vm1550, %v4718
    %4814 = vst.msk [vmem:[#allocation2 + $0x250] sm:$0xf] %vm1550, %v4720
    %4815 = vst.msk [vmem:[#allocation2 + $0x25c] sm:$0xf] %vm1550, %v4722
    %4816 = vst.msk [vmem:[#allocation2 + $0x268] sm:$0xf] %vm1550, %v4724
    %4817 = vst.msk [vmem:[#allocation2 + $0x274] sm:$0xf] %vm1550, %v4726
    %4818 = vst.msk [vmem:[#allocation2 + $0x280] sm:$0xf] %vm1550, %v4728
    %4819 = vst.msk [vmem:[#allocation2 + $0x28c] sm:$0xf] %vm1550, %v4730
    %4820 = vst.msk [vmem:[#allocation2 + $0x298] sm:$0xf] %vm1550, %v4732
    %4821 = vst.msk [vmem:[#allocation2 + $0x2a4] sm:$0xf] %vm1550, %v4734
    %4822 = vst.msk [vmem:[#allocation2 + $0x2b0] sm:$0xf] %vm1550, %v4736
    %4823 = vst.msk [vmem:[#allocation2 + $0x2bc] sm:$0xf] %vm1550, %v4738
    %4824 = vst.msk [vmem:[#allocation2 + $0x2c8] sm:$0xf] %vm1550, %v4740
    %4825 = vst.msk [vmem:[#allocation2 + $0x2d4] sm:$0xf] %vm1550, %v4742
    %4826 = vst.msk [vmem:[#allocation2 + $0x2e0] sm:$0xf] %vm1550, %v4744
    %4827 = vst.msk [vmem:[#allocation2 + $0x2ec] sm:$0xf] %vm1550, %v4746
    %4828 = vst.msk [vmem:[#allocation2 + $0x2f8] sm:$0xf] %vm1550, %v4748
    %4829 = vst.msk [vmem:[#allocation2 + $0x304] sm:$0xf] %vm1550, %v4750
    %4830 = vst.msk [vmem:[#allocation2 + $0x310] sm:$0xf] %vm1550, %v4752
    %4831 = vst.msk [vmem:[#allocation2 + $0x31c] sm:$0xf] %vm1550, %v4754
    %4832 = vst.msk [vmem:[#allocation2 + $0x328] sm:$0xf] %vm1550, %v4756
    %4833 = vst.msk [vmem:[#allocation2 + $0x334] sm:$0xf] %vm1550, %v4758
    %4834 = vst.msk [vmem:[#allocation2 + $0x340] sm:$0xf] %vm1550, %v4760
    %4835 = vst.msk [vmem:[#allocation2 + $0x34c] sm:$0xf] %vm1550, %v4762
    %4836 = vst.msk [vmem:[#allocation2 + $0x358] sm:$0xf] %vm1550, %v4764
    %v4837 = vld [vmem:[%s0 + $0x10] sm:$0xc]
    %v4838 = vld [vmem:[%s0 + $0x14] sm:$0xf]
    %v4839 = vld [vmem:[%s0 + $0x18] sm:$0xf]
    %v4840 = vld [vmem:[%s0 + $0x1c] sm:$0xf]
    %v4841 = vld [vmem:[%s0 + $0x20] sm:$0xf]
    %v4842 = vld [vmem:[%s0 + $0x24] sm:$0xf]
    %v4843 = vld [vmem:[%s0 + $0x28] sm:$0xf]
    %v4844 = vld [vmem:[%s0 + $0x2c] sm:$0xf]
    %v4845 = vld [vmem:[%s0 + $0x30] sm:$0xf]
    %v4846 = vld [vmem:[%s0 + $0x34] sm:$0xf]
    %v4847 = vld [vmem:[%s0 + $0x38] sm:$0xf]
    %v4848 = vld [vmem:[%s0 + $0x3c] sm:$0xf]
    %v4849 = vld [vmem:[%s0 + $0x40] sm:$0xf]
    %v4850 = vld [vmem:[%s0 + $0x44] sm:$0xf]
    %v4851 = vld [vmem:[%s0 + $0x48] sm:$0xf]
    %v4852 = vld [vmem:[%s0 + $0x4c] sm:$0xf]
    %v4853 = vld [vmem:[%s0 + $0x50] sm:$0xf]
    %v4854 = vld [vmem:[%s0 + $0x54] sm:$0xf]
    %v4855 = vld [vmem:[%s0 + $0x58] sm:$0xf]
    %v4856 = vld [vmem:[%s0 + $0x5c] sm:$0xf]
    %v4857 = vld [vmem:[%s0 + $0x60] sm:$0xf]
    %v4858 = vld [vmem:[%s0 + $0x64] sm:$0xf]
    %v4859 = vld [vmem:[%s0 + $0x68] sm:$0xf]
    %v4860 = vld [vmem:[%s0 + $0x6c] sm:$0xf]
    %v4861 = vld [vmem:[%s0 + $0x70] sm:$0xf]
    %v4862 = vld [vmem:[%s0 + $0x74] sm:$0xf]
    %v4863 = vld [vmem:[%s0 + $0x78] sm:$0xf]
    %v4864 = vld [vmem:[%s0 + $0x7c] sm:$0xf]
    %v4865 = vld [vmem:[%s0 + $0x80] sm:$0xf]
    %v4866 = vld [vmem:[%s0 + $0x84] sm:$0xf]
    %v4867 = vld [vmem:[%s0 + $0x88] sm:$0xf]
    %v4868 = vld [vmem:[%s0 + $0x8c] sm:$0xf]
    %v4869 = vld [vmem:[%s0 + $0x90] sm:$0xf]
    %v4870 = vld [vmem:[%s0 + $0x94] sm:$0xf]
    %v4871 = vld [vmem:[%s0 + $0x98] sm:$0xf]
    %v4872 = vld [vmem:[%s0 + $0x9c] sm:$0xf]
    %v4873 = vld [vmem:[%s0 + $0xa0] sm:$0x7]
    %vm4874 = vsmask.f32 1280
    %vm4875 = vsmask.f32 5392
    %vm4876 = vmor %vm4874, %vm4875
    %v4878 = vshrl.u32 %v4837, 16
    %v4880 = vrot.slane %v4878, 6
    %v4881 = vshll.u32 %v4837, 16
    %v4883 = vrot.slane %v4881, 7
    %v4884 = vor.u32 %v4880, %v4883
    %v4885 = vrot.slane %v4884, 4
    %v4887 = vshrl.u32 %v4838, 16
    %v4889 = vrot.slane %v4887, 6
    %v4890 = vshll.u32 %v4838, 16
    %v4892 = vrot.slane %v4890, 7
    %v4893 = vor.u32 %v4889, %v4892
    %v4894 = vsel %vm4876, %v4885, %v4893
    %v4895 = vrot.slane %v4893, 4
    %v4897 = vshrl.u32 %v4839, 16
    %v4899 = vrot.slane %v4897, 6
    %v4900 = vshll.u32 %v4839, 16
    %v4902 = vrot.slane %v4900, 7
    %v4903 = vor.u32 %v4899, %v4902
    %v4904 = vsel %vm4876, %v4895, %v4903
    %v4905 = vrot.slane %v4903, 4
    %v4907 = vshrl.u32 %v4840, 16
    %v4909 = vrot.slane %v4907, 6
    %v4910 = vshll.u32 %v4840, 16
    %v4912 = vrot.slane %v4910, 7
    %v4913 = vor.u32 %v4909, %v4912
    %v4914 = vsel %vm4876, %v4905, %v4913
    %v4915 = vrot.slane %v4913, 4
    %v4917 = vshrl.u32 %v4841, 16
    %v4919 = vrot.slane %v4917, 6
    %v4920 = vshll.u32 %v4841, 16
    %v4922 = vrot.slane %v4920, 7
    %v4923 = vor.u32 %v4919, %v4922
    %v4924 = vsel %vm4876, %v4915, %v4923
    %v4925 = vrot.slane %v4923, 4
    %v4927 = vshrl.u32 %v4842, 16
    %v4929 = vrot.slane %v4927, 6
    %v4930 = vshll.u32 %v4842, 16
    %v4932 = vrot.slane %v4930, 7
    %v4933 = vor.u32 %v4929, %v4932
    %v4934 = vsel %vm4876, %v4925, %v4933
    %v4935 = vrot.slane %v4933, 4
    %v4937 = vshrl.u32 %v4843, 16
    %v4939 = vrot.slane %v4937, 6
    %v4940 = vshll.u32 %v4843, 16
    %v4942 = vrot.slane %v4940, 7
    %v4943 = vor.u32 %v4939, %v4942
    %v4944 = vsel %vm4876, %v4935, %v4943
    %v4945 = vrot.slane %v4943, 4
    %v4947 = vshrl.u32 %v4844, 16
    %v4949 = vrot.slane %v4947, 6
    %v4950 = vshll.u32 %v4844, 16
    %v4952 = vrot.slane %v4950, 7
    %v4953 = vor.u32 %v4949, %v4952
    %v4954 = vsel %vm4876, %v4945, %v4953
    %v4955 = vrot.slane %v4953, 4
    %v4957 = vshrl.u32 %v4845, 16
    %v4959 = vrot.slane %v4957, 6
    %v4960 = vshll.u32 %v4845, 16
    %v4962 = vrot.slane %v4960, 7
    %v4963 = vor.u32 %v4959, %v4962
    %v4964 = vsel %vm4876, %v4955, %v4963
    %v4965 = vrot.slane %v4963, 4
    %v4967 = vshrl.u32 %v4846, 16
    %v4969 = vrot.slane %v4967, 6
    %v4970 = vshll.u32 %v4846, 16
    %v4972 = vrot.slane %v4970, 7
    %v4973 = vor.u32 %v4969, %v4972
    %v4974 = vsel %vm4876, %v4965, %v4973
    %v4975 = vrot.slane %v4973, 4
    %v4977 = vshrl.u32 %v4847, 16
    %v4979 = vrot.slane %v4977, 6
    %v4980 = vshll.u32 %v4847, 16
    %v4982 = vrot.slane %v4980, 7
    %v4983 = vor.u32 %v4979, %v4982
    %v4984 = vsel %vm4876, %v4975, %v4983
    %v4985 = vrot.slane %v4983, 4
    %v4987 = vshrl.u32 %v4848, 16
    %v4989 = vrot.slane %v4987, 6
    %v4990 = vshll.u32 %v4848, 16
    %v4992 = vrot.slane %v4990, 7
    %v4993 = vor.u32 %v4989, %v4992
    %v4994 = vsel %vm4876, %v4985, %v4993
    %v4995 = vrot.slane %v4993, 4
    %v4997 = vshrl.u32 %v4849, 16
    %v4999 = vrot.slane %v4997, 6
    %v5000 = vshll.u32 %v4849, 16
    %v5002 = vrot.slane %v5000, 7
    %v5003 = vor.u32 %v4999, %v5002
    %v5004 = vsel %vm4876, %v4995, %v5003
    %v5005 = vrot.slane %v5003, 4
    %v5007 = vshrl.u32 %v4850, 16
    %v5009 = vrot.slane %v5007, 6
    %v5010 = vshll.u32 %v4850, 16
    %v5012 = vrot.slane %v5010, 7
    %v5013 = vor.u32 %v5009, %v5012
    %v5014 = vsel %vm4876, %v5005, %v5013
    %v5015 = vrot.slane %v5013, 4
    %v5017 = vshrl.u32 %v4851, 16
    %v5019 = vrot.slane %v5017, 6
    %v5020 = vshll.u32 %v4851, 16
    %v5022 = vrot.slane %v5020, 7
    %v5023 = vor.u32 %v5019, %v5022
    %v5024 = vsel %vm4876, %v5015, %v5023
    %v5025 = vrot.slane %v5023, 4
    %v5027 = vshrl.u32 %v4852, 16
    %v5029 = vrot.slane %v5027, 6
    %v5030 = vshll.u32 %v4852, 16
    %v5032 = vrot.slane %v5030, 7
    %v5033 = vor.u32 %v5029, %v5032
    %v5034 = vsel %vm4876, %v5025, %v5033
    %v5035 = vrot.slane %v5033, 4
    %v5037 = vshrl.u32 %v4853, 16
    %v5039 = vrot.slane %v5037, 6
    %v5040 = vshll.u32 %v4853, 16
    %v5042 = vrot.slane %v5040, 7
    %v5043 = vor.u32 %v5039, %v5042
    %v5044 = vsel %vm4876, %v5035, %v5043
    %v5045 = vrot.slane %v5043, 4
    %v5047 = vshrl.u32 %v4854, 16
    %v5049 = vrot.slane %v5047, 6
    %v5050 = vshll.u32 %v4854, 16
    %v5052 = vrot.slane %v5050, 7
    %v5053 = vor.u32 %v5049, %v5052
    %v5054 = vsel %vm4876, %v5045, %v5053
    %v5055 = vrot.slane %v5053, 4
    %v5057 = vshrl.u32 %v4855, 16
    %v5059 = vrot.slane %v5057, 6
    %v5060 = vshll.u32 %v4855, 16
    %v5062 = vrot.slane %v5060, 7
    %v5063 = vor.u32 %v5059, %v5062
    %v5064 = vsel %vm4876, %v5055, %v5063
    %v5065 = vrot.slane %v5063, 4
    %v5067 = vshrl.u32 %v4856, 16
    %v5069 = vrot.slane %v5067, 6
    %v5070 = vshll.u32 %v4856, 16
    %v5072 = vrot.slane %v5070, 7
    %v5073 = vor.u32 %v5069, %v5072
    %v5074 = vsel %vm4876, %v5065, %v5073
    %v5075 = vrot.slane %v5073, 4
    %v5077 = vshrl.u32 %v4857, 16
    %v5079 = vrot.slane %v5077, 6
    %v5080 = vshll.u32 %v4857, 16
    %v5082 = vrot.slane %v5080, 7
    %v5083 = vor.u32 %v5079, %v5082
    %v5084 = vsel %vm4876, %v5075, %v5083
    %v5085 = vrot.slane %v5083, 4
    %v5087 = vshrl.u32 %v4858, 16
    %v5089 = vrot.slane %v5087, 6
    %v5090 = vshll.u32 %v4858, 16
    %v5092 = vrot.slane %v5090, 7
    %v5093 = vor.u32 %v5089, %v5092
    %v5094 = vsel %vm4876, %v5085, %v5093
    %v5095 = vrot.slane %v5093, 4
    %v5097 = vshrl.u32 %v4859, 16
    %v5099 = vrot.slane %v5097, 6
    %v5100 = vshll.u32 %v4859, 16
    %v5102 = vrot.slane %v5100, 7
    %v5103 = vor.u32 %v5099, %v5102
    %v5104 = vsel %vm4876, %v5095, %v5103
    %v5105 = vrot.slane %v5103, 4
    %v5107 = vshrl.u32 %v4860, 16
    %v5109 = vrot.slane %v5107, 6
    %v5110 = vshll.u32 %v4860, 16
    %v5112 = vrot.slane %v5110, 7
    %v5113 = vor.u32 %v5109, %v5112
    %v5114 = vsel %vm4876, %v5105, %v5113
    %v5115 = vrot.slane %v5113, 4
    %v5117 = vshrl.u32 %v4861, 16
    %v5119 = vrot.slane %v5117, 6
    %v5120 = vshll.u32 %v4861, 16
    %v5122 = vrot.slane %v5120, 7
    %v5123 = vor.u32 %v5119, %v5122
    %v5124 = vsel %vm4876, %v5115, %v5123
    %v5125 = vrot.slane %v5123, 4
    %v5127 = vshrl.u32 %v4862, 16
    %v5129 = vrot.slane %v5127, 6
    %v5130 = vshll.u32 %v4862, 16
    %v5132 = vrot.slane %v5130, 7
    %v5133 = vor.u32 %v5129, %v5132
    %v5134 = vsel %vm4876, %v5125, %v5133
    %v5135 = vrot.slane %v5133, 4
    %v5137 = vshrl.u32 %v4863, 16
    %v5139 = vrot.slane %v5137, 6
    %v5140 = vshll.u32 %v4863, 16
    %v5142 = vrot.slane %v5140, 7
    %v5143 = vor.u32 %v5139, %v5142
    %v5144 = vsel %vm4876, %v5135, %v5143
    %v5145 = vrot.slane %v5143, 4
    %v5147 = vshrl.u32 %v4864, 16
    %v5149 = vrot.slane %v5147, 6
    %v5150 = vshll.u32 %v4864, 16
    %v5152 = vrot.slane %v5150, 7
    %v5153 = vor.u32 %v5149, %v5152
    %v5154 = vsel %vm4876, %v5145, %v5153
    %v5155 = vrot.slane %v5153, 4
    %v5157 = vshrl.u32 %v4865, 16
    %v5159 = vrot.slane %v5157, 6
    %v5160 = vshll.u32 %v4865, 16
    %v5162 = vrot.slane %v5160, 7
    %v5163 = vor.u32 %v5159, %v5162
    %v5164 = vsel %vm4876, %v5155, %v5163
    %v5165 = vrot.slane %v5163, 4
    %v5167 = vshrl.u32 %v4866, 16
    %v5169 = vrot.slane %v5167, 6
    %v5170 = vshll.u32 %v4866, 16
    %v5172 = vrot.slane %v5170, 7
    %v5173 = vor.u32 %v5169, %v5172
    %v5174 = vsel %vm4876, %v5165, %v5173
    %v5175 = vrot.slane %v5173, 4
    %v5177 = vshrl.u32 %v4867, 16
    %v5179 = vrot.slane %v5177, 6
    %v5180 = vshll.u32 %v4867, 16
    %v5182 = vrot.slane %v5180, 7
    %v5183 = vor.u32 %v5179, %v5182
    %v5184 = vsel %vm4876, %v5175, %v5183
    %v5185 = vrot.slane %v5183, 4
    %v5187 = vshrl.u32 %v4868, 16
    %v5189 = vrot.slane %v5187, 6
    %v5190 = vshll.u32 %v4868, 16
    %v5192 = vrot.slane %v5190, 7
    %v5193 = vor.u32 %v5189, %v5192
    %v5194 = vsel %vm4876, %v5185, %v5193
    %v5195 = vrot.slane %v5193, 4
    %v5197 = vshrl.u32 %v4869, 16
    %v5199 = vrot.slane %v5197, 6
    %v5200 = vshll.u32 %v4869, 16
    %v5202 = vrot.slane %v5200, 7
    %v5203 = vor.u32 %v5199, %v5202
    %v5204 = vsel %vm4876, %v5195, %v5203
    %v5205 = vrot.slane %v5203, 4
    %v5207 = vshrl.u32 %v4870, 16
    %v5209 = vrot.slane %v5207, 6
    %v5210 = vshll.u32 %v4870, 16
    %v5212 = vrot.slane %v5210, 7
    %v5213 = vor.u32 %v5209, %v5212
    %v5214 = vsel %vm4876, %v5205, %v5213
    %v5215 = vrot.slane %v5213, 4
    %v5217 = vshrl.u32 %v4871, 16
    %v5219 = vrot.slane %v5217, 6
    %v5220 = vshll.u32 %v4871, 16
    %v5222 = vrot.slane %v5220, 7
    %v5223 = vor.u32 %v5219, %v5222
    %v5224 = vsel %vm4876, %v5215, %v5223
    %v5225 = vrot.slane %v5223, 4
    %v5227 = vshrl.u32 %v4872, 16
    %v5229 = vrot.slane %v5227, 6
    %v5230 = vshll.u32 %v4872, 16
    %v5232 = vrot.slane %v5230, 7
    %v5233 = vor.u32 %v5229, %v5232
    %v5234 = vsel %vm4876, %v5225, %v5233
    %v5235 = vrot.slane %v5233, 4
    %v5237 = vshrl.u32 %v4873, 16
    %v5239 = vrot.slane %v5237, 6
    %v5240 = vshll.u32 %v4873, 16
    %v5242 = vrot.slane %v5240, 7
    %v5243 = vor.u32 %v5239, %v5242
    %v5244 = vsel %vm4876, %v5235, %v5243
    %5245 = vrot.lane.b32.xlu0 %v4894, 96
    %v5246 = vpop.permute.xlu0 %5245
    %5247 = vrot.lane.b32.xlu0 %v4904, 96
    %v5248 = vpop.permute.xlu0 %5247
    %5249 = vrot.lane.b32.xlu0 %v4914, 96
    %v5250 = vpop.permute.xlu0 %5249
    %5251 = vrot.lane.b32.xlu0 %v4924, 96
    %v5252 = vpop.permute.xlu0 %5251
    %5253 = vrot.lane.b32.xlu0 %v4934, 96
    %v5254 = vpop.permute.xlu0 %5253
    %5255 = vrot.lane.b32.xlu0 %v4944, 96
    %v5256 = vpop.permute.xlu0 %5255
    %5257 = vrot.lane.b32.xlu0 %v4954, 96
    %v5258 = vpop.permute.xlu0 %5257
    %5259 = vrot.lane.b32.xlu0 %v4964, 96
    %v5260 = vpop.permute.xlu0 %5259
    %5261 = vrot.lane.b32.xlu0 %v4974, 96
    %v5262 = vpop.permute.xlu0 %5261
    %5263 = vrot.lane.b32.xlu0 %v4984, 96
    %v5264 = vpop.permute.xlu0 %5263
    %5265 = vrot.lane.b32.xlu0 %v4994, 96
    %v5266 = vpop.permute.xlu0 %5265
    %5267 = vrot.lane.b32.xlu0 %v5004, 96
    %v5268 = vpop.permute.xlu0 %5267
    %5269 = vrot.lane.b32.xlu0 %v5014, 96
    %v5270 = vpop.permute.xlu0 %5269
    %5271 = vrot.lane.b32.xlu0 %v5024, 96
    %v5272 = vpop.permute.xlu0 %5271
    %5273 = vrot.lane.b32.xlu0 %v5034, 96
    %v5274 = vpop.permute.xlu0 %5273
    %5275 = vrot.lane.b32.xlu0 %v5044, 96
    %v5276 = vpop.permute.xlu0 %5275
    %5277 = vrot.lane.b32.xlu0 %v5054, 96
    %v5278 = vpop.permute.xlu0 %5277
    %5279 = vrot.lane.b32.xlu0 %v5064, 96
    %v5280 = vpop.permute.xlu0 %5279
    %5281 = vrot.lane.b32.xlu0 %v5074, 96
    %v5282 = vpop.permute.xlu0 %5281
    %5283 = vrot.lane.b32.xlu0 %v5084, 96
    %v5284 = vpop.permute.xlu0 %5283
    %5285 = vrot.lane.b32.xlu0 %v5094, 96
    %v5286 = vpop.permute.xlu0 %5285
    %5287 = vrot.lane.b32.xlu0 %v5104, 96
    %v5288 = vpop.permute.xlu0 %5287
    %5289 = vrot.lane.b32.xlu0 %v5114, 96
    %v5290 = vpop.permute.xlu0 %5289
    %5291 = vrot.lane.b32.xlu0 %v5124, 96
    %v5292 = vpop.permute.xlu0 %5291
    %5293 = vrot.lane.b32.xlu0 %v5134, 96
    %v5294 = vpop.permute.xlu0 %5293
    %5295 = vrot.lane.b32.xlu0 %v5144, 96
    %v5296 = vpop.permute.xlu0 %5295
    %5297 = vrot.lane.b32.xlu0 %v5154, 96
    %v5298 = vpop.permute.xlu0 %5297
    %5299 = vrot.lane.b32.xlu0 %v5164, 96
    %v5300 = vpop.permute.xlu0 %5299
    %5301 = vrot.lane.b32.xlu0 %v5174, 96
    %v5302 = vpop.permute.xlu0 %5301
    %5303 = vrot.lane.b32.xlu0 %v5184, 96
    %v5304 = vpop.permute.xlu0 %5303
    %5305 = vrot.lane.b32.xlu0 %v5194, 96
    %v5306 = vpop.permute.xlu0 %5305
    %5307 = vrot.lane.b32.xlu0 %v5204, 96
    %v5308 = vpop.permute.xlu0 %5307
    %5309 = vrot.lane.b32.xlu0 %v5214, 96
    %v5310 = vpop.permute.xlu0 %5309
    %5311 = vrot.lane.b32.xlu0 %v5224, 96
    %v5312 = vpop.permute.xlu0 %5311
    %5313 = vrot.lane.b32.xlu0 %v5234, 96
    %v5314 = vpop.permute.xlu0 %5313
    %5315 = vrot.lane.b32.xlu0 %v5244, 96
    %v5316 = vpop.permute.xlu0 %5315
    %5353 = vst.msk [vmem:[#allocation2 + $0x4] sm:$0xf] %vm2205, %v5246
    %5354 = vst.msk [vmem:[#allocation2 + $0x10] sm:$0xf] %vm2205, %v5248
    %5355 = vst.msk [vmem:[#allocation2 + $0x1c] sm:$0xf] %vm2205, %v5250
    %5356 = vst.msk [vmem:[#allocation2 + $0x28] sm:$0xf] %vm2205, %v5252
    %5357 = vst.msk [vmem:[#allocation2 + $0x34] sm:$0xf] %vm2205, %v5254
    %5358 = vst.msk [vmem:[#allocation2 + $0x40] sm:$0xf] %vm2205, %v5256
    %5359 = vst.msk [vmem:[#allocation2 + $0x4c] sm:$0xf] %vm2205, %v5258
    %5360 = vst.msk [vmem:[#allocation2 + $0x58] sm:$0xf] %vm2205, %v5260
    %5361 = vst.msk [vmem:[#allocation2 + $0x64] sm:$0xf] %vm2205, %v5262
    %5362 = vst.msk [vmem:[#allocation2 + $0x70] sm:$0xf] %vm2205, %v5264
    %5363 = vst.msk [vmem:[#allocation2 + $0x7c] sm:$0xf] %vm2205, %v5266
    %5364 = vst.msk [vmem:[#allocation2 + $0x88] sm:$0xf] %vm2205, %v5268
    %5365 = vst.msk [vmem:[#allocation2 + $0x94] sm:$0xf] %vm2205, %v5270
    %5366 = vst.msk [vmem:[#allocation2 + $0xa0] sm:$0xf] %vm2205, %v5272
    %5367 = vst.msk [vmem:[#allocation2 + $0xac] sm:$0xf] %vm2205, %v5274
    %5368 = vst.msk [vmem:[#allocation2 + $0xb8] sm:$0xf] %vm2205, %v5276
    %5369 = vst.msk [vmem:[#allocation2 + $0xc4] sm:$0xf] %vm2205, %v5278
    %5370 = vst.msk [vmem:[#allocation2 + $0xd0] sm:$0xf] %vm2205, %v5280
    %5371 = vst.msk [vmem:[#allocation2 + $0xdc] sm:$0xf] %vm2205, %v5282
    %5372 = vst.msk [vmem:[#allocation2 + $0xe8] sm:$0xf] %vm2205, %v5284
    %5373 = vst.msk [vmem:[#allocation2 + $0xf4] sm:$0xf] %vm2205, %v5286
    %5374 = vst.msk [vmem:[#allocation2 + $0x100] sm:$0xf] %vm2205, %v5288
    %5375 = vst.msk [vmem:[#allocation2 + $0x10c] sm:$0xf] %vm2205, %v5290
    %5376 = vst.msk [vmem:[#allocation2 + $0x118] sm:$0xf] %vm2205, %v5292
    %5377 = vst.msk [vmem:[#allocation2 + $0x124] sm:$0xf] %vm2205, %v5294
    %5378 = vst.msk [vmem:[#allocation2 + $0x130] sm:$0xf] %vm2205, %v5296
    %5379 = vst.msk [vmem:[#allocation2 + $0x13c] sm:$0xf] %vm2205, %v5298
    %5380 = vst.msk [vmem:[#allocation2 + $0x148] sm:$0xf] %vm2205, %v5300
    %5381 = vst.msk [vmem:[#allocation2 + $0x154] sm:$0xf] %vm2205, %v5302
    %5382 = vst.msk [vmem:[#allocation2 + $0x160] sm:$0xf] %vm2205, %v5304
    %5383 = vst.msk [vmem:[#allocation2 + $0x16c] sm:$0xf] %vm2205, %v5306
    %5384 = vst.msk [vmem:[#allocation2 + $0x178] sm:$0xf] %vm2205, %v5308
    %5385 = vst.msk [vmem:[#allocation2 + $0x184] sm:$0xf] %vm2205, %v5310
    %5386 = vst.msk [vmem:[#allocation2 + $0x190] sm:$0xf] %vm2205, %v5312
    %5387 = vst.msk [vmem:[#allocation2 + $0x19c] sm:$0xf] %vm2205, %v5314
    %5388 = vst.msk [vmem:[#allocation2 + $0x1a8] sm:$0xf] %vm2205, %v5316
    %v5389 = vld [vmem:[%s89 + $0x10] sm:$0xc]
    %v5390 = vld [vmem:[%s89 + $0x14] sm:$0xf]
    %v5391 = vld [vmem:[%s89 + $0x18] sm:$0xf]
    %v5392 = vld [vmem:[%s89 + $0x1c] sm:$0xf]
    %v5393 = vld [vmem:[%s89 + $0x20] sm:$0xf]
    %v5394 = vld [vmem:[%s89 + $0x24] sm:$0xf]
    %v5395 = vld [vmem:[%s89 + $0x28] sm:$0xf]
    %v5396 = vld [vmem:[%s89 + $0x2c] sm:$0xf]
    %v5397 = vld [vmem:[%s89 + $0x30] sm:$0xf]
    %v5398 = vld [vmem:[%s89 + $0x34] sm:$0xf]
    %v5399 = vld [vmem:[%s89 + $0x38] sm:$0xf]
    %v5400 = vld [vmem:[%s89 + $0x3c] sm:$0xf]
    %v5401 = vld [vmem:[%s89 + $0x40] sm:$0xf]
    %v5402 = vld [vmem:[%s89 + $0x44] sm:$0xf]
    %v5403 = vld [vmem:[%s89 + $0x48] sm:$0xf]
    %v5404 = vld [vmem:[%s89 + $0x4c] sm:$0xf]
    %v5405 = vld [vmem:[%s89 + $0x50] sm:$0xf]
    %v5406 = vld [vmem:[%s89 + $0x54] sm:$0xf]
    %v5407 = vld [vmem:[%s89 + $0x58] sm:$0xf]
    %v5408 = vld [vmem:[%s89 + $0x5c] sm:$0xf]
    %v5409 = vld [vmem:[%s89 + $0x60] sm:$0xf]
    %v5410 = vld [vmem:[%s89 + $0x64] sm:$0xf]
    %v5411 = vld [vmem:[%s89 + $0x68] sm:$0xf]
    %v5412 = vld [vmem:[%s89 + $0x6c] sm:$0xf]
    %v5413 = vld [vmem:[%s89 + $0x70] sm:$0xf]
    %v5414 = vld [vmem:[%s89 + $0x74] sm:$0xf]
    %v5415 = vld [vmem:[%s89 + $0x78] sm:$0xf]
    %v5416 = vld [vmem:[%s89 + $0x7c] sm:$0xf]
    %v5417 = vld [vmem:[%s89 + $0x80] sm:$0xf]
    %v5418 = vld [vmem:[%s89 + $0x84] sm:$0xf]
    %v5419 = vld [vmem:[%s89 + $0x88] sm:$0xf]
    %v5420 = vld [vmem:[%s89 + $0x8c] sm:$0xf]
    %v5421 = vld [vmem:[%s89 + $0x90] sm:$0xf]
    %v5422 = vld [vmem:[%s89 + $0x94] sm:$0xf]
    %v5423 = vld [vmem:[%s89 + $0x98] sm:$0xf]
    %v5424 = vld [vmem:[%s89 + $0x9c] sm:$0xf]
    %v5425 = vld [vmem:[%s89 + $0xa0] sm:$0x7]
    %v5427 = vshrl.u32 %v5389, 16
    %v5429 = vrot.slane %v5427, 6
    %v5430 = vshll.u32 %v5389, 16
    %v5432 = vrot.slane %v5430, 7
    %v5433 = vor.u32 %v5429, %v5432
    %v5434 = vrot.slane %v5433, 4
    %v5436 = vshrl.u32 %v5390, 16
    %v5438 = vrot.slane %v5436, 6
    %v5439 = vshll.u32 %v5390, 16
    %v5441 = vrot.slane %v5439, 7
    %v5442 = vor.u32 %v5438, %v5441
    %v5443 = vsel %vm4876, %v5434, %v5442
    %v5444 = vrot.slane %v5442, 4
    %v5446 = vshrl.u32 %v5391, 16
    %v5448 = vrot.slane %v5446, 6
    %v5449 = vshll.u32 %v5391, 16
    %v5451 = vrot.slane %v5449, 7
    %v5452 = vor.u32 %v5448, %v5451
    %v5453 = vsel %vm4876, %v5444, %v5452
    %v5454 = vrot.slane %v5452, 4
    %v5456 = vshrl.u32 %v5392, 16
    %v5458 = vrot.slane %v5456, 6
    %v5459 = vshll.u32 %v5392, 16
    %v5461 = vrot.slane %v5459, 7
    %v5462 = vor.u32 %v5458, %v5461
    %v5463 = vsel %vm4876, %v5454, %v5462
    %v5464 = vrot.slane %v5462, 4
    %v5466 = vshrl.u32 %v5393, 16
    %v5468 = vrot.slane %v5466, 6
    %v5469 = vshll.u32 %v5393, 16
    %v5471 = vrot.slane %v5469, 7
    %v5472 = vor.u32 %v5468, %v5471
    %v5473 = vsel %vm4876, %v5464, %v5472
    %v5474 = vrot.slane %v5472, 4
    %v5476 = vshrl.u32 %v5394, 16
    %v5478 = vrot.slane %v5476, 6
    %v5479 = vshll.u32 %v5394, 16
    %v5481 = vrot.slane %v5479, 7
    %v5482 = vor.u32 %v5478, %v5481
    %v5483 = vsel %vm4876, %v5474, %v5482
    %v5484 = vrot.slane %v5482, 4
    %v5486 = vshrl.u32 %v5395, 16
    %v5488 = vrot.slane %v5486, 6
    %v5489 = vshll.u32 %v5395, 16
    %v5491 = vrot.slane %v5489, 7
    %v5492 = vor.u32 %v5488, %v5491
    %v5493 = vsel %vm4876, %v5484, %v5492
    %v5494 = vrot.slane %v5492, 4
    %v5496 = vshrl.u32 %v5396, 16
    %v5498 = vrot.slane %v5496, 6
    %v5499 = vshll.u32 %v5396, 16
    %v5501 = vrot.slane %v5499, 7
    %v5502 = vor.u32 %v5498, %v5501
    %v5503 = vsel %vm4876, %v5494, %v5502
    %v5504 = vrot.slane %v5502, 4
    %v5506 = vshrl.u32 %v5397, 16
    %v5508 = vrot.slane %v5506, 6
    %v5509 = vshll.u32 %v5397, 16
    %v5511 = vrot.slane %v5509, 7
    %v5512 = vor.u32 %v5508, %v5511
    %v5513 = vsel %vm4876, %v5504, %v5512
    %v5514 = vrot.slane %v5512, 4
    %v5516 = vshrl.u32 %v5398, 16
    %v5518 = vrot.slane %v5516, 6
    %v5519 = vshll.u32 %v5398, 16
    %v5521 = vrot.slane %v5519, 7
    %v5522 = vor.u32 %v5518, %v5521
    %v5523 = vsel %vm4876, %v5514, %v5522
    %v5524 = vrot.slane %v5522, 4
    %v5526 = vshrl.u32 %v5399, 16
    %v5528 = vrot.slane %v5526, 6
    %v5529 = vshll.u32 %v5399, 16
    %v5531 = vrot.slane %v5529, 7
    %v5532 = vor.u32 %v5528, %v5531
    %v5533 = vsel %vm4876, %v5524, %v5532
    %v5534 = vrot.slane %v5532, 4
    %v5536 = vshrl.u32 %v5400, 16
    %v5538 = vrot.slane %v5536, 6
    %v5539 = vshll.u32 %v5400, 16
    %v5541 = vrot.slane %v5539, 7
    %v5542 = vor.u32 %v5538, %v5541
    %v5543 = vsel %vm4876, %v5534, %v5542
    %v5544 = vrot.slane %v5542, 4
    %v5546 = vshrl.u32 %v5401, 16
    %v5548 = vrot.slane %v5546, 6
    %v5549 = vshll.u32 %v5401, 16
    %v5551 = vrot.slane %v5549, 7
    %v5552 = vor.u32 %v5548, %v5551
    %v5553 = vsel %vm4876, %v5544, %v5552
    %v5554 = vrot.slane %v5552, 4
    %v5556 = vshrl.u32 %v5402, 16
    %v5558 = vrot.slane %v5556, 6
    %v5559 = vshll.u32 %v5402, 16
    %v5561 = vrot.slane %v5559, 7
    %v5562 = vor.u32 %v5558, %v5561
    %v5563 = vsel %vm4876, %v5554, %v5562
    %v5564 = vrot.slane %v5562, 4
    %v5566 = vshrl.u32 %v5403, 16
    %v5568 = vrot.slane %v5566, 6
    %v5569 = vshll.u32 %v5403, 16
    %v5571 = vrot.slane %v5569, 7
    %v5572 = vor.u32 %v5568, %v5571
    %v5573 = vsel %vm4876, %v5564, %v5572
    %v5574 = vrot.slane %v5572, 4
    %v5576 = vshrl.u32 %v5404, 16
    %v5578 = vrot.slane %v5576, 6
    %v5579 = vshll.u32 %v5404, 16
    %v5581 = vrot.slane %v5579, 7
    %v5582 = vor.u32 %v5578, %v5581
    %v5583 = vsel %vm4876, %v5574, %v5582
    %v5584 = vrot.slane %v5582, 4
    %v5586 = vshrl.u32 %v5405, 16
    %v5588 = vrot.slane %v5586, 6
    %v5589 = vshll.u32 %v5405, 16
    %v5591 = vrot.slane %v5589, 7
    %v5592 = vor.u32 %v5588, %v5591
    %v5593 = vsel %vm4876, %v5584, %v5592
    %v5594 = vrot.slane %v5592, 4
    %v5596 = vshrl.u32 %v5406, 16
    %v5598 = vrot.slane %v5596, 6
    %v5599 = vshll.u32 %v5406, 16
    %v5601 = vrot.slane %v5599, 7
    %v5602 = vor.u32 %v5598, %v5601
    %v5603 = vsel %vm4876, %v5594, %v5602
    %v5604 = vrot.slane %v5602, 4
    %v5606 = vshrl.u32 %v5407, 16
    %v5608 = vrot.slane %v5606, 6
    %v5609 = vshll.u32 %v5407, 16
    %v5611 = vrot.slane %v5609, 7
    %v5612 = vor.u32 %v5608, %v5611
    %v5613 = vsel %vm4876, %v5604, %v5612
    %v5614 = vrot.slane %v5612, 4
    %v5616 = vshrl.u32 %v5408, 16
    %v5618 = vrot.slane %v5616, 6
    %v5619 = vshll.u32 %v5408, 16
    %v5621 = vrot.slane %v5619, 7
    %v5622 = vor.u32 %v5618, %v5621
    %v5623 = vsel %vm4876, %v5614, %v5622
    %v5624 = vrot.slane %v5622, 4
    %v5626 = vshrl.u32 %v5409, 16
    %v5628 = vrot.slane %v5626, 6
    %v5629 = vshll.u32 %v5409, 16
    %v5631 = vrot.slane %v5629, 7
    %v5632 = vor.u32 %v5628, %v5631
    %v5633 = vsel %vm4876, %v5624, %v5632
    %v5634 = vrot.slane %v5632, 4
    %v5636 = vshrl.u32 %v5410, 16
    %v5638 = vrot.slane %v5636, 6
    %v5639 = vshll.u32 %v5410, 16
    %v5641 = vrot.slane %v5639, 7
    %v5642 = vor.u32 %v5638, %v5641
    %v5643 = vsel %vm4876, %v5634, %v5642
    %v5644 = vrot.slane %v5642, 4
    %v5646 = vshrl.u32 %v5411, 16
    %v5648 = vrot.slane %v5646, 6
    %v5649 = vshll.u32 %v5411, 16
    %v5651 = vrot.slane %v5649, 7
    %v5652 = vor.u32 %v5648, %v5651
    %v5653 = vsel %vm4876, %v5644, %v5652
    %v5654 = vrot.slane %v5652, 4
    %v5656 = vshrl.u32 %v5412, 16
    %v5658 = vrot.slane %v5656, 6
    %v5659 = vshll.u32 %v5412, 16
    %v5661 = vrot.slane %v5659, 7
    %v5662 = vor.u32 %v5658, %v5661
    %v5663 = vsel %vm4876, %v5654, %v5662
    %v5664 = vrot.slane %v5662, 4
    %v5666 = vshrl.u32 %v5413, 16
    %v5668 = vrot.slane %v5666, 6
    %v5669 = vshll.u32 %v5413, 16
    %v5671 = vrot.slane %v5669, 7
    %v5672 = vor.u32 %v5668, %v5671
    %v5673 = vsel %vm4876, %v5664, %v5672
    %v5674 = vrot.slane %v5672, 4
    %v5676 = vshrl.u32 %v5414, 16
    %v5678 = vrot.slane %v5676, 6
    %v5679 = vshll.u32 %v5414, 16
    %v5681 = vrot.slane %v5679, 7
    %v5682 = vor.u32 %v5678, %v5681
    %v5683 = vsel %vm4876, %v5674, %v5682
    %v5684 = vrot.slane %v5682, 4
    %v5686 = vshrl.u32 %v5415, 16
    %v5688 = vrot.slane %v5686, 6
    %v5689 = vshll.u32 %v5415, 16
    %v5691 = vrot.slane %v5689, 7
    %v5692 = vor.u32 %v5688, %v5691
    %v5693 = vsel %vm4876, %v5684, %v5692
    %v5694 = vrot.slane %v5692, 4
    %v5696 = vshrl.u32 %v5416, 16
    %v5698 = vrot.slane %v5696, 6
    %v5699 = vshll.u32 %v5416, 16
    %v5701 = vrot.slane %v5699, 7
    %v5702 = vor.u32 %v5698, %v5701
    %v5703 = vsel %vm4876, %v5694, %v5702
    %v5704 = vrot.slane %v5702, 4
    %v5706 = vshrl.u32 %v5417, 16
    %v5708 = vrot.slane %v5706, 6
    %v5709 = vshll.u32 %v5417, 16
    %v5711 = vrot.slane %v5709, 7
    %v5712 = vor.u32 %v5708, %v5711
    %v5713 = vsel %vm4876, %v5704, %v5712
    %v5714 = vrot.slane %v5712, 4
    %v5716 = vshrl.u32 %v5418, 16
    %v5718 = vrot.slane %v5716, 6
    %v5719 = vshll.u32 %v5418, 16
    %v5721 = vrot.slane %v5719, 7
    %v5722 = vor.u32 %v5718, %v5721
    %v5723 = vsel %vm4876, %v5714, %v5722
    %v5724 = vrot.slane %v5722, 4
    %v5726 = vshrl.u32 %v5419, 16
    %v5728 = vrot.slane %v5726, 6
    %v5729 = vshll.u32 %v5419, 16
    %v5731 = vrot.slane %v5729, 7
    %v5732 = vor.u32 %v5728, %v5731
    %v5733 = vsel %vm4876, %v5724, %v5732
    %v5734 = vrot.slane %v5732, 4
    %v5736 = vshrl.u32 %v5420, 16
    %v5738 = vrot.slane %v5736, 6
    %v5739 = vshll.u32 %v5420, 16
    %v5741 = vrot.slane %v5739, 7
    %v5742 = vor.u32 %v5738, %v5741
    %v5743 = vsel %vm4876, %v5734, %v5742
    %v5744 = vrot.slane %v5742, 4
    %v5746 = vshrl.u32 %v5421, 16
    %v5748 = vrot.slane %v5746, 6
    %v5749 = vshll.u32 %v5421, 16
    %v5751 = vrot.slane %v5749, 7
    %v5752 = vor.u32 %v5748, %v5751
    %v5753 = vsel %vm4876, %v5744, %v5752
    %v5754 = vrot.slane %v5752, 4
    %v5756 = vshrl.u32 %v5422, 16
    %v5758 = vrot.slane %v5756, 6
    %v5759 = vshll.u32 %v5422, 16
    %v5761 = vrot.slane %v5759, 7
    %v5762 = vor.u32 %v5758, %v5761
    %v5763 = vsel %vm4876, %v5754, %v5762
    %v5764 = vrot.slane %v5762, 4
    %v5766 = vshrl.u32 %v5423, 16
    %v5768 = vrot.slane %v5766, 6
    %v5769 = vshll.u32 %v5423, 16
    %v5771 = vrot.slane %v5769, 7
    %v5772 = vor.u32 %v5768, %v5771
    %v5773 = vsel %vm4876, %v5764, %v5772
    %v5774 = vrot.slane %v5772, 4
    %v5776 = vshrl.u32 %v5424, 16
    %v5778 = vrot.slane %v5776, 6
    %v5779 = vshll.u32 %v5424, 16
    %v5781 = vrot.slane %v5779, 7
    %v5782 = vor.u32 %v5778, %v5781
    %v5783 = vsel %vm4876, %v5774, %v5782
    %v5784 = vrot.slane %v5782, 4
    %v5786 = vshrl.u32 %v5425, 16
    %v5788 = vrot.slane %v5786, 6
    %v5789 = vshll.u32 %v5425, 16
    %v5791 = vrot.slane %v5789, 7
    %v5792 = vor.u32 %v5788, %v5791
    %v5793 = vsel %vm4876, %v5784, %v5792
    %5794 = vrot.lane.b32.xlu0 %v5443, 96
    %v5795 = vpop.permute.xlu0 %5794
    %5796 = vrot.lane.b32.xlu0 %v5453, 96
    %v5797 = vpop.permute.xlu0 %5796
    %5798 = vrot.lane.b32.xlu0 %v5463, 96
    %v5799 = vpop.permute.xlu0 %5798
    %5800 = vrot.lane.b32.xlu0 %v5473, 96
    %v5801 = vpop.permute.xlu0 %5800
    %5802 = vrot.lane.b32.xlu0 %v5483, 96
    %v5803 = vpop.permute.xlu0 %5802
    %5804 = vrot.lane.b32.xlu0 %v5493, 96
    %v5805 = vpop.permute.xlu0 %5804
    %5806 = vrot.lane.b32.xlu0 %v5503, 96
    %v5807 = vpop.permute.xlu0 %5806
    %5808 = vrot.lane.b32.xlu0 %v5513, 96
    %v5809 = vpop.permute.xlu0 %5808
    %5810 = vrot.lane.b32.xlu0 %v5523, 96
    %v5811 = vpop.permute.xlu0 %5810
    %5812 = vrot.lane.b32.xlu0 %v5533, 96
    %v5813 = vpop.permute.xlu0 %5812
    %5814 = vrot.lane.b32.xlu0 %v5543, 96
    %v5815 = vpop.permute.xlu0 %5814
    %5816 = vrot.lane.b32.xlu0 %v5553, 96
    %v5817 = vpop.permute.xlu0 %5816
    %5818 = vrot.lane.b32.xlu0 %v5563, 96
    %v5819 = vpop.permute.xlu0 %5818
    %5820 = vrot.lane.b32.xlu0 %v5573, 96
    %v5821 = vpop.permute.xlu0 %5820
    %5822 = vrot.lane.b32.xlu0 %v5583, 96
    %v5823 = vpop.permute.xlu0 %5822
    %5824 = vrot.lane.b32.xlu0 %v5593, 96
    %v5825 = vpop.permute.xlu0 %5824
    %5826 = vrot.lane.b32.xlu0 %v5603, 96
    %v5827 = vpop.permute.xlu0 %5826
    %5828 = vrot.lane.b32.xlu0 %v5613, 96
    %v5829 = vpop.permute.xlu0 %5828
    %5830 = vrot.lane.b32.xlu0 %v5623, 96
    %v5831 = vpop.permute.xlu0 %5830
    %5832 = vrot.lane.b32.xlu0 %v5633, 96
    %v5833 = vpop.permute.xlu0 %5832
    %5834 = vrot.lane.b32.xlu0 %v5643, 96
    %v5835 = vpop.permute.xlu0 %5834
    %5836 = vrot.lane.b32.xlu0 %v5653, 96
    %v5837 = vpop.permute.xlu0 %5836
    %5838 = vrot.lane.b32.xlu0 %v5663, 96
    %v5839 = vpop.permute.xlu0 %5838
    %5840 = vrot.lane.b32.xlu0 %v5673, 96
    %v5841 = vpop.permute.xlu0 %5840
    %5842 = vrot.lane.b32.xlu0 %v5683, 96
    %v5843 = vpop.permute.xlu0 %5842
    %5844 = vrot.lane.b32.xlu0 %v5693, 96
    %v5845 = vpop.permute.xlu0 %5844
    %5846 = vrot.lane.b32.xlu0 %v5703, 96
    %v5847 = vpop.permute.xlu0 %5846
    %5848 = vrot.lane.b32.xlu0 %v5713, 96
    %v5849 = vpop.permute.xlu0 %5848
    %5850 = vrot.lane.b32.xlu0 %v5723, 96
    %v5851 = vpop.permute.xlu0 %5850
    %5852 = vrot.lane.b32.xlu0 %v5733, 96
    %v5853 = vpop.permute.xlu0 %5852
    %5854 = vrot.lane.b32.xlu0 %v5743, 96
    %v5855 = vpop.permute.xlu0 %5854
    %5856 = vrot.lane.b32.xlu0 %v5753, 96
    %v5857 = vpop.permute.xlu0 %5856
    %5858 = vrot.lane.b32.xlu0 %v5763, 96
    %v5859 = vpop.permute.xlu0 %5858
    %5860 = vrot.lane.b32.xlu0 %v5773, 96
    %v5861 = vpop.permute.xlu0 %5860
    %5862 = vrot.lane.b32.xlu0 %v5783, 96
    %v5863 = vpop.permute.xlu0 %5862
    %5864 = vrot.lane.b32.xlu0 %v5793, 96
    %v5865 = vpop.permute.xlu0 %5864
    %5902 = vst.msk [vmem:[#allocation2 + $0x1b4] sm:$0xf] %vm2205, %v5795
    %5903 = vst.msk [vmem:[#allocation2 + $0x1c0] sm:$0xf] %vm2205, %v5797
    %5904 = vst.msk [vmem:[#allocation2 + $0x1cc] sm:$0xf] %vm2205, %v5799
    %5905 = vst.msk [vmem:[#allocation2 + $0x1d8] sm:$0xf] %vm2205, %v5801
    %5906 = vst.msk [vmem:[#allocation2 + $0x1e4] sm:$0xf] %vm2205, %v5803
    %5907 = vst.msk [vmem:[#allocation2 + $0x1f0] sm:$0xf] %vm2205, %v5805
    %5908 = vst.msk [vmem:[#allocation2 + $0x1fc] sm:$0xf] %vm2205, %v5807
    %5909 = vst.msk [vmem:[#allocation2 + $0x208] sm:$0xf] %vm2205, %v5809
    %5910 = vst.msk [vmem:[#allocation2 + $0x214] sm:$0xf] %vm2205, %v5811
    %5911 = vst.msk [vmem:[#allocation2 + $0x220] sm:$0xf] %vm2205, %v5813
    %5912 = vst.msk [vmem:[#allocation2 + $0x22c] sm:$0xf] %vm2205, %v5815
    %5913 = vst.msk [vmem:[#allocation2 + $0x238] sm:$0xf] %vm2205, %v5817
    %5914 = vst.msk [vmem:[#allocation2 + $0x244] sm:$0xf] %vm2205, %v5819
    %5915 = vst.msk [vmem:[#allocation2 + $0x250] sm:$0xf] %vm2205, %v5821
    %5916 = vst.msk [vmem:[#allocation2 + $0x25c] sm:$0xf] %vm2205, %v5823
    %5917 = vst.msk [vmem:[#allocation2 + $0x268] sm:$0xf] %vm2205, %v5825
    %5918 = vst.msk [vmem:[#allocation2 + $0x274] sm:$0xf] %vm2205, %v5827
    %5919 = vst.msk [vmem:[#allocation2 + $0x280] sm:$0xf] %vm2205, %v5829
    %5920 = vst.msk [vmem:[#allocation2 + $0x28c] sm:$0xf] %vm2205, %v5831
    %5921 = vst.msk [vmem:[#allocation2 + $0x298] sm:$0xf] %vm2205, %v5833
    %5922 = vst.msk [vmem:[#allocation2 + $0x2a4] sm:$0xf] %vm2205, %v5835
    %5923 = vst.msk [vmem:[#allocation2 + $0x2b0] sm:$0xf] %vm2205, %v5837
    %5924 = vst.msk [vmem:[#allocation2 + $0x2bc] sm:$0xf] %vm2205, %v5839
    %5925 = vst.msk [vmem:[#allocation2 + $0x2c8] sm:$0xf] %vm2205, %v5841
    %5926 = vst.msk [vmem:[#allocation2 + $0x2d4] sm:$0xf] %vm2205, %v5843
    %5927 = vst.msk [vmem:[#allocation2 + $0x2e0] sm:$0xf] %vm2205, %v5845
    %5928 = vst.msk [vmem:[#allocation2 + $0x2ec] sm:$0xf] %vm2205, %v5847
    %5929 = vst.msk [vmem:[#allocation2 + $0x2f8] sm:$0xf] %vm2205, %v5849
    %5930 = vst.msk [vmem:[#allocation2 + $0x304] sm:$0xf] %vm2205, %v5851
    %5931 = vst.msk [vmem:[#allocation2 + $0x310] sm:$0xf] %vm2205, %v5853
    %5932 = vst.msk [vmem:[#allocation2 + $0x31c] sm:$0xf] %vm2205, %v5855
    %5933 = vst.msk [vmem:[#allocation2 + $0x328] sm:$0xf] %vm2205, %v5857
    %5934 = vst.msk [vmem:[#allocation2 + $0x334] sm:$0xf] %vm2205, %v5859
    %5935 = vst.msk [vmem:[#allocation2 + $0x340] sm:$0xf] %vm2205, %v5861
    %5936 = vst.msk [vmem:[#allocation2 + $0x34c] sm:$0xf] %vm2205, %v5863
    %5937 = vst.msk [vmem:[#allocation2 + $0x358] sm:$0xf] %vm2205, %v5865
    %v5938 = vld [vmem:[%s0 + $0x10] sm:$0x8]
    %v5939 = vld [vmem:[%s0 + $0x14] sm:$0xf]
    %v5940 = vld [vmem:[%s0 + $0x18] sm:$0xf]
    %v5941 = vld [vmem:[%s0 + $0x1c] sm:$0xf]
    %v5942 = vld [vmem:[%s0 + $0x20] sm:$0xf]
    %v5943 = vld [vmem:[%s0 + $0x24] sm:$0xf]
    %v5944 = vld [vmem:[%s0 + $0x28] sm:$0xf]
    %v5945 = vld [vmem:[%s0 + $0x2c] sm:$0xf]
    %v5946 = vld [vmem:[%s0 + $0x30] sm:$0xf]
    %v5947 = vld [vmem:[%s0 + $0x34] sm:$0xf]
    %v5948 = vld [vmem:[%s0 + $0x38] sm:$0xf]
    %v5949 = vld [vmem:[%s0 + $0x3c] sm:$0xf]
    %v5950 = vld [vmem:[%s0 + $0x40] sm:$0xf]
    %v5951 = vld [vmem:[%s0 + $0x44] sm:$0xf]
    %v5952 = vld [vmem:[%s0 + $0x48] sm:$0xf]
    %v5953 = vld [vmem:[%s0 + $0x4c] sm:$0xf]
    %v5954 = vld [vmem:[%s0 + $0x50] sm:$0xf]
    %v5955 = vld [vmem:[%s0 + $0x54] sm:$0xf]
    %v5956 = vld [vmem:[%s0 + $0x58] sm:$0xf]
    %v5957 = vld [vmem:[%s0 + $0x5c] sm:$0xf]
    %v5958 = vld [vmem:[%s0 + $0x60] sm:$0xf]
    %v5959 = vld [vmem:[%s0 + $0x64] sm:$0xf]
    %v5960 = vld [vmem:[%s0 + $0x68] sm:$0xf]
    %v5961 = vld [vmem:[%s0 + $0x6c] sm:$0xf]
    %v5962 = vld [vmem:[%s0 + $0x70] sm:$0xf]
    %v5963 = vld [vmem:[%s0 + $0x74] sm:$0xf]
    %v5964 = vld [vmem:[%s0 + $0x78] sm:$0xf]
    %v5965 = vld [vmem:[%s0 + $0x7c] sm:$0xf]
    %v5966 = vld [vmem:[%s0 + $0x80] sm:$0xf]
    %v5967 = vld [vmem:[%s0 + $0x84] sm:$0xf]
    %v5968 = vld [vmem:[%s0 + $0x88] sm:$0xf]
    %v5969 = vld [vmem:[%s0 + $0x8c] sm:$0xf]
    %v5970 = vld [vmem:[%s0 + $0x90] sm:$0xf]
    %v5971 = vld [vmem:[%s0 + $0x94] sm:$0xf]
    %v5972 = vld [vmem:[%s0 + $0x98] sm:$0xf]
    %v5973 = vld [vmem:[%s0 + $0x9c] sm:$0xf]
    %v5974 = vld [vmem:[%s0 + $0xa0] sm:$0x7]
    %vm6012 = vcmask 1040384
    %vm6013 = vcmask 1044484
    %vm6014 = vmor %vm6012, %vm6013
    %v6015 = vrot.slane %v5938, 7
    %v6016 = vrot.slane %v6015, 4
    %v6017 = vrot.slane %v5939, 7
    %v6018 = vsel %vm6014, %v6016, %v6017
    %v6019 = vrot.slane %v6017, 4
    %v6020 = vrot.slane %v5940, 7
    %v6021 = vsel %vm6014, %v6019, %v6020
    %v6022 = vrot.slane %v6020, 4
    %v6023 = vrot.slane %v5941, 7
    %v6024 = vsel %vm6014, %v6022, %v6023
    %v6025 = vrot.slane %v6023, 4
    %v6026 = vrot.slane %v5942, 7
    %v6027 = vsel %vm6014, %v6025, %v6026
    %v6028 = vrot.slane %v6026, 4
    %v6029 = vrot.slane %v5943, 7
    %v6030 = vsel %vm6014, %v6028, %v6029
    %v6031 = vrot.slane %v6029, 4
    %v6032 = vrot.slane %v5944, 7
    %v6033 = vsel %vm6014, %v6031, %v6032
    %v6034 = vrot.slane %v6032, 4
    %v6035 = vrot.slane %v5945, 7
    %v6036 = vsel %vm6014, %v6034, %v6035
    %v6037 = vrot.slane %v6035, 4
    %v6038 = vrot.slane %v5946, 7
    %v6039 = vsel %vm6014, %v6037, %v6038
    %v6040 = vrot.slane %v6038, 4
    %v6041 = vrot.slane %v5947, 7
    %v6042 = vsel %vm6014, %v6040, %v6041
    %v6043 = vrot.slane %v6041, 4
    %v6044 = vrot.slane %v5948, 7
    %v6045 = vsel %vm6014, %v6043, %v6044
    %v6046 = vrot.slane %v6044, 4
    %v6047 = vrot.slane %v5949, 7
    %v6048 = vsel %vm6014, %v6046, %v6047
    %v6049 = vrot.slane %v6047, 4
    %v6050 = vrot.slane %v5950, 7
    %v6051 = vsel %vm6014, %v6049, %v6050
    %v6052 = vrot.slane %v6050, 4
    %v6053 = vrot.slane %v5951, 7
    %v6054 = vsel %vm6014, %v6052, %v6053
    %v6055 = vrot.slane %v6053, 4
    %v6056 = vrot.slane %v5952, 7
    %v6057 = vsel %vm6014, %v6055, %v6056
    %v6058 = vrot.slane %v6056, 4
    %v6059 = vrot.slane %v5953, 7
    %v6060 = vsel %vm6014, %v6058, %v6059
    %v6061 = vrot.slane %v6059, 4
    %v6062 = vrot.slane %v5954, 7
    %v6063 = vsel %vm6014, %v6061, %v6062
    %v6064 = vrot.slane %v6062, 4
    %v6065 = vrot.slane %v5955, 7
    %v6066 = vsel %vm6014, %v6064, %v6065
    %v6067 = vrot.slane %v6065, 4
    %v6068 = vrot.slane %v5956, 7
    %v6069 = vsel %vm6014, %v6067, %v6068
    %v6070 = vrot.slane %v6068, 4
    %v6071 = vrot.slane %v5957, 7
    %v6072 = vsel %vm6014, %v6070, %v6071
    %v6073 = vrot.slane %v6071, 4
    %v6074 = vrot.slane %v5958, 7
    %v6075 = vsel %vm6014, %v6073, %v6074
    %v6076 = vrot.slane %v6074, 4
    %v6077 = vrot.slane %v5959, 7
    %v6078 = vsel %vm6014, %v6076, %v6077
    %v6079 = vrot.slane %v6077, 4
    %v6080 = vrot.slane %v5960, 7
    %v6081 = vsel %vm6014, %v6079, %v6080
    %v6082 = vrot.slane %v6080, 4
    %v6083 = vrot.slane %v5961, 7
    %v6084 = vsel %vm6014, %v6082, %v6083
    %v6085 = vrot.slane %v6083, 4
    %v6086 = vrot.slane %v5962, 7
    %v6087 = vsel %vm6014, %v6085, %v6086
    %v6088 = vrot.slane %v6086, 4
    %v6089 = vrot.slane %v5963, 7
    %v6090 = vsel %vm6014, %v6088, %v6089
    %v6091 = vrot.slane %v6089, 4
    %v6092 = vrot.slane %v5964, 7
    %v6093 = vsel %vm6014, %v6091, %v6092
    %v6094 = vrot.slane %v6092, 4
    %v6095 = vrot.slane %v5965, 7
    %v6096 = vsel %vm6014, %v6094, %v6095
    %v6097 = vrot.slane %v6095, 4
    %v6098 = vrot.slane %v5966, 7
    %v6099 = vsel %vm6014, %v6097, %v6098
    %v6100 = vrot.slane %v6098, 4
    %v6101 = vrot.slane %v5967, 7
    %v6102 = vsel %vm6014, %v6100, %v6101
    %v6103 = vrot.slane %v6101, 4
    %v6104 = vrot.slane %v5968, 7
    %v6105 = vsel %vm6014, %v6103, %v6104
    %v6106 = vrot.slane %v6104, 4
    %v6107 = vrot.slane %v5969, 7
    %v6108 = vsel %vm6014, %v6106, %v6107
    %v6109 = vrot.slane %v6107, 4
    %v6110 = vrot.slane %v5970, 7
    %v6111 = vsel %vm6014, %v6109, %v6110
    %v6112 = vrot.slane %v6110, 4
    %v6113 = vrot.slane %v5971, 7
    %v6114 = vsel %vm6014, %v6112, %v6113
    %v6115 = vrot.slane %v6113, 4
    %v6116 = vrot.slane %v5972, 7
    %v6117 = vsel %vm6014, %v6115, %v6116
    %v6118 = vrot.slane %v6116, 4
    %v6119 = vrot.slane %v5973, 7
    %v6120 = vsel %vm6014, %v6118, %v6119
    %v6121 = vrot.slane %v6119, 4
    %v6122 = vrot.slane %v5974, 7
    %v6123 = vsel %vm6014, %v6121, %v6122
    %6160 = vst.msk [vmem:[#allocation2 + $0x8] sm:$0xf] %vm52, %v6018
    %6161 = vst.msk [vmem:[#allocation2 + $0x14] sm:$0xf] %vm52, %v6021
    %6162 = vst.msk [vmem:[#allocation2 + $0x20] sm:$0xf] %vm52, %v6024
    %6163 = vst.msk [vmem:[#allocation2 + $0x2c] sm:$0xf] %vm52, %v6027
    %6164 = vst.msk [vmem:[#allocation2 + $0x38] sm:$0xf] %vm52, %v6030
    %6165 = vst.msk [vmem:[#allocation2 + $0x44] sm:$0xf] %vm52, %v6033
    %6166 = vst.msk [vmem:[#allocation2 + $0x50] sm:$0xf] %vm52, %v6036
    %6167 = vst.msk [vmem:[#allocation2 + $0x5c] sm:$0xf] %vm52, %v6039
    %6168 = vst.msk [vmem:[#allocation2 + $0x68] sm:$0xf] %vm52, %v6042
    %6169 = vst.msk [vmem:[#allocation2 + $0x74] sm:$0xf] %vm52, %v6045
    %6170 = vst.msk [vmem:[#allocation2 + $0x80] sm:$0xf] %vm52, %v6048
    %6171 = vst.msk [vmem:[#allocation2 + $0x8c] sm:$0xf] %vm52, %v6051
    %6172 = vst.msk [vmem:[#allocation2 + $0x98] sm:$0xf] %vm52, %v6054
    %6173 = vst.msk [vmem:[#allocation2 + $0xa4] sm:$0xf] %vm52, %v6057
    %6174 = vst.msk [vmem:[#allocation2 + $0xb0] sm:$0xf] %vm52, %v6060
    %6175 = vst.msk [vmem:[#allocation2 + $0xbc] sm:$0xf] %vm52, %v6063
    %6176 = vst.msk [vmem:[#allocation2 + $0xc8] sm:$0xf] %vm52, %v6066
    %6177 = vst.msk [vmem:[#allocation2 + $0xd4] sm:$0xf] %vm52, %v6069
    %6178 = vst.msk [vmem:[#allocation2 + $0xe0] sm:$0xf] %vm52, %v6072
    %6179 = vst.msk [vmem:[#allocation2 + $0xec] sm:$0xf] %vm52, %v6075
    %6180 = vst.msk [vmem:[#allocation2 + $0xf8] sm:$0xf] %vm52, %v6078
    %6181 = vst.msk [vmem:[#allocation2 + $0x104] sm:$0xf] %vm52, %v6081
    %6182 = vst.msk [vmem:[#allocation2 + $0x110] sm:$0xf] %vm52, %v6084
    %6183 = vst.msk [vmem:[#allocation2 + $0x11c] sm:$0xf] %vm52, %v6087
    %6184 = vst.msk [vmem:[#allocation2 + $0x128] sm:$0xf] %vm52, %v6090
    %6185 = vst.msk [vmem:[#allocation2 + $0x134] sm:$0xf] %vm52, %v6093
    %6186 = vst.msk [vmem:[#allocation2 + $0x140] sm:$0xf] %vm52, %v6096
    %6187 = vst.msk [vmem:[#allocation2 + $0x14c] sm:$0xf] %vm52, %v6099
    %6188 = vst.msk [vmem:[#allocation2 + $0x158] sm:$0xf] %vm52, %v6102
    %6189 = vst.msk [vmem:[#allocation2 + $0x164] sm:$0xf] %vm52, %v6105
    %6190 = vst.msk [vmem:[#allocation2 + $0x170] sm:$0xf] %vm52, %v6108
    %6191 = vst.msk [vmem:[#allocation2 + $0x17c] sm:$0xf] %vm52, %v6111
    %6192 = vst.msk [vmem:[#allocation2 + $0x188] sm:$0xf] %vm52, %v6114
    %6193 = vst.msk [vmem:[#allocation2 + $0x194] sm:$0xf] %vm52, %v6117
    %6194 = vst.msk [vmem:[#allocation2 + $0x1a0] sm:$0xf] %vm52, %v6120
    %6195 = vst.msk [vmem:[#allocation2 + $0x1ac] sm:$0xf] %vm52, %v6123
    %v6196 = vld [vmem:[%s89 + $0x10] sm:$0x8]
    %v6197 = vld [vmem:[%s89 + $0x14] sm:$0xf]
    %v6198 = vld [vmem:[%s89 + $0x18] sm:$0xf]
    %v6199 = vld [vmem:[%s89 + $0x1c] sm:$0xf]
    %v6200 = vld [vmem:[%s89 + $0x20] sm:$0xf]
    %v6201 = vld [vmem:[%s89 + $0x24] sm:$0xf]
    %v6202 = vld [vmem:[%s89 + $0x28] sm:$0xf]
    %v6203 = vld [vmem:[%s89 + $0x2c] sm:$0xf]
    %v6204 = vld [vmem:[%s89 + $0x30] sm:$0xf]
    %v6205 = vld [vmem:[%s89 + $0x34] sm:$0xf]
    %v6206 = vld [vmem:[%s89 + $0x38] sm:$0xf]
    %v6207 = vld [vmem:[%s89 + $0x3c] sm:$0xf]
    %v6208 = vld [vmem:[%s89 + $0x40] sm:$0xf]
    %v6209 = vld [vmem:[%s89 + $0x44] sm:$0xf]
    %v6210 = vld [vmem:[%s89 + $0x48] sm:$0xf]
    %v6211 = vld [vmem:[%s89 + $0x4c] sm:$0xf]
    %v6212 = vld [vmem:[%s89 + $0x50] sm:$0xf]
    %v6213 = vld [vmem:[%s89 + $0x54] sm:$0xf]
    %v6214 = vld [vmem:[%s89 + $0x58] sm:$0xf]
    %v6215 = vld [vmem:[%s89 + $0x5c] sm:$0xf]
    %v6216 = vld [vmem:[%s89 + $0x60] sm:$0xf]
    %v6217 = vld [vmem:[%s89 + $0x64] sm:$0xf]
    %v6218 = vld [vmem:[%s89 + $0x68] sm:$0xf]
    %v6219 = vld [vmem:[%s89 + $0x6c] sm:$0xf]
    %v6220 = vld [vmem:[%s89 + $0x70] sm:$0xf]
    %v6221 = vld [vmem:[%s89 + $0x74] sm:$0xf]
    %v6222 = vld [vmem:[%s89 + $0x78] sm:$0xf]
    %v6223 = vld [vmem:[%s89 + $0x7c] sm:$0xf]
    %v6224 = vld [vmem:[%s89 + $0x80] sm:$0xf]
    %v6225 = vld [vmem:[%s89 + $0x84] sm:$0xf]
    %v6226 = vld [vmem:[%s89 + $0x88] sm:$0xf]
    %v6227 = vld [vmem:[%s89 + $0x8c] sm:$0xf]
    %v6228 = vld [vmem:[%s89 + $0x90] sm:$0xf]
    %v6229 = vld [vmem:[%s89 + $0x94] sm:$0xf]
    %v6230 = vld [vmem:[%s89 + $0x98] sm:$0xf]
    %v6231 = vld [vmem:[%s89 + $0x9c] sm:$0xf]
    %v6232 = vld [vmem:[%s89 + $0xa0] sm:$0x7]
    %v6270 = vrot.slane %v6196, 7
    %v6271 = vrot.slane %v6270, 4
    %v6272 = vrot.slane %v6197, 7
    %v6273 = vsel %vm6014, %v6271, %v6272
    %v6274 = vrot.slane %v6272, 4
    %v6275 = vrot.slane %v6198, 7
    %v6276 = vsel %vm6014, %v6274, %v6275
    %v6277 = vrot.slane %v6275, 4
    %v6278 = vrot.slane %v6199, 7
    %v6279 = vsel %vm6014, %v6277, %v6278
    %v6280 = vrot.slane %v6278, 4
    %v6281 = vrot.slane %v6200, 7
    %v6282 = vsel %vm6014, %v6280, %v6281
    %v6283 = vrot.slane %v6281, 4
    %v6284 = vrot.slane %v6201, 7
    %v6285 = vsel %vm6014, %v6283, %v6284
    %v6286 = vrot.slane %v6284, 4
    %v6287 = vrot.slane %v6202, 7
    %v6288 = vsel %vm6014, %v6286, %v6287
    %v6289 = vrot.slane %v6287, 4
    %v6290 = vrot.slane %v6203, 7
    %v6291 = vsel %vm6014, %v6289, %v6290
    %v6292 = vrot.slane %v6290, 4
    %v6293 = vrot.slane %v6204, 7
    %v6294 = vsel %vm6014, %v6292, %v6293
    %v6295 = vrot.slane %v6293, 4
    %v6296 = vrot.slane %v6205, 7
    %v6297 = vsel %vm6014, %v6295, %v6296
    %v6298 = vrot.slane %v6296, 4
    %v6299 = vrot.slane %v6206, 7
    %v6300 = vsel %vm6014, %v6298, %v6299
    %v6301 = vrot.slane %v6299, 4
    %v6302 = vrot.slane %v6207, 7
    %v6303 = vsel %vm6014, %v6301, %v6302
    %v6304 = vrot.slane %v6302, 4
    %v6305 = vrot.slane %v6208, 7
    %v6306 = vsel %vm6014, %v6304, %v6305
    %v6307 = vrot.slane %v6305, 4
    %v6308 = vrot.slane %v6209, 7
    %v6309 = vsel %vm6014, %v6307, %v6308
    %v6310 = vrot.slane %v6308, 4
    %v6311 = vrot.slane %v6210, 7
    %v6312 = vsel %vm6014, %v6310, %v6311
    %v6313 = vrot.slane %v6311, 4
    %v6314 = vrot.slane %v6211, 7
    %v6315 = vsel %vm6014, %v6313, %v6314
    %v6316 = vrot.slane %v6314, 4
    %v6317 = vrot.slane %v6212, 7
    %v6318 = vsel %vm6014, %v6316, %v6317
    %v6319 = vrot.slane %v6317, 4
    %v6320 = vrot.slane %v6213, 7
    %v6321 = vsel %vm6014, %v6319, %v6320
    %v6322 = vrot.slane %v6320, 4
    %v6323 = vrot.slane %v6214, 7
    %v6324 = vsel %vm6014, %v6322, %v6323
    %v6325 = vrot.slane %v6323, 4
    %v6326 = vrot.slane %v6215, 7
    %v6327 = vsel %vm6014, %v6325, %v6326
    %v6328 = vrot.slane %v6326, 4
    %v6329 = vrot.slane %v6216, 7
    %v6330 = vsel %vm6014, %v6328, %v6329
    %v6331 = vrot.slane %v6329, 4
    %v6332 = vrot.slane %v6217, 7
    %v6333 = vsel %vm6014, %v6331, %v6332
    %v6334 = vrot.slane %v6332, 4
    %v6335 = vrot.slane %v6218, 7
    %v6336 = vsel %vm6014, %v6334, %v6335
    %v6337 = vrot.slane %v6335, 4
    %v6338 = vrot.slane %v6219, 7
    %v6339 = vsel %vm6014, %v6337, %v6338
    %v6340 = vrot.slane %v6338, 4
    %v6341 = vrot.slane %v6220, 7
    %v6342 = vsel %vm6014, %v6340, %v6341
    %v6343 = vrot.slane %v6341, 4
    %v6344 = vrot.slane %v6221, 7
    %v6345 = vsel %vm6014, %v6343, %v6344
    %v6346 = vrot.slane %v6344, 4
    %v6347 = vrot.slane %v6222, 7
    %v6348 = vsel %vm6014, %v6346, %v6347
    %v6349 = vrot.slane %v6347, 4
    %v6350 = vrot.slane %v6223, 7
    %v6351 = vsel %vm6014, %v6349, %v6350
    %v6352 = vrot.slane %v6350, 4
    %v6353 = vrot.slane %v6224, 7
    %v6354 = vsel %vm6014, %v6352, %v6353
    %v6355 = vrot.slane %v6353, 4
    %v6356 = vrot.slane %v6225, 7
    %v6357 = vsel %vm6014, %v6355, %v6356
    %v6358 = vrot.slane %v6356, 4
    %v6359 = vrot.slane %v6226, 7
    %v6360 = vsel %vm6014, %v6358, %v6359
    %v6361 = vrot.slane %v6359, 4
    %v6362 = vrot.slane %v6227, 7
    %v6363 = vsel %vm6014, %v6361, %v6362
    %v6364 = vrot.slane %v6362, 4
    %v6365 = vrot.slane %v6228, 7
    %v6366 = vsel %vm6014, %v6364, %v6365
    %v6367 = vrot.slane %v6365, 4
    %v6368 = vrot.slane %v6229, 7
    %v6369 = vsel %vm6014, %v6367, %v6368
    %v6370 = vrot.slane %v6368, 4
    %v6371 = vrot.slane %v6230, 7
    %v6372 = vsel %vm6014, %v6370, %v6371
    %v6373 = vrot.slane %v6371, 4
    %v6374 = vrot.slane %v6231, 7
    %v6375 = vsel %vm6014, %v6373, %v6374
    %v6376 = vrot.slane %v6374, 4
    %v6377 = vrot.slane %v6232, 7
    %v6378 = vsel %vm6014, %v6376, %v6377
    %6415 = vst.msk [vmem:[#allocation2 + $0x1b8] sm:$0xf] %vm52, %v6273
    %6416 = vst.msk [vmem:[#allocation2 + $0x1c4] sm:$0xf] %vm52, %v6276
    %6417 = vst.msk [vmem:[#allocation2 + $0x1d0] sm:$0xf] %vm52, %v6279
    %6418 = vst.msk [vmem:[#allocation2 + $0x1dc] sm:$0xf] %vm52, %v6282
    %6419 = vst.msk [vmem:[#allocation2 + $0x1e8] sm:$0xf] %vm52, %v6285
    %6420 = vst.msk [vmem:[#allocation2 + $0x1f4] sm:$0xf] %vm52, %v6288
    %6421 = vst.msk [vmem:[#allocation2 + $0x200] sm:$0xf] %vm52, %v6291
    %6422 = vst.msk [vmem:[#allocation2 + $0x20c] sm:$0xf] %vm52, %v6294
    %6423 = vst.msk [vmem:[#allocation2 + $0x218] sm:$0xf] %vm52, %v6297
    %6424 = vst.msk [vmem:[#allocation2 + $0x224] sm:$0xf] %vm52, %v6300
    %6425 = vst.msk [vmem:[#allocation2 + $0x230] sm:$0xf] %vm52, %v6303
    %6426 = vst.msk [vmem:[#allocation2 + $0x23c] sm:$0xf] %vm52, %v6306
    %6427 = vst.msk [vmem:[#allocation2 + $0x248] sm:$0xf] %vm52, %v6309
    %6428 = vst.msk [vmem:[#allocation2 + $0x254] sm:$0xf] %vm52, %v6312
    %6429 = vst.msk [vmem:[#allocation2 + $0x260] sm:$0xf] %vm52, %v6315
    %6430 = vst.msk [vmem:[#allocation2 + $0x26c] sm:$0xf] %vm52, %v6318
    %6431 = vst.msk [vmem:[#allocation2 + $0x278] sm:$0xf] %vm52, %v6321
    %6432 = vst.msk [vmem:[#allocation2 + $0x284] sm:$0xf] %vm52, %v6324
    %6433 = vst.msk [vmem:[#allocation2 + $0x290] sm:$0xf] %vm52, %v6327
    %6434 = vst.msk [vmem:[#allocation2 + $0x29c] sm:$0xf] %vm52, %v6330
    %6435 = vst.msk [vmem:[#allocation2 + $0x2a8] sm:$0xf] %vm52, %v6333
    %6436 = vst.msk [vmem:[#allocation2 + $0x2b4] sm:$0xf] %vm52, %v6336
    %6437 = vst.msk [vmem:[#allocation2 + $0x2c0] sm:$0xf] %vm52, %v6339
    %6438 = vst.msk [vmem:[#allocation2 + $0x2cc] sm:$0xf] %vm52, %v6342
    %6439 = vst.msk [vmem:[#allocation2 + $0x2d8] sm:$0xf] %vm52, %v6345
    %6440 = vst.msk [vmem:[#allocation2 + $0x2e4] sm:$0xf] %vm52, %v6348
    %6441 = vst.msk [vmem:[#allocation2 + $0x2f0] sm:$0xf] %vm52, %v6351
    %6442 = vst.msk [vmem:[#allocation2 + $0x2fc] sm:$0xf] %vm52, %v6354
    %6443 = vst.msk [vmem:[#allocation2 + $0x308] sm:$0xf] %vm52, %v6357
    %6444 = vst.msk [vmem:[#allocation2 + $0x314] sm:$0xf] %vm52, %v6360
    %6445 = vst.msk [vmem:[#allocation2 + $0x320] sm:$0xf] %vm52, %v6363
    %6446 = vst.msk [vmem:[#allocation2 + $0x32c] sm:$0xf] %vm52, %v6366
    %6447 = vst.msk [vmem:[#allocation2 + $0x338] sm:$0xf] %vm52, %v6369
    %6448 = vst.msk [vmem:[#allocation2 + $0x344] sm:$0xf] %vm52, %v6372
    %6449 = vst.msk [vmem:[#allocation2 + $0x350] sm:$0xf] %vm52, %v6375
    %6450 = vst.msk [vmem:[#allocation2 + $0x35c] sm:$0xf] %vm52, %v6378
    %v6451 = vld [vmem:[#allocation2] sm:$0xff]
    %v6452 = vld [vmem:[#allocation2 + $0x8] sm:$0xf]
    %v6453 = vld [vmem:[#allocation2 + $0xc] sm:$0xff]
    %v6454 = vld [vmem:[#allocation2 + $0x14] sm:$0xf]
    %v6455 = vld [vmem:[#allocation2 + $0x18] sm:$0xff]
    %v6456 = vld [vmem:[#allocation2 + $0x20] sm:$0xf]
    %v6457 = vld [vmem:[#allocation2 + $0x24] sm:$0xff]
    %v6458 = vld [vmem:[#allocation2 + $0x2c] sm:$0xf]
    %v6459 = vld [vmem:[#allocation2 + $0x30] sm:$0xff]
    %v6460 = vld [vmem:[#allocation2 + $0x38] sm:$0xf]
    %v6461 = vld [vmem:[#allocation2 + $0x3c] sm:$0xff]
    %v6462 = vld [vmem:[#allocation2 + $0x44] sm:$0xf]
    %v6463 = vld [vmem:[#allocation2 + $0x48] sm:$0xff]
    %v6464 = vld [vmem:[#allocation2 + $0x50] sm:$0xf]
    %v6465 = vld [vmem:[#allocation2 + $0x54] sm:$0xff]
    %v6466 = vld [vmem:[#allocation2 + $0x5c] sm:$0xf]
    %v6467 = vld [vmem:[#allocation2 + $0x60] sm:$0xff]
    %v6468 = vld [vmem:[#allocation2 + $0x68] sm:$0xf]
    %v6469 = vld [vmem:[#allocation2 + $0x6c] sm:$0xff]
    %v6470 = vld [vmem:[#allocation2 + $0x74] sm:$0xf]
    %v6471 = vld [vmem:[#allocation2 + $0x78] sm:$0xff]
    %v6472 = vld [vmem:[#allocation2 + $0x80] sm:$0xf]
    %v6473 = vld [vmem:[#allocation2 + $0x84] sm:$0xff]
    %v6474 = vld [vmem:[#allocation2 + $0x8c] sm:$0xf]
    %v6475 = vld [vmem:[#allocation2 + $0x90] sm:$0xff]
    %v6476 = vld [vmem:[#allocation2 + $0x98] sm:$0xf]
    %v6477 = vld [vmem:[#allocation2 + $0x9c] sm:$0xff]
    %v6478 = vld [vmem:[#allocation2 + $0xa4] sm:$0xf]
    %v6479 = vld [vmem:[#allocation2 + $0xa8] sm:$0xff]
    %v6480 = vld [vmem:[#allocation2 + $0xb0] sm:$0xf]
    %v6481 = vld [vmem:[#allocation2 + $0xb4] sm:$0xff]
    %v6482 = vld [vmem:[#allocation2 + $0xbc] sm:$0xf]
    %v6483 = vld [vmem:[#allocation2 + $0xc0] sm:$0xff]
    %v6484 = vld [vmem:[#allocation2 + $0xc8] sm:$0xf]
    %v6485 = vld [vmem:[#allocation2 + $0xcc] sm:$0xff]
    %v6486 = vld [vmem:[#allocation2 + $0xd4] sm:$0xf]
    %v6487 = vld [vmem:[#allocation2 + $0xd8] sm:$0xff]
    %v6488 = vld [vmem:[#allocation2 + $0xe0] sm:$0xf]
    %v6489 = vld [vmem:[#allocation2 + $0xe4] sm:$0xff]
    %v6490 = vld [vmem:[#allocation2 + $0xec] sm:$0xf]
    %v6491 = vld [vmem:[#allocation2 + $0xf0] sm:$0xff]
    %v6492 = vld [vmem:[#allocation2 + $0xf8] sm:$0xf]
    %v6493 = vld [vmem:[#allocation2 + $0xfc] sm:$0xff]
    %v6494 = vld [vmem:[#allocation2 + $0x104] sm:$0xf]
    %v6495 = vld [vmem:[#allocation2 + $0x108] sm:$0xff]
    %v6496 = vld [vmem:[#allocation2 + $0x110] sm:$0xf]
    %v6497 = vld [vmem:[#allocation2 + $0x114] sm:$0xff]
    %v6498 = vld [vmem:[#allocation2 + $0x11c] sm:$0xf]
    %v6499 = vld [vmem:[#allocation2 + $0x120] sm:$0xff]
    %v6500 = vld [vmem:[#allocation2 + $0x128] sm:$0xf]
    %v6501 = vld [vmem:[#allocation2 + $0x12c] sm:$0xff]
    %v6502 = vld [vmem:[#allocation2 + $0x134] sm:$0xf]
    %v6503 = vld [vmem:[#allocation2 + $0x138] sm:$0xff]
    %v6504 = vld [vmem:[#allocation2 + $0x140] sm:$0xf]
    %v6505 = vld [vmem:[#allocation2 + $0x144] sm:$0xff]
    %v6506 = vld [vmem:[#allocation2 + $0x14c] sm:$0xf]
    %v6507 = vld [vmem:[#allocation2 + $0x150] sm:$0xff]
    %v6508 = vld [vmem:[#allocation2 + $0x158] sm:$0xf]
    %v6509 = vld [vmem:[#allocation2 + $0x15c] sm:$0xff]
    %v6510 = vld [vmem:[#allocation2 + $0x164] sm:$0xf]
    %v6511 = vld [vmem:[#allocation2 + $0x168] sm:$0xff]
    %v6512 = vld [vmem:[#allocation2 + $0x170] sm:$0xf]
    %v6513 = vld [vmem:[#allocation2 + $0x174] sm:$0xff]
    %v6514 = vld [vmem:[#allocation2 + $0x17c] sm:$0xf]
    %v6515 = vld [vmem:[#allocation2 + $0x180] sm:$0xff]
    %v6516 = vld [vmem:[#allocation2 + $0x188] sm:$0xf]
    %v6517 = vld [vmem:[#allocation2 + $0x18c] sm:$0xff]
    %v6518 = vld [vmem:[#allocation2 + $0x194] sm:$0xf]
    %v6519 = vld [vmem:[#allocation2 + $0x198] sm:$0xff]
    %v6520 = vld [vmem:[#allocation2 + $0x1a0] sm:$0xf]
    %v6521 = vld [vmem:[#allocation2 + $0x1a4] sm:$0xff]
    %v6522 = vld [vmem:[#allocation2 + $0x1ac] sm:$0xf]
    %v6523 = vld [vmem:[#allocation2 + $0x1b0] sm:$0xff]
    %v6524 = vld [vmem:[#allocation2 + $0x1b8] sm:$0xf]
    %v6525 = vld [vmem:[#allocation2 + $0x1bc] sm:$0xff]
    %v6526 = vld [vmem:[#allocation2 + $0x1c4] sm:$0xf]
    %v6527 = vld [vmem:[#allocation2 + $0x1c8] sm:$0xff]
    %v6528 = vld [vmem:[#allocation2 + $0x1d0] sm:$0xf]
    %v6529 = vld [vmem:[#allocation2 + $0x1d4] sm:$0xff]
    %v6530 = vld [vmem:[#allocation2 + $0x1dc] sm:$0xf]
    %v6531 = vld [vmem:[#allocation2 + $0x1e0] sm:$0xff]
    %v6532 = vld [vmem:[#allocation2 + $0x1e8] sm:$0xf]
    %v6533 = vld [vmem:[#allocation2 + $0x1ec] sm:$0xff]
    %v6534 = vld [vmem:[#allocation2 + $0x1f4] sm:$0xf]
    %v6535 = vld [vmem:[#allocation2 + $0x1f8] sm:$0xff]
    %v6536 = vld [vmem:[#allocation2 + $0x200] sm:$0xf]
    %v6537 = vld [vmem:[#allocation2 + $0x204] sm:$0xff]
    %v6538 = vld [vmem:[#allocation2 + $0x20c] sm:$0xf]
    %v6539 = vld [vmem:[#allocation2 + $0x210] sm:$0xff]
    %v6540 = vld [vmem:[#allocation2 + $0x218] sm:$0xf]
    %v6541 = vld [vmem:[#allocation2 + $0x21c] sm:$0xff]
    %v6542 = vld [vmem:[#allocation2 + $0x224] sm:$0xf]
    %v6543 = vld [vmem:[#allocation2 + $0x228] sm:$0xff]
    %v6544 = vld [vmem:[#allocation2 + $0x230] sm:$0xf]
    %v6545 = vld [vmem:[#allocation2 + $0x234] sm:$0xff]
    %v6546 = vld [vmem:[#allocation2 + $0x23c] sm:$0xf]
    %v6547 = vld [vmem:[#allocation2 + $0x240] sm:$0xff]
    %v6548 = vld [vmem:[#allocation2 + $0x248] sm:$0xf]
    %v6549 = vld [vmem:[#allocation2 + $0x24c] sm:$0xff]
    %v6550 = vld [vmem:[#allocation2 + $0x254] sm:$0xf]
    %v6551 = vld [vmem:[#allocation2 + $0x258] sm:$0xff]
    %v6552 = vld [vmem:[#allocation2 + $0x260] sm:$0xf]
    %v6553 = vld [vmem:[#allocation2 + $0x264] sm:$0xff]
    %v6554 = vld [vmem:[#allocation2 + $0x26c] sm:$0xf]
    %v6555 = vld [vmem:[#allocation2 + $0x270] sm:$0xff]
    %v6556 = vld [vmem:[#allocation2 + $0x278] sm:$0xf]
    %v6557 = vld [vmem:[#allocation2 + $0x27c] sm:$0xff]
    %v6558 = vld [vmem:[#allocation2 + $0x284] sm:$0xf]
    %v6559 = vld [vmem:[#allocation2 + $0x288] sm:$0xff]
    %v6560 = vld [vmem:[#allocation2 + $0x290] sm:$0xf]
    %v6561 = vld [vmem:[#allocation2 + $0x294] sm:$0xff]
    %v6562 = vld [vmem:[#allocation2 + $0x29c] sm:$0xf]
    %v6563 = vld [vmem:[#allocation2 + $0x2a0] sm:$0xff]
    %v6564 = vld [vmem:[#allocation2 + $0x2a8] sm:$0xf]
    %v6565 = vld [vmem:[#allocation2 + $0x2ac] sm:$0xff]
    %v6566 = vld [vmem:[#allocation2 + $0x2b4] sm:$0xf]
    %v6567 = vld [vmem:[#allocation2 + $0x2b8] sm:$0xff]
    %v6568 = vld [vmem:[#allocation2 + $0x2c0] sm:$0xf]
    %v6569 = vld [vmem:[#allocation2 + $0x2c4] sm:$0xff]
    %v6570 = vld [vmem:[#allocation2 + $0x2cc] sm:$0xf]
    %v6571 = vld [vmem:[#allocation2 + $0x2d0] sm:$0xff]
    %v6572 = vld [vmem:[#allocation2 + $0x2d8] sm:$0xf]
    %v6573 = vld [vmem:[#allocation2 + $0x2dc] sm:$0xff]
    %v6574 = vld [vmem:[#allocation2 + $0x2e4] sm:$0xf]
    %v6575 = vld [vmem:[#allocation2 + $0x2e8] sm:$0xff]
    %v6576 = vld [vmem:[#allocation2 + $0x2f0] sm:$0xf]
    %v6577 = vld [vmem:[#allocation2 + $0x2f4] sm:$0xff]
    %v6578 = vld [vmem:[#allocation2 + $0x2fc] sm:$0xf]
    %v6579 = vld [vmem:[#allocation2 + $0x300] sm:$0xff]
    %v6580 = vld [vmem:[#allocation2 + $0x308] sm:$0xf]
    %v6581 = vld [vmem:[#allocation2 + $0x30c] sm:$0xff]
    %v6582 = vld [vmem:[#allocation2 + $0x314] sm:$0xf]
    %v6583 = vld [vmem:[#allocation2 + $0x318] sm:$0xff]
    %v6584 = vld [vmem:[#allocation2 + $0x320] sm:$0xf]
    %v6585 = vld [vmem:[#allocation2 + $0x324] sm:$0xff]
    %v6586 = vld [vmem:[#allocation2 + $0x32c] sm:$0xf]
    %v6587 = vld [vmem:[#allocation2 + $0x330] sm:$0xff]
    %v6588 = vld [vmem:[#allocation2 + $0x338] sm:$0xf]
    %v6589 = vld [vmem:[#allocation2 + $0x33c] sm:$0xff]
    %v6590 = vld [vmem:[#allocation2 + $0x344] sm:$0xf]
    %v6591 = vld [vmem:[#allocation2 + $0x348] sm:$0xff]
    %v6592 = vld [vmem:[#allocation2 + $0x350] sm:$0xf]
    %v6593 = vld [vmem:[#allocation2 + $0x354] sm:$0xff]
    %v6594 = vld [vmem:[#allocation2 + $0x35c] sm:$0xf]
    %v6595 = vld [vmem:[%s1] sm:$0xf]
    %v6596 = vld [vmem:[%s1 + $0x4] sm:$0xf]
    %v6597 = vld [vmem:[%s1 + $0x8] sm:$0xf]
    %v6598 = vld [vmem:[%s1 + $0xc] sm:$0xf]
    %v6599 = vld [vmem:[%s1 + $0x10] sm:$0xf]
    %v6600 = vld [vmem:[%s1 + $0x14] sm:$0xf]
    %v6601 = vld [vmem:[%s1 + $0x18] sm:$0xf]
    %v6602 = vld [vmem:[%s1 + $0x1c] sm:$0xf]
    %v6603 = vld [vmem:[%s1 + $0x20] sm:$0xf]
    %v6604 = vld [vmem:[%s1 + $0x24] sm:$0xf]
    %v6605 = vld [vmem:[%s1 + $0x28] sm:$0xf]
    %v6606 = vld [vmem:[%s1 + $0x2c] sm:$0xf]
    %v6607 = vld [vmem:[%s1 + $0x30] sm:$0xf]
    %v6608 = vld [vmem:[%s1 + $0x34] sm:$0xf]
    %v6609 = vld [vmem:[%s1 + $0x38] sm:$0xf]
    %v6610 = vld [vmem:[%s1 + $0x3c] sm:$0xf]
    %v6611 = vld [vmem:[%s1 + $0x40] sm:$0xf]
    %v6612 = vld [vmem:[%s1 + $0x44] sm:$0xf]
    %v6613 = vld [vmem:[%s1 + $0x48] sm:$0xf]
    %v6614 = vld [vmem:[%s1 + $0x4c] sm:$0xf]
    %v6615 = vld [vmem:[%s1 + $0x50] sm:$0xf]
    %v6616 = vld [vmem:[%s1 + $0x54] sm:$0xf]
    %v6617 = vld [vmem:[%s1 + $0x58] sm:$0xf]
    %v6618 = vld [vmem:[%s1 + $0x5c] sm:$0xf]
    %v6619 = vld [vmem:[%s1 + $0x60] sm:$0xf]
    %v6620 = vld [vmem:[%s1 + $0x64] sm:$0xf]
    %v6621 = vld [vmem:[%s1 + $0x68] sm:$0xf]
    %v6622 = vld [vmem:[%s1 + $0x6c] sm:$0xf]
    %v6623 = vld [vmem:[%s1 + $0x70] sm:$0xf]
    %v6624 = vld [vmem:[%s1 + $0x74] sm:$0xf]
    %v6625 = vld [vmem:[%s1 + $0x78] sm:$0xf]
    %v6626 = vld [vmem:[%s1 + $0x7c] sm:$0xf]
    %v6627 = vld [vmem:[%s1 + $0x80] sm:$0xf]
    %v6628 = vld [vmem:[%s1 + $0x84] sm:$0xf]
    %v6629 = vld [vmem:[%s1 + $0x88] sm:$0xf]
    %v6630 = vld [vmem:[%s1 + $0x8c] sm:$0xf]
    %v6631 = vld [vmem:[%s2] sm:$0x1]
    %v6633 = vlaneseq
    %v6634 = vshrl.u32 %v6633, 7
    %v6635 = vsub.s32 0, %v6634
    %v6636 = vrot.slane %v6631, %v6635
    %v6782 = vunpack.c.l.b16 %v6451
    %v6783 = vunpack.c.h.b16 %v6451
    %v6784 = vunpack.c.l.b16 %v6452
    %v6785 = vunpack.c.l.b16 %v6453
    %v6786 = vunpack.c.h.b16 %v6453
    %v6787 = vunpack.c.l.b16 %v6454
    %v6788 = vunpack.c.l.b16 %v6455
    %v6789 = vunpack.c.h.b16 %v6455
    %v6790 = vunpack.c.l.b16 %v6456
    %v6791 = vunpack.c.l.b16 %v6457
    %v6792 = vunpack.c.h.b16 %v6457
    %v6793 = vunpack.c.l.b16 %v6458
    %v6794 = vunpack.c.l.b16 %v6459
    %v6795 = vunpack.c.h.b16 %v6459
    %v6796 = vunpack.c.l.b16 %v6460
    %v6797 = vunpack.c.l.b16 %v6461
    %v6798 = vunpack.c.h.b16 %v6461
    %v6799 = vunpack.c.l.b16 %v6462
    %v6800 = vunpack.c.l.b16 %v6463
    %v6801 = vunpack.c.h.b16 %v6463
    %v6802 = vunpack.c.l.b16 %v6464
    %v6803 = vunpack.c.l.b16 %v6465
    %v6804 = vunpack.c.h.b16 %v6465
    %v6805 = vunpack.c.l.b16 %v6466
    %v6806 = vunpack.c.l.b16 %v6467
    %v6807 = vunpack.c.h.b16 %v6467
    %v6808 = vunpack.c.l.b16 %v6468
    %v6809 = vunpack.c.l.b16 %v6469
    %v6810 = vunpack.c.h.b16 %v6469
    %v6811 = vunpack.c.l.b16 %v6470
    %v6812 = vunpack.c.l.b16 %v6471
    %v6813 = vunpack.c.h.b16 %v6471
    %v6814 = vunpack.c.l.b16 %v6472
    %v6815 = vunpack.c.l.b16 %v6473
    %v6816 = vunpack.c.h.b16 %v6473
    %v6817 = vunpack.c.l.b16 %v6474
    %v6818 = vunpack.c.l.b16 %v6475
    %v6819 = vunpack.c.h.b16 %v6475
    %v6820 = vunpack.c.l.b16 %v6476
    %v6821 = vunpack.c.l.b16 %v6477
    %v6822 = vunpack.c.h.b16 %v6477
    %v6823 = vunpack.c.l.b16 %v6478
    %v6824 = vunpack.c.l.b16 %v6479
    %v6825 = vunpack.c.h.b16 %v6479
    %v6826 = vunpack.c.l.b16 %v6480
    %v6827 = vunpack.c.l.b16 %v6481
    %v6828 = vunpack.c.h.b16 %v6481
    %v6829 = vunpack.c.l.b16 %v6482
    %v6830 = vunpack.c.l.b16 %v6483
    %v6831 = vunpack.c.h.b16 %v6483
    %v6832 = vunpack.c.l.b16 %v6484
    %v6833 = vunpack.c.l.b16 %v6485
    %v6834 = vunpack.c.h.b16 %v6485
    %v6835 = vunpack.c.l.b16 %v6486
    %v6836 = vunpack.c.l.b16 %v6487
    %v6837 = vunpack.c.h.b16 %v6487
    %v6838 = vunpack.c.l.b16 %v6488
    %v6839 = vunpack.c.l.b16 %v6489
    %v6840 = vunpack.c.h.b16 %v6489
    %v6841 = vunpack.c.l.b16 %v6490
    %v6842 = vunpack.c.l.b16 %v6491
    %v6843 = vunpack.c.h.b16 %v6491
    %v6844 = vunpack.c.l.b16 %v6492
    %v6845 = vunpack.c.l.b16 %v6493
    %v6846 = vunpack.c.h.b16 %v6493
    %v6847 = vunpack.c.l.b16 %v6494
    %v6848 = vunpack.c.l.b16 %v6495
    %v6849 = vunpack.c.h.b16 %v6495
    %v6850 = vunpack.c.l.b16 %v6496
    %v6851 = vunpack.c.l.b16 %v6497
    %v6852 = vunpack.c.h.b16 %v6497
    %v6853 = vunpack.c.l.b16 %v6498
    %v6854 = vunpack.c.l.b16 %v6499
    %v6855 = vunpack.c.h.b16 %v6499
    %v6856 = vunpack.c.l.b16 %v6500
    %v6857 = vunpack.c.l.b16 %v6501
    %v6858 = vunpack.c.h.b16 %v6501
    %v6859 = vunpack.c.l.b16 %v6502
    %v6860 = vunpack.c.l.b16 %v6503
    %v6861 = vunpack.c.h.b16 %v6503
    %v6862 = vunpack.c.l.b16 %v6504
    %v6863 = vunpack.c.l.b16 %v6505
    %v6864 = vunpack.c.h.b16 %v6505
    %v6865 = vunpack.c.l.b16 %v6506
    %v6866 = vunpack.c.l.b16 %v6507
    %v6867 = vunpack.c.h.b16 %v6507
    %v6868 = vunpack.c.l.b16 %v6508
    %v6869 = vunpack.c.l.b16 %v6509
    %v6870 = vunpack.c.h.b16 %v6509
    %v6871 = vunpack.c.l.b16 %v6510
    %v6872 = vunpack.c.l.b16 %v6511
    %v6873 = vunpack.c.h.b16 %v6511
    %v6874 = vunpack.c.l.b16 %v6512
    %v6875 = vunpack.c.l.b16 %v6513
    %v6876 = vunpack.c.h.b16 %v6513
    %v6877 = vunpack.c.l.b16 %v6514
    %v6878 = vunpack.c.l.b16 %v6515
    %v6879 = vunpack.c.h.b16 %v6515
    %v6880 = vunpack.c.l.b16 %v6516
    %v6881 = vunpack.c.l.b16 %v6517
    %v6882 = vunpack.c.h.b16 %v6517
    %v6883 = vunpack.c.l.b16 %v6518
    %v6884 = vunpack.c.l.b16 %v6519
    %v6885 = vunpack.c.h.b16 %v6519
    %v6886 = vunpack.c.l.b16 %v6520
    %v6887 = vunpack.c.l.b16 %v6521
    %v6888 = vunpack.c.h.b16 %v6521
    %v6889 = vunpack.c.l.b16 %v6522
    %v6890 = vunpack.c.l.b16 %v6523
    %v6891 = vunpack.c.h.b16 %v6523
    %v6892 = vunpack.c.l.b16 %v6524
    %v6893 = vunpack.c.l.b16 %v6525
    %v6894 = vunpack.c.h.b16 %v6525
    %v6895 = vunpack.c.l.b16 %v6526
    %v6896 = vunpack.c.l.b16 %v6527
    %v6897 = vunpack.c.h.b16 %v6527
    %v6898 = vunpack.c.l.b16 %v6528
    %v6899 = vunpack.c.l.b16 %v6529
    %v6900 = vunpack.c.h.b16 %v6529
    %v6901 = vunpack.c.l.b16 %v6530
    %v6902 = vunpack.c.l.b16 %v6531
    %v6903 = vunpack.c.h.b16 %v6531
    %v6904 = vunpack.c.l.b16 %v6532
    %v6905 = vunpack.c.l.b16 %v6533
    %v6906 = vunpack.c.h.b16 %v6533
    %v6907 = vunpack.c.l.b16 %v6534
    %v6908 = vunpack.c.l.b16 %v6535
    %v6909 = vunpack.c.h.b16 %v6535
    %v6910 = vunpack.c.l.b16 %v6536
    %v6911 = vunpack.c.l.b16 %v6537
    %v6912 = vunpack.c.h.b16 %v6537
    %v6913 = vunpack.c.l.b16 %v6538
    %v6914 = vunpack.c.l.b16 %v6539
    %v6915 = vunpack.c.h.b16 %v6539
    %v6916 = vunpack.c.l.b16 %v6540
    %v6917 = vunpack.c.l.b16 %v6541
    %v6918 = vunpack.c.h.b16 %v6541
    %v6919 = vunpack.c.l.b16 %v6542
    %v6920 = vunpack.c.l.b16 %v6543
    %v6921 = vunpack.c.h.b16 %v6543
    %v6922 = vunpack.c.l.b16 %v6544
    %v6923 = vunpack.c.l.b16 %v6545
    %v6924 = vunpack.c.h.b16 %v6545
    %v6925 = vunpack.c.l.b16 %v6546
    %v6926 = vunpack.c.l.b16 %v6547
    %v6927 = vunpack.c.h.b16 %v6547
    %v6928 = vunpack.c.l.b16 %v6548
    %v6929 = vunpack.c.l.b16 %v6549
    %v6930 = vunpack.c.h.b16 %v6549
    %v6931 = vunpack.c.l.b16 %v6550
    %v6932 = vunpack.c.l.b16 %v6551
    %v6933 = vunpack.c.h.b16 %v6551
    %v6934 = vunpack.c.l.b16 %v6552
    %v6935 = vunpack.c.l.b16 %v6553
    %v6936 = vunpack.c.h.b16 %v6553
    %v6937 = vunpack.c.l.b16 %v6554
    %v6938 = vunpack.c.l.b16 %v6555
    %v6939 = vunpack.c.h.b16 %v6555
    %v6940 = vunpack.c.l.b16 %v6556
    %v6941 = vunpack.c.l.b16 %v6557
    %v6942 = vunpack.c.h.b16 %v6557
    %v6943 = vunpack.c.l.b16 %v6558
    %v6944 = vunpack.c.l.b16 %v6559
    %v6945 = vunpack.c.h.b16 %v6559
    %v6946 = vunpack.c.l.b16 %v6560
    %v6947 = vunpack.c.l.b16 %v6561
    %v6948 = vunpack.c.h.b16 %v6561
    %v6949 = vunpack.c.l.b16 %v6562
    %v6950 = vunpack.c.l.b16 %v6563
    %v6951 = vunpack.c.h.b16 %v6563
    %v6952 = vunpack.c.l.b16 %v6564
    %v6953 = vunpack.c.l.b16 %v6565
    %v6954 = vunpack.c.h.b16 %v6565
    %v6955 = vunpack.c.l.b16 %v6566
    %v6956 = vunpack.c.l.b16 %v6567
    %v6957 = vunpack.c.h.b16 %v6567
    %v6958 = vunpack.c.l.b16 %v6568
    %v6959 = vunpack.c.l.b16 %v6569
    %v6960 = vunpack.c.h.b16 %v6569
    %v6961 = vunpack.c.l.b16 %v6570
    %v6962 = vunpack.c.l.b16 %v6571
    %v6963 = vunpack.c.h.b16 %v6571
    %v6964 = vunpack.c.l.b16 %v6572
    %v6965 = vunpack.c.l.b16 %v6573
    %v6966 = vunpack.c.h.b16 %v6573
    %v6967 = vunpack.c.l.b16 %v6574
    %v6968 = vunpack.c.l.b16 %v6575
    %v6969 = vunpack.c.h.b16 %v6575
    %v6970 = vunpack.c.l.b16 %v6576
    %v6971 = vunpack.c.l.b16 %v6577
    %v6972 = vunpack.c.h.b16 %v6577
    %v6973 = vunpack.c.l.b16 %v6578
    %v6974 = vunpack.c.l.b16 %v6579
    %v6975 = vunpack.c.h.b16 %v6579
    %v6976 = vunpack.c.l.b16 %v6580
    %v6977 = vunpack.c.l.b16 %v6581
    %v6978 = vunpack.c.h.b16 %v6581
    %v6979 = vunpack.c.l.b16 %v6582
    %v6980 = vunpack.c.l.b16 %v6583
    %v6981 = vunpack.c.h.b16 %v6583
    %v6982 = vunpack.c.l.b16 %v6584
    %v6983 = vunpack.c.l.b16 %v6585
    %v6984 = vunpack.c.h.b16 %v6585
    %v6985 = vunpack.c.l.b16 %v6586
    %v6986 = vunpack.c.l.b16 %v6587
    %v6987 = vunpack.c.h.b16 %v6587
    %v6988 = vunpack.c.l.b16 %v6588
    %v6989 = vunpack.c.l.b16 %v6589
    %v6990 = vunpack.c.h.b16 %v6589
    %v6991 = vunpack.c.l.b16 %v6590
    %v6992 = vunpack.c.l.b16 %v6591
    %v6993 = vunpack.c.h.b16 %v6591
    %v6994 = vunpack.c.l.b16 %v6592
    %v6995 = vunpack.c.l.b16 %v6593
    %v6996 = vunpack.c.h.b16 %v6593
    %v6997 = vunpack.c.l.b16 %v6594
    %v6998 = vpack.c.b16 %v6785, %v6782
    %v6999 = vpack.c.b16 %v6786, %v6783
    %v7000 = vpack.c.b16 %v6787, %v6784
    %v7001 = vpack.c.b16 %v6791, %v6788
    %v7002 = vpack.c.b16 %v6792, %v6789
    %v7003 = vpack.c.b16 %v6793, %v6790
    %v7004 = vpack.c.b16 %v6797, %v6794
    %v7005 = vpack.c.b16 %v6798, %v6795
    %v7006 = vpack.c.b16 %v6799, %v6796
    %v7007 = vpack.c.b16 %v6803, %v6800
    %v7008 = vpack.c.b16 %v6804, %v6801
    %v7009 = vpack.c.b16 %v6805, %v6802
    %v7010 = vpack.c.b16 %v6809, %v6806
    %v7011 = vpack.c.b16 %v6810, %v6807
    %v7012 = vpack.c.b16 %v6811, %v6808
    %v7013 = vpack.c.b16 %v6815, %v6812
    %v7014 = vpack.c.b16 %v6816, %v6813
    %v7015 = vpack.c.b16 %v6817, %v6814
    %v7016 = vpack.c.b16 %v6821, %v6818
    %v7017 = vpack.c.b16 %v6822, %v6819
    %v7018 = vpack.c.b16 %v6823, %v6820
    %v7019 = vpack.c.b16 %v6827, %v6824
    %v7020 = vpack.c.b16 %v6828, %v6825
    %v7021 = vpack.c.b16 %v6829, %v6826
    %v7022 = vpack.c.b16 %v6833, %v6830
    %v7023 = vpack.c.b16 %v6834, %v6831
    %v7024 = vpack.c.b16 %v6835, %v6832
    %v7025 = vpack.c.b16 %v6839, %v6836
    %v7026 = vpack.c.b16 %v6840, %v6837
    %v7027 = vpack.c.b16 %v6841, %v6838
    %v7028 = vpack.c.b16 %v6845, %v6842
    %v7029 = vpack.c.b16 %v6846, %v6843
    %v7030 = vpack.c.b16 %v6847, %v6844
    %v7031 = vpack.c.b16 %v6851, %v6848
    %v7032 = vpack.c.b16 %v6852, %v6849
    %v7033 = vpack.c.b16 %v6853, %v6850
    %v7034 = vpack.c.b16 %v6857, %v6854
    %v7035 = vpack.c.b16 %v6858, %v6855
    %v7036 = vpack.c.b16 %v6859, %v6856
    %v7037 = vpack.c.b16 %v6863, %v6860
    %v7038 = vpack.c.b16 %v6864, %v6861
    %v7039 = vpack.c.b16 %v6865, %v6862
    %v7040 = vpack.c.b16 %v6869, %v6866
    %v7041 = vpack.c.b16 %v6870, %v6867
    %v7042 = vpack.c.b16 %v6871, %v6868
    %v7043 = vpack.c.b16 %v6875, %v6872
    %v7044 = vpack.c.b16 %v6876, %v6873
    %v7045 = vpack.c.b16 %v6877, %v6874
    %v7046 = vpack.c.b16 %v6881, %v6878
    %v7047 = vpack.c.b16 %v6882, %v6879
    %v7048 = vpack.c.b16 %v6883, %v6880
    %v7049 = vpack.c.b16 %v6887, %v6884
    %v7050 = vpack.c.b16 %v6888, %v6885
    %v7051 = vpack.c.b16 %v6889, %v6886
    %v7052 = vpack.c.b16 %v6893, %v6890
    %v7053 = vpack.c.b16 %v6894, %v6891
    %v7054 = vpack.c.b16 %v6895, %v6892
    %v7055 = vpack.c.b16 %v6899, %v6896
    %v7056 = vpack.c.b16 %v6900, %v6897
    %v7057 = vpack.c.b16 %v6901, %v6898
    %v7058 = vpack.c.b16 %v6905, %v6902
    %v7059 = vpack.c.b16 %v6906, %v6903
    %v7060 = vpack.c.b16 %v6907, %v6904
    %v7061 = vpack.c.b16 %v6911, %v6908
    %v7062 = vpack.c.b16 %v6912, %v6909
    %v7063 = vpack.c.b16 %v6913, %v6910
    %v7064 = vpack.c.b16 %v6917, %v6914
    %v7065 = vpack.c.b16 %v6918, %v6915
    %v7066 = vpack.c.b16 %v6919, %v6916
    %v7067 = vpack.c.b16 %v6923, %v6920
    %v7068 = vpack.c.b16 %v6924, %v6921
    %v7069 = vpack.c.b16 %v6925, %v6922
    %v7070 = vpack.c.b16 %v6929, %v6926
    %v7071 = vpack.c.b16 %v6930, %v6927
    %v7072 = vpack.c.b16 %v6931, %v6928
    %v7073 = vpack.c.b16 %v6935, %v6932
    %v7074 = vpack.c.b16 %v6936, %v6933
    %v7075 = vpack.c.b16 %v6937, %v6934
    %v7076 = vpack.c.b16 %v6941, %v6938
    %v7077 = vpack.c.b16 %v6942, %v6939
    %v7078 = vpack.c.b16 %v6943, %v6940
    %v7079 = vpack.c.b16 %v6947, %v6944
    %v7080 = vpack.c.b16 %v6948, %v6945
    %v7081 = vpack.c.b16 %v6949, %v6946
    %v7082 = vpack.c.b16 %v6953, %v6950
    %v7083 = vpack.c.b16 %v6954, %v6951
    %v7084 = vpack.c.b16 %v6955, %v6952
    %v7085 = vpack.c.b16 %v6959, %v6956
    %v7086 = vpack.c.b16 %v6960, %v6957
    %v7087 = vpack.c.b16 %v6961, %v6958
    %v7088 = vpack.c.b16 %v6965, %v6962
    %v7089 = vpack.c.b16 %v6966, %v6963
    %v7090 = vpack.c.b16 %v6967, %v6964
    %v7091 = vpack.c.b16 %v6971, %v6968
    %v7092 = vpack.c.b16 %v6972, %v6969
    %v7093 = vpack.c.b16 %v6973, %v6970
    %v7094 = vpack.c.b16 %v6977, %v6974
    %v7095 = vpack.c.b16 %v6978, %v6975
    %v7096 = vpack.c.b16 %v6979, %v6976
    %v7097 = vpack.c.b16 %v6983, %v6980
    %v7098 = vpack.c.b16 %v6984, %v6981
    %v7099 = vpack.c.b16 %v6985, %v6982
    %v7100 = vpack.c.b16 %v6989, %v6986
    %v7101 = vpack.c.b16 %v6990, %v6987
    %v7102 = vpack.c.b16 %v6991, %v6988
    %v7103 = vpack.c.b16 %v6995, %v6992
    %v7104 = vpack.c.b16 %v6996, %v6993
    %v7105 = vpack.c.b16 %v6997, %v6994
    %v7214 = vunpack.c.l.b16 %v6595
    %v7215 = vunpack.c.l.b16 %v6596
    %v7216 = vunpack.c.l.b16 %v6597
    %v7217 = vunpack.c.l.b16 %v6598
    %v7218 = vunpack.c.l.b16 %v6599
    %v7219 = vunpack.c.l.b16 %v6600
    %v7220 = vunpack.c.l.b16 %v6601
    %v7221 = vunpack.c.l.b16 %v6602
    %v7222 = vunpack.c.l.b16 %v6603
    %v7223 = vunpack.c.l.b16 %v6604
    %v7224 = vunpack.c.l.b16 %v6605
    %v7225 = vunpack.c.l.b16 %v6606
    %v7226 = vunpack.c.l.b16 %v6607
    %v7227 = vunpack.c.l.b16 %v6608
    %v7228 = vunpack.c.l.b16 %v6609
    %v7229 = vunpack.c.l.b16 %v6610
    %v7230 = vunpack.c.l.b16 %v6611
    %v7231 = vunpack.c.l.b16 %v6612
    %v7232 = vunpack.c.l.b16 %v6613
    %v7233 = vunpack.c.l.b16 %v6614
    %v7234 = vunpack.c.l.b16 %v6615
    %v7235 = vunpack.c.l.b16 %v6616
    %v7236 = vunpack.c.l.b16 %v6617
    %v7237 = vunpack.c.l.b16 %v6618
    %v7238 = vunpack.c.l.b16 %v6619
    %v7239 = vunpack.c.l.b16 %v6620
    %v7240 = vunpack.c.l.b16 %v6621
    %v7241 = vunpack.c.l.b16 %v6622
    %v7242 = vunpack.c.l.b16 %v6623
    %v7243 = vunpack.c.l.b16 %v6624
    %v7244 = vunpack.c.l.b16 %v6625
    %v7245 = vunpack.c.l.b16 %v6626
    %v7246 = vunpack.c.l.b16 %v6627
    %v7247 = vunpack.c.l.b16 %v6628
    %v7248 = vunpack.c.l.b16 %v6629
    %v7249 = vunpack.c.l.b16 %v6630
    %v7250 = vpack.c.b16 %v7215, %v7214
    %v7251 = vpack.c.b16 %v7217, %v7216
    %v7252 = vpack.c.b16 %v7219, %v7218
    %v7253 = vpack.c.b16 %v7221, %v7220
    %v7254 = vpack.c.b16 %v7223, %v7222
    %v7255 = vpack.c.b16 %v7225, %v7224
    %v7256 = vpack.c.b16 %v7227, %v7226
    %v7257 = vpack.c.b16 %v7229, %v7228
    %v7258 = vpack.c.b16 %v7231, %v7230
    %v7259 = vpack.c.b16 %v7233, %v7232
    %v7260 = vpack.c.b16 %v7235, %v7234
    %v7261 = vpack.c.b16 %v7237, %v7236
    %v7262 = vpack.c.b16 %v7239, %v7238
    %v7263 = vpack.c.b16 %v7241, %v7240
    %v7264 = vpack.c.b16 %v7243, %v7242
    %v7265 = vpack.c.b16 %v7245, %v7244
    %v7266 = vpack.c.b16 %v7247, %v7246
    %v7267 = vpack.c.b16 %v7249, %v7248
    %vm7286 = vcmask 261120
    %v7288 = vsel %vm7286, %v7000, 0
    %v7291 = vsel %vm7286, %v7003, 0
    %v7294 = vsel %vm7286, %v7006, 0
    %v7297 = vsel %vm7286, %v7009, 0
    %v7300 = vsel %vm7286, %v7012, 0
    %v7303 = vsel %vm7286, %v7015, 0
    %v7306 = vsel %vm7286, %v7018, 0
    %v7309 = vsel %vm7286, %v7021, 0
    %v7312 = vsel %vm7286, %v7024, 0
    %v7315 = vsel %vm7286, %v7027, 0
    %v7318 = vsel %vm7286, %v7030, 0
    %v7321 = vsel %vm7286, %v7033, 0
    %v7324 = vsel %vm7286, %v7036, 0
    %v7327 = vsel %vm7286, %v7039, 0
    %v7330 = vsel %vm7286, %v7042, 0
    %v7333 = vsel %vm7286, %v7045, 0
    %v7336 = vsel %vm7286, %v7048, 0
    %v7339 = vsel %vm7286, %v7051, 0
    %v7342 = vsel %vm7286, %v7054, 0
    %v7345 = vsel %vm7286, %v7057, 0
    %v7348 = vsel %vm7286, %v7060, 0
    %v7351 = vsel %vm7286, %v7063, 0
    %v7354 = vsel %vm7286, %v7066, 0
    %v7357 = vsel %vm7286, %v7069, 0
    %v7360 = vsel %vm7286, %v7072, 0
    %v7363 = vsel %vm7286, %v7075, 0
    %v7366 = vsel %vm7286, %v7078, 0
    %v7369 = vsel %vm7286, %v7081, 0
    %v7372 = vsel %vm7286, %v7084, 0
    %v7375 = vsel %vm7286, %v7087, 0
    %v7378 = vsel %vm7286, %v7090, 0
    %v7381 = vsel %vm7286, %v7093, 0
    %v7384 = vsel %vm7286, %v7096, 0
    %v7387 = vsel %vm7286, %v7099, 0
    %v7390 = vsel %vm7286, %v7102, 0
    %v7393 = vsel %vm7286, %v7105, 0
    %7395 = vmatprep.subr.bf16.mxu0 0
    %7396 = vmatpush1.bf16.msra.mxu0 %v7257
    %7397 = vmatprep.subr.bf16.mxu0 0
    %7398 = vmatpush1.bf16.msra.mxu0 %v7256
    %7399 = vmatprep.subr.bf16.mxu0 0
    %7400 = vmatpush1.bf16.msra.mxu0 %v7255
    %7401 = vmatprep.subr.bf16.mxu0 0
    %7402 = vmatpush1.bf16.msra.mxu0 %v7254
    %7403 = vmatprep.subr.bf16.mxu0 0
    %7404 = vmatpush1.bf16.msra.mxu0 %v7253
    %7405 = vmatprep.subr.bf16.mxu0 0
    %7406 = vmatpush1.bf16.msra.mxu0 %v7252
    %7407 = vmatprep.subr.bf16.mxu0 0
    %7408 = vmatpush1.bf16.msra.mxu0 %v7251
    %7409 = vmatprep.subr.bf16.mxu0 0
    %7410 = vmatpush1.bf16.msra.mxu0 %v7250
    %7411 = vmatprep.subr.bf16.mxu0 0
    %7412 = vmatpush2.bf16.msra.mxu0 %v7265
    %7413 = vmatprep.subr.bf16.mxu0 0
    %7414 = vmatpush2.bf16.msra.mxu0 %v7264
    %7415 = vmatprep.subr.bf16.mxu0 0
    %7416 = vmatpush2.bf16.msra.mxu0 %v7263
    %7417 = vmatprep.subr.bf16.mxu0 0
    %7418 = vmatpush2.bf16.msra.mxu0 %v7262
    %7419 = vmatprep.subr.bf16.mxu0 0
    %7420 = vmatpush2.bf16.msra.mxu0 %v7261
    %7421 = vmatprep.subr.bf16.mxu0 0
    %7422 = vmatpush2.bf16.msra.mxu0 %v7260
    %7423 = vmatprep.subr.bf16.mxu0 0
    %7424 = vmatpush2.bf16.msra.mxu0 %v7259
    %7425 = vmatprep.subr.bf16.mxu0 0
    %7426 = vmatpush2.bf16.msra.mxu0 %v7258
    %7427 = vmatprep.mubr.bf16.mxu0 %v6999
    %7428 = vmatmul.mubr.bf16.gmra.mxu0 %v6998
    %v7429 = vpop.f32.mrf.mxu0
    %v7430 = vadd.f32 %v6636, %v7429
    %v7431 = vpop.f32.mrf.mxu0
    %v7432 = vpop.f32.mrf.mxu0
    %v7433 = vadd.f32 %v6636, %v7432
    %v7434 = vpop.f32.mrf.mxu0
    %7435 = vmatprep.mubr.bf16.mxu0 %v7002
    %7436 = vmatmul.mubr.bf16.gmra.mxu0 %v7001
    %v7437 = vpop.f32.mrf.mxu0
    %v7438 = vadd.f32 %v6636, %v7437
    %v7439 = vpop.f32.mrf.mxu0
    %v7440 = vpop.f32.mrf.mxu0
    %v7441 = vadd.f32 %v6636, %v7440
    %v7442 = vpop.f32.mrf.mxu0
    %7443 = vmatprep.mubr.bf16.mxu0 %v7005
    %7444 = vmatmul.mubr.bf16.gmra.mxu0 %v7004
    %v7445 = vpop.f32.mrf.mxu0
    %v7446 = vadd.f32 %v6636, %v7445
    %v7447 = vpop.f32.mrf.mxu0
    %v7448 = vpop.f32.mrf.mxu0
    %v7449 = vadd.f32 %v6636, %v7448
    %v7450 = vpop.f32.mrf.mxu0
    %7451 = vmatprep.mubr.bf16.mxu0 %v7008
    %7452 = vmatmul.mubr.bf16.gmra.mxu0 %v7007
    %v7453 = vpop.f32.mrf.mxu0
    %v7454 = vadd.f32 %v6636, %v7453
    %v7455 = vpop.f32.mrf.mxu0
    %v7456 = vpop.f32.mrf.mxu0
    %v7457 = vadd.f32 %v6636, %v7456
    %v7458 = vpop.f32.mrf.mxu0
    %7459 = vmatprep.mubr.bf16.mxu0 %v7011
    %7460 = vmatmul.mubr.bf16.gmra.mxu0 %v7010
    %v7461 = vpop.f32.mrf.mxu0
    %v7462 = vadd.f32 %v6636, %v7461
    %v7463 = vpop.f32.mrf.mxu0
    %v7464 = vpop.f32.mrf.mxu0
    %v7465 = vadd.f32 %v6636, %v7464
    %v7466 = vpop.f32.mrf.mxu0
    %7467 = vmatprep.mubr.bf16.mxu0 %v7014
    %7468 = vmatmul.mubr.bf16.gmra.mxu0 %v7013
    %v7469 = vpop.f32.mrf.mxu0
    %v7470 = vadd.f32 %v6636, %v7469
    %v7471 = vpop.f32.mrf.mxu0
    %v7472 = vpop.f32.mrf.mxu0
    %v7473 = vadd.f32 %v6636, %v7472
    %v7474 = vpop.f32.mrf.mxu0
    %7475 = vmatprep.mubr.bf16.mxu0 %v7017
    %7476 = vmatmul.mubr.bf16.gmra.mxu0 %v7016
    %v7477 = vpop.f32.mrf.mxu0
    %v7478 = vadd.f32 %v6636, %v7477
    %v7479 = vpop.f32.mrf.mxu0
    %v7480 = vpop.f32.mrf.mxu0
    %v7481 = vadd.f32 %v6636, %v7480
    %v7482 = vpop.f32.mrf.mxu0
    %7483 = vmatprep.mubr.bf16.mxu0 %v7020
    %7484 = vmatmul.mubr.bf16.gmra.mxu0 %v7019
    %v7485 = vpop.f32.mrf.mxu0
    %v7486 = vadd.f32 %v6636, %v7485
    %v7487 = vpop.f32.mrf.mxu0
    %v7488 = vpop.f32.mrf.mxu0
    %v7489 = vadd.f32 %v6636, %v7488
    %v7490 = vpop.f32.mrf.mxu0
    %7491 = vmatprep.mubr.bf16.mxu0 %v7023
    %7492 = vmatmul.mubr.bf16.gmra.mxu0 %v7022
    %v7493 = vpop.f32.mrf.mxu0
    %v7494 = vadd.f32 %v6636, %v7493
    %v7495 = vpop.f32.mrf.mxu0
    %v7496 = vpop.f32.mrf.mxu0
    %v7497 = vadd.f32 %v6636, %v7496
    %v7498 = vpop.f32.mrf.mxu0
    %7499 = vmatprep.mubr.bf16.mxu0 %v7026
    %7500 = vmatmul.mubr.bf16.gmra.mxu0 %v7025
    %v7501 = vpop.f32.mrf.mxu0
    %v7502 = vadd.f32 %v6636, %v7501
    %v7503 = vpop.f32.mrf.mxu0
    %v7504 = vpop.f32.mrf.mxu0
    %v7505 = vadd.f32 %v6636, %v7504
    %v7506 = vpop.f32.mrf.mxu0
    %7507 = vmatprep.mubr.bf16.mxu0 %v7029
    %7508 = vmatmul.mubr.bf16.gmra.mxu0 %v7028
    %v7509 = vpop.f32.mrf.mxu0
    %v7510 = vadd.f32 %v6636, %v7509
    %v7511 = vpop.f32.mrf.mxu0
    %v7512 = vpop.f32.mrf.mxu0
    %v7513 = vadd.f32 %v6636, %v7512
    %v7514 = vpop.f32.mrf.mxu0
    %7515 = vmatprep.mubr.bf16.mxu0 %v7032
    %7516 = vmatmul.mubr.bf16.gmra.mxu0 %v7031
    %v7517 = vpop.f32.mrf.mxu0
    %v7518 = vadd.f32 %v6636, %v7517
    %v7519 = vpop.f32.mrf.mxu0
    %v7520 = vpop.f32.mrf.mxu0
    %v7521 = vadd.f32 %v6636, %v7520
    %v7522 = vpop.f32.mrf.mxu0
    %7523 = vmatprep.mubr.bf16.mxu0 %v7035
    %7524 = vmatmul.mubr.bf16.gmra.mxu0 %v7034
    %v7525 = vpop.f32.mrf.mxu0
    %v7526 = vadd.f32 %v6636, %v7525
    %v7527 = vpop.f32.mrf.mxu0
    %v7528 = vpop.f32.mrf.mxu0
    %v7529 = vadd.f32 %v6636, %v7528
    %v7530 = vpop.f32.mrf.mxu0
    %7531 = vmatprep.mubr.bf16.mxu0 %v7038
    %7532 = vmatmul.mubr.bf16.gmra.mxu0 %v7037
    %v7533 = vpop.f32.mrf.mxu0
    %v7534 = vadd.f32 %v6636, %v7533
    %v7535 = vpop.f32.mrf.mxu0
    %v7536 = vpop.f32.mrf.mxu0
    %v7537 = vadd.f32 %v6636, %v7536
    %v7538 = vpop.f32.mrf.mxu0
    %7539 = vmatprep.mubr.bf16.mxu0 %v7041
    %7540 = vmatmul.mubr.bf16.gmra.mxu0 %v7040
    %v7541 = vpop.f32.mrf.mxu0
    %v7542 = vadd.f32 %v6636, %v7541
    %v7543 = vpop.f32.mrf.mxu0
    %v7544 = vpop.f32.mrf.mxu0
    %v7545 = vadd.f32 %v6636, %v7544
    %v7546 = vpop.f32.mrf.mxu0
    %7547 = vmatprep.mubr.bf16.mxu0 %v7044
    %7548 = vmatmul.mubr.bf16.gmra.mxu0 %v7043
    %v7549 = vpop.f32.mrf.mxu0
    %v7550 = vadd.f32 %v6636, %v7549
    %v7551 = vpop.f32.mrf.mxu0
    %v7552 = vpop.f32.mrf.mxu0
    %v7553 = vadd.f32 %v6636, %v7552
    %v7554 = vpop.f32.mrf.mxu0
    %7555 = vmatprep.mubr.bf16.mxu0 %v7047
    %7556 = vmatmul.mubr.bf16.gmra.mxu0 %v7046
    %v7557 = vpop.f32.mrf.mxu0
    %v7558 = vadd.f32 %v6636, %v7557
    %v7559 = vpop.f32.mrf.mxu0
    %v7560 = vpop.f32.mrf.mxu0
    %v7561 = vadd.f32 %v6636, %v7560
    %v7562 = vpop.f32.mrf.mxu0
    %7563 = vmatprep.mubr.bf16.mxu0 %v7050
    %7564 = vmatmul.mubr.bf16.gmra.mxu0 %v7049
    %v7565 = vpop.f32.mrf.mxu0
    %v7566 = vadd.f32 %v6636, %v7565
    %v7567 = vpop.f32.mrf.mxu0
    %v7568 = vpop.f32.mrf.mxu0
    %v7569 = vadd.f32 %v6636, %v7568
    %v7570 = vpop.f32.mrf.mxu0
    %7571 = vmatprep.mubr.bf16.mxu0 %v7053
    %7572 = vmatmul.mubr.bf16.gmra.mxu0 %v7052
    %v7573 = vpop.f32.mrf.mxu0
    %v7574 = vadd.f32 %v6636, %v7573
    %v7575 = vpop.f32.mrf.mxu0
    %v7576 = vpop.f32.mrf.mxu0
    %v7577 = vadd.f32 %v6636, %v7576
    %v7578 = vpop.f32.mrf.mxu0
    %7579 = vmatprep.mubr.bf16.mxu0 %v7056
    %7580 = vmatmul.mubr.bf16.gmra.mxu0 %v7055
    %v7581 = vpop.f32.mrf.mxu0
    %v7582 = vadd.f32 %v6636, %v7581
    %v7583 = vpop.f32.mrf.mxu0
    %v7584 = vpop.f32.mrf.mxu0
    %v7585 = vadd.f32 %v6636, %v7584
    %v7586 = vpop.f32.mrf.mxu0
    %7587 = vmatprep.mubr.bf16.mxu0 %v7059
    %7588 = vmatmul.mubr.bf16.gmra.mxu0 %v7058
    %v7589 = vpop.f32.mrf.mxu0
    %v7590 = vadd.f32 %v6636, %v7589
    %v7591 = vpop.f32.mrf.mxu0
    %v7592 = vpop.f32.mrf.mxu0
    %v7593 = vadd.f32 %v6636, %v7592
    %v7594 = vpop.f32.mrf.mxu0
    %7595 = vmatprep.mubr.bf16.mxu0 %v7062
    %7596 = vmatmul.mubr.bf16.gmra.mxu0 %v7061
    %v7597 = vpop.f32.mrf.mxu0
    %v7598 = vadd.f32 %v6636, %v7597
    %v7599 = vpop.f32.mrf.mxu0
    %v7600 = vpop.f32.mrf.mxu0
    %v7601 = vadd.f32 %v6636, %v7600
    %v7602 = vpop.f32.mrf.mxu0
    %7603 = vmatprep.mubr.bf16.mxu0 %v7065
    %7604 = vmatmul.mubr.bf16.gmra.mxu0 %v7064
    %v7605 = vpop.f32.mrf.mxu0
    %v7606 = vadd.f32 %v6636, %v7605
    %v7607 = vpop.f32.mrf.mxu0
    %v7608 = vpop.f32.mrf.mxu0
    %v7609 = vadd.f32 %v6636, %v7608
    %v7610 = vpop.f32.mrf.mxu0
    %7611 = vmatprep.mubr.bf16.mxu0 %v7068
    %7612 = vmatmul.mubr.bf16.gmra.mxu0 %v7067
    %v7613 = vpop.f32.mrf.mxu0
    %v7614 = vadd.f32 %v6636, %v7613
    %v7615 = vpop.f32.mrf.mxu0
    %v7616 = vpop.f32.mrf.mxu0
    %v7617 = vadd.f32 %v6636, %v7616
    %v7618 = vpop.f32.mrf.mxu0
    %7619 = vmatprep.mubr.bf16.mxu0 %v7071
    %7620 = vmatmul.mubr.bf16.gmra.mxu0 %v7070
    %v7621 = vpop.f32.mrf.mxu0
    %v7622 = vadd.f32 %v6636, %v7621
    %v7623 = vpop.f32.mrf.mxu0
    %v7624 = vpop.f32.mrf.mxu0
    %v7625 = vadd.f32 %v6636, %v7624
    %v7626 = vpop.f32.mrf.mxu0
    %7627 = vmatprep.mubr.bf16.mxu0 %v7074
    %7628 = vmatmul.mubr.bf16.gmra.mxu0 %v7073
    %v7629 = vpop.f32.mrf.mxu0
    %v7630 = vadd.f32 %v6636, %v7629
    %v7631 = vpop.f32.mrf.mxu0
    %v7632 = vpop.f32.mrf.mxu0
    %v7633 = vadd.f32 %v6636, %v7632
    %v7634 = vpop.f32.mrf.mxu0
    %7635 = vmatprep.mubr.bf16.mxu0 %v7077
    %7636 = vmatmul.mubr.bf16.gmra.mxu0 %v7076
    %v7637 = vpop.f32.mrf.mxu0
    %v7638 = vadd.f32 %v6636, %v7637
    %v7639 = vpop.f32.mrf.mxu0
    %v7640 = vpop.f32.mrf.mxu0
    %v7641 = vadd.f32 %v6636, %v7640
    %v7642 = vpop.f32.mrf.mxu0
    %7643 = vmatprep.mubr.bf16.mxu0 %v7080
    %7644 = vmatmul.mubr.bf16.gmra.mxu0 %v7079
    %v7645 = vpop.f32.mrf.mxu0
    %v7646 = vadd.f32 %v6636, %v7645
    %v7647 = vpop.f32.mrf.mxu0
    %v7648 = vpop.f32.mrf.mxu0
    %v7649 = vadd.f32 %v6636, %v7648
    %v7650 = vpop.f32.mrf.mxu0
    %7651 = vmatprep.mubr.bf16.mxu0 %v7083
    %7652 = vmatmul.mubr.bf16.gmra.mxu0 %v7082
    %v7653 = vpop.f32.mrf.mxu0
    %v7654 = vadd.f32 %v6636, %v7653
    %v7655 = vpop.f32.mrf.mxu0
    %v7656 = vpop.f32.mrf.mxu0
    %v7657 = vadd.f32 %v6636, %v7656
    %v7658 = vpop.f32.mrf.mxu0
    %7659 = vmatprep.mubr.bf16.mxu0 %v7086
    %7660 = vmatmul.mubr.bf16.gmra.mxu0 %v7085
    %v7661 = vpop.f32.mrf.mxu0
    %v7662 = vadd.f32 %v6636, %v7661
    %v7663 = vpop.f32.mrf.mxu0
    %v7664 = vpop.f32.mrf.mxu0
    %v7665 = vadd.f32 %v6636, %v7664
    %v7666 = vpop.f32.mrf.mxu0
    %7667 = vmatprep.mubr.bf16.mxu0 %v7089
    %7668 = vmatmul.mubr.bf16.gmra.mxu0 %v7088
    %v7669 = vpop.f32.mrf.mxu0
    %v7670 = vadd.f32 %v6636, %v7669
    %v7671 = vpop.f32.mrf.mxu0
    %v7672 = vpop.f32.mrf.mxu0
    %v7673 = vadd.f32 %v6636, %v7672
    %v7674 = vpop.f32.mrf.mxu0
    %7675 = vmatprep.mubr.bf16.mxu0 %v7092
    %7676 = vmatmul.mubr.bf16.gmra.mxu0 %v7091
    %v7677 = vpop.f32.mrf.mxu0
    %v7678 = vadd.f32 %v6636, %v7677
    %v7679 = vpop.f32.mrf.mxu0
    %v7680 = vpop.f32.mrf.mxu0
    %v7681 = vadd.f32 %v6636, %v7680
    %v7682 = vpop.f32.mrf.mxu0
    %7683 = vmatprep.mubr.bf16.mxu0 %v7095
    %7684 = vmatmul.mubr.bf16.gmra.mxu0 %v7094
    %v7685 = vpop.f32.mrf.mxu0
    %v7686 = vadd.f32 %v6636, %v7685
    %v7687 = vpop.f32.mrf.mxu0
    %v7688 = vpop.f32.mrf.mxu0
    %v7689 = vadd.f32 %v6636, %v7688
    %v7690 = vpop.f32.mrf.mxu0
    %7691 = vmatprep.mubr.bf16.mxu0 %v7098
    %7692 = vmatmul.mubr.bf16.gmra.mxu0 %v7097
    %v7693 = vpop.f32.mrf.mxu0
    %v7694 = vadd.f32 %v6636, %v7693
    %v7695 = vpop.f32.mrf.mxu0
    %v7696 = vpop.f32.mrf.mxu0
    %v7697 = vadd.f32 %v6636, %v7696
    %v7698 = vpop.f32.mrf.mxu0
    %7699 = vmatprep.mubr.bf16.mxu0 %v7101
    %7700 = vmatmul.mubr.bf16.gmra.mxu0 %v7100
    %v7701 = vpop.f32.mrf.mxu0
    %v7702 = vadd.f32 %v6636, %v7701
    %v7703 = vpop.f32.mrf.mxu0
    %v7704 = vpop.f32.mrf.mxu0
    %v7705 = vadd.f32 %v6636, %v7704
    %v7706 = vpop.f32.mrf.mxu0
    %7707 = vmatprep.mubr.bf16.mxu0 %v7104
    %7708 = vmatmul.mubr.bf16.gmra.mxu0 %v7103
    %v7709 = vpop.f32.mrf.mxu0
    %v7710 = vadd.f32 %v6636, %v7709
    %v7711 = vpop.f32.mrf.mxu0
    %v7712 = vpop.f32.mrf.mxu0
    %v7713 = vadd.f32 %v6636, %v7712
    %v7714 = vpop.f32.mrf.mxu0
    %7715 = vdwg.mxu0
    %7716 = vmatprep.subr.bf16.mxu0 0
    %7717 = vmatpush1.bf16.msra.mxu0 0
    %7718 = vmatprep.subr.bf16.mxu0 0
    %7719 = vmatpush1.bf16.msra.mxu0 0
    %7720 = vmatprep.subr.bf16.mxu0 0
    %7721 = vmatpush1.bf16.msra.mxu0 0
    %7722 = vmatprep.subr.bf16.mxu0 0
    %7723 = vmatpush1.bf16.msra.mxu0 0
    %7724 = vmatprep.subr.bf16.mxu0 0
    %7725 = vmatpush1.bf16.msra.mxu0 0
    %7726 = vmatprep.subr.bf16.mxu0 0
    %7727 = vmatpush1.bf16.msra.mxu0 0
    %7728 = vmatprep.subr.bf16.mxu0 0
    %7729 = vmatpush1.bf16.msra.mxu0 %v7267
    %7730 = vmatprep.subr.bf16.mxu0 0
    %7731 = vmatpush1.bf16.msra.mxu0 %v7266
    %7732 = vmatprep.subr.bf16.mxu0 0
    %7733 = vmatpush2.bf16.msra.mxu0 0
    %7734 = vmatprep.subr.bf16.mxu0 0
    %7735 = vmatpush2.bf16.msra.mxu0 0
    %7736 = vmatprep.subr.bf16.mxu0 0
    %7737 = vmatpush2.bf16.msra.mxu0 0
    %7738 = vmatprep.subr.bf16.mxu0 0
    %7739 = vmatpush2.bf16.msra.mxu0 0
    %7740 = vmatprep.subr.bf16.mxu0 0
    %7741 = vmatpush2.bf16.msra.mxu0 0
    %7742 = vmatprep.subr.bf16.mxu0 0
    %7743 = vmatpush2.bf16.msra.mxu0 0
    %7744 = vmatprep.subr.bf16.mxu0 0
    %7745 = vmatpush2.bf16.msra.mxu0 0
    %7746 = vmatprep.subr.bf16.mxu0 0
    %7747 = vmatpush2.bf16.msra.mxu0 0
    %7748 = vmatprep.mubr.bf16.mxu0 0
    %7749 = vmatmul.mubr.bf16.gmra.mxu0 %v7288
    %v7750 = vpop.f32.mrf.mxu0
    %v7751 = vadd.f32 %v7430, %v7750
    %v7752 = vpop.f32.mrf.mxu0
    %v7753 = vpop.f32.mrf.mxu0
    %v7754 = vadd.f32 %v7433, %v7753
    %v7755 = vpop.f32.mrf.mxu0
    %7756 = vmatprep.mubr.bf16.mxu0 0
    %7757 = vmatmul.mubr.bf16.gmra.mxu0 %v7291
    %v7758 = vpop.f32.mrf.mxu0
    %v7759 = vadd.f32 %v7438, %v7758
    %v7760 = vpop.f32.mrf.mxu0
    %v7761 = vpop.f32.mrf.mxu0
    %v7762 = vadd.f32 %v7441, %v7761
    %v7763 = vpop.f32.mrf.mxu0
    %7764 = vmatprep.mubr.bf16.mxu0 0
    %7765 = vmatmul.mubr.bf16.gmra.mxu0 %v7294
    %v7766 = vpop.f32.mrf.mxu0
    %v7767 = vadd.f32 %v7446, %v7766
    %v7768 = vpop.f32.mrf.mxu0
    %v7769 = vpop.f32.mrf.mxu0
    %v7770 = vadd.f32 %v7449, %v7769
    %v7771 = vpop.f32.mrf.mxu0
    %7772 = vmatprep.mubr.bf16.mxu0 0
    %7773 = vmatmul.mubr.bf16.gmra.mxu0 %v7297
    %v7774 = vpop.f32.mrf.mxu0
    %v7775 = vadd.f32 %v7454, %v7774
    %v7776 = vpop.f32.mrf.mxu0
    %v7777 = vpop.f32.mrf.mxu0
    %v7778 = vadd.f32 %v7457, %v7777
    %v7779 = vpop.f32.mrf.mxu0
    %7780 = vmatprep.mubr.bf16.mxu0 0
    %7781 = vmatmul.mubr.bf16.gmra.mxu0 %v7300
    %v7782 = vpop.f32.mrf.mxu0
    %v7783 = vadd.f32 %v7462, %v7782
    %v7784 = vpop.f32.mrf.mxu0
    %v7785 = vpop.f32.mrf.mxu0
    %v7786 = vadd.f32 %v7465, %v7785
    %v7787 = vpop.f32.mrf.mxu0
    %7788 = vmatprep.mubr.bf16.mxu0 0
    %7789 = vmatmul.mubr.bf16.gmra.mxu0 %v7303
    %v7790 = vpop.f32.mrf.mxu0
    %v7791 = vadd.f32 %v7470, %v7790
    %v7792 = vpop.f32.mrf.mxu0
    %v7793 = vpop.f32.mrf.mxu0
    %v7794 = vadd.f32 %v7473, %v7793
    %v7795 = vpop.f32.mrf.mxu0
    %7796 = vmatprep.mubr.bf16.mxu0 0
    %7797 = vmatmul.mubr.bf16.gmra.mxu0 %v7306
    %v7798 = vpop.f32.mrf.mxu0
    %v7799 = vadd.f32 %v7478, %v7798
    %v7800 = vpop.f32.mrf.mxu0
    %v7801 = vpop.f32.mrf.mxu0
    %v7802 = vadd.f32 %v7481, %v7801
    %v7803 = vpop.f32.mrf.mxu0
    %7804 = vmatprep.mubr.bf16.mxu0 0
    %7805 = vmatmul.mubr.bf16.gmra.mxu0 %v7309
    %v7806 = vpop.f32.mrf.mxu0
    %v7807 = vadd.f32 %v7486, %v7806
    %v7808 = vpop.f32.mrf.mxu0
    %v7809 = vpop.f32.mrf.mxu0
    %v7810 = vadd.f32 %v7489, %v7809
    %v7811 = vpop.f32.mrf.mxu0
    %7812 = vmatprep.mubr.bf16.mxu0 0
    %7813 = vmatmul.mubr.bf16.gmra.mxu0 %v7312
    %v7814 = vpop.f32.mrf.mxu0
    %v7815 = vadd.f32 %v7494, %v7814
    %v7816 = vpop.f32.mrf.mxu0
    %v7817 = vpop.f32.mrf.mxu0
    %v7818 = vadd.f32 %v7497, %v7817
    %v7819 = vpop.f32.mrf.mxu0
    %7820 = vmatprep.mubr.bf16.mxu0 0
    %7821 = vmatmul.mubr.bf16.gmra.mxu0 %v7315
    %v7822 = vpop.f32.mrf.mxu0
    %v7823 = vadd.f32 %v7502, %v7822
    %v7824 = vpop.f32.mrf.mxu0
    %v7825 = vpop.f32.mrf.mxu0
    %v7826 = vadd.f32 %v7505, %v7825
    %v7827 = vpop.f32.mrf.mxu0
    %7828 = vmatprep.mubr.bf16.mxu0 0
    %7829 = vmatmul.mubr.bf16.gmra.mxu0 %v7318
    %v7830 = vpop.f32.mrf.mxu0
    %v7831 = vadd.f32 %v7510, %v7830
    %v7832 = vpop.f32.mrf.mxu0
    %v7833 = vpop.f32.mrf.mxu0
    %v7834 = vadd.f32 %v7513, %v7833
    %v7835 = vpop.f32.mrf.mxu0
    %7836 = vmatprep.mubr.bf16.mxu0 0
    %7837 = vmatmul.mubr.bf16.gmra.mxu0 %v7321
    %v7838 = vpop.f32.mrf.mxu0
    %v7839 = vadd.f32 %v7518, %v7838
    %v7840 = vpop.f32.mrf.mxu0
    %v7841 = vpop.f32.mrf.mxu0
    %v7842 = vadd.f32 %v7521, %v7841
    %v7843 = vpop.f32.mrf.mxu0
    %7844 = vmatprep.mubr.bf16.mxu0 0
    %7845 = vmatmul.mubr.bf16.gmra.mxu0 %v7324
    %v7846 = vpop.f32.mrf.mxu0
    %v7847 = vadd.f32 %v7526, %v7846
    %v7848 = vpop.f32.mrf.mxu0
    %v7849 = vpop.f32.mrf.mxu0
    %v7850 = vadd.f32 %v7529, %v7849
    %v7851 = vpop.f32.mrf.mxu0
    %7852 = vmatprep.mubr.bf16.mxu0 0
    %7853 = vmatmul.mubr.bf16.gmra.mxu0 %v7327
    %v7854 = vpop.f32.mrf.mxu0
    %v7855 = vadd.f32 %v7534, %v7854
    %v7856 = vpop.f32.mrf.mxu0
    %v7857 = vpop.f32.mrf.mxu0
    %v7858 = vadd.f32 %v7537, %v7857
    %v7859 = vpop.f32.mrf.mxu0
    %7860 = vmatprep.mubr.bf16.mxu0 0
    %7861 = vmatmul.mubr.bf16.gmra.mxu0 %v7330
    %v7862 = vpop.f32.mrf.mxu0
    %v7863 = vadd.f32 %v7542, %v7862
    %v7864 = vpop.f32.mrf.mxu0
    %v7865 = vpop.f32.mrf.mxu0
    %v7866 = vadd.f32 %v7545, %v7865
    %v7867 = vpop.f32.mrf.mxu0
    %7868 = vmatprep.mubr.bf16.mxu0 0
    %7869 = vmatmul.mubr.bf16.gmra.mxu0 %v7333
    %v7870 = vpop.f32.mrf.mxu0
    %v7871 = vadd.f32 %v7550, %v7870
    %v7872 = vpop.f32.mrf.mxu0
    %v7873 = vpop.f32.mrf.mxu0
    %v7874 = vadd.f32 %v7553, %v7873
    %v7875 = vpop.f32.mrf.mxu0
    %7876 = vmatprep.mubr.bf16.mxu0 0
    %7877 = vmatmul.mubr.bf16.gmra.mxu0 %v7336
    %v7878 = vpop.f32.mrf.mxu0
    %v7879 = vadd.f32 %v7558, %v7878
    %v7880 = vpop.f32.mrf.mxu0
    %v7881 = vpop.f32.mrf.mxu0
    %v7882 = vadd.f32 %v7561, %v7881
    %v7883 = vpop.f32.mrf.mxu0
    %7884 = vmatprep.mubr.bf16.mxu0 0
    %7885 = vmatmul.mubr.bf16.gmra.mxu0 %v7339
    %v7886 = vpop.f32.mrf.mxu0
    %v7887 = vadd.f32 %v7566, %v7886
    %v7888 = vpop.f32.mrf.mxu0
    %v7889 = vpop.f32.mrf.mxu0
    %v7890 = vadd.f32 %v7569, %v7889
    %v7891 = vpop.f32.mrf.mxu0
    %7892 = vmatprep.mubr.bf16.mxu0 0
    %7893 = vmatmul.mubr.bf16.gmra.mxu0 %v7342
    %v7894 = vpop.f32.mrf.mxu0
    %v7895 = vadd.f32 %v7574, %v7894
    %v7896 = vpop.f32.mrf.mxu0
    %v7897 = vpop.f32.mrf.mxu0
    %v7898 = vadd.f32 %v7577, %v7897
    %v7899 = vpop.f32.mrf.mxu0
    %7900 = vmatprep.mubr.bf16.mxu0 0
    %7901 = vmatmul.mubr.bf16.gmra.mxu0 %v7345
    %v7902 = vpop.f32.mrf.mxu0
    %v7903 = vadd.f32 %v7582, %v7902
    %v7904 = vpop.f32.mrf.mxu0
    %v7905 = vpop.f32.mrf.mxu0
    %v7906 = vadd.f32 %v7585, %v7905
    %v7907 = vpop.f32.mrf.mxu0
    %7908 = vmatprep.mubr.bf16.mxu0 0
    %7909 = vmatmul.mubr.bf16.gmra.mxu0 %v7348
    %v7910 = vpop.f32.mrf.mxu0
    %v7911 = vadd.f32 %v7590, %v7910
    %v7912 = vpop.f32.mrf.mxu0
    %v7913 = vpop.f32.mrf.mxu0
    %v7914 = vadd.f32 %v7593, %v7913
    %v7915 = vpop.f32.mrf.mxu0
    %7916 = vmatprep.mubr.bf16.mxu0 0
    %7917 = vmatmul.mubr.bf16.gmra.mxu0 %v7351
    %v7918 = vpop.f32.mrf.mxu0
    %v7919 = vadd.f32 %v7598, %v7918
    %v7920 = vpop.f32.mrf.mxu0
    %v7921 = vpop.f32.mrf.mxu0
    %v7922 = vadd.f32 %v7601, %v7921
    %v7923 = vpop.f32.mrf.mxu0
    %7924 = vmatprep.mubr.bf16.mxu0 0
    %7925 = vmatmul.mubr.bf16.gmra.mxu0 %v7354
    %v7926 = vpop.f32.mrf.mxu0
    %v7927 = vadd.f32 %v7606, %v7926
    %v7928 = vpop.f32.mrf.mxu0
    %v7929 = vpop.f32.mrf.mxu0
    %v7930 = vadd.f32 %v7609, %v7929
    %v7931 = vpop.f32.mrf.mxu0
    %7932 = vmatprep.mubr.bf16.mxu0 0
    %7933 = vmatmul.mubr.bf16.gmra.mxu0 %v7357
    %v7934 = vpop.f32.mrf.mxu0
    %v7935 = vadd.f32 %v7614, %v7934
    %v7936 = vpop.f32.mrf.mxu0
    %v7937 = vpop.f32.mrf.mxu0
    %v7938 = vadd.f32 %v7617, %v7937
    %v7939 = vpop.f32.mrf.mxu0
    %7940 = vmatprep.mubr.bf16.mxu0 0
    %7941 = vmatmul.mubr.bf16.gmra.mxu0 %v7360
    %v7942 = vpop.f32.mrf.mxu0
    %v7943 = vadd.f32 %v7622, %v7942
    %v7944 = vpop.f32.mrf.mxu0
    %v7945 = vpop.f32.mrf.mxu0
    %v7946 = vadd.f32 %v7625, %v7945
    %v7947 = vpop.f32.mrf.mxu0
    %7948 = vmatprep.mubr.bf16.mxu0 0
    %7949 = vmatmul.mubr.bf16.gmra.mxu0 %v7363
    %v7950 = vpop.f32.mrf.mxu0
    %v7951 = vadd.f32 %v7630, %v7950
    %v7952 = vpop.f32.mrf.mxu0
    %v7953 = vpop.f32.mrf.mxu0
    %v7954 = vadd.f32 %v7633, %v7953
    %v7955 = vpop.f32.mrf.mxu0
    %7956 = vmatprep.mubr.bf16.mxu0 0
    %7957 = vmatmul.mubr.bf16.gmra.mxu0 %v7366
    %v7958 = vpop.f32.mrf.mxu0
    %v7959 = vadd.f32 %v7638, %v7958
    %v7960 = vpop.f32.mrf.mxu0
    %v7961 = vpop.f32.mrf.mxu0
    %v7962 = vadd.f32 %v7641, %v7961
    %v7963 = vpop.f32.mrf.mxu0
    %7964 = vmatprep.mubr.bf16.mxu0 0
    %7965 = vmatmul.mubr.bf16.gmra.mxu0 %v7369
    %v7966 = vpop.f32.mrf.mxu0
    %v7967 = vadd.f32 %v7646, %v7966
    %v7968 = vpop.f32.mrf.mxu0
    %v7969 = vpop.f32.mrf.mxu0
    %v7970 = vadd.f32 %v7649, %v7969
    %v7971 = vpop.f32.mrf.mxu0
    %7972 = vmatprep.mubr.bf16.mxu0 0
    %7973 = vmatmul.mubr.bf16.gmra.mxu0 %v7372
    %v7974 = vpop.f32.mrf.mxu0
    %v7975 = vadd.f32 %v7654, %v7974
    %v7976 = vpop.f32.mrf.mxu0
    %v7977 = vpop.f32.mrf.mxu0
    %v7978 = vadd.f32 %v7657, %v7977
    %v7979 = vpop.f32.mrf.mxu0
    %7980 = vmatprep.mubr.bf16.mxu0 0
    %7981 = vmatmul.mubr.bf16.gmra.mxu0 %v7375
    %v7982 = vpop.f32.mrf.mxu0
    %v7983 = vadd.f32 %v7662, %v7982
    %v7984 = vpop.f32.mrf.mxu0
    %v7985 = vpop.f32.mrf.mxu0
    %v7986 = vadd.f32 %v7665, %v7985
    %v7987 = vpop.f32.mrf.mxu0
    %7988 = vmatprep.mubr.bf16.mxu0 0
    %7989 = vmatmul.mubr.bf16.gmra.mxu0 %v7378
    %v7990 = vpop.f32.mrf.mxu0
    %v7991 = vadd.f32 %v7670, %v7990
    %v7992 = vpop.f32.mrf.mxu0
    %v7993 = vpop.f32.mrf.mxu0
    %v7994 = vadd.f32 %v7673, %v7993
    %v7995 = vpop.f32.mrf.mxu0
    %7996 = vmatprep.mubr.bf16.mxu0 0
    %7997 = vmatmul.mubr.bf16.gmra.mxu0 %v7381
    %v7998 = vpop.f32.mrf.mxu0
    %v7999 = vadd.f32 %v7678, %v7998
    %v8000 = vpop.f32.mrf.mxu0
    %v8001 = vpop.f32.mrf.mxu0
    %v8002 = vadd.f32 %v7681, %v8001
    %v8003 = vpop.f32.mrf.mxu0
    %8004 = vmatprep.mubr.bf16.mxu0 0
    %8005 = vmatmul.mubr.bf16.gmra.mxu0 %v7384
    %v8006 = vpop.f32.mrf.mxu0
    %v8007 = vadd.f32 %v7686, %v8006
    %v8008 = vpop.f32.mrf.mxu0
    %v8009 = vpop.f32.mrf.mxu0
    %v8010 = vadd.f32 %v7689, %v8009
    %v8011 = vpop.f32.mrf.mxu0
    %8012 = vmatprep.mubr.bf16.mxu0 0
    %8013 = vmatmul.mubr.bf16.gmra.mxu0 %v7387
    %v8014 = vpop.f32.mrf.mxu0
    %v8015 = vadd.f32 %v7694, %v8014
    %v8016 = vpop.f32.mrf.mxu0
    %v8017 = vpop.f32.mrf.mxu0
    %v8018 = vadd.f32 %v7697, %v8017
    %v8019 = vpop.f32.mrf.mxu0
    %8020 = vmatprep.mubr.bf16.mxu0 0
    %8021 = vmatmul.mubr.bf16.gmra.mxu0 %v7390
    %v8022 = vpop.f32.mrf.mxu0
    %v8023 = vadd.f32 %v7702, %v8022
    %v8024 = vpop.f32.mrf.mxu0
    %v8025 = vpop.f32.mrf.mxu0
    %v8026 = vadd.f32 %v7705, %v8025
    %v8027 = vpop.f32.mrf.mxu0
    %8028 = vmatprep.mubr.bf16.mxu0 0
    %8029 = vmatmul.mubr.bf16.gmra.mxu0 %v7393
    %v8030 = vpop.f32.mrf.mxu0
    %v8031 = vadd.f32 %v7710, %v8030
    %v8032 = vpop.f32.mrf.mxu0
    %v8033 = vpop.f32.mrf.mxu0
    %v8034 = vadd.f32 %v7713, %v8033
    %v8035 = vpop.f32.mrf.mxu0
    %8036 = vdwg.mxu0
    %vm8037 = vcmp.ge.f32.partialorder %v7751, 0.0
    %vm8038 = vcmp.ge.f32.partialorder %v7754, 0.0
    %vm8039 = vcmp.ge.f32.partialorder %v7759, 0.0
    %vm8040 = vcmp.ge.f32.partialorder %v7762, 0.0
    %vm8041 = vcmp.ge.f32.partialorder %v7767, 0.0
    %vm8042 = vcmp.ge.f32.partialorder %v7770, 0.0
    %vm8043 = vcmp.ge.f32.partialorder %v7775, 0.0
    %vm8044 = vcmp.ge.f32.partialorder %v7778, 0.0
    %vm8045 = vcmp.ge.f32.partialorder %v7783, 0.0
    %vm8046 = vcmp.ge.f32.partialorder %v7786, 0.0
    %vm8047 = vcmp.ge.f32.partialorder %v7791, 0.0
    %vm8048 = vcmp.ge.f32.partialorder %v7794, 0.0
    %vm8049 = vcmp.ge.f32.partialorder %v7799, 0.0
    %vm8050 = vcmp.ge.f32.partialorder %v7802, 0.0
    %vm8051 = vcmp.ge.f32.partialorder %v7807, 0.0
    %vm8052 = vcmp.ge.f32.partialorder %v7810, 0.0
    %vm8053 = vcmp.ge.f32.partialorder %v7815, 0.0
    %vm8054 = vcmp.ge.f32.partialorder %v7818, 0.0
    %vm8055 = vcmp.ge.f32.partialorder %v7823, 0.0
    %vm8056 = vcmp.ge.f32.partialorder %v7826, 0.0
    %vm8057 = vcmp.ge.f32.partialorder %v7831, 0.0
    %vm8058 = vcmp.ge.f32.partialorder %v7834, 0.0
    %vm8059 = vcmp.ge.f32.partialorder %v7839, 0.0
    %vm8060 = vcmp.ge.f32.partialorder %v7842, 0.0
    %vm8061 = vcmp.ge.f32.partialorder %v7847, 0.0
    %vm8062 = vcmp.ge.f32.partialorder %v7850, 0.0
    %vm8063 = vcmp.ge.f32.partialorder %v7855, 0.0
    %vm8064 = vcmp.ge.f32.partialorder %v7858, 0.0
    %vm8065 = vcmp.ge.f32.partialorder %v7863, 0.0
    %vm8066 = vcmp.ge.f32.partialorder %v7866, 0.0
    %vm8067 = vcmp.ge.f32.partialorder %v7871, 0.0
    %vm8068 = vcmp.ge.f32.partialorder %v7874, 0.0
    %vm8069 = vcmp.ge.f32.partialorder %v7879, 0.0
    %vm8070 = vcmp.ge.f32.partialorder %v7882, 0.0
    %vm8071 = vcmp.ge.f32.partialorder %v7887, 0.0
    %vm8072 = vcmp.ge.f32.partialorder %v7890, 0.0
    %vm8073 = vcmp.ge.f32.partialorder %v7895, 0.0
    %vm8074 = vcmp.ge.f32.partialorder %v7898, 0.0
    %vm8075 = vcmp.ge.f32.partialorder %v7903, 0.0
    %vm8076 = vcmp.ge.f32.partialorder %v7906, 0.0
    %vm8077 = vcmp.ge.f32.partialorder %v7911, 0.0
    %vm8078 = vcmp.ge.f32.partialorder %v7914, 0.0
    %vm8079 = vcmp.ge.f32.partialorder %v7919, 0.0
    %vm8080 = vcmp.ge.f32.partialorder %v7922, 0.0
    %vm8081 = vcmp.ge.f32.partialorder %v7927, 0.0
    %vm8082 = vcmp.ge.f32.partialorder %v7930, 0.0
    %vm8083 = vcmp.ge.f32.partialorder %v7935, 0.0
    %vm8084 = vcmp.ge.f32.partialorder %v7938, 0.0
    %vm8085 = vcmp.ge.f32.partialorder %v7943, 0.0
    %vm8086 = vcmp.ge.f32.partialorder %v7946, 0.0
    %vm8087 = vcmp.ge.f32.partialorder %v7951, 0.0
    %vm8088 = vcmp.ge.f32.partialorder %v7954, 0.0
    %vm8089 = vcmp.ge.f32.partialorder %v7959, 0.0
    %vm8090 = vcmp.ge.f32.partialorder %v7962, 0.0
    %vm8091 = vcmp.ge.f32.partialorder %v7967, 0.0
    %vm8092 = vcmp.ge.f32.partialorder %v7970, 0.0
    %vm8093 = vcmp.ge.f32.partialorder %v7975, 0.0
    %vm8094 = vcmp.ge.f32.partialorder %v7978, 0.0
    %vm8095 = vcmp.ge.f32.partialorder %v7983, 0.0
    %vm8096 = vcmp.ge.f32.partialorder %v7986, 0.0
    %vm8097 = vcmp.ge.f32.partialorder %v7991, 0.0
    %vm8098 = vcmp.ge.f32.partialorder %v7994, 0.0
    %vm8099 = vcmp.ge.f32.partialorder %v7999, 0.0
    %vm8100 = vcmp.ge.f32.partialorder %v8002, 0.0
    %vm8101 = vcmp.ge.f32.partialorder %v8007, 0.0
    %vm8102 = vcmp.ge.f32.partialorder %v8010, 0.0
    %vm8103 = vcmp.ge.f32.partialorder %v8015, 0.0
    %vm8104 = vcmp.ge.f32.partialorder %v8018, 0.0
    %vm8105 = vcmp.ge.f32.partialorder %v8023, 0.0
    %vm8106 = vcmp.ge.f32.partialorder %v8026, 0.0
    %vm8107 = vcmp.ge.f32.partialorder %v8031, 0.0
    %vm8108 = vcmp.ge.f32.partialorder %v8034, 0.0
    %v8109 = vmul.f32 %v7751, 0.1
    %v8110 = vmul.f32 %v7754, 0.1
    %v8111 = vmul.f32 %v7759, 0.1
    %v8112 = vmul.f32 %v7762, 0.1
    %v8113 = vmul.f32 %v7767, 0.1
    %v8114 = vmul.f32 %v7770, 0.1
    %v8115 = vmul.f32 %v7775, 0.1
    %v8116 = vmul.f32 %v7778, 0.1
    %v8117 = vmul.f32 %v7783, 0.1
    %v8118 = vmul.f32 %v7786, 0.1
    %v8119 = vmul.f32 %v7791, 0.1
    %v8120 = vmul.f32 %v7794, 0.1
    %v8121 = vmul.f32 %v7799, 0.1
    %v8122 = vmul.f32 %v7802, 0.1
    %v8123 = vmul.f32 %v7807, 0.1
    %v8124 = vmul.f32 %v7810, 0.1
    %v8125 = vmul.f32 %v7815, 0.1
    %v8126 = vmul.f32 %v7818, 0.1
    %v8127 = vmul.f32 %v7823, 0.1
    %v8128 = vmul.f32 %v7826, 0.1
    %v8129 = vmul.f32 %v7831, 0.1
    %v8130 = vmul.f32 %v7834, 0.1
    %v8131 = vmul.f32 %v7839, 0.1
    %v8132 = vmul.f32 %v7842, 0.1
    %v8133 = vmul.f32 %v7847, 0.1
    %v8134 = vmul.f32 %v7850, 0.1
    %v8135 = vmul.f32 %v7855, 0.1
    %v8136 = vmul.f32 %v7858, 0.1
    %v8137 = vmul.f32 %v7863, 0.1
    %v8138 = vmul.f32 %v7866, 0.1
    %v8139 = vmul.f32 %v7871, 0.1
    %v8140 = vmul.f32 %v7874, 0.1
    %v8141 = vmul.f32 %v7879, 0.1
    %v8142 = vmul.f32 %v7882, 0.1
    %v8143 = vmul.f32 %v7887, 0.1
    %v8144 = vmul.f32 %v7890, 0.1
    %v8145 = vmul.f32 %v7895, 0.1
    %v8146 = vmul.f32 %v7898, 0.1
    %v8147 = vmul.f32 %v7903, 0.1
    %v8148 = vmul.f32 %v7906, 0.1
    %v8149 = vmul.f32 %v7911, 0.1
    %v8150 = vmul.f32 %v7914, 0.1
    %v8151 = vmul.f32 %v7919, 0.1
    %v8152 = vmul.f32 %v7922, 0.1
    %v8153 = vmul.f32 %v7927, 0.1
    %v8154 = vmul.f32 %v7930, 0.1
    %v8155 = vmul.f32 %v7935, 0.1
    %v8156 = vmul.f32 %v7938, 0.1
    %v8157 = vmul.f32 %v7943, 0.1
    %v8158 = vmul.f32 %v7946, 0.1
    %v8159 = vmul.f32 %v7951, 0.1
    %v8160 = vmul.f32 %v7954, 0.1
    %v8161 = vmul.f32 %v7959, 0.1
    %v8162 = vmul.f32 %v7962, 0.1
    %v8163 = vmul.f32 %v7967, 0.1
    %v8164 = vmul.f32 %v7970, 0.1
    %v8165 = vmul.f32 %v7975, 0.1
    %v8166 = vmul.f32 %v7978, 0.1
    %v8167 = vmul.f32 %v7983, 0.1
    %v8168 = vmul.f32 %v7986, 0.1
    %v8169 = vmul.f32 %v7991, 0.1
    %v8170 = vmul.f32 %v7994, 0.1
    %v8171 = vmul.f32 %v7999, 0.1
    %v8172 = vmul.f32 %v8002, 0.1
    %v8173 = vmul.f32 %v8007, 0.1
    %v8174 = vmul.f32 %v8010, 0.1
    %v8175 = vmul.f32 %v8015, 0.1
    %v8176 = vmul.f32 %v8018, 0.1
    %v8177 = vmul.f32 %v8023, 0.1
    %v8178 = vmul.f32 %v8026, 0.1
    %v8179 = vmul.f32 %v8031, 0.1
    %v8180 = vmul.f32 %v8034, 0.1
    %v8181 = vsel %vm8037, %v7751, %v8109
    %v8182 = vsel %vm8038, %v7754, %v8110
    %v8183 = vsel %vm8039, %v7759, %v8111
    %v8184 = vsel %vm8040, %v7762, %v8112
    %v8185 = vsel %vm8041, %v7767, %v8113
    %v8186 = vsel %vm8042, %v7770, %v8114
    %v8187 = vsel %vm8043, %v7775, %v8115
    %v8188 = vsel %vm8044, %v7778, %v8116
    %v8189 = vsel %vm8045, %v7783, %v8117
    %v8190 = vsel %vm8046, %v7786, %v8118
    %v8191 = vsel %vm8047, %v7791, %v8119
    %v8192 = vsel %vm8048, %v7794, %v8120
    %v8193 = vsel %vm8049, %v7799, %v8121
    %v8194 = vsel %vm8050, %v7802, %v8122
    %v8195 = vsel %vm8051, %v7807, %v8123
    %v8196 = vsel %vm8052, %v7810, %v8124
    %v8197 = vsel %vm8053, %v7815, %v8125
    %v8198 = vsel %vm8054, %v7818, %v8126
    %v8199 = vsel %vm8055, %v7823, %v8127
    %v8200 = vsel %vm8056, %v7826, %v8128
    %v8201 = vsel %vm8057, %v7831, %v8129
    %v8202 = vsel %vm8058, %v7834, %v8130
    %v8203 = vsel %vm8059, %v7839, %v8131
    %v8204 = vsel %vm8060, %v7842, %v8132
    %v8205 = vsel %vm8061, %v7847, %v8133
    %v8206 = vsel %vm8062, %v7850, %v8134
    %v8207 = vsel %vm8063, %v7855, %v8135
    %v8208 = vsel %vm8064, %v7858, %v8136
    %v8209 = vsel %vm8065, %v7863, %v8137
    %v8210 = vsel %vm8066, %v7866, %v8138
    %v8211 = vsel %vm8067, %v7871, %v8139
    %v8212 = vsel %vm8068, %v7874, %v8140
    %v8213 = vsel %vm8069, %v7879, %v8141
    %v8214 = vsel %vm8070, %v7882, %v8142
    %v8215 = vsel %vm8071, %v7887, %v8143
    %v8216 = vsel %vm8072, %v7890, %v8144
    %v8217 = vsel %vm8073, %v7895, %v8145
    %v8218 = vsel %vm8074, %v7898, %v8146
    %v8219 = vsel %vm8075, %v7903, %v8147
    %v8220 = vsel %vm8076, %v7906, %v8148
    %v8221 = vsel %vm8077, %v7911, %v8149
    %v8222 = vsel %vm8078, %v7914, %v8150
    %v8223 = vsel %vm8079, %v7919, %v8151
    %v8224 = vsel %vm8080, %v7922, %v8152
    %v8225 = vsel %vm8081, %v7927, %v8153
    %v8226 = vsel %vm8082, %v7930, %v8154
    %v8227 = vsel %vm8083, %v7935, %v8155
    %v8228 = vsel %vm8084, %v7938, %v8156
    %v8229 = vsel %vm8085, %v7943, %v8157
    %v8230 = vsel %vm8086, %v7946, %v8158
    %v8231 = vsel %vm8087, %v7951, %v8159
    %v8232 = vsel %vm8088, %v7954, %v8160
    %v8233 = vsel %vm8089, %v7959, %v8161
    %v8234 = vsel %vm8090, %v7962, %v8162
    %v8235 = vsel %vm8091, %v7967, %v8163
    %v8236 = vsel %vm8092, %v7970, %v8164
    %v8237 = vsel %vm8093, %v7975, %v8165
    %v8238 = vsel %vm8094, %v7978, %v8166
    %v8239 = vsel %vm8095, %v7983, %v8167
    %v8240 = vsel %vm8096, %v7986, %v8168
    %v8241 = vsel %vm8097, %v7991, %v8169
    %v8242 = vsel %vm8098, %v7994, %v8170
    %v8243 = vsel %vm8099, %v7999, %v8171
    %v8244 = vsel %vm8100, %v8002, %v8172
    %v8245 = vsel %vm8101, %v8007, %v8173
    %v8246 = vsel %vm8102, %v8010, %v8174
    %v8247 = vsel %vm8103, %v8015, %v8175
    %v8248 = vsel %vm8104, %v8018, %v8176
    %v8249 = vsel %vm8105, %v8023, %v8177
    %v8250 = vsel %vm8106, %v8026, %v8178
    %v8251 = vsel %vm8107, %v8031, %v8179
    %v8252 = vsel %vm8108, %v8034, %v8180
    %8253 = vst [vmem:[#allocation3] sm:$0xff] %v8181
    %8254 = vst [vmem:[#allocation3 + $0x8] sm:$0xff] %v8182
    %8255 = vst [vmem:[#allocation3 + $0x10] sm:$0xff] %v8183
    %8256 = vst [vmem:[#allocation3 + $0x18] sm:$0xff] %v8184
    %8257 = vst [vmem:[#allocation3 + $0x20] sm:$0xff] %v8185
    %8258 = vst [vmem:[#allocation3 + $0x28] sm:$0xff] %v8186
    %8259 = vst [vmem:[#allocation3 + $0x30] sm:$0xff] %v8187
    %8260 = vst [vmem:[#allocation3 + $0x38] sm:$0xff] %v8188
    %8261 = vst [vmem:[#allocation3 + $0x40] sm:$0xff] %v8189
    %8262 = vst [vmem:[#allocation3 + $0x48] sm:$0xff] %v8190
    %8263 = vst [vmem:[#allocation3 + $0x50] sm:$0xff] %v8191
    %8264 = vst [vmem:[#allocation3 + $0x58] sm:$0xff] %v8192
    %8265 = vst [vmem:[#allocation3 + $0x60] sm:$0xff] %v8193
    %8266 = vst [vmem:[#allocation3 + $0x68] sm:$0xff] %v8194
    %8267 = vst [vmem:[#allocation3 + $0x70] sm:$0xff] %v8195
    %8268 = vst [vmem:[#allocation3 + $0x78] sm:$0xff] %v8196
    %8269 = vst [vmem:[#allocation3 + $0x80] sm:$0xff] %v8197
    %8270 = vst [vmem:[#allocation3 + $0x88] sm:$0xff] %v8198
    %8271 = vst [vmem:[#allocation3 + $0x90] sm:$0xff] %v8199
    %8272 = vst [vmem:[#allocation3 + $0x98] sm:$0xff] %v8200
    %8273 = vst [vmem:[#allocation3 + $0xa0] sm:$0xff] %v8201
    %8274 = vst [vmem:[#allocation3 + $0xa8] sm:$0xff] %v8202
    %8275 = vst [vmem:[#allocation3 + $0xb0] sm:$0xff] %v8203
    %8276 = vst [vmem:[#allocation3 + $0xb8] sm:$0xff] %v8204
    %8277 = vst [vmem:[#allocation3 + $0xc0] sm:$0xff] %v8205
    %8278 = vst [vmem:[#allocation3 + $0xc8] sm:$0xff] %v8206
    %8279 = vst [vmem:[#allocation3 + $0xd0] sm:$0xff] %v8207
    %8280 = vst [vmem:[#allocation3 + $0xd8] sm:$0xff] %v8208
    %8281 = vst [vmem:[#allocation3 + $0xe0] sm:$0xff] %v8209
    %8282 = vst [vmem:[#allocation3 + $0xe8] sm:$0xff] %v8210
    %8283 = vst [vmem:[#allocation3 + $0xf0] sm:$0xff] %v8211
    %8284 = vst [vmem:[#allocation3 + $0xf8] sm:$0xff] %v8212
    %8285 = vst [vmem:[#allocation3 + $0x100] sm:$0xff] %v8213
    %8286 = vst [vmem:[#allocation3 + $0x108] sm:$0xff] %v8214
    %8287 = vst [vmem:[#allocation3 + $0x110] sm:$0xff] %v8215
    %8288 = vst [vmem:[#allocation3 + $0x118] sm:$0xff] %v8216
    %8289 = vst [vmem:[#allocation3 + $0x120] sm:$0xff] %v8217
    %8290 = vst [vmem:[#allocation3 + $0x128] sm:$0xff] %v8218
    %8291 = vst [vmem:[#allocation3 + $0x130] sm:$0xff] %v8219
    %8292 = vst [vmem:[#allocation3 + $0x138] sm:$0xff] %v8220
    %8293 = vst [vmem:[#allocation3 + $0x140] sm:$0xff] %v8221
    %8294 = vst [vmem:[#allocation3 + $0x148] sm:$0xff] %v8222
    %8295 = vst [vmem:[#allocation3 + $0x150] sm:$0xff] %v8223
    %8296 = vst [vmem:[#allocation3 + $0x158] sm:$0xff] %v8224
    %8297 = vst [vmem:[#allocation3 + $0x160] sm:$0xff] %v8225
    %8298 = vst [vmem:[#allocation3 + $0x168] sm:$0xff] %v8226
    %8299 = vst [vmem:[#allocation3 + $0x170] sm:$0xff] %v8227
    %8300 = vst [vmem:[#allocation3 + $0x178] sm:$0xff] %v8228
    %8301 = vst [vmem:[#allocation3 + $0x180] sm:$0xff] %v8229
    %8302 = vst [vmem:[#allocation3 + $0x188] sm:$0xff] %v8230
    %8303 = vst [vmem:[#allocation3 + $0x190] sm:$0xff] %v8231
    %8304 = vst [vmem:[#allocation3 + $0x198] sm:$0xff] %v8232
    %8305 = vst [vmem:[#allocation3 + $0x1a0] sm:$0xff] %v8233
    %8306 = vst [vmem:[#allocation3 + $0x1a8] sm:$0xff] %v8234
    %8307 = vst [vmem:[#allocation3 + $0x1b0] sm:$0xff] %v8235
    %8308 = vst [vmem:[#allocation3 + $0x1b8] sm:$0xff] %v8236
    %8309 = vst [vmem:[#allocation3 + $0x1c0] sm:$0xff] %v8237
    %8310 = vst [vmem:[#allocation3 + $0x1c8] sm:$0xff] %v8238
    %8311 = vst [vmem:[#allocation3 + $0x1d0] sm:$0xff] %v8239
    %8312 = vst [vmem:[#allocation3 + $0x1d8] sm:$0xff] %v8240
    %8313 = vst [vmem:[#allocation3 + $0x1e0] sm:$0xff] %v8241
    %8314 = vst [vmem:[#allocation3 + $0x1e8] sm:$0xff] %v8242
    %8315 = vst [vmem:[#allocation3 + $0x1f0] sm:$0xff] %v8243
    %8316 = vst [vmem:[#allocation3 + $0x1f8] sm:$0xff] %v8244
    %8317 = vst [vmem:[#allocation3 + $0x200] sm:$0xff] %v8245
    %8318 = vst [vmem:[#allocation3 + $0x208] sm:$0xff] %v8246
    %8319 = vst [vmem:[#allocation3 + $0x210] sm:$0xff] %v8247
    %8320 = vst [vmem:[#allocation3 + $0x218] sm:$0xff] %v8248
    %8321 = vst [vmem:[#allocation3 + $0x220] sm:$0xff] %v8249
    %8322 = vst [vmem:[#allocation3 + $0x228] sm:$0xff] %v8250
    %8323 = vst [vmem:[#allocation3 + $0x230] sm:$0xff] %v8251
    %8324 = vst [vmem:[#allocation3 + $0x238] sm:$0xff] %v8252
    // Predicated region
    $region14: #{tpu_custom_call.1} parent=1 // pred_check
      _
    $region15: #{tpu_custom_call.1} parent=1 // pred_check_branch
      %8326 = sbr.rel (0) target = $region17
    $region16: #{tpu_custom_call.1} parent=1 // pred_region
      %s8328 = ssub.s32 9216, 9216
      %8329 = vsyncadd [#allocation4], %s8328
      %s8330 = sshll.u32 [#allocation3], 4
      %s8331 = int_to_ptr.vmem [resolvable:$true] %s8330
      %8336 = dma.vmem_to_hbm [thread:$0]  %s8331, 9216, %s3, [#allocation4], 128, 128, 8
    $region17: #{tpu_custom_call.1} parent=1 // pred_fallthru
      _
    // Predicated region
    $region18: #{tpu_custom_call.1} parent=1 // pred_check
      _
    $region19: #{tpu_custom_call.1} parent=1 // pred_check_branch
      %8338 = sbr.rel (0) target = $region21
    $region20: #{tpu_custom_call.1} parent=1 // pred_region
      %8339 = dma.done [#allocation4], 9216
    $region21: #{tpu_custom_call.1} parent=1 // pred_fallthru
      _
    %8340 = vsyncpa [#allocation4], 1

</llo_original>
